<compile_context>
chip_gen: v6e
topology: v6e:2x2x1
jax: 0.10.0
libtpu: 0.0.40
codegen_flags: <defaults>
</compile_context>

<pallas_src>
import jax
import jax.numpy as jnp
import numpy as np
from jax.experimental import pallas as pl
from jax.experimental.pallas import tpu as pltpu


_BT = 64  # images per grid step (can be raised to 128 on v5e/v6e)


# ------------------------------ fused kernel -------------------------------

def _fused_net_kernel(x_ref, w1_ref, b1_ref, w2_ref, b2_ref,
                      w3_ref, b3_ref, w4_ref, b4_ref, o_ref):
    bt = o_ref.shape[0]                            # batch tile (static)
    xb = x_ref[0]                                  # (28, BT, 28) = [h, b, w]

    # ---- conv1 (1->10, k5): 5 accumulating banded matmuls over the width ----
    # rows = (oh, b); output lane = (ow % 2)*128 + (ow // 2)*10 + c
    y1 = jnp.dot(xb[0:24].reshape(24 * bt, 28), w1_ref[0],
                 preferred_element_type=jnp.float32)
    for kh in range(1, 5):
        y1 = y1 + jnp.dot(xb[kh:kh + 24].reshape(24 * bt, 28), w1_ref[kh],
                          preferred_element_type=jnp.float32)

    # ---- 2x2 maxpool + bias + relu (leading-dim + lane-parity slab ops) ----
    y1 = y1.reshape(12, 2, bt, 256)
    y1 = jnp.maximum(y1[:, 0], y1[:, 1])             # pool over height
    y1 = jnp.maximum(y1[..., :128], y1[..., 128:])   # pool over width
    a1 = jnp.maximum(y1 + b1_ref[...], 0.0)          # (12, bt, 128), lane = ow'*10+c

    # ---- conv2 (10->20, k5): 5 accumulating banded matmuls; K = (ow', cin) ----
    y2 = jnp.dot(a1[0:8].reshape(8 * bt, 128), w2_ref[0],
                 preferred_element_type=jnp.float32)
    for kh in range(1, 5):
        y2 = y2 + jnp.dot(a1[kh:kh + 8].reshape(8 * bt, 128), w2_ref[kh],
                          preferred_element_type=jnp.float32)

    y2 = y2.reshape(4, 2, bt, 256)
    y2 = jnp.maximum(y2[:, 0], y2[:, 1])
    y2 = jnp.maximum(y2[..., :128], y2[..., 128:])
    a2 = jnp.maximum(y2 + b2_ref[...], 0.0)          # (4, bt, 128), lane = ww*20+cout

    # ---- fc1 (320->50) + relu: 4 accumulating dots (torch flatten order in w3) ----
    acc = jnp.dot(a2[0], w3_ref[0], preferred_element_type=jnp.float32)
    for hh in range(1, 4):
        acc = acc + jnp.dot(a2[hh], w3_ref[hh],
                            preferred_element_type=jnp.float32)
    h = jnp.maximum(acc + b3_ref[...], 0.0)          # (bt, 50)

    # ---- fc2 (50->10) + log_softmax(dim=1) ----
    logits = (jnp.dot(h, w4_ref[...], preferred_element_type=jnp.float32)
              + b4_ref[...])                          # (bt, 10)
    z = logits - jnp.max(logits, axis=-1, keepdims=True)
    o_ref[...] = z - jnp.log(jnp.sum(jnp.exp(z), axis=-1, keepdims=True))


# --------------------------- host-side wrappers -----------------------------

def pack_params(p):
    """One-time re-layout of the PyTorch-style weights into the banded layouts
    the fused kernel consumes (done on the host, outside the forward path)."""
    w1 = np.asarray(p["conv1_w"], np.float32)   # (10, 1, 5, 5)
    b1 = np.asarray(p["conv1_b"], np.float32)   # (10,)
    w2 = np.asarray(p["conv2_w"], np.float32)   # (20, 10, 5, 5)
    b2 = np.asarray(p["conv2_b"], np.float32)   # (20,)
    f1w = np.asarray(p["fc1_w"], np.float32)    # (50, 320)
    f1b = np.asarray(p["fc1_b"], np.float32)    # (50,)
    f2w = np.asarray(p["fc2_w"], np.float32)    # (10, 50)
    f2b = np.asarray(p["fc2_b"], np.float32)    # (10,)

    # conv1: banded (kh, 28, 256).  Column (ow%2)*128 + (ow//2)*10 + c at row
    # iw holds w1[c, 0, kh, iw-ow] for 0 <= iw-ow < 5 (contraction over width).
    W1 = np.zeros((5, 28, 256), np.float32)
    for kh in range(5):
        for ow in range(24):
            lane0 = (ow % 2) * 128 + (ow // 2) * 10
            for kw in range(5):
                W1[kh, ow + kw, lane0:lane0 + 10] = w1[:, 0, kh, kw]
    B1 = np.zeros((1, 128), np.float32)
    for owp in range(12):
        B1[0, owp * 10:owp * 10 + 10] = b1

    # conv2: banded (kh, 128, 256).  Row ow1*10+cin, column
    # (ow2%2)*128 + (ow2//2)*20 + cout holds w2[cout, cin, kh, ow1-ow2].
    W2 = np.zeros((5, 128, 256), np.float32)
    for kh in range(5):
        for ow2 in range(8):
            lane0 = (ow2 % 2) * 128 + (ow2 // 2) * 20
            for kw in range(5):
                row0 = (ow2 + kw) * 10
                W2[kh, row0:row0 + 10, lane0:lane0 + 20] = w2[:, :, kh, kw].T
    B2 = np.zeros((1, 128), np.float32)
    for wwp in range(4):
        B2[0, wwp * 20:wwp * 20 + 20] = b2

    # fc1: (hh, 128, 50); row ww*20+cout  <->  torch flat index cout*16+hh*4+ww.
    W3 = np.zeros((4, 128, 50), np.float32)
    for hh in range(4):
        for ww in range(4):
            for cout in range(20):
                W3[hh, ww * 20 + cout, :] = f1w[:, cout * 16 + hh * 4 + ww]

    return {
        "w1": jnp.asarray(W1), "b1": jnp.asarray(B1),
        "w2": jnp.asarray(W2), "b2": jnp.asarray(B2),
        "w3": jnp.asarray(W3), "b3": jnp.asarray(f1b.reshape(1, 50)),
        "w4": jnp.asarray(f2w.T), "b4": jnp.asarray(f2b.reshape(1, 10)),
    }


def network_forward(packed, x):
    """x: (N,1,28,28) f32 -> (N,10) log-probs.  `packed` from pack_params."""
    n = x.shape[0]
    npad = -n % _BT
    nt = (n + npad) // _BT

    xp = x.reshape(n, 28, 28)
    if npad:
        xp = jnp.concatenate([xp, jnp.zeros((npad, 28, 28), xp.dtype)], axis=0)
    # (nt, 28, BT, 28): height leading, batch in sublanes, width in lanes.
    xp = xp.reshape(nt, _BT, 28, 28).transpose(0, 2, 1, 3)

    full = lambda shape: pl.BlockSpec(shape, lambda i: (0,) * len(shape))
    out = pl.pallas_call(
        _fused_net_kernel,
        out_shape=jax.ShapeDtypeStruct((nt * _BT, 10), jnp.float32),
        grid=(nt,),
        in_specs=[
            pl.BlockSpec((1, 28, _BT, 28), lambda i: (i, 0, 0, 0)),
            full((5, 28, 256)), full((1, 128)),
            full((5, 128, 256)), full((1, 128)),
            full((4, 128, 50)), full((1, 50)),
            full((50, 10)), full((1, 10)),
        ],
        out_specs=pl.BlockSpec((_BT, 10), lambda i: (i, 0)),
        compiler_params=pltpu.CompilerParams(
            dimension_semantics=("parallel",)),
    )(xp, packed["w1"], packed["b1"], packed["w2"], packed["b2"],
      packed["w3"], packed["b3"], packed["w4"], packed["b4"])
    return out[:n]


# ------------------------------ reference -----------------------------------

def reference_forward(params, x):
    dn = ("NCHW", "OIHW", "NCHW")
    hp = jax.lax.Precision.HIGHEST
    y = jax.lax.conv_general_dilated(x, params["conv1_w"], (1, 1), "VALID",
                                     dimension_numbers=dn, precision=hp)
    y = y + params["conv1_b"][None, :, None, None]
    y = y.reshape(y.shape[0], 10, 12, 2, 12, 2).max(axis=(3, 5))
    y = jnp.maximum(y, 0.0)
    y = jax.lax.conv_general_dilated(y, params["conv2_w"], (1, 1), "VALID",
                                     dimension_numbers=dn, precision=hp)
    y = y + params["conv2_b"][None, :, None, None]
    y = y.reshape(y.shape[0], 20, 4, 2, 4, 2).max(axis=(3, 5))
    y = jnp.maximum(y, 0.0)
    y = y.reshape(y.shape[0], 320)
    y = jnp.maximum(jnp.dot(y, params["fc1_w"].T, precision=hp) + params["fc1_b"], 0.0)
    y = jnp.dot(y, params["fc2_w"].T, precision=hp) + params["fc2_b"]
    return jax.nn.log_softmax(y, axis=1)


# ----------------------------- parameter init -------------------------------

def init_params(key):
    ks = jax.random.split(key, 8)

    def u(k, shape, fan_in):  # PyTorch-style U(-1/sqrt(fan_in), 1/sqrt(fan_in))
        bound = 1.0 / (fan_in ** 0.5)
        return jax.random.uniform(k, shape, jnp.float32, -bound, bound)

    return {
        "conv1_w": u(ks[0], (10, 1, 5, 5), 1 * 5 * 5),
        "conv1_b": u(ks[1], (10,), 1 * 5 * 5),
        "conv2_w": u(ks[2], (20, 10, 5, 5), 10 * 5 * 5),
        "conv2_b": u(ks[3], (20,), 10 * 5 * 5),
        "fc1_w": u(ks[4], (50, 320), 320),
        "fc1_b": u(ks[5], (50,), 320),
        "fc2_w": u(ks[6], (10, 50), 50),
        "fc2_b": u(ks[7], (10,), 50),
    }


if __name__ == "__main__":
    key = jax.random.PRNGKey(0)
    pkey, xkey = jax.random.split(key)
    params = init_params(pkey)
    # 28x28 single-channel input is required: the module hard-codes the 320-d flatten.
    x = jax.random.normal(xkey, (2, 1, 28, 28), jnp.float32)

    packed = pack_params(params)            # one-time weight re-layout
    fwd = jax.jit(network_forward)
    out = fwd(packed, x)
    jax.block_until_ready(out)

    assert out.shape == (2, 10)
    assert bool(jnp.all(jnp.isfinite(out)))
    # log_softmax rows must sum to ~1 in prob space
    assert bool(jnp.allclose(jnp.sum(jnp.exp(out), axis=1), 1.0, atol=1e-5))
    # numerical check against a pure-XLA reference of the PyTorch module
    ref = reference_forward(params, x)
    max_diff = float(jnp.max(jnp.abs(out - ref)))
    assert max_diff < 5e-2, f"mismatch vs reference: {max_diff}"
    print("KERNEL_OK")
</pallas_src>

<mosaic_0001>
module attributes {stable_mosaic.version = 11 : i64} {
  func.func @_fused_net_kernel(%arg0: i32, %arg1: memref<1x28x64x28xf32, #tpu.memory_space<vmem>>, %arg2: memref<5x28x256xf32, #tpu.memory_space<vmem>>, %arg3: memref<1x128xf32, #tpu.memory_space<vmem>>, %arg4: memref<5x128x256xf32, #tpu.memory_space<vmem>>, %arg5: memref<1x128xf32, #tpu.memory_space<vmem>>, %arg6: memref<4x128x50xf32, #tpu.memory_space<vmem>>, %arg7: memref<1x50xf32, #tpu.memory_space<vmem>>, %arg8: memref<50x10xf32, #tpu.memory_space<vmem>>, %arg9: memref<1x10xf32, #tpu.memory_space<vmem>>, %arg10: memref<64x10xf32, #tpu.memory_space<vmem>>) attributes {dimension_semantics = [#tpu.dimension_semantics<parallel>], iteration_bounds = array<i64: 1>, scalar_prefetch = 0 : i64, scratch_operands = 0 : i64, tpu.core_type = #tpu.core_type<tc>, window_params = [{transform_indices = @transform_0, window_bounds = array<i64: 1, 28, 64, 28>}, {pipeline_mode = #tpu.pipeline_mode<synchronous>, transform_indices = @transform_1, window_bounds = array<i64: 5, 28, 256>}, {pipeline_mode = #tpu.pipeline_mode<synchronous>, transform_indices = @transform_2, window_bounds = array<i64: 1, 128>}, {pipeline_mode = #tpu.pipeline_mode<synchronous>, transform_indices = @transform_3, window_bounds = array<i64: 5, 128, 256>}, {pipeline_mode = #tpu.pipeline_mode<synchronous>, transform_indices = @transform_4, window_bounds = array<i64: 1, 128>}, {pipeline_mode = #tpu.pipeline_mode<synchronous>, transform_indices = @transform_5, window_bounds = array<i64: 4, 128, 50>}, {pipeline_mode = #tpu.pipeline_mode<synchronous>, transform_indices = @transform_6, window_bounds = array<i64: 1, 50>}, {pipeline_mode = #tpu.pipeline_mode<synchronous>, transform_indices = @transform_7, window_bounds = array<i64: 50, 10>}, {pipeline_mode = #tpu.pipeline_mode<synchronous>, transform_indices = @transform_8, window_bounds = array<i64: 1, 10>}, {transform_indices = @transform_9, window_bounds = array<i64: 64, 10>}]} {
    %c0 = arith.constant 0 : index
    %c0_0 = arith.constant 0 : index
    %c0_1 = arith.constant 0 : index
    %c0_2 = arith.constant 0 : index
    %0 = vector.load %arg1[%c0, %c0_0, %c0_1, %c0_2] : memref<1x28x64x28xf32, #tpu.memory_space<vmem>>, vector<1x28x64x28xf32>
    %1 = vector.shape_cast %0 : vector<1x28x64x28xf32> to vector<28x64x28xf32>
    %2 = vector.extract_strided_slice %1 {offsets = [0, 0, 0], sizes = [24, 64, 28], strides = [1, 1, 1]} : vector<28x64x28xf32> to vector<24x64x28xf32>
    %3 = vector.shape_cast %2 : vector<24x64x28xf32> to vector<1536x28xf32>
    %c0_3 = arith.constant 0 : index
    %c0_4 = arith.constant 0 : index
    %c0_5 = arith.constant 0 : index
    %4 = vector.load %arg2[%c0_3, %c0_4, %c0_5] : memref<5x28x256xf32, #tpu.memory_space<vmem>>, vector<1x28x256xf32>
    %5 = vector.shape_cast %4 : vector<1x28x256xf32> to vector<28x256xf32>
    %cst = arith.constant dense<0.000000e+00> : vector<1536x256xf32>
    %6 = tpu.matmul %3, %5, %cst {dimension_numbers = #tpu.dot_dimension_numbers<[1], [0], [0], [1], [0, 0, 1, 1], [], []>} : vector<1536x28xf32>, vector<28x256xf32>, vector<1536x256xf32> -> vector<1536x256xf32>
    %7 = vector.extract_strided_slice %1 {offsets = [1, 0, 0], sizes = [24, 64, 28], strides = [1, 1, 1]} : vector<28x64x28xf32> to vector<24x64x28xf32>
    %8 = vector.shape_cast %7 : vector<24x64x28xf32> to vector<1536x28xf32>
    %c1 = arith.constant 1 : index
    %c0_6 = arith.constant 0 : index
    %c0_7 = arith.constant 0 : index
    %9 = vector.load %arg2[%c1, %c0_6, %c0_7] : memref<5x28x256xf32, #tpu.memory_space<vmem>>, vector<1x28x256xf32>
    %10 = vector.shape_cast %9 : vector<1x28x256xf32> to vector<28x256xf32>
    %cst_8 = arith.constant dense<0.000000e+00> : vector<1536x256xf32>
    %11 = tpu.matmul %8, %10, %cst_8 {dimension_numbers = #tpu.dot_dimension_numbers<[1], [0], [0], [1], [0, 0, 1, 1], [], []>} : vector<1536x28xf32>, vector<28x256xf32>, vector<1536x256xf32> -> vector<1536x256xf32>
    %12 = arith.addf %6, %11 : vector<1536x256xf32>
    %13 = vector.extract_strided_slice %1 {offsets = [2, 0, 0], sizes = [24, 64, 28], strides = [1, 1, 1]} : vector<28x64x28xf32> to vector<24x64x28xf32>
    %14 = vector.shape_cast %13 : vector<24x64x28xf32> to vector<1536x28xf32>
    %c2 = arith.constant 2 : index
    %c0_9 = arith.constant 0 : index
    %c0_10 = arith.constant 0 : index
    %15 = vector.load %arg2[%c2, %c0_9, %c0_10] : memref<5x28x256xf32, #tpu.memory_space<vmem>>, vector<1x28x256xf32>
    %16 = vector.shape_cast %15 : vector<1x28x256xf32> to vector<28x256xf32>
    %cst_11 = arith.constant dense<0.000000e+00> : vector<1536x256xf32>
    %17 = tpu.matmul %14, %16, %cst_11 {dimension_numbers = #tpu.dot_dimension_numbers<[1], [0], [0], [1], [0, 0, 1, 1], [], []>} : vector<1536x28xf32>, vector<28x256xf32>, vector<1536x256xf32> -> vector<1536x256xf32>
    %18 = arith.addf %12, %17 : vector<1536x256xf32>
    %19 = vector.extract_strided_slice %1 {offsets = [3, 0, 0], sizes = [24, 64, 28], strides = [1, 1, 1]} : vector<28x64x28xf32> to vector<24x64x28xf32>
    %20 = vector.shape_cast %19 : vector<24x64x28xf32> to vector<1536x28xf32>
    %c3 = arith.constant 3 : index
    %c0_12 = arith.constant 0 : index
    %c0_13 = arith.constant 0 : index
    %21 = vector.load %arg2[%c3, %c0_12, %c0_13] : memref<5x28x256xf32, #tpu.memory_space<vmem>>, vector<1x28x256xf32>
    %22 = vector.shape_cast %21 : vector<1x28x256xf32> to vector<28x256xf32>
    %cst_14 = arith.constant dense<0.000000e+00> : vector<1536x256xf32>
    %23 = tpu.matmul %20, %22, %cst_14 {dimension_numbers = #tpu.dot_dimension_numbers<[1], [0], [0], [1], [0, 0, 1, 1], [], []>} : vector<1536x28xf32>, vector<28x256xf32>, vector<1536x256xf32> -> vector<1536x256xf32>
    %24 = arith.addf %18, %23 : vector<1536x256xf32>
    %25 = vector.extract_strided_slice %1 {offsets = [4, 0, 0], sizes = [24, 64, 28], strides = [1, 1, 1]} : vector<28x64x28xf32> to vector<24x64x28xf32>
    %26 = vector.shape_cast %25 : vector<24x64x28xf32> to vector<1536x28xf32>
    %c4 = arith.constant 4 : index
    %c0_15 = arith.constant 0 : index
    %c0_16 = arith.constant 0 : index
    %27 = vector.load %arg2[%c4, %c0_15, %c0_16] : memref<5x28x256xf32, #tpu.memory_space<vmem>>, vector<1x28x256xf32>
    %28 = vector.shape_cast %27 : vector<1x28x256xf32> to vector<28x256xf32>
    %cst_17 = arith.constant dense<0.000000e+00> : vector<1536x256xf32>
    %29 = tpu.matmul %26, %28, %cst_17 {dimension_numbers = #tpu.dot_dimension_numbers<[1], [0], [0], [1], [0, 0, 1, 1], [], []>} : vector<1536x28xf32>, vector<28x256xf32>, vector<1536x256xf32> -> vector<1536x256xf32>
    %30 = arith.addf %24, %29 : vector<1536x256xf32>
    %31 = vector.shape_cast %30 : vector<1536x256xf32> to vector<12x2x64x256xf32>
    %32 = vector.extract_strided_slice %31 {offsets = [0, 0, 0, 0], sizes = [12, 1, 64, 256], strides = [1, 1, 1, 1]} : vector<12x2x64x256xf32> to vector<12x1x64x256xf32>
    %33 = vector.shape_cast %32 : vector<12x1x64x256xf32> to vector<12x64x256xf32>
    %34 = vector.extract_strided_slice %31 {offsets = [0, 1, 0, 0], sizes = [12, 1, 64, 256], strides = [1, 1, 1, 1]} : vector<12x2x64x256xf32> to vector<12x1x64x256xf32>
    %35 = vector.shape_cast %34 : vector<12x1x64x256xf32> to vector<12x64x256xf32>
    %36 = arith.maximumf %33, %35 : vector<12x64x256xf32>
    %37 = vector.extract_strided_slice %36 {offsets = [0, 0, 0], sizes = [12, 64, 128], strides = [1, 1, 1]} : vector<12x64x256xf32> to vector<12x64x128xf32>
    %38 = vector.extract_strided_slice %36 {offsets = [0, 0, 128], sizes = [12, 64, 128], strides = [1, 1, 1]} : vector<12x64x256xf32> to vector<12x64x128xf32>
    %39 = arith.maximumf %37, %38 : vector<12x64x128xf32>
    %c0_18 = arith.constant 0 : index
    %c0_19 = arith.constant 0 : index
    %40 = vector.load %arg3[%c0_18, %c0_19] : memref<1x128xf32, #tpu.memory_space<vmem>>, vector<1x128xf32>
    %41 = vector.shape_cast %40 : vector<1x128xf32> to vector<1x1x128xf32>
    %42 = vector.broadcast %41 : vector<1x1x128xf32> to vector<12x64x128xf32>
    %43 = arith.addf %39, %42 : vector<12x64x128xf32>
    %cst_20 = arith.constant 0.000000e+00 : f32
    %44 = vector.broadcast %cst_20 : f32 to vector<12x64x128xf32>
    %45 = arith.maximumf %43, %44 : vector<12x64x128xf32>
    %46 = vector.extract_strided_slice %45 {offsets = [0, 0, 0], sizes = [8, 64, 128], strides = [1, 1, 1]} : vector<12x64x128xf32> to vector<8x64x128xf32>
    %47 = vector.shape_cast %46 : vector<8x64x128xf32> to vector<512x128xf32>
    %c0_21 = arith.constant 0 : index
    %c0_22 = arith.constant 0 : index
    %c0_23 = arith.constant 0 : index
    %48 = vector.load %arg4[%c0_21, %c0_22, %c0_23] : memref<5x128x256xf32, #tpu.memory_space<vmem>>, vector<1x128x256xf32>
    %49 = vector.shape_cast %48 : vector<1x128x256xf32> to vector<128x256xf32>
    %cst_24 = arith.constant dense<0.000000e+00> : vector<512x256xf32>
    %50 = tpu.matmul %47, %49, %cst_24 {dimension_numbers = #tpu.dot_dimension_numbers<[1], [0], [0], [1], [0, 0, 1, 1], [], []>} : vector<512x128xf32>, vector<128x256xf32>, vector<512x256xf32> -> vector<512x256xf32>
    %51 = vector.extract_strided_slice %45 {offsets = [1, 0, 0], sizes = [8, 64, 128], strides = [1, 1, 1]} : vector<12x64x128xf32> to vector<8x64x128xf32>
    %52 = vector.shape_cast %51 : vector<8x64x128xf32> to vector<512x128xf32>
    %c1_25 = arith.constant 1 : index
    %c0_26 = arith.constant 0 : index
    %c0_27 = arith.constant 0 : index
    %53 = vector.load %arg4[%c1_25, %c0_26, %c0_27] : memref<5x128x256xf32, #tpu.memory_space<vmem>>, vector<1x128x256xf32>
    %54 = vector.shape_cast %53 : vector<1x128x256xf32> to vector<128x256xf32>
    %cst_28 = arith.constant dense<0.000000e+00> : vector<512x256xf32>
    %55 = tpu.matmul %52, %54, %cst_28 {dimension_numbers = #tpu.dot_dimension_numbers<[1], [0], [0], [1], [0, 0, 1, 1], [], []>} : vector<512x128xf32>, vector<128x256xf32>, vector<512x256xf32> -> vector<512x256xf32>
    %56 = arith.addf %50, %55 : vector<512x256xf32>
    %57 = vector.extract_strided_slice %45 {offsets = [2, 0, 0], sizes = [8, 64, 128], strides = [1, 1, 1]} : vector<12x64x128xf32> to vector<8x64x128xf32>
    %58 = vector.shape_cast %57 : vector<8x64x128xf32> to vector<512x128xf32>
    %c2_29 = arith.constant 2 : index
    %c0_30 = arith.constant 0 : index
    %c0_31 = arith.constant 0 : index
    %59 = vector.load %arg4[%c2_29, %c0_30, %c0_31] : memref<5x128x256xf32, #tpu.memory_space<vmem>>, vector<1x128x256xf32>
    %60 = vector.shape_cast %59 : vector<1x128x256xf32> to vector<128x256xf32>
    %cst_32 = arith.constant dense<0.000000e+00> : vector<512x256xf32>
    %61 = tpu.matmul %58, %60, %cst_32 {dimension_numbers = #tpu.dot_dimension_numbers<[1], [0], [0], [1], [0, 0, 1, 1], [], []>} : vector<512x128xf32>, vector<128x256xf32>, vector<512x256xf32> -> vector<512x256xf32>
    %62 = arith.addf %56, %61 : vector<512x256xf32>
    %63 = vector.extract_strided_slice %45 {offsets = [3, 0, 0], sizes = [8, 64, 128], strides = [1, 1, 1]} : vector<12x64x128xf32> to vector<8x64x128xf32>
    %64 = vector.shape_cast %63 : vector<8x64x128xf32> to vector<512x128xf32>
    %c3_33 = arith.constant 3 : index
    %c0_34 = arith.constant 0 : index
    %c0_35 = arith.constant 0 : index
    %65 = vector.load %arg4[%c3_33, %c0_34, %c0_35] : memref<5x128x256xf32, #tpu.memory_space<vmem>>, vector<1x128x256xf32>
    %66 = vector.shape_cast %65 : vector<1x128x256xf32> to vector<128x256xf32>
    %cst_36 = arith.constant dense<0.000000e+00> : vector<512x256xf32>
    %67 = tpu.matmul %64, %66, %cst_36 {dimension_numbers = #tpu.dot_dimension_numbers<[1], [0], [0], [1], [0, 0, 1, 1], [], []>} : vector<512x128xf32>, vector<128x256xf32>, vector<512x256xf32> -> vector<512x256xf32>
    %68 = arith.addf %62, %67 : vector<512x256xf32>
    %69 = vector.extract_strided_slice %45 {offsets = [4, 0, 0], sizes = [8, 64, 128], strides = [1, 1, 1]} : vector<12x64x128xf32> to vector<8x64x128xf32>
    %70 = vector.shape_cast %69 : vector<8x64x128xf32> to vector<512x128xf32>
    %c4_37 = arith.constant 4 : index
    %c0_38 = arith.constant 0 : index
    %c0_39 = arith.constant 0 : index
    %71 = vector.load %arg4[%c4_37, %c0_38, %c0_39] : memref<5x128x256xf32, #tpu.memory_space<vmem>>, vector<1x128x256xf32>
    %72 = vector.shape_cast %71 : vector<1x128x256xf32> to vector<128x256xf32>
    %cst_40 = arith.constant dense<0.000000e+00> : vector<512x256xf32>
    %73 = tpu.matmul %70, %72, %cst_40 {dimension_numbers = #tpu.dot_dimension_numbers<[1], [0], [0], [1], [0, 0, 1, 1], [], []>} : vector<512x128xf32>, vector<128x256xf32>, vector<512x256xf32> -> vector<512x256xf32>
    %74 = arith.addf %68, %73 : vector<512x256xf32>
    %75 = vector.shape_cast %74 : vector<512x256xf32> to vector<4x2x64x256xf32>
    %76 = vector.extract_strided_slice %75 {offsets = [0, 0, 0, 0], sizes = [4, 1, 64, 256], strides = [1, 1, 1, 1]} : vector<4x2x64x256xf32> to vector<4x1x64x256xf32>
    %77 = vector.shape_cast %76 : vector<4x1x64x256xf32> to vector<4x64x256xf32>
    %78 = vector.extract_strided_slice %75 {offsets = [0, 1, 0, 0], sizes = [4, 1, 64, 256], strides = [1, 1, 1, 1]} : vector<4x2x64x256xf32> to vector<4x1x64x256xf32>
    %79 = vector.shape_cast %78 : vector<4x1x64x256xf32> to vector<4x64x256xf32>
    %80 = arith.maximumf %77, %79 : vector<4x64x256xf32>
    %81 = vector.extract_strided_slice %80 {offsets = [0, 0, 0], sizes = [4, 64, 128], strides = [1, 1, 1]} : vector<4x64x256xf32> to vector<4x64x128xf32>
    %82 = vector.extract_strided_slice %80 {offsets = [0, 0, 128], sizes = [4, 64, 128], strides = [1, 1, 1]} : vector<4x64x256xf32> to vector<4x64x128xf32>
    %83 = arith.maximumf %81, %82 : vector<4x64x128xf32>
    %c0_41 = arith.constant 0 : index
    %c0_42 = arith.constant 0 : index
    %84 = vector.load %arg5[%c0_41, %c0_42] : memref<1x128xf32, #tpu.memory_space<vmem>>, vector<1x128xf32>
    %85 = vector.shape_cast %84 : vector<1x128xf32> to vector<1x1x128xf32>
    %86 = vector.broadcast %85 : vector<1x1x128xf32> to vector<4x64x128xf32>
    %87 = arith.addf %83, %86 : vector<4x64x128xf32>
    %cst_43 = arith.constant 0.000000e+00 : f32
    %88 = vector.broadcast %cst_43 : f32 to vector<4x64x128xf32>
    %89 = arith.maximumf %87, %88 : vector<4x64x128xf32>
    %90 = vector.extract_strided_slice %89 {offsets = [0, 0, 0], sizes = [1, 64, 128], strides = [1, 1, 1]} : vector<4x64x128xf32> to vector<1x64x128xf32>
    %91 = vector.shape_cast %90 : vector<1x64x128xf32> to vector<64x128xf32>
    %c0_44 = arith.constant 0 : index
    %c0_45 = arith.constant 0 : index
    %c0_46 = arith.constant 0 : index
    %92 = vector.load %arg6[%c0_44, %c0_45, %c0_46] : memref<4x128x50xf32, #tpu.memory_space<vmem>>, vector<1x128x50xf32>
    %93 = vector.shape_cast %92 : vector<1x128x50xf32> to vector<128x50xf32>
    %cst_47 = arith.constant dense<0.000000e+00> : vector<64x50xf32>
    %94 = tpu.matmul %91, %93, %cst_47 {dimension_numbers = #tpu.dot_dimension_numbers<[1], [0], [0], [1], [0, 0, 1, 1], [], []>} : vector<64x128xf32>, vector<128x50xf32>, vector<64x50xf32> -> vector<64x50xf32>
    %95 = vector.extract_strided_slice %89 {offsets = [1, 0, 0], sizes = [1, 64, 128], strides = [1, 1, 1]} : vector<4x64x128xf32> to vector<1x64x128xf32>
    %96 = vector.shape_cast %95 : vector<1x64x128xf32> to vector<64x128xf32>
    %c1_48 = arith.constant 1 : index
    %c0_49 = arith.constant 0 : index
    %c0_50 = arith.constant 0 : index
    %97 = vector.load %arg6[%c1_48, %c0_49, %c0_50] : memref<4x128x50xf32, #tpu.memory_space<vmem>>, vector<1x128x50xf32>
    %98 = vector.shape_cast %97 : vector<1x128x50xf32> to vector<128x50xf32>
    %cst_51 = arith.constant dense<0.000000e+00> : vector<64x50xf32>
    %99 = tpu.matmul %96, %98, %cst_51 {dimension_numbers = #tpu.dot_dimension_numbers<[1], [0], [0], [1], [0, 0, 1, 1], [], []>} : vector<64x128xf32>, vector<128x50xf32>, vector<64x50xf32> -> vector<64x50xf32>
    %100 = arith.addf %94, %99 : vector<64x50xf32>
    %101 = vector.extract_strided_slice %89 {offsets = [2, 0, 0], sizes = [1, 64, 128], strides = [1, 1, 1]} : vector<4x64x128xf32> to vector<1x64x128xf32>
    %102 = vector.shape_cast %101 : vector<1x64x128xf32> to vector<64x128xf32>
    %c2_52 = arith.constant 2 : index
    %c0_53 = arith.constant 0 : index
    %c0_54 = arith.constant 0 : index
    %103 = vector.load %arg6[%c2_52, %c0_53, %c0_54] : memref<4x128x50xf32, #tpu.memory_space<vmem>>, vector<1x128x50xf32>
    %104 = vector.shape_cast %103 : vector<1x128x50xf32> to vector<128x50xf32>
    %cst_55 = arith.constant dense<0.000000e+00> : vector<64x50xf32>
    %105 = tpu.matmul %102, %104, %cst_55 {dimension_numbers = #tpu.dot_dimension_numbers<[1], [0], [0], [1], [0, 0, 1, 1], [], []>} : vector<64x128xf32>, vector<128x50xf32>, vector<64x50xf32> -> vector<64x50xf32>
    %106 = arith.addf %100, %105 : vector<64x50xf32>
    %107 = vector.extract_strided_slice %89 {offsets = [3, 0, 0], sizes = [1, 64, 128], strides = [1, 1, 1]} : vector<4x64x128xf32> to vector<1x64x128xf32>
    %108 = vector.shape_cast %107 : vector<1x64x128xf32> to vector<64x128xf32>
    %c3_56 = arith.constant 3 : index
    %c0_57 = arith.constant 0 : index
    %c0_58 = arith.constant 0 : index
    %109 = vector.load %arg6[%c3_56, %c0_57, %c0_58] : memref<4x128x50xf32, #tpu.memory_space<vmem>>, vector<1x128x50xf32>
    %110 = vector.shape_cast %109 : vector<1x128x50xf32> to vector<128x50xf32>
    %cst_59 = arith.constant dense<0.000000e+00> : vector<64x50xf32>
    %111 = tpu.matmul %108, %110, %cst_59 {dimension_numbers = #tpu.dot_dimension_numbers<[1], [0], [0], [1], [0, 0, 1, 1], [], []>} : vector<64x128xf32>, vector<128x50xf32>, vector<64x50xf32> -> vector<64x50xf32>
    %112 = arith.addf %106, %111 : vector<64x50xf32>
    %c0_60 = arith.constant 0 : index
    %c0_61 = arith.constant 0 : index
    %113 = vector.load %arg7[%c0_60, %c0_61] : memref<1x50xf32, #tpu.memory_space<vmem>>, vector<1x50xf32>
    %114 = vector.broadcast %113 : vector<1x50xf32> to vector<64x50xf32>
    %115 = arith.addf %112, %114 : vector<64x50xf32>
    %cst_62 = arith.constant 0.000000e+00 : f32
    %116 = vector.broadcast %cst_62 : f32 to vector<64x50xf32>
    %117 = arith.maximumf %115, %116 : vector<64x50xf32>
    %c0_63 = arith.constant 0 : index
    %c0_64 = arith.constant 0 : index
    %118 = vector.load %arg8[%c0_63, %c0_64] : memref<50x10xf32, #tpu.memory_space<vmem>>, vector<50x10xf32>
    %cst_65 = arith.constant dense<0.000000e+00> : vector<64x10xf32>
    %119 = tpu.matmul %117, %118, %cst_65 {dimension_numbers = #tpu.dot_dimension_numbers<[1], [0], [0], [1], [0, 0, 1, 1], [], []>} : vector<64x50xf32>, vector<50x10xf32>, vector<64x10xf32> -> vector<64x10xf32>
    %c0_66 = arith.constant 0 : index
    %c0_67 = arith.constant 0 : index
    %120 = vector.load %arg9[%c0_66, %c0_67] : memref<1x10xf32, #tpu.memory_space<vmem>>, vector<1x10xf32>
    %121 = vector.broadcast %120 : vector<1x10xf32> to vector<64x10xf32>
    %122 = arith.addf %119, %121 : vector<64x10xf32>
    %cst_68 = arith.constant dense<0xFF800000> : vector<64xf32>
    %123 = vector.multi_reduction <maximumf>, %122, %cst_68 [1] : vector<64x10xf32> to vector<64xf32>
    %124 = vector.shape_cast %123 : vector<64xf32> to vector<64x1xf32>
    %125 = vector.broadcast %124 : vector<64x1xf32> to vector<64x10xf32>
    %126 = arith.subf %122, %125 : vector<64x10xf32>
    %127 = math.exp %126 : vector<64x10xf32>
    %cst_69 = arith.constant dense<0.000000e+00> : vector<64xf32>
    %128 = vector.multi_reduction <add>, %127, %cst_69 [1] : vector<64x10xf32> to vector<64xf32>
    %129 = vector.shape_cast %128 : vector<64xf32> to vector<64x1xf32>
    %130 = math.log %129 : vector<64x1xf32>
    %131 = vector.broadcast %130 : vector<64x1xf32> to vector<64x10xf32>
    %132 = arith.subf %126, %131 : vector<64x10xf32>
    %c0_70 = arith.constant 0 : index
    %c0_71 = arith.constant 0 : index
    %133 = vector.load %arg10[%c0_70, %c0_71] : memref<64x10xf32, #tpu.memory_space<vmem>>, vector<64x10xf32>
    tpu.vector_store %arg10[%c0_70, %c0_71], %132 {strides = array<i32>} : memref<64x10xf32, #tpu.memory_space<vmem>>, vector<64x10xf32>,
    return
  }
  func.func @transform_0(%arg0: i32) -> (i32, i32, i32, i32) {
    %c0_i32 = arith.constant 0 : i32
    %c0_i32_0 = arith.constant 0 : i32
    %c0_i32_1 = arith.constant 0 : i32
    %c0_i32_2 = arith.constant 0 : i32
    return %arg0, %c0_i32, %c0_i32_0, %c0_i32_1 : i32, i32, i32, i32
  }
  func.func @transform_1(%arg0: i32) -> (i32, i32, i32) {
    %c0_i32 = arith.constant 0 : i32
    %c0_i32_0 = arith.constant 0 : i32
    %c0_i32_1 = arith.constant 0 : i32
    %c0_i32_2 = arith.constant 0 : i32
    return %c0_i32, %c0_i32_0, %c0_i32_1 : i32, i32, i32
  }
  func.func @transform_2(%arg0: i32) -> (i32, i32) {
    %c0_i32 = arith.constant 0 : i32
    %c0_i32_0 = arith.constant 0 : i32
    %c0_i32_1 = arith.constant 0 : i32
    return %c0_i32, %c0_i32_0 : i32, i32
  }
  func.func @transform_3(%arg0: i32) -> (i32, i32, i32) {
    %c0_i32 = arith.constant 0 : i32
    %c0_i32_0 = arith.constant 0 : i32
    %c0_i32_1 = arith.constant 0 : i32
    %c0_i32_2 = arith.constant 0 : i32
    return %c0_i32, %c0_i32_0, %c0_i32_1 : i32, i32, i32
  }
  func.func @transform_4(%arg0: i32) -> (i32, i32) {
    %c0_i32 = arith.constant 0 : i32
    %c0_i32_0 = arith.constant 0 : i32
    %c0_i32_1 = arith.constant 0 : i32
    return %c0_i32, %c0_i32_0 : i32, i32
  }
  func.func @transform_5(%arg0: i32) -> (i32, i32, i32) {
    %c0_i32 = arith.constant 0 : i32
    %c0_i32_0 = arith.constant 0 : i32
    %c0_i32_1 = arith.constant 0 : i32
    %c0_i32_2 = arith.constant 0 : i32
    return %c0_i32, %c0_i32_0, %c0_i32_1 : i32, i32, i32
  }
  func.func @transform_6(%arg0: i32) -> (i32, i32) {
    %c0_i32 = arith.constant 0 : i32
    %c0_i32_0 = arith.constant 0 : i32
    %c0_i32_1 = arith.constant 0 : i32
    return %c0_i32, %c0_i32_0 : i32, i32
  }
  func.func @transform_7(%arg0: i32) -> (i32, i32) {
    %c0_i32 = arith.constant 0 : i32
    %c0_i32_0 = arith.constant 0 : i32
    %c0_i32_1 = arith.constant 0 : i32
    return %c0_i32, %c0_i32_0 : i32, i32
  }
  func.func @transform_8(%arg0: i32) -> (i32, i32) {
    %c0_i32 = arith.constant 0 : i32
    %c0_i32_0 = arith.constant 0 : i32
    %c0_i32_1 = arith.constant 0 : i32
    return %c0_i32, %c0_i32_0 : i32, i32
  }
  func.func @transform_9(%arg0: i32) -> (i32, i32) {
    %c0_i32 = arith.constant 0 : i32
    %c0_i32_0 = arith.constant 0 : i32
    return %arg0, %c0_i32 : i32, i32
  }
}

</mosaic_0001>

<llo_original>
// kernel: network_forward.1
$region0: #{network_forward.1}
  #allocation0 [shape = 'u32[]', space=smem, size = 0x4, offset = 0x4, fixed_abs, tag = 'smem constant byte address 0x4 - core index']
  #allocation1 [shape = 'u32[144,128]{1,0:T(1,128)}', space=vmem, size = 0x12000, scoped, tag = 'internal scratch']
  %s0 = inlined_call_operand.vmem [shape: f32[1,28,64,28], index: 0, kind: input, shape index: {}]
  %s1 = inlined_call_operand.vmem [shape: f32[5,28,256], index: 1, kind: input, shape index: {}]
  %s2 = inlined_call_operand.vmem [shape: f32[1,128], index: 2, kind: input, shape index: {}]
  %s3 = inlined_call_operand.vmem [shape: f32[5,128,256], index: 3, kind: input, shape index: {}]
  %s4 = inlined_call_operand.vmem [shape: f32[1,128], index: 4, kind: input, shape index: {}]
  %s5 = inlined_call_operand.vmem [shape: f32[4,128,50], index: 5, kind: input, shape index: {}]
  %s6 = inlined_call_operand.vmem [shape: f32[1,50], index: 6, kind: input, shape index: {}]
  %s7 = inlined_call_operand.vmem [shape: f32[50,10], index: 7, kind: input, shape index: {}]
  %s8 = inlined_call_operand.vmem [shape: f32[1,10], index: 8, kind: input, shape index: {}]
  %s9 = inlined_call_operand.vmem [shape: f32[64,10], index: 9, kind: output, shape index: {}]
  %s10 = sld [smem:[#allocation0]]
  $region46: #{network_forward.1} parent=0
    _
  %s12 = ssub.s32 1, %s10
  %s13 = scalar_select 0, %s12, %s10
  // Predicated region
  $region2: #{network_forward.1} parent=0 // pred_check
    _
  $region3: #{network_forward.1} parent=0 // pred_check_branch
    %15 = sbr.rel (0) target = $region5
  $region4: #{network_forward.1} parent=0 // pred_region
    _
  $region5: #{network_forward.1} parent=0 // pred_fallthru
    _
  // Predicated region
  $region6: #{network_forward.1} parent=0 // pred_check
    _
  $region7: #{network_forward.1} parent=0 // pred_check_branch
    %17 = sbr.rel (0) target = $region9
  $region8: #{network_forward.1} parent=0 // pred_region
    _
  $region9: #{network_forward.1} parent=0 // pred_fallthru
    _
  // Predicated region
  $region10: #{network_forward.1} parent=0 // pred_check
    _
  $region11: #{network_forward.1} parent=0 // pred_check_branch
    %19 = sbr.rel (0) target = $region13
  $region12: #{network_forward.1} parent=0 // pred_region
    _
  $region13: #{network_forward.1} parent=0 // pred_fallthru
    _
  // Predicated region
  $region14: #{network_forward.1} parent=0 // pred_check
    _
  $region15: #{network_forward.1} parent=0 // pred_check_branch
    %21 = sbr.rel (0) target = $region17
  $region16: #{network_forward.1} parent=0 // pred_region
    _
  $region17: #{network_forward.1} parent=0 // pred_fallthru
    _
  // Predicated region
  $region18: #{network_forward.1} parent=0 // pred_check
    _
  $region19: #{network_forward.1} parent=0 // pred_check_branch
    %23 = sbr.rel (0) target = $region21
  $region20: #{network_forward.1} parent=0 // pred_region
    _
  $region21: #{network_forward.1} parent=0 // pred_fallthru
    _
  // Predicated region
  $region22: #{network_forward.1} parent=0 // pred_check
    _
  $region23: #{network_forward.1} parent=0 // pred_check_branch
    %25 = sbr.rel (0) target = $region25
  $region24: #{network_forward.1} parent=0 // pred_region
    _
  $region25: #{network_forward.1} parent=0 // pred_fallthru
    _
  // Predicated region
  $region26: #{network_forward.1} parent=0 // pred_check
    _
  $region27: #{network_forward.1} parent=0 // pred_check_branch
    %27 = sbr.rel (0) target = $region29
  $region28: #{network_forward.1} parent=0 // pred_region
    _
  $region29: #{network_forward.1} parent=0 // pred_fallthru
    _
  // Predicated region
  $region30: #{network_forward.1} parent=0 // pred_check
    _
  $region31: #{network_forward.1} parent=0 // pred_check_branch
    %29 = sbr.rel (0) target = $region33
  $region32: #{network_forward.1} parent=0 // pred_region
    _
  $region33: #{network_forward.1} parent=0 // pred_fallthru
    _
  // Predicated region
  $region34: #{network_forward.1} parent=0 // pred_check
    _
  $region35: #{network_forward.1} parent=0 // pred_check_branch
    %31 = sbr.rel (0) target = $region37
  $region36: #{network_forward.1} parent=0 // pred_region
    _
  $region37: #{network_forward.1} parent=0 // pred_fallthru
    _
  %v32 = vld [vmem:[%s0] sm:$0xff]
  %v33 = vld [vmem:[%s0 + $0x8] sm:$0xff]
  %v34 = vld [vmem:[%s0 + $0x10] sm:$0xff]
  %v35 = vld [vmem:[%s0 + $0x18] sm:$0xff]
  %v36 = vld [vmem:[%s0 + $0x20] sm:$0xff]
  %v37 = vld [vmem:[%s0 + $0x28] sm:$0xff]
  %v38 = vld [vmem:[%s0 + $0x30] sm:$0xff]
  %v39 = vld [vmem:[%s0 + $0x38] sm:$0xff]
  %v40 = vld [vmem:[%s0 + $0x40] sm:$0xff]
  %v41 = vld [vmem:[%s0 + $0x48] sm:$0xff]
  %v42 = vld [vmem:[%s0 + $0x50] sm:$0xff]
  %v43 = vld [vmem:[%s0 + $0x58] sm:$0xff]
  %v44 = vld [vmem:[%s0 + $0x60] sm:$0xff]
  %v45 = vld [vmem:[%s0 + $0x68] sm:$0xff]
  %v46 = vld [vmem:[%s0 + $0x70] sm:$0xff]
  %v47 = vld [vmem:[%s0 + $0x78] sm:$0xff]
  %v48 = vld [vmem:[%s0 + $0x80] sm:$0xff]
  %v49 = vld [vmem:[%s0 + $0x88] sm:$0xff]
  %v50 = vld [vmem:[%s0 + $0x90] sm:$0xff]
  %v51 = vld [vmem:[%s0 + $0x98] sm:$0xff]
  %v52 = vld [vmem:[%s0 + $0xa0] sm:$0xff]
  %v53 = vld [vmem:[%s0 + $0xa8] sm:$0xff]
  %v54 = vld [vmem:[%s0 + $0xb0] sm:$0xff]
  %v55 = vld [vmem:[%s0 + $0xb8] sm:$0xff]
  %v56 = vld [vmem:[%s0 + $0xc0] sm:$0xff]
  %v57 = vld [vmem:[%s0 + $0xc8] sm:$0xff]
  %v58 = vld [vmem:[%s0 + $0xd0] sm:$0xff]
  %v59 = vld [vmem:[%s0 + $0xd8] sm:$0xff]
  %v60 = vld [vmem:[%s0 + $0xe0] sm:$0xff]
  %v61 = vld [vmem:[%s0 + $0xe8] sm:$0xff]
  %v62 = vld [vmem:[%s0 + $0xf0] sm:$0xff]
  %v63 = vld [vmem:[%s0 + $0xf8] sm:$0xff]
  %v64 = vld [vmem:[%s0 + $0x100] sm:$0xff]
  %v65 = vld [vmem:[%s0 + $0x108] sm:$0xff]
  %v66 = vld [vmem:[%s0 + $0x110] sm:$0xff]
  %v67 = vld [vmem:[%s0 + $0x118] sm:$0xff]
  %v68 = vld [vmem:[%s0 + $0x120] sm:$0xff]
  %v69 = vld [vmem:[%s0 + $0x128] sm:$0xff]
  %v70 = vld [vmem:[%s0 + $0x130] sm:$0xff]
  %v71 = vld [vmem:[%s0 + $0x138] sm:$0xff]
  %v72 = vld [vmem:[%s0 + $0x140] sm:$0xff]
  %v73 = vld [vmem:[%s0 + $0x148] sm:$0xff]
  %v74 = vld [vmem:[%s0 + $0x150] sm:$0xff]
  %v75 = vld [vmem:[%s0 + $0x158] sm:$0xff]
  %v76 = vld [vmem:[%s0 + $0x160] sm:$0xff]
  %v77 = vld [vmem:[%s0 + $0x168] sm:$0xff]
  %v78 = vld [vmem:[%s0 + $0x170] sm:$0xff]
  %v79 = vld [vmem:[%s0 + $0x178] sm:$0xff]
  %v80 = vld [vmem:[%s0 + $0x180] sm:$0xff]
  %v81 = vld [vmem:[%s0 + $0x188] sm:$0xff]
  %v82 = vld [vmem:[%s0 + $0x190] sm:$0xff]
  %v83 = vld [vmem:[%s0 + $0x198] sm:$0xff]
  %v84 = vld [vmem:[%s0 + $0x1a0] sm:$0xff]
  %v85 = vld [vmem:[%s0 + $0x1a8] sm:$0xff]
  %v86 = vld [vmem:[%s0 + $0x1b0] sm:$0xff]
  %v87 = vld [vmem:[%s0 + $0x1b8] sm:$0xff]
  %v88 = vld [vmem:[%s0 + $0x1c0] sm:$0xff]
  %v89 = vld [vmem:[%s0 + $0x1c8] sm:$0xff]
  %v90 = vld [vmem:[%s0 + $0x1d0] sm:$0xff]
  %v91 = vld [vmem:[%s0 + $0x1d8] sm:$0xff]
  %v92 = vld [vmem:[%s0 + $0x1e0] sm:$0xff]
  %v93 = vld [vmem:[%s0 + $0x1e8] sm:$0xff]
  %v94 = vld [vmem:[%s0 + $0x1f0] sm:$0xff]
  %v95 = vld [vmem:[%s0 + $0x1f8] sm:$0xff]
  %v96 = vld [vmem:[%s0 + $0x200] sm:$0xff]
  %v97 = vld [vmem:[%s0 + $0x208] sm:$0xff]
  %v98 = vld [vmem:[%s0 + $0x210] sm:$0xff]
  %v99 = vld [vmem:[%s0 + $0x218] sm:$0xff]
  %v100 = vld [vmem:[%s0 + $0x220] sm:$0xff]
  %v101 = vld [vmem:[%s0 + $0x228] sm:$0xff]
  %v102 = vld [vmem:[%s0 + $0x230] sm:$0xff]
  %v103 = vld [vmem:[%s0 + $0x238] sm:$0xff]
  %v104 = vld [vmem:[%s0 + $0x240] sm:$0xff]
  %v105 = vld [vmem:[%s0 + $0x248] sm:$0xff]
  %v106 = vld [vmem:[%s0 + $0x250] sm:$0xff]
  %v107 = vld [vmem:[%s0 + $0x258] sm:$0xff]
  %v108 = vld [vmem:[%s0 + $0x260] sm:$0xff]
  %v109 = vld [vmem:[%s0 + $0x268] sm:$0xff]
  %v110 = vld [vmem:[%s0 + $0x270] sm:$0xff]
  %v111 = vld [vmem:[%s0 + $0x278] sm:$0xff]
  %v112 = vld [vmem:[%s0 + $0x280] sm:$0xff]
  %v113 = vld [vmem:[%s0 + $0x288] sm:$0xff]
  %v114 = vld [vmem:[%s0 + $0x290] sm:$0xff]
  %v115 = vld [vmem:[%s0 + $0x298] sm:$0xff]
  %v116 = vld [vmem:[%s0 + $0x2a0] sm:$0xff]
  %v117 = vld [vmem:[%s0 + $0x2a8] sm:$0xff]
  %v118 = vld [vmem:[%s0 + $0x2b0] sm:$0xff]
  %v119 = vld [vmem:[%s0 + $0x2b8] sm:$0xff]
  %v120 = vld [vmem:[%s0 + $0x2c0] sm:$0xff]
  %v121 = vld [vmem:[%s0 + $0x2c8] sm:$0xff]
  %v122 = vld [vmem:[%s0 + $0x2d0] sm:$0xff]
  %v123 = vld [vmem:[%s0 + $0x2d8] sm:$0xff]
  %v124 = vld [vmem:[%s0 + $0x2e0] sm:$0xff]
  %v125 = vld [vmem:[%s0 + $0x2e8] sm:$0xff]
  %v126 = vld [vmem:[%s0 + $0x2f0] sm:$0xff]
  %v127 = vld [vmem:[%s0 + $0x2f8] sm:$0xff]
  %v128 = vld [vmem:[%s0 + $0x300] sm:$0xff]
  %v129 = vld [vmem:[%s0 + $0x308] sm:$0xff]
  %v130 = vld [vmem:[%s0 + $0x310] sm:$0xff]
  %v131 = vld [vmem:[%s0 + $0x318] sm:$0xff]
  %v132 = vld [vmem:[%s0 + $0x320] sm:$0xff]
  %v133 = vld [vmem:[%s0 + $0x328] sm:$0xff]
  %v134 = vld [vmem:[%s0 + $0x330] sm:$0xff]
  %v135 = vld [vmem:[%s0 + $0x338] sm:$0xff]
  %v136 = vld [vmem:[%s0 + $0x340] sm:$0xff]
  %v137 = vld [vmem:[%s0 + $0x348] sm:$0xff]
  %v138 = vld [vmem:[%s0 + $0x350] sm:$0xff]
  %v139 = vld [vmem:[%s0 + $0x358] sm:$0xff]
  %v140 = vld [vmem:[%s0 + $0x360] sm:$0xff]
  %v141 = vld [vmem:[%s0 + $0x368] sm:$0xff]
  %v142 = vld [vmem:[%s0 + $0x370] sm:$0xff]
  %v143 = vld [vmem:[%s0 + $0x378] sm:$0xff]
  %v144 = vld [vmem:[%s0 + $0x380] sm:$0xff]
  %v145 = vld [vmem:[%s0 + $0x388] sm:$0xff]
  %v146 = vld [vmem:[%s0 + $0x390] sm:$0xff]
  %v147 = vld [vmem:[%s0 + $0x398] sm:$0xff]
  %v148 = vld [vmem:[%s0 + $0x3a0] sm:$0xff]
  %v149 = vld [vmem:[%s0 + $0x3a8] sm:$0xff]
  %v150 = vld [vmem:[%s0 + $0x3b0] sm:$0xff]
  %v151 = vld [vmem:[%s0 + $0x3b8] sm:$0xff]
  %v152 = vld [vmem:[%s0 + $0x3c0] sm:$0xff]
  %v153 = vld [vmem:[%s0 + $0x3c8] sm:$0xff]
  %v154 = vld [vmem:[%s0 + $0x3d0] sm:$0xff]
  %v155 = vld [vmem:[%s0 + $0x3d8] sm:$0xff]
  %v156 = vld [vmem:[%s0 + $0x3e0] sm:$0xff]
  %v157 = vld [vmem:[%s0 + $0x3e8] sm:$0xff]
  %v158 = vld [vmem:[%s0 + $0x3f0] sm:$0xff]
  %v159 = vld [vmem:[%s0 + $0x3f8] sm:$0xff]
  %v160 = vld [vmem:[%s0 + $0x400] sm:$0xff]
  %v161 = vld [vmem:[%s0 + $0x408] sm:$0xff]
  %v162 = vld [vmem:[%s0 + $0x410] sm:$0xff]
  %v163 = vld [vmem:[%s0 + $0x418] sm:$0xff]
  %v164 = vld [vmem:[%s0 + $0x420] sm:$0xff]
  %v165 = vld [vmem:[%s0 + $0x428] sm:$0xff]
  %v166 = vld [vmem:[%s0 + $0x430] sm:$0xff]
  %v167 = vld [vmem:[%s0 + $0x438] sm:$0xff]
  %v168 = vld [vmem:[%s0 + $0x440] sm:$0xff]
  %v169 = vld [vmem:[%s0 + $0x448] sm:$0xff]
  %v170 = vld [vmem:[%s0 + $0x450] sm:$0xff]
  %v171 = vld [vmem:[%s0 + $0x458] sm:$0xff]
  %v172 = vld [vmem:[%s0 + $0x460] sm:$0xff]
  %v173 = vld [vmem:[%s0 + $0x468] sm:$0xff]
  %v174 = vld [vmem:[%s0 + $0x470] sm:$0xff]
  %v175 = vld [vmem:[%s0 + $0x478] sm:$0xff]
  %v176 = vld [vmem:[%s0 + $0x480] sm:$0xff]
  %v177 = vld [vmem:[%s0 + $0x488] sm:$0xff]
  %v178 = vld [vmem:[%s0 + $0x490] sm:$0xff]
  %v179 = vld [vmem:[%s0 + $0x498] sm:$0xff]
  %v180 = vld [vmem:[%s0 + $0x4a0] sm:$0xff]
  %v181 = vld [vmem:[%s0 + $0x4a8] sm:$0xff]
  %v182 = vld [vmem:[%s0 + $0x4b0] sm:$0xff]
  %v183 = vld [vmem:[%s0 + $0x4b8] sm:$0xff]
  %v184 = vld [vmem:[%s0 + $0x4c0] sm:$0xff]
  %v185 = vld [vmem:[%s0 + $0x4c8] sm:$0xff]
  %v186 = vld [vmem:[%s0 + $0x4d0] sm:$0xff]
  %v187 = vld [vmem:[%s0 + $0x4d8] sm:$0xff]
  %v188 = vld [vmem:[%s0 + $0x4e0] sm:$0xff]
  %v189 = vld [vmem:[%s0 + $0x4e8] sm:$0xff]
  %v190 = vld [vmem:[%s0 + $0x4f0] sm:$0xff]
  %v191 = vld [vmem:[%s0 + $0x4f8] sm:$0xff]
  %v192 = vld [vmem:[%s0 + $0x500] sm:$0xff]
  %v193 = vld [vmem:[%s0 + $0x508] sm:$0xff]
  %v194 = vld [vmem:[%s0 + $0x510] sm:$0xff]
  %v195 = vld [vmem:[%s0 + $0x518] sm:$0xff]
  %v196 = vld [vmem:[%s0 + $0x520] sm:$0xff]
  %v197 = vld [vmem:[%s0 + $0x528] sm:$0xff]
  %v198 = vld [vmem:[%s0 + $0x530] sm:$0xff]
  %v199 = vld [vmem:[%s0 + $0x538] sm:$0xff]
  %v200 = vld [vmem:[%s0 + $0x540] sm:$0xff]
  %v201 = vld [vmem:[%s0 + $0x548] sm:$0xff]
  %v202 = vld [vmem:[%s0 + $0x550] sm:$0xff]
  %v203 = vld [vmem:[%s0 + $0x558] sm:$0xff]
  %v204 = vld [vmem:[%s0 + $0x560] sm:$0xff]
  %v205 = vld [vmem:[%s0 + $0x568] sm:$0xff]
  %v206 = vld [vmem:[%s0 + $0x570] sm:$0xff]
  %v207 = vld [vmem:[%s0 + $0x578] sm:$0xff]
  %v208 = vld [vmem:[%s0 + $0x580] sm:$0xff]
  %v209 = vld [vmem:[%s0 + $0x588] sm:$0xff]
  %v210 = vld [vmem:[%s0 + $0x590] sm:$0xff]
  %v211 = vld [vmem:[%s0 + $0x598] sm:$0xff]
  %v212 = vld [vmem:[%s0 + $0x5a0] sm:$0xff]
  %v213 = vld [vmem:[%s0 + $0x5a8] sm:$0xff]
  %v214 = vld [vmem:[%s0 + $0x5b0] sm:$0xff]
  %v215 = vld [vmem:[%s0 + $0x5b8] sm:$0xff]
  %v216 = vld [vmem:[%s0 + $0x5c0] sm:$0xff]
  %v217 = vld [vmem:[%s0 + $0x5c8] sm:$0xff]
  %v218 = vld [vmem:[%s0 + $0x5d0] sm:$0xff]
  %v219 = vld [vmem:[%s0 + $0x5d8] sm:$0xff]
  %v220 = vld [vmem:[%s0 + $0x5e0] sm:$0xff]
  %v221 = vld [vmem:[%s0 + $0x5e8] sm:$0xff]
  %v222 = vld [vmem:[%s0 + $0x5f0] sm:$0xff]
  %v223 = vld [vmem:[%s0 + $0x5f8] sm:$0xff]
  %v224 = vld [vmem:[%s0 + $0x600] sm:$0xff]
  %v225 = vld [vmem:[%s0 + $0x608] sm:$0xff]
  %v226 = vld [vmem:[%s0 + $0x610] sm:$0xff]
  %v227 = vld [vmem:[%s0 + $0x618] sm:$0xff]
  %v228 = vld [vmem:[%s0 + $0x620] sm:$0xff]
  %v229 = vld [vmem:[%s0 + $0x628] sm:$0xff]
  %v230 = vld [vmem:[%s0 + $0x630] sm:$0xff]
  %v231 = vld [vmem:[%s0 + $0x638] sm:$0xff]
  %v232 = vld [vmem:[%s0 + $0x640] sm:$0xff]
  %v233 = vld [vmem:[%s0 + $0x648] sm:$0xff]
  %v234 = vld [vmem:[%s0 + $0x650] sm:$0xff]
  %v235 = vld [vmem:[%s0 + $0x658] sm:$0xff]
  %v236 = vld [vmem:[%s0 + $0x660] sm:$0xff]
  %v237 = vld [vmem:[%s0 + $0x668] sm:$0xff]
  %v238 = vld [vmem:[%s0 + $0x670] sm:$0xff]
  %v239 = vld [vmem:[%s0 + $0x678] sm:$0xff]
  %v240 = vld [vmem:[%s0 + $0x680] sm:$0xff]
  %v241 = vld [vmem:[%s0 + $0x688] sm:$0xff]
  %v242 = vld [vmem:[%s0 + $0x690] sm:$0xff]
  %v243 = vld [vmem:[%s0 + $0x698] sm:$0xff]
  %v244 = vld [vmem:[%s0 + $0x6a0] sm:$0xff]
  %v245 = vld [vmem:[%s0 + $0x6a8] sm:$0xff]
  %v246 = vld [vmem:[%s0 + $0x6b0] sm:$0xff]
  %v247 = vld [vmem:[%s0 + $0x6b8] sm:$0xff]
  %v248 = vld [vmem:[%s0 + $0x6c0] sm:$0xff]
  %v249 = vld [vmem:[%s0 + $0x6c8] sm:$0xff]
  %v250 = vld [vmem:[%s0 + $0x6d0] sm:$0xff]
  %v251 = vld [vmem:[%s0 + $0x6d8] sm:$0xff]
  %v252 = vld [vmem:[%s0 + $0x6e0] sm:$0xff]
  %v253 = vld [vmem:[%s0 + $0x6e8] sm:$0xff]
  %v254 = vld [vmem:[%s0 + $0x6f0] sm:$0xff]
  %v255 = vld [vmem:[%s0 + $0x6f8] sm:$0xff]
  %v256 = vld [vmem:[%s1] sm:$0xff]
  %v257 = vld [vmem:[%s1 + $0x8] sm:$0xff]
  %v258 = vld [vmem:[%s1 + $0x10] sm:$0xff]
  %v259 = vld [vmem:[%s1 + $0x18] sm:$0xff]
  %v260 = vld [vmem:[%s1 + $0x20] sm:$0xff]
  %v261 = vld [vmem:[%s1 + $0x28] sm:$0xff]
  %v262 = vld [vmem:[%s1 + $0x30] sm:$0xf]
  %v263 = vld [vmem:[%s1 + $0x38] sm:$0xf]
  %s264 = scalar_lea.vmem %s1, 64
  %v265 = vld [vmem:[%s264] sm:$0xff]
  %v266 = vld [vmem:[%s264 + $0x8] sm:$0xff]
  %v267 = vld [vmem:[%s264 + $0x10] sm:$0xff]
  %v268 = vld [vmem:[%s264 + $0x18] sm:$0xff]
  %v269 = vld [vmem:[%s264 + $0x20] sm:$0xff]
  %v270 = vld [vmem:[%s264 + $0x28] sm:$0xff]
  %v271 = vld [vmem:[%s264 + $0x30] sm:$0xf]
  %v272 = vld [vmem:[%s264 + $0x38] sm:$0xf]
  %vm273 = vcmask 228352
  %v275 = vsel %vm273, %v40, 0
  %v278 = vsel %vm273, %v41, 0
  %v281 = vsel %vm273, %v42, 0
  %v284 = vsel %vm273, %v43, 0
  %v287 = vsel %vm273, %v44, 0
  %v290 = vsel %vm273, %v45, 0
  %v293 = vsel %vm273, %v46, 0
  %v296 = vsel %vm273, %v47, 0
  %v299 = vsel %vm273, %v48, 0
  %v302 = vsel %vm273, %v49, 0
  %v305 = vsel %vm273, %v50, 0
  %v308 = vsel %vm273, %v51, 0
  %v311 = vsel %vm273, %v52, 0
  %v314 = vsel %vm273, %v53, 0
  %v317 = vsel %vm273, %v54, 0
  %v320 = vsel %vm273, %v55, 0
  %v323 = vsel %vm273, %v56, 0
  %v326 = vsel %vm273, %v57, 0
  %v329 = vsel %vm273, %v58, 0
  %v332 = vsel %vm273, %v59, 0
  %v335 = vsel %vm273, %v60, 0
  %v338 = vsel %vm273, %v61, 0
  %v341 = vsel %vm273, %v62, 0
  %v344 = vsel %vm273, %v63, 0
  %v347 = vsel %vm273, %v64, 0
  %v350 = vsel %vm273, %v65, 0
  %v353 = vsel %vm273, %v66, 0
  %v356 = vsel %vm273, %v67, 0
  %v359 = vsel %vm273, %v68, 0
  %v362 = vsel %vm273, %v69, 0
  %v365 = vsel %vm273, %v70, 0
  %v368 = vsel %vm273, %v71, 0
  %v371 = vsel %vm273, %v72, 0
  %v374 = vsel %vm273, %v73, 0
  %v377 = vsel %vm273, %v74, 0
  %v380 = vsel %vm273, %v75, 0
  %v383 = vsel %vm273, %v76, 0
  %v386 = vsel %vm273, %v77, 0
  %v389 = vsel %vm273, %v78, 0
  %v392 = vsel %vm273, %v79, 0
  %v395 = vsel %vm273, %v80, 0
  %v398 = vsel %vm273, %v81, 0
  %v401 = vsel %vm273, %v82, 0
  %v404 = vsel %vm273, %v83, 0
  %v407 = vsel %vm273, %v84, 0
  %v410 = vsel %vm273, %v85, 0
  %v413 = vsel %vm273, %v86, 0
  %v416 = vsel %vm273, %v87, 0
  %v419 = vsel %vm273, %v88, 0
  %v422 = vsel %vm273, %v89, 0
  %v425 = vsel %vm273, %v90, 0
  %v428 = vsel %vm273, %v91, 0
  %v431 = vsel %vm273, %v92, 0
  %v434 = vsel %vm273, %v93, 0
  %v437 = vsel %vm273, %v94, 0
  %v440 = vsel %vm273, %v95, 0
  %v443 = vsel %vm273, %v96, 0
  %v446 = vsel %vm273, %v97, 0
  %v449 = vsel %vm273, %v98, 0
  %v452 = vsel %vm273, %v99, 0
  %v455 = vsel %vm273, %v100, 0
  %v458 = vsel %vm273, %v101, 0
  %v461 = vsel %vm273, %v102, 0
  %v464 = vsel %vm273, %v103, 0
  %v467 = vsel %vm273, %v104, 0
  %v470 = vsel %vm273, %v105, 0
  %v473 = vsel %vm273, %v106, 0
  %v476 = vsel %vm273, %v107, 0
  %v479 = vsel %vm273, %v108, 0
  %v482 = vsel %vm273, %v109, 0
  %v485 = vsel %vm273, %v110, 0
  %v488 = vsel %vm273, %v111, 0
  %v491 = vsel %vm273, %v112, 0
  %v494 = vsel %vm273, %v113, 0
  %v497 = vsel %vm273, %v114, 0
  %v500 = vsel %vm273, %v115, 0
  %v503 = vsel %vm273, %v116, 0
  %v506 = vsel %vm273, %v117, 0
  %v509 = vsel %vm273, %v118, 0
  %v512 = vsel %vm273, %v119, 0
  %v515 = vsel %vm273, %v120, 0
  %v518 = vsel %vm273, %v121, 0
  %v521 = vsel %vm273, %v122, 0
  %v524 = vsel %vm273, %v123, 0
  %v527 = vsel %vm273, %v124, 0
  %v530 = vsel %vm273, %v125, 0
  %v533 = vsel %vm273, %v126, 0
  %v536 = vsel %vm273, %v127, 0
  %v539 = vsel %vm273, %v128, 0
  %v542 = vsel %vm273, %v129, 0
  %v545 = vsel %vm273, %v130, 0
  %v548 = vsel %vm273, %v131, 0
  %v551 = vsel %vm273, %v132, 0
  %v554 = vsel %vm273, %v133, 0
  %v557 = vsel %vm273, %v134, 0
  %v560 = vsel %vm273, %v135, 0
  %v563 = vsel %vm273, %v136, 0
  %v566 = vsel %vm273, %v137, 0
  %v569 = vsel %vm273, %v138, 0
  %v572 = vsel %vm273, %v139, 0
  %v575 = vsel %vm273, %v140, 0
  %v578 = vsel %vm273, %v141, 0
  %v581 = vsel %vm273, %v142, 0
  %v584 = vsel %vm273, %v143, 0
  %v587 = vsel %vm273, %v144, 0
  %v590 = vsel %vm273, %v145, 0
  %v593 = vsel %vm273, %v146, 0
  %v596 = vsel %vm273, %v147, 0
  %v599 = vsel %vm273, %v148, 0
  %v602 = vsel %vm273, %v149, 0
  %v605 = vsel %vm273, %v150, 0
  %v608 = vsel %vm273, %v151, 0
  %v611 = vsel %vm273, %v152, 0
  %v614 = vsel %vm273, %v153, 0
  %v617 = vsel %vm273, %v154, 0
  %v620 = vsel %vm273, %v155, 0
  %v623 = vsel %vm273, %v156, 0
  %v626 = vsel %vm273, %v157, 0
  %v629 = vsel %vm273, %v158, 0
  %v632 = vsel %vm273, %v159, 0
  %v635 = vsel %vm273, %v160, 0
  %v638 = vsel %vm273, %v161, 0
  %v641 = vsel %vm273, %v162, 0
  %v644 = vsel %vm273, %v163, 0
  %v647 = vsel %vm273, %v164, 0
  %v650 = vsel %vm273, %v165, 0
  %v653 = vsel %vm273, %v166, 0
  %v656 = vsel %vm273, %v167, 0
  %v659 = vsel %vm273, %v168, 0
  %v662 = vsel %vm273, %v169, 0
  %v665 = vsel %vm273, %v170, 0
  %v668 = vsel %vm273, %v171, 0
  %v671 = vsel %vm273, %v172, 0
  %v674 = vsel %vm273, %v173, 0
  %v677 = vsel %vm273, %v174, 0
  %v680 = vsel %vm273, %v175, 0
  %v683 = vsel %vm273, %v176, 0
  %v686 = vsel %vm273, %v177, 0
  %v689 = vsel %vm273, %v178, 0
  %v692 = vsel %vm273, %v179, 0
  %v695 = vsel %vm273, %v180, 0
  %v698 = vsel %vm273, %v181, 0
  %v701 = vsel %vm273, %v182, 0
  %v704 = vsel %vm273, %v183, 0
  %v707 = vsel %vm273, %v184, 0
  %v710 = vsel %vm273, %v185, 0
  %v713 = vsel %vm273, %v186, 0
  %v716 = vsel %vm273, %v187, 0
  %v719 = vsel %vm273, %v188, 0
  %v722 = vsel %vm273, %v189, 0
  %v725 = vsel %vm273, %v190, 0
  %v728 = vsel %vm273, %v191, 0
  %v731 = vsel %vm273, %v192, 0
  %v734 = vsel %vm273, %v193, 0
  %v737 = vsel %vm273, %v194, 0
  %v740 = vsel %vm273, %v195, 0
  %v743 = vsel %vm273, %v196, 0
  %v746 = vsel %vm273, %v197, 0
  %v749 = vsel %vm273, %v198, 0
  %v752 = vsel %vm273, %v199, 0
  %v755 = vsel %vm273, %v200, 0
  %v758 = vsel %vm273, %v201, 0
  %v761 = vsel %vm273, %v202, 0
  %v764 = vsel %vm273, %v203, 0
  %v767 = vsel %vm273, %v204, 0
  %v770 = vsel %vm273, %v205, 0
  %v773 = vsel %vm273, %v206, 0
  %v776 = vsel %vm273, %v207, 0
  %v779 = vsel %vm273, %v208, 0
  %v782 = vsel %vm273, %v209, 0
  %v785 = vsel %vm273, %v210, 0
  %v788 = vsel %vm273, %v211, 0
  %v791 = vsel %vm273, %v212, 0
  %v794 = vsel %vm273, %v213, 0
  %v797 = vsel %vm273, %v214, 0
  %v800 = vsel %vm273, %v215, 0
  %v803 = vsel %vm273, %v216, 0
  %v806 = vsel %vm273, %v217, 0
  %v809 = vsel %vm273, %v218, 0
  %v812 = vsel %vm273, %v219, 0
  %v815 = vsel %vm273, %v220, 0
  %v818 = vsel %vm273, %v221, 0
  %v821 = vsel %vm273, %v222, 0
  %v824 = vsel %vm273, %v223, 0
  %v827 = vsel %vm273, %v224, 0
  %v830 = vsel %vm273, %v225, 0
  %v833 = vsel %vm273, %v226, 0
  %v836 = vsel %vm273, %v227, 0
  %v839 = vsel %vm273, %v228, 0
  %v842 = vsel %vm273, %v229, 0
  %v845 = vsel %vm273, %v230, 0
  %v848 = vsel %vm273, %v231, 0
  %vm850 = vcmask 1043456
  %v852 = vsel %vm850, %v271, 0
  %v855 = vsel %vm850, %v272, 0
  %857 = vmatprep.subr.mxu0 0.0
  %858 = vmatpush1.msra.mxu0 0.0
  %859 = vmatprep.subr.mxu0 0.0
  %860 = vmatpush1.msra.mxu0 0.0
  %861 = vmatprep.subr.mxu0 0.0
  %862 = vmatpush1.msra.mxu0 0.0
  %863 = vmatprep.subr.mxu0 0.0
  %864 = vmatpush1.msra.mxu0 0.0
  %865 = vmatprep.subr.mxu0 0.0
  %866 = vmatpush1.msra.mxu0 0.0
  %867 = vmatprep.subr.mxu0 0.0
  %868 = vmatpush1.msra.mxu0 0.0
  %869 = vmatprep.subr.mxu0 0.0
  %870 = vmatpush1.msra.mxu0 0.0
  %871 = vmatprep.subr.mxu0 0.0
  %872 = vmatpush1.msra.mxu0 0.0
  %873 = vmatprep.subr.mxu0 0.0
  %874 = vmatpush1.msra.mxu0 0.0
  %875 = vmatprep.subr.mxu0 0.0
  %876 = vmatpush1.msra.mxu0 0.0
  %877 = vmatprep.subr.mxu0 0.0
  %878 = vmatpush1.msra.mxu0 0.0
  %879 = vmatprep.subr.mxu0 0.0
  %880 = vmatpush1.msra.mxu0 0.0
  %881 = vmatprep.subr.mxu0 %v855
  %882 = vmatpush1.msra.mxu0 %v852
  %883 = vmatprep.subr.mxu0 %v270
  %884 = vmatpush1.msra.mxu0 %v269
  %885 = vmatprep.subr.mxu0 %v268
  %886 = vmatpush1.msra.mxu0 %v267
  %887 = vmatprep.subr.mxu0 %v266
  %888 = vmatpush1.msra.mxu0 %v265
  %889 = vmatprep.subr.mxu0 0.0
  %890 = vmatpush2.msra.mxu0 0.0
  %891 = vmatprep.subr.mxu0 0.0
  %892 = vmatpush2.msra.mxu0 0.0
  %893 = vmatprep.subr.mxu0 0.0
  %894 = vmatpush2.msra.mxu0 0.0
  %895 = vmatprep.subr.mxu0 0.0
  %896 = vmatpush2.msra.mxu0 0.0
  %897 = vmatprep.subr.mxu0 0.0
  %898 = vmatpush2.msra.mxu0 0.0
  %899 = vmatprep.subr.mxu0 0.0
  %900 = vmatpush2.msra.mxu0 0.0
  %901 = vmatprep.subr.mxu0 0.0
  %902 = vmatpush2.msra.mxu0 0.0
  %903 = vmatprep.subr.mxu0 0.0
  %904 = vmatpush2.msra.mxu0 0.0
  %905 = vmatprep.subr.mxu0 0.0
  %906 = vmatpush2.msra.mxu0 0.0
  %907 = vmatprep.subr.mxu0 0.0
  %908 = vmatpush2.msra.mxu0 0.0
  %909 = vmatprep.subr.mxu0 0.0
  %910 = vmatpush2.msra.mxu0 0.0
  %911 = vmatprep.subr.mxu0 0.0
  %912 = vmatpush2.msra.mxu0 0.0
  %913 = vmatprep.subr.mxu0 0.0
  %914 = vmatpush2.msra.mxu0 0.0
  %915 = vmatprep.subr.mxu0 0.0
  %916 = vmatpush2.msra.mxu0 0.0
  %917 = vmatprep.subr.mxu0 0.0
  %918 = vmatpush2.msra.mxu0 0.0
  %919 = vmatprep.subr.mxu0 0.0
  %920 = vmatpush2.msra.mxu0 0.0
  %921 = vmatprep.mubr.f32.mxu0 0.0
  %922 = vmatmul.mubr.f32.gmra.mxu0 %v275
  %v923 = vpop.f32.mrf.mxu0
  %v924 = vadd.f32 0.0, %v923
  %v925 = vpop.f32.mrf.mxu0
  %v926 = vadd.f32 0.0, %v925
  %927 = vmatprep.mubr.f32.mxu0 0.0
  %928 = vmatmul.mubr.f32.gmra.mxu0 %v278
  %v929 = vpop.f32.mrf.mxu0
  %v930 = vadd.f32 0.0, %v929
  %v931 = vpop.f32.mrf.mxu0
  %v932 = vadd.f32 0.0, %v931
  %933 = vmatprep.mubr.f32.mxu0 0.0
  %934 = vmatmul.mubr.f32.gmra.mxu0 %v281
  %v935 = vpop.f32.mrf.mxu0
  %v936 = vadd.f32 0.0, %v935
  %v937 = vpop.f32.mrf.mxu0
  %v938 = vadd.f32 0.0, %v937
  %939 = vmatprep.mubr.f32.mxu0 0.0
  %940 = vmatmul.mubr.f32.gmra.mxu0 %v284
  %v941 = vpop.f32.mrf.mxu0
  %v942 = vadd.f32 0.0, %v941
  %v943 = vpop.f32.mrf.mxu0
  %v944 = vadd.f32 0.0, %v943
  %945 = vmatprep.mubr.f32.mxu0 0.0
  %946 = vmatmul.mubr.f32.gmra.mxu0 %v287
  %v947 = vpop.f32.mrf.mxu0
  %v948 = vadd.f32 0.0, %v947
  %v949 = vpop.f32.mrf.mxu0
  %v950 = vadd.f32 0.0, %v949
  %951 = vmatprep.mubr.f32.mxu0 0.0
  %952 = vmatmul.mubr.f32.gmra.mxu0 %v290
  %v953 = vpop.f32.mrf.mxu0
  %v954 = vadd.f32 0.0, %v953
  %v955 = vpop.f32.mrf.mxu0
  %v956 = vadd.f32 0.0, %v955
  %957 = vmatprep.mubr.f32.mxu0 0.0
  %958 = vmatmul.mubr.f32.gmra.mxu0 %v293
  %v959 = vpop.f32.mrf.mxu0
  %v960 = vadd.f32 0.0, %v959
  %v961 = vpop.f32.mrf.mxu0
  %v962 = vadd.f32 0.0, %v961
  %963 = vmatprep.mubr.f32.mxu0 0.0
  %964 = vmatmul.mubr.f32.gmra.mxu0 %v296
  %v965 = vpop.f32.mrf.mxu0
  %v966 = vadd.f32 0.0, %v965
  %v967 = vpop.f32.mrf.mxu0
  %v968 = vadd.f32 0.0, %v967
  %969 = vmatprep.mubr.f32.mxu0 0.0
  %970 = vmatmul.mubr.f32.gmra.mxu0 %v299
  %v971 = vpop.f32.mrf.mxu0
  %v972 = vadd.f32 0.0, %v971
  %v973 = vpop.f32.mrf.mxu0
  %v974 = vadd.f32 0.0, %v973
  %975 = vmatprep.mubr.f32.mxu0 0.0
  %976 = vmatmul.mubr.f32.gmra.mxu0 %v302
  %v977 = vpop.f32.mrf.mxu0
  %v978 = vadd.f32 0.0, %v977
  %v979 = vpop.f32.mrf.mxu0
  %v980 = vadd.f32 0.0, %v979
  %981 = vmatprep.mubr.f32.mxu0 0.0
  %982 = vmatmul.mubr.f32.gmra.mxu0 %v305
  %v983 = vpop.f32.mrf.mxu0
  %v984 = vadd.f32 0.0, %v983
  %v985 = vpop.f32.mrf.mxu0
  %v986 = vadd.f32 0.0, %v985
  %987 = vmatprep.mubr.f32.mxu0 0.0
  %988 = vmatmul.mubr.f32.gmra.mxu0 %v308
  %v989 = vpop.f32.mrf.mxu0
  %v990 = vadd.f32 0.0, %v989
  %v991 = vpop.f32.mrf.mxu0
  %v992 = vadd.f32 0.0, %v991
  %993 = vmatprep.mubr.f32.mxu0 0.0
  %994 = vmatmul.mubr.f32.gmra.mxu0 %v311
  %v995 = vpop.f32.mrf.mxu0
  %v996 = vadd.f32 0.0, %v995
  %v997 = vpop.f32.mrf.mxu0
  %v998 = vadd.f32 0.0, %v997
  %999 = vmatprep.mubr.f32.mxu0 0.0
  %1000 = vmatmul.mubr.f32.gmra.mxu0 %v314
  %v1001 = vpop.f32.mrf.mxu0
  %v1002 = vadd.f32 0.0, %v1001
  %v1003 = vpop.f32.mrf.mxu0
  %v1004 = vadd.f32 0.0, %v1003
  %1005 = vmatprep.mubr.f32.mxu0 0.0
  %1006 = vmatmul.mubr.f32.gmra.mxu0 %v317
  %v1007 = vpop.f32.mrf.mxu0
  %v1008 = vadd.f32 0.0, %v1007
  %v1009 = vpop.f32.mrf.mxu0
  %v1010 = vadd.f32 0.0, %v1009
  %1011 = vmatprep.mubr.f32.mxu0 0.0
  %1012 = vmatmul.mubr.f32.gmra.mxu0 %v320
  %v1013 = vpop.f32.mrf.mxu0
  %v1014 = vadd.f32 0.0, %v1013
  %v1015 = vpop.f32.mrf.mxu0
  %v1016 = vadd.f32 0.0, %v1015
  %1017 = vmatprep.mubr.f32.mxu0 0.0
  %1018 = vmatmul.mubr.f32.gmra.mxu0 %v323
  %v1019 = vpop.f32.mrf.mxu0
  %v1020 = vadd.f32 0.0, %v1019
  %v1021 = vpop.f32.mrf.mxu0
  %v1022 = vadd.f32 0.0, %v1021
  %1023 = vmatprep.mubr.f32.mxu0 0.0
  %1024 = vmatmul.mubr.f32.gmra.mxu0 %v326
  %v1025 = vpop.f32.mrf.mxu0
  %v1026 = vadd.f32 0.0, %v1025
  %v1027 = vpop.f32.mrf.mxu0
  %v1028 = vadd.f32 0.0, %v1027
  %1029 = vmatprep.mubr.f32.mxu0 0.0
  %1030 = vmatmul.mubr.f32.gmra.mxu0 %v329
  %v1031 = vpop.f32.mrf.mxu0
  %v1032 = vadd.f32 0.0, %v1031
  %v1033 = vpop.f32.mrf.mxu0
  %v1034 = vadd.f32 0.0, %v1033
  %1035 = vmatprep.mubr.f32.mxu0 0.0
  %1036 = vmatmul.mubr.f32.gmra.mxu0 %v332
  %v1037 = vpop.f32.mrf.mxu0
  %v1038 = vadd.f32 0.0, %v1037
  %v1039 = vpop.f32.mrf.mxu0
  %v1040 = vadd.f32 0.0, %v1039
  %1041 = vmatprep.mubr.f32.mxu0 0.0
  %1042 = vmatmul.mubr.f32.gmra.mxu0 %v335
  %v1043 = vpop.f32.mrf.mxu0
  %v1044 = vadd.f32 0.0, %v1043
  %v1045 = vpop.f32.mrf.mxu0
  %v1046 = vadd.f32 0.0, %v1045
  %1047 = vmatprep.mubr.f32.mxu0 0.0
  %1048 = vmatmul.mubr.f32.gmra.mxu0 %v338
  %v1049 = vpop.f32.mrf.mxu0
  %v1050 = vadd.f32 0.0, %v1049
  %v1051 = vpop.f32.mrf.mxu0
  %v1052 = vadd.f32 0.0, %v1051
  %1053 = vmatprep.mubr.f32.mxu0 0.0
  %1054 = vmatmul.mubr.f32.gmra.mxu0 %v341
  %v1055 = vpop.f32.mrf.mxu0
  %v1056 = vadd.f32 0.0, %v1055
  %v1057 = vpop.f32.mrf.mxu0
  %v1058 = vadd.f32 0.0, %v1057
  %1059 = vmatprep.mubr.f32.mxu0 0.0
  %1060 = vmatmul.mubr.f32.gmra.mxu0 %v344
  %v1061 = vpop.f32.mrf.mxu0
  %v1062 = vadd.f32 0.0, %v1061
  %v1063 = vpop.f32.mrf.mxu0
  %v1064 = vadd.f32 0.0, %v1063
  %1065 = vmatprep.mubr.f32.mxu0 0.0
  %1066 = vmatmul.mubr.f32.gmra.mxu0 %v347
  %v1067 = vpop.f32.mrf.mxu0
  %v1068 = vadd.f32 0.0, %v1067
  %v1069 = vpop.f32.mrf.mxu0
  %v1070 = vadd.f32 0.0, %v1069
  %1071 = vmatprep.mubr.f32.mxu0 0.0
  %1072 = vmatmul.mubr.f32.gmra.mxu0 %v350
  %v1073 = vpop.f32.mrf.mxu0
  %v1074 = vadd.f32 0.0, %v1073
  %v1075 = vpop.f32.mrf.mxu0
  %v1076 = vadd.f32 0.0, %v1075
  %1077 = vmatprep.mubr.f32.mxu0 0.0
  %1078 = vmatmul.mubr.f32.gmra.mxu0 %v353
  %v1079 = vpop.f32.mrf.mxu0
  %v1080 = vadd.f32 0.0, %v1079
  %v1081 = vpop.f32.mrf.mxu0
  %v1082 = vadd.f32 0.0, %v1081
  %1083 = vmatprep.mubr.f32.mxu0 0.0
  %1084 = vmatmul.mubr.f32.gmra.mxu0 %v356
  %v1085 = vpop.f32.mrf.mxu0
  %v1086 = vadd.f32 0.0, %v1085
  %v1087 = vpop.f32.mrf.mxu0
  %v1088 = vadd.f32 0.0, %v1087
  %1089 = vmatprep.mubr.f32.mxu0 0.0
  %1090 = vmatmul.mubr.f32.gmra.mxu0 %v359
  %v1091 = vpop.f32.mrf.mxu0
  %v1092 = vadd.f32 0.0, %v1091
  %v1093 = vpop.f32.mrf.mxu0
  %v1094 = vadd.f32 0.0, %v1093
  %1095 = vmatprep.mubr.f32.mxu0 0.0
  %1096 = vmatmul.mubr.f32.gmra.mxu0 %v362
  %v1097 = vpop.f32.mrf.mxu0
  %v1098 = vadd.f32 0.0, %v1097
  %v1099 = vpop.f32.mrf.mxu0
  %v1100 = vadd.f32 0.0, %v1099
  %1101 = vmatprep.mubr.f32.mxu0 0.0
  %1102 = vmatmul.mubr.f32.gmra.mxu0 %v365
  %v1103 = vpop.f32.mrf.mxu0
  %v1104 = vadd.f32 0.0, %v1103
  %v1105 = vpop.f32.mrf.mxu0
  %v1106 = vadd.f32 0.0, %v1105
  %1107 = vmatprep.mubr.f32.mxu0 0.0
  %1108 = vmatmul.mubr.f32.gmra.mxu0 %v368
  %v1109 = vpop.f32.mrf.mxu0
  %v1110 = vadd.f32 0.0, %v1109
  %v1111 = vpop.f32.mrf.mxu0
  %v1112 = vadd.f32 0.0, %v1111
  %1113 = vmatprep.mubr.f32.mxu0 0.0
  %1114 = vmatmul.mubr.f32.gmra.mxu0 %v371
  %v1115 = vpop.f32.mrf.mxu0
  %v1116 = vadd.f32 0.0, %v1115
  %v1117 = vpop.f32.mrf.mxu0
  %v1118 = vadd.f32 0.0, %v1117
  %1119 = vmatprep.mubr.f32.mxu0 0.0
  %1120 = vmatmul.mubr.f32.gmra.mxu0 %v374
  %v1121 = vpop.f32.mrf.mxu0
  %v1122 = vadd.f32 0.0, %v1121
  %v1123 = vpop.f32.mrf.mxu0
  %v1124 = vadd.f32 0.0, %v1123
  %1125 = vmatprep.mubr.f32.mxu0 0.0
  %1126 = vmatmul.mubr.f32.gmra.mxu0 %v377
  %v1127 = vpop.f32.mrf.mxu0
  %v1128 = vadd.f32 0.0, %v1127
  %v1129 = vpop.f32.mrf.mxu0
  %v1130 = vadd.f32 0.0, %v1129
  %1131 = vmatprep.mubr.f32.mxu0 0.0
  %1132 = vmatmul.mubr.f32.gmra.mxu0 %v380
  %v1133 = vpop.f32.mrf.mxu0
  %v1134 = vadd.f32 0.0, %v1133
  %v1135 = vpop.f32.mrf.mxu0
  %v1136 = vadd.f32 0.0, %v1135
  %1137 = vmatprep.mubr.f32.mxu0 0.0
  %1138 = vmatmul.mubr.f32.gmra.mxu0 %v383
  %v1139 = vpop.f32.mrf.mxu0
  %v1140 = vadd.f32 0.0, %v1139
  %v1141 = vpop.f32.mrf.mxu0
  %v1142 = vadd.f32 0.0, %v1141
  %1143 = vmatprep.mubr.f32.mxu0 0.0
  %1144 = vmatmul.mubr.f32.gmra.mxu0 %v386
  %v1145 = vpop.f32.mrf.mxu0
  %v1146 = vadd.f32 0.0, %v1145
  %v1147 = vpop.f32.mrf.mxu0
  %v1148 = vadd.f32 0.0, %v1147
  %1149 = vmatprep.mubr.f32.mxu0 0.0
  %1150 = vmatmul.mubr.f32.gmra.mxu0 %v389
  %v1151 = vpop.f32.mrf.mxu0
  %v1152 = vadd.f32 0.0, %v1151
  %v1153 = vpop.f32.mrf.mxu0
  %v1154 = vadd.f32 0.0, %v1153
  %1155 = vmatprep.mubr.f32.mxu0 0.0
  %1156 = vmatmul.mubr.f32.gmra.mxu0 %v392
  %v1157 = vpop.f32.mrf.mxu0
  %v1158 = vadd.f32 0.0, %v1157
  %v1159 = vpop.f32.mrf.mxu0
  %v1160 = vadd.f32 0.0, %v1159
  %1161 = vmatprep.mubr.f32.mxu0 0.0
  %1162 = vmatmul.mubr.f32.gmra.mxu0 %v395
  %v1163 = vpop.f32.mrf.mxu0
  %v1164 = vadd.f32 0.0, %v1163
  %v1165 = vpop.f32.mrf.mxu0
  %v1166 = vadd.f32 0.0, %v1165
  %1167 = vmatprep.mubr.f32.mxu0 0.0
  %1168 = vmatmul.mubr.f32.gmra.mxu0 %v398
  %v1169 = vpop.f32.mrf.mxu0
  %v1170 = vadd.f32 0.0, %v1169
  %v1171 = vpop.f32.mrf.mxu0
  %v1172 = vadd.f32 0.0, %v1171
  %1173 = vmatprep.mubr.f32.mxu0 0.0
  %1174 = vmatmul.mubr.f32.gmra.mxu0 %v401
  %v1175 = vpop.f32.mrf.mxu0
  %v1176 = vadd.f32 0.0, %v1175
  %v1177 = vpop.f32.mrf.mxu0
  %v1178 = vadd.f32 0.0, %v1177
  %1179 = vmatprep.mubr.f32.mxu0 0.0
  %1180 = vmatmul.mubr.f32.gmra.mxu0 %v404
  %v1181 = vpop.f32.mrf.mxu0
  %v1182 = vadd.f32 0.0, %v1181
  %v1183 = vpop.f32.mrf.mxu0
  %v1184 = vadd.f32 0.0, %v1183
  %1185 = vmatprep.mubr.f32.mxu0 0.0
  %1186 = vmatmul.mubr.f32.gmra.mxu0 %v407
  %v1187 = vpop.f32.mrf.mxu0
  %v1188 = vadd.f32 0.0, %v1187
  %v1189 = vpop.f32.mrf.mxu0
  %v1190 = vadd.f32 0.0, %v1189
  %1191 = vmatprep.mubr.f32.mxu0 0.0
  %1192 = vmatmul.mubr.f32.gmra.mxu0 %v410
  %v1193 = vpop.f32.mrf.mxu0
  %v1194 = vadd.f32 0.0, %v1193
  %v1195 = vpop.f32.mrf.mxu0
  %v1196 = vadd.f32 0.0, %v1195
  %1197 = vmatprep.mubr.f32.mxu0 0.0
  %1198 = vmatmul.mubr.f32.gmra.mxu0 %v413
  %v1199 = vpop.f32.mrf.mxu0
  %v1200 = vadd.f32 0.0, %v1199
  %v1201 = vpop.f32.mrf.mxu0
  %v1202 = vadd.f32 0.0, %v1201
  %1203 = vmatprep.mubr.f32.mxu0 0.0
  %1204 = vmatmul.mubr.f32.gmra.mxu0 %v416
  %v1205 = vpop.f32.mrf.mxu0
  %v1206 = vadd.f32 0.0, %v1205
  %v1207 = vpop.f32.mrf.mxu0
  %v1208 = vadd.f32 0.0, %v1207
  %1209 = vmatprep.mubr.f32.mxu0 0.0
  %1210 = vmatmul.mubr.f32.gmra.mxu0 %v419
  %v1211 = vpop.f32.mrf.mxu0
  %v1212 = vadd.f32 0.0, %v1211
  %v1213 = vpop.f32.mrf.mxu0
  %v1214 = vadd.f32 0.0, %v1213
  %1215 = vmatprep.mubr.f32.mxu0 0.0
  %1216 = vmatmul.mubr.f32.gmra.mxu0 %v422
  %v1217 = vpop.f32.mrf.mxu0
  %v1218 = vadd.f32 0.0, %v1217
  %v1219 = vpop.f32.mrf.mxu0
  %v1220 = vadd.f32 0.0, %v1219
  %1221 = vmatprep.mubr.f32.mxu0 0.0
  %1222 = vmatmul.mubr.f32.gmra.mxu0 %v425
  %v1223 = vpop.f32.mrf.mxu0
  %v1224 = vadd.f32 0.0, %v1223
  %v1225 = vpop.f32.mrf.mxu0
  %v1226 = vadd.f32 0.0, %v1225
  %1227 = vmatprep.mubr.f32.mxu0 0.0
  %1228 = vmatmul.mubr.f32.gmra.mxu0 %v428
  %v1229 = vpop.f32.mrf.mxu0
  %v1230 = vadd.f32 0.0, %v1229
  %v1231 = vpop.f32.mrf.mxu0
  %v1232 = vadd.f32 0.0, %v1231
  %1233 = vmatprep.mubr.f32.mxu0 0.0
  %1234 = vmatmul.mubr.f32.gmra.mxu0 %v431
  %v1235 = vpop.f32.mrf.mxu0
  %v1236 = vadd.f32 0.0, %v1235
  %v1237 = vpop.f32.mrf.mxu0
  %v1238 = vadd.f32 0.0, %v1237
  %1239 = vmatprep.mubr.f32.mxu0 0.0
  %1240 = vmatmul.mubr.f32.gmra.mxu0 %v434
  %v1241 = vpop.f32.mrf.mxu0
  %v1242 = vadd.f32 0.0, %v1241
  %v1243 = vpop.f32.mrf.mxu0
  %v1244 = vadd.f32 0.0, %v1243
  %1245 = vmatprep.mubr.f32.mxu0 0.0
  %1246 = vmatmul.mubr.f32.gmra.mxu0 %v437
  %v1247 = vpop.f32.mrf.mxu0
  %v1248 = vadd.f32 0.0, %v1247
  %v1249 = vpop.f32.mrf.mxu0
  %v1250 = vadd.f32 0.0, %v1249
  %1251 = vmatprep.mubr.f32.mxu0 0.0
  %1252 = vmatmul.mubr.f32.gmra.mxu0 %v440
  %v1253 = vpop.f32.mrf.mxu0
  %v1254 = vadd.f32 0.0, %v1253
  %v1255 = vpop.f32.mrf.mxu0
  %v1256 = vadd.f32 0.0, %v1255
  %1257 = vmatprep.mubr.f32.mxu0 0.0
  %1258 = vmatmul.mubr.f32.gmra.mxu0 %v443
  %v1259 = vpop.f32.mrf.mxu0
  %v1260 = vadd.f32 0.0, %v1259
  %v1261 = vpop.f32.mrf.mxu0
  %v1262 = vadd.f32 0.0, %v1261
  %1263 = vmatprep.mubr.f32.mxu0 0.0
  %1264 = vmatmul.mubr.f32.gmra.mxu0 %v446
  %v1265 = vpop.f32.mrf.mxu0
  %v1266 = vadd.f32 0.0, %v1265
  %v1267 = vpop.f32.mrf.mxu0
  %v1268 = vadd.f32 0.0, %v1267
  %1269 = vmatprep.mubr.f32.mxu0 0.0
  %1270 = vmatmul.mubr.f32.gmra.mxu0 %v449
  %v1271 = vpop.f32.mrf.mxu0
  %v1272 = vadd.f32 0.0, %v1271
  %v1273 = vpop.f32.mrf.mxu0
  %v1274 = vadd.f32 0.0, %v1273
  %1275 = vmatprep.mubr.f32.mxu0 0.0
  %1276 = vmatmul.mubr.f32.gmra.mxu0 %v452
  %v1277 = vpop.f32.mrf.mxu0
  %v1278 = vadd.f32 0.0, %v1277
  %v1279 = vpop.f32.mrf.mxu0
  %v1280 = vadd.f32 0.0, %v1279
  %1281 = vmatprep.mubr.f32.mxu0 0.0
  %1282 = vmatmul.mubr.f32.gmra.mxu0 %v455
  %v1283 = vpop.f32.mrf.mxu0
  %v1284 = vadd.f32 0.0, %v1283
  %v1285 = vpop.f32.mrf.mxu0
  %v1286 = vadd.f32 0.0, %v1285
  %1287 = vmatprep.mubr.f32.mxu0 0.0
  %1288 = vmatmul.mubr.f32.gmra.mxu0 %v458
  %v1289 = vpop.f32.mrf.mxu0
  %v1290 = vadd.f32 0.0, %v1289
  %v1291 = vpop.f32.mrf.mxu0
  %v1292 = vadd.f32 0.0, %v1291
  %1293 = vmatprep.mubr.f32.mxu0 0.0
  %1294 = vmatmul.mubr.f32.gmra.mxu0 %v461
  %v1295 = vpop.f32.mrf.mxu0
  %v1296 = vadd.f32 0.0, %v1295
  %v1297 = vpop.f32.mrf.mxu0
  %v1298 = vadd.f32 0.0, %v1297
  %1299 = vmatprep.mubr.f32.mxu0 0.0
  %1300 = vmatmul.mubr.f32.gmra.mxu0 %v464
  %v1301 = vpop.f32.mrf.mxu0
  %v1302 = vadd.f32 0.0, %v1301
  %v1303 = vpop.f32.mrf.mxu0
  %v1304 = vadd.f32 0.0, %v1303
  %1305 = vmatprep.mubr.f32.mxu0 0.0
  %1306 = vmatmul.mubr.f32.gmra.mxu0 %v467
  %v1307 = vpop.f32.mrf.mxu0
  %v1308 = vadd.f32 0.0, %v1307
  %v1309 = vpop.f32.mrf.mxu0
  %v1310 = vadd.f32 0.0, %v1309
  %1311 = vmatprep.mubr.f32.mxu0 0.0
  %1312 = vmatmul.mubr.f32.gmra.mxu0 %v470
  %v1313 = vpop.f32.mrf.mxu0
  %v1314 = vadd.f32 0.0, %v1313
  %v1315 = vpop.f32.mrf.mxu0
  %v1316 = vadd.f32 0.0, %v1315
  %1317 = vmatprep.mubr.f32.mxu0 0.0
  %1318 = vmatmul.mubr.f32.gmra.mxu0 %v473
  %v1319 = vpop.f32.mrf.mxu0
  %v1320 = vadd.f32 0.0, %v1319
  %v1321 = vpop.f32.mrf.mxu0
  %v1322 = vadd.f32 0.0, %v1321
  %1323 = vmatprep.mubr.f32.mxu0 0.0
  %1324 = vmatmul.mubr.f32.gmra.mxu0 %v476
  %v1325 = vpop.f32.mrf.mxu0
  %v1326 = vadd.f32 0.0, %v1325
  %v1327 = vpop.f32.mrf.mxu0
  %v1328 = vadd.f32 0.0, %v1327
  %1329 = vmatprep.mubr.f32.mxu0 0.0
  %1330 = vmatmul.mubr.f32.gmra.mxu0 %v479
  %v1331 = vpop.f32.mrf.mxu0
  %v1332 = vadd.f32 0.0, %v1331
  %v1333 = vpop.f32.mrf.mxu0
  %v1334 = vadd.f32 0.0, %v1333
  %1335 = vmatprep.mubr.f32.mxu0 0.0
  %1336 = vmatmul.mubr.f32.gmra.mxu0 %v482
  %v1337 = vpop.f32.mrf.mxu0
  %v1338 = vadd.f32 0.0, %v1337
  %v1339 = vpop.f32.mrf.mxu0
  %v1340 = vadd.f32 0.0, %v1339
  %1341 = vmatprep.mubr.f32.mxu0 0.0
  %1342 = vmatmul.mubr.f32.gmra.mxu0 %v485
  %v1343 = vpop.f32.mrf.mxu0
  %v1344 = vadd.f32 0.0, %v1343
  %v1345 = vpop.f32.mrf.mxu0
  %v1346 = vadd.f32 0.0, %v1345
  %1347 = vmatprep.mubr.f32.mxu0 0.0
  %1348 = vmatmul.mubr.f32.gmra.mxu0 %v488
  %v1349 = vpop.f32.mrf.mxu0
  %v1350 = vadd.f32 0.0, %v1349
  %v1351 = vpop.f32.mrf.mxu0
  %v1352 = vadd.f32 0.0, %v1351
  %1353 = vmatprep.mubr.f32.mxu0 0.0
  %1354 = vmatmul.mubr.f32.gmra.mxu0 %v491
  %v1355 = vpop.f32.mrf.mxu0
  %v1356 = vadd.f32 0.0, %v1355
  %v1357 = vpop.f32.mrf.mxu0
  %v1358 = vadd.f32 0.0, %v1357
  %1359 = vmatprep.mubr.f32.mxu0 0.0
  %1360 = vmatmul.mubr.f32.gmra.mxu0 %v494
  %v1361 = vpop.f32.mrf.mxu0
  %v1362 = vadd.f32 0.0, %v1361
  %v1363 = vpop.f32.mrf.mxu0
  %v1364 = vadd.f32 0.0, %v1363
  %1365 = vmatprep.mubr.f32.mxu0 0.0
  %1366 = vmatmul.mubr.f32.gmra.mxu0 %v497
  %v1367 = vpop.f32.mrf.mxu0
  %v1368 = vadd.f32 0.0, %v1367
  %v1369 = vpop.f32.mrf.mxu0
  %v1370 = vadd.f32 0.0, %v1369
  %1371 = vmatprep.mubr.f32.mxu0 0.0
  %1372 = vmatmul.mubr.f32.gmra.mxu0 %v500
  %v1373 = vpop.f32.mrf.mxu0
  %v1374 = vadd.f32 0.0, %v1373
  %v1375 = vpop.f32.mrf.mxu0
  %v1376 = vadd.f32 0.0, %v1375
  %1377 = vmatprep.mubr.f32.mxu0 0.0
  %1378 = vmatmul.mubr.f32.gmra.mxu0 %v503
  %v1379 = vpop.f32.mrf.mxu0
  %v1380 = vadd.f32 0.0, %v1379
  %v1381 = vpop.f32.mrf.mxu0
  %v1382 = vadd.f32 0.0, %v1381
  %1383 = vmatprep.mubr.f32.mxu0 0.0
  %1384 = vmatmul.mubr.f32.gmra.mxu0 %v506
  %v1385 = vpop.f32.mrf.mxu0
  %v1386 = vadd.f32 0.0, %v1385
  %v1387 = vpop.f32.mrf.mxu0
  %v1388 = vadd.f32 0.0, %v1387
  %1389 = vmatprep.mubr.f32.mxu0 0.0
  %1390 = vmatmul.mubr.f32.gmra.mxu0 %v509
  %v1391 = vpop.f32.mrf.mxu0
  %v1392 = vadd.f32 0.0, %v1391
  %v1393 = vpop.f32.mrf.mxu0
  %v1394 = vadd.f32 0.0, %v1393
  %1395 = vmatprep.mubr.f32.mxu0 0.0
  %1396 = vmatmul.mubr.f32.gmra.mxu0 %v512
  %v1397 = vpop.f32.mrf.mxu0
  %v1398 = vadd.f32 0.0, %v1397
  %v1399 = vpop.f32.mrf.mxu0
  %v1400 = vadd.f32 0.0, %v1399
  %1401 = vmatprep.mubr.f32.mxu0 0.0
  %1402 = vmatmul.mubr.f32.gmra.mxu0 %v515
  %v1403 = vpop.f32.mrf.mxu0
  %v1404 = vadd.f32 0.0, %v1403
  %v1405 = vpop.f32.mrf.mxu0
  %v1406 = vadd.f32 0.0, %v1405
  %1407 = vmatprep.mubr.f32.mxu0 0.0
  %1408 = vmatmul.mubr.f32.gmra.mxu0 %v518
  %v1409 = vpop.f32.mrf.mxu0
  %v1410 = vadd.f32 0.0, %v1409
  %v1411 = vpop.f32.mrf.mxu0
  %v1412 = vadd.f32 0.0, %v1411
  %1413 = vmatprep.mubr.f32.mxu0 0.0
  %1414 = vmatmul.mubr.f32.gmra.mxu0 %v521
  %v1415 = vpop.f32.mrf.mxu0
  %v1416 = vadd.f32 0.0, %v1415
  %v1417 = vpop.f32.mrf.mxu0
  %v1418 = vadd.f32 0.0, %v1417
  %1419 = vmatprep.mubr.f32.mxu0 0.0
  %1420 = vmatmul.mubr.f32.gmra.mxu0 %v524
  %v1421 = vpop.f32.mrf.mxu0
  %v1422 = vadd.f32 0.0, %v1421
  %v1423 = vpop.f32.mrf.mxu0
  %v1424 = vadd.f32 0.0, %v1423
  %1425 = vmatprep.mubr.f32.mxu0 0.0
  %1426 = vmatmul.mubr.f32.gmra.mxu0 %v527
  %v1427 = vpop.f32.mrf.mxu0
  %v1428 = vadd.f32 0.0, %v1427
  %v1429 = vpop.f32.mrf.mxu0
  %v1430 = vadd.f32 0.0, %v1429
  %1431 = vmatprep.mubr.f32.mxu0 0.0
  %1432 = vmatmul.mubr.f32.gmra.mxu0 %v530
  %v1433 = vpop.f32.mrf.mxu0
  %v1434 = vadd.f32 0.0, %v1433
  %v1435 = vpop.f32.mrf.mxu0
  %v1436 = vadd.f32 0.0, %v1435
  %1437 = vmatprep.mubr.f32.mxu0 0.0
  %1438 = vmatmul.mubr.f32.gmra.mxu0 %v533
  %v1439 = vpop.f32.mrf.mxu0
  %v1440 = vadd.f32 0.0, %v1439
  %v1441 = vpop.f32.mrf.mxu0
  %v1442 = vadd.f32 0.0, %v1441
  %1443 = vmatprep.mubr.f32.mxu0 0.0
  %1444 = vmatmul.mubr.f32.gmra.mxu0 %v536
  %v1445 = vpop.f32.mrf.mxu0
  %v1446 = vadd.f32 0.0, %v1445
  %v1447 = vpop.f32.mrf.mxu0
  %v1448 = vadd.f32 0.0, %v1447
  %1449 = vmatprep.mubr.f32.mxu0 0.0
  %1450 = vmatmul.mubr.f32.gmra.mxu0 %v539
  %v1451 = vpop.f32.mrf.mxu0
  %v1452 = vadd.f32 0.0, %v1451
  %v1453 = vpop.f32.mrf.mxu0
  %v1454 = vadd.f32 0.0, %v1453
  %1455 = vmatprep.mubr.f32.mxu0 0.0
  %1456 = vmatmul.mubr.f32.gmra.mxu0 %v542
  %v1457 = vpop.f32.mrf.mxu0
  %v1458 = vadd.f32 0.0, %v1457
  %v1459 = vpop.f32.mrf.mxu0
  %v1460 = vadd.f32 0.0, %v1459
  %1461 = vmatprep.mubr.f32.mxu0 0.0
  %1462 = vmatmul.mubr.f32.gmra.mxu0 %v545
  %v1463 = vpop.f32.mrf.mxu0
  %v1464 = vadd.f32 0.0, %v1463
  %v1465 = vpop.f32.mrf.mxu0
  %v1466 = vadd.f32 0.0, %v1465
  %1467 = vmatprep.mubr.f32.mxu0 0.0
  %1468 = vmatmul.mubr.f32.gmra.mxu0 %v548
  %v1469 = vpop.f32.mrf.mxu0
  %v1470 = vadd.f32 0.0, %v1469
  %v1471 = vpop.f32.mrf.mxu0
  %v1472 = vadd.f32 0.0, %v1471
  %1473 = vmatprep.mubr.f32.mxu0 0.0
  %1474 = vmatmul.mubr.f32.gmra.mxu0 %v551
  %v1475 = vpop.f32.mrf.mxu0
  %v1476 = vadd.f32 0.0, %v1475
  %v1477 = vpop.f32.mrf.mxu0
  %v1478 = vadd.f32 0.0, %v1477
  %1479 = vmatprep.mubr.f32.mxu0 0.0
  %1480 = vmatmul.mubr.f32.gmra.mxu0 %v554
  %v1481 = vpop.f32.mrf.mxu0
  %v1482 = vadd.f32 0.0, %v1481
  %v1483 = vpop.f32.mrf.mxu0
  %v1484 = vadd.f32 0.0, %v1483
  %1485 = vmatprep.mubr.f32.mxu0 0.0
  %1486 = vmatmul.mubr.f32.gmra.mxu0 %v557
  %v1487 = vpop.f32.mrf.mxu0
  %v1488 = vadd.f32 0.0, %v1487
  %v1489 = vpop.f32.mrf.mxu0
  %v1490 = vadd.f32 0.0, %v1489
  %1491 = vmatprep.mubr.f32.mxu0 0.0
  %1492 = vmatmul.mubr.f32.gmra.mxu0 %v560
  %v1493 = vpop.f32.mrf.mxu0
  %v1494 = vadd.f32 0.0, %v1493
  %v1495 = vpop.f32.mrf.mxu0
  %v1496 = vadd.f32 0.0, %v1495
  %1497 = vmatprep.mubr.f32.mxu0 0.0
  %1498 = vmatmul.mubr.f32.gmra.mxu0 %v563
  %v1499 = vpop.f32.mrf.mxu0
  %v1500 = vadd.f32 0.0, %v1499
  %v1501 = vpop.f32.mrf.mxu0
  %v1502 = vadd.f32 0.0, %v1501
  %1503 = vmatprep.mubr.f32.mxu0 0.0
  %1504 = vmatmul.mubr.f32.gmra.mxu0 %v566
  %v1505 = vpop.f32.mrf.mxu0
  %v1506 = vadd.f32 0.0, %v1505
  %v1507 = vpop.f32.mrf.mxu0
  %v1508 = vadd.f32 0.0, %v1507
  %1509 = vmatprep.mubr.f32.mxu0 0.0
  %1510 = vmatmul.mubr.f32.gmra.mxu0 %v569
  %v1511 = vpop.f32.mrf.mxu0
  %v1512 = vadd.f32 0.0, %v1511
  %v1513 = vpop.f32.mrf.mxu0
  %v1514 = vadd.f32 0.0, %v1513
  %1515 = vmatprep.mubr.f32.mxu0 0.0
  %1516 = vmatmul.mubr.f32.gmra.mxu0 %v572
  %v1517 = vpop.f32.mrf.mxu0
  %v1518 = vadd.f32 0.0, %v1517
  %v1519 = vpop.f32.mrf.mxu0
  %v1520 = vadd.f32 0.0, %v1519
  %1521 = vmatprep.mubr.f32.mxu0 0.0
  %1522 = vmatmul.mubr.f32.gmra.mxu0 %v575
  %v1523 = vpop.f32.mrf.mxu0
  %v1524 = vadd.f32 0.0, %v1523
  %v1525 = vpop.f32.mrf.mxu0
  %v1526 = vadd.f32 0.0, %v1525
  %1527 = vmatprep.mubr.f32.mxu0 0.0
  %1528 = vmatmul.mubr.f32.gmra.mxu0 %v578
  %v1529 = vpop.f32.mrf.mxu0
  %v1530 = vadd.f32 0.0, %v1529
  %v1531 = vpop.f32.mrf.mxu0
  %v1532 = vadd.f32 0.0, %v1531
  %1533 = vmatprep.mubr.f32.mxu0 0.0
  %1534 = vmatmul.mubr.f32.gmra.mxu0 %v581
  %v1535 = vpop.f32.mrf.mxu0
  %v1536 = vadd.f32 0.0, %v1535
  %v1537 = vpop.f32.mrf.mxu0
  %v1538 = vadd.f32 0.0, %v1537
  %1539 = vmatprep.mubr.f32.mxu0 0.0
  %1540 = vmatmul.mubr.f32.gmra.mxu0 %v584
  %v1541 = vpop.f32.mrf.mxu0
  %v1542 = vadd.f32 0.0, %v1541
  %v1543 = vpop.f32.mrf.mxu0
  %v1544 = vadd.f32 0.0, %v1543
  %1545 = vmatprep.mubr.f32.mxu0 0.0
  %1546 = vmatmul.mubr.f32.gmra.mxu0 %v587
  %v1547 = vpop.f32.mrf.mxu0
  %v1548 = vadd.f32 0.0, %v1547
  %v1549 = vpop.f32.mrf.mxu0
  %v1550 = vadd.f32 0.0, %v1549
  %1551 = vmatprep.mubr.f32.mxu0 0.0
  %1552 = vmatmul.mubr.f32.gmra.mxu0 %v590
  %v1553 = vpop.f32.mrf.mxu0
  %v1554 = vadd.f32 0.0, %v1553
  %v1555 = vpop.f32.mrf.mxu0
  %v1556 = vadd.f32 0.0, %v1555
  %1557 = vmatprep.mubr.f32.mxu0 0.0
  %1558 = vmatmul.mubr.f32.gmra.mxu0 %v593
  %v1559 = vpop.f32.mrf.mxu0
  %v1560 = vadd.f32 0.0, %v1559
  %v1561 = vpop.f32.mrf.mxu0
  %v1562 = vadd.f32 0.0, %v1561
  %1563 = vmatprep.mubr.f32.mxu0 0.0
  %1564 = vmatmul.mubr.f32.gmra.mxu0 %v596
  %v1565 = vpop.f32.mrf.mxu0
  %v1566 = vadd.f32 0.0, %v1565
  %v1567 = vpop.f32.mrf.mxu0
  %v1568 = vadd.f32 0.0, %v1567
  %1569 = vmatprep.mubr.f32.mxu0 0.0
  %1570 = vmatmul.mubr.f32.gmra.mxu0 %v599
  %v1571 = vpop.f32.mrf.mxu0
  %v1572 = vadd.f32 0.0, %v1571
  %v1573 = vpop.f32.mrf.mxu0
  %v1574 = vadd.f32 0.0, %v1573
  %1575 = vmatprep.mubr.f32.mxu0 0.0
  %1576 = vmatmul.mubr.f32.gmra.mxu0 %v602
  %v1577 = vpop.f32.mrf.mxu0
  %v1578 = vadd.f32 0.0, %v1577
  %v1579 = vpop.f32.mrf.mxu0
  %v1580 = vadd.f32 0.0, %v1579
  %1581 = vmatprep.mubr.f32.mxu0 0.0
  %1582 = vmatmul.mubr.f32.gmra.mxu0 %v605
  %v1583 = vpop.f32.mrf.mxu0
  %v1584 = vadd.f32 0.0, %v1583
  %v1585 = vpop.f32.mrf.mxu0
  %v1586 = vadd.f32 0.0, %v1585
  %1587 = vmatprep.mubr.f32.mxu0 0.0
  %1588 = vmatmul.mubr.f32.gmra.mxu0 %v608
  %v1589 = vpop.f32.mrf.mxu0
  %v1590 = vadd.f32 0.0, %v1589
  %v1591 = vpop.f32.mrf.mxu0
  %v1592 = vadd.f32 0.0, %v1591
  %1593 = vmatprep.mubr.f32.mxu0 0.0
  %1594 = vmatmul.mubr.f32.gmra.mxu0 %v611
  %v1595 = vpop.f32.mrf.mxu0
  %v1596 = vadd.f32 0.0, %v1595
  %v1597 = vpop.f32.mrf.mxu0
  %v1598 = vadd.f32 0.0, %v1597
  %1599 = vmatprep.mubr.f32.mxu0 0.0
  %1600 = vmatmul.mubr.f32.gmra.mxu0 %v614
  %v1601 = vpop.f32.mrf.mxu0
  %v1602 = vadd.f32 0.0, %v1601
  %v1603 = vpop.f32.mrf.mxu0
  %v1604 = vadd.f32 0.0, %v1603
  %1605 = vmatprep.mubr.f32.mxu0 0.0
  %1606 = vmatmul.mubr.f32.gmra.mxu0 %v617
  %v1607 = vpop.f32.mrf.mxu0
  %v1608 = vadd.f32 0.0, %v1607
  %v1609 = vpop.f32.mrf.mxu0
  %v1610 = vadd.f32 0.0, %v1609
  %1611 = vmatprep.mubr.f32.mxu0 0.0
  %1612 = vmatmul.mubr.f32.gmra.mxu0 %v620
  %v1613 = vpop.f32.mrf.mxu0
  %v1614 = vadd.f32 0.0, %v1613
  %v1615 = vpop.f32.mrf.mxu0
  %v1616 = vadd.f32 0.0, %v1615
  %1617 = vmatprep.mubr.f32.mxu0 0.0
  %1618 = vmatmul.mubr.f32.gmra.mxu0 %v623
  %v1619 = vpop.f32.mrf.mxu0
  %v1620 = vadd.f32 0.0, %v1619
  %v1621 = vpop.f32.mrf.mxu0
  %v1622 = vadd.f32 0.0, %v1621
  %1623 = vmatprep.mubr.f32.mxu0 0.0
  %1624 = vmatmul.mubr.f32.gmra.mxu0 %v626
  %v1625 = vpop.f32.mrf.mxu0
  %v1626 = vadd.f32 0.0, %v1625
  %v1627 = vpop.f32.mrf.mxu0
  %v1628 = vadd.f32 0.0, %v1627
  %1629 = vmatprep.mubr.f32.mxu0 0.0
  %1630 = vmatmul.mubr.f32.gmra.mxu0 %v629
  %v1631 = vpop.f32.mrf.mxu0
  %v1632 = vadd.f32 0.0, %v1631
  %v1633 = vpop.f32.mrf.mxu0
  %v1634 = vadd.f32 0.0, %v1633
  %1635 = vmatprep.mubr.f32.mxu0 0.0
  %1636 = vmatmul.mubr.f32.gmra.mxu0 %v632
  %v1637 = vpop.f32.mrf.mxu0
  %v1638 = vadd.f32 0.0, %v1637
  %v1639 = vpop.f32.mrf.mxu0
  %v1640 = vadd.f32 0.0, %v1639
  %1641 = vmatprep.mubr.f32.mxu0 0.0
  %1642 = vmatmul.mubr.f32.gmra.mxu0 %v635
  %v1643 = vpop.f32.mrf.mxu0
  %v1644 = vadd.f32 0.0, %v1643
  %v1645 = vpop.f32.mrf.mxu0
  %v1646 = vadd.f32 0.0, %v1645
  %1647 = vmatprep.mubr.f32.mxu0 0.0
  %1648 = vmatmul.mubr.f32.gmra.mxu0 %v638
  %v1649 = vpop.f32.mrf.mxu0
  %v1650 = vadd.f32 0.0, %v1649
  %v1651 = vpop.f32.mrf.mxu0
  %v1652 = vadd.f32 0.0, %v1651
  %1653 = vmatprep.mubr.f32.mxu0 0.0
  %1654 = vmatmul.mubr.f32.gmra.mxu0 %v641
  %v1655 = vpop.f32.mrf.mxu0
  %v1656 = vadd.f32 0.0, %v1655
  %v1657 = vpop.f32.mrf.mxu0
  %v1658 = vadd.f32 0.0, %v1657
  %1659 = vmatprep.mubr.f32.mxu0 0.0
  %1660 = vmatmul.mubr.f32.gmra.mxu0 %v644
  %v1661 = vpop.f32.mrf.mxu0
  %v1662 = vadd.f32 0.0, %v1661
  %v1663 = vpop.f32.mrf.mxu0
  %v1664 = vadd.f32 0.0, %v1663
  %1665 = vmatprep.mubr.f32.mxu0 0.0
  %1666 = vmatmul.mubr.f32.gmra.mxu0 %v647
  %v1667 = vpop.f32.mrf.mxu0
  %v1668 = vadd.f32 0.0, %v1667
  %v1669 = vpop.f32.mrf.mxu0
  %v1670 = vadd.f32 0.0, %v1669
  %1671 = vmatprep.mubr.f32.mxu0 0.0
  %1672 = vmatmul.mubr.f32.gmra.mxu0 %v650
  %v1673 = vpop.f32.mrf.mxu0
  %v1674 = vadd.f32 0.0, %v1673
  %v1675 = vpop.f32.mrf.mxu0
  %v1676 = vadd.f32 0.0, %v1675
  %1677 = vmatprep.mubr.f32.mxu0 0.0
  %1678 = vmatmul.mubr.f32.gmra.mxu0 %v653
  %v1679 = vpop.f32.mrf.mxu0
  %v1680 = vadd.f32 0.0, %v1679
  %v1681 = vpop.f32.mrf.mxu0
  %v1682 = vadd.f32 0.0, %v1681
  %1683 = vmatprep.mubr.f32.mxu0 0.0
  %1684 = vmatmul.mubr.f32.gmra.mxu0 %v656
  %v1685 = vpop.f32.mrf.mxu0
  %v1686 = vadd.f32 0.0, %v1685
  %v1687 = vpop.f32.mrf.mxu0
  %v1688 = vadd.f32 0.0, %v1687
  %1689 = vmatprep.mubr.f32.mxu0 0.0
  %1690 = vmatmul.mubr.f32.gmra.mxu0 %v659
  %v1691 = vpop.f32.mrf.mxu0
  %v1692 = vadd.f32 0.0, %v1691
  %v1693 = vpop.f32.mrf.mxu0
  %v1694 = vadd.f32 0.0, %v1693
  %1695 = vmatprep.mubr.f32.mxu0 0.0
  %1696 = vmatmul.mubr.f32.gmra.mxu0 %v662
  %v1697 = vpop.f32.mrf.mxu0
  %v1698 = vadd.f32 0.0, %v1697
  %v1699 = vpop.f32.mrf.mxu0
  %v1700 = vadd.f32 0.0, %v1699
  %1701 = vmatprep.mubr.f32.mxu0 0.0
  %1702 = vmatmul.mubr.f32.gmra.mxu0 %v665
  %v1703 = vpop.f32.mrf.mxu0
  %v1704 = vadd.f32 0.0, %v1703
  %v1705 = vpop.f32.mrf.mxu0
  %v1706 = vadd.f32 0.0, %v1705
  %1707 = vmatprep.mubr.f32.mxu0 0.0
  %1708 = vmatmul.mubr.f32.gmra.mxu0 %v668
  %v1709 = vpop.f32.mrf.mxu0
  %v1710 = vadd.f32 0.0, %v1709
  %v1711 = vpop.f32.mrf.mxu0
  %v1712 = vadd.f32 0.0, %v1711
  %1713 = vmatprep.mubr.f32.mxu0 0.0
  %1714 = vmatmul.mubr.f32.gmra.mxu0 %v671
  %v1715 = vpop.f32.mrf.mxu0
  %v1716 = vadd.f32 0.0, %v1715
  %v1717 = vpop.f32.mrf.mxu0
  %v1718 = vadd.f32 0.0, %v1717
  %1719 = vmatprep.mubr.f32.mxu0 0.0
  %1720 = vmatmul.mubr.f32.gmra.mxu0 %v674
  %v1721 = vpop.f32.mrf.mxu0
  %v1722 = vadd.f32 0.0, %v1721
  %v1723 = vpop.f32.mrf.mxu0
  %v1724 = vadd.f32 0.0, %v1723
  %1725 = vmatprep.mubr.f32.mxu0 0.0
  %1726 = vmatmul.mubr.f32.gmra.mxu0 %v677
  %v1727 = vpop.f32.mrf.mxu0
  %v1728 = vadd.f32 0.0, %v1727
  %v1729 = vpop.f32.mrf.mxu0
  %v1730 = vadd.f32 0.0, %v1729
  %1731 = vmatprep.mubr.f32.mxu0 0.0
  %1732 = vmatmul.mubr.f32.gmra.mxu0 %v680
  %v1733 = vpop.f32.mrf.mxu0
  %v1734 = vadd.f32 0.0, %v1733
  %v1735 = vpop.f32.mrf.mxu0
  %v1736 = vadd.f32 0.0, %v1735
  %1737 = vmatprep.mubr.f32.mxu0 0.0
  %1738 = vmatmul.mubr.f32.gmra.mxu0 %v683
  %v1739 = vpop.f32.mrf.mxu0
  %v1740 = vadd.f32 0.0, %v1739
  %v1741 = vpop.f32.mrf.mxu0
  %v1742 = vadd.f32 0.0, %v1741
  %1743 = vmatprep.mubr.f32.mxu0 0.0
  %1744 = vmatmul.mubr.f32.gmra.mxu0 %v686
  %v1745 = vpop.f32.mrf.mxu0
  %v1746 = vadd.f32 0.0, %v1745
  %v1747 = vpop.f32.mrf.mxu0
  %v1748 = vadd.f32 0.0, %v1747
  %1749 = vmatprep.mubr.f32.mxu0 0.0
  %1750 = vmatmul.mubr.f32.gmra.mxu0 %v689
  %v1751 = vpop.f32.mrf.mxu0
  %v1752 = vadd.f32 0.0, %v1751
  %v1753 = vpop.f32.mrf.mxu0
  %v1754 = vadd.f32 0.0, %v1753
  %1755 = vmatprep.mubr.f32.mxu0 0.0
  %1756 = vmatmul.mubr.f32.gmra.mxu0 %v692
  %v1757 = vpop.f32.mrf.mxu0
  %v1758 = vadd.f32 0.0, %v1757
  %v1759 = vpop.f32.mrf.mxu0
  %v1760 = vadd.f32 0.0, %v1759
  %1761 = vmatprep.mubr.f32.mxu0 0.0
  %1762 = vmatmul.mubr.f32.gmra.mxu0 %v695
  %v1763 = vpop.f32.mrf.mxu0
  %v1764 = vadd.f32 0.0, %v1763
  %v1765 = vpop.f32.mrf.mxu0
  %v1766 = vadd.f32 0.0, %v1765
  %1767 = vmatprep.mubr.f32.mxu0 0.0
  %1768 = vmatmul.mubr.f32.gmra.mxu0 %v698
  %v1769 = vpop.f32.mrf.mxu0
  %v1770 = vadd.f32 0.0, %v1769
  %v1771 = vpop.f32.mrf.mxu0
  %v1772 = vadd.f32 0.0, %v1771
  %1773 = vmatprep.mubr.f32.mxu0 0.0
  %1774 = vmatmul.mubr.f32.gmra.mxu0 %v701
  %v1775 = vpop.f32.mrf.mxu0
  %v1776 = vadd.f32 0.0, %v1775
  %v1777 = vpop.f32.mrf.mxu0
  %v1778 = vadd.f32 0.0, %v1777
  %1779 = vmatprep.mubr.f32.mxu0 0.0
  %1780 = vmatmul.mubr.f32.gmra.mxu0 %v704
  %v1781 = vpop.f32.mrf.mxu0
  %v1782 = vadd.f32 0.0, %v1781
  %v1783 = vpop.f32.mrf.mxu0
  %v1784 = vadd.f32 0.0, %v1783
  %1785 = vmatprep.mubr.f32.mxu0 0.0
  %1786 = vmatmul.mubr.f32.gmra.mxu0 %v707
  %v1787 = vpop.f32.mrf.mxu0
  %v1788 = vadd.f32 0.0, %v1787
  %v1789 = vpop.f32.mrf.mxu0
  %v1790 = vadd.f32 0.0, %v1789
  %1791 = vmatprep.mubr.f32.mxu0 0.0
  %1792 = vmatmul.mubr.f32.gmra.mxu0 %v710
  %v1793 = vpop.f32.mrf.mxu0
  %v1794 = vadd.f32 0.0, %v1793
  %v1795 = vpop.f32.mrf.mxu0
  %v1796 = vadd.f32 0.0, %v1795
  %1797 = vmatprep.mubr.f32.mxu0 0.0
  %1798 = vmatmul.mubr.f32.gmra.mxu0 %v713
  %v1799 = vpop.f32.mrf.mxu0
  %v1800 = vadd.f32 0.0, %v1799
  %v1801 = vpop.f32.mrf.mxu0
  %v1802 = vadd.f32 0.0, %v1801
  %1803 = vmatprep.mubr.f32.mxu0 0.0
  %1804 = vmatmul.mubr.f32.gmra.mxu0 %v716
  %v1805 = vpop.f32.mrf.mxu0
  %v1806 = vadd.f32 0.0, %v1805
  %v1807 = vpop.f32.mrf.mxu0
  %v1808 = vadd.f32 0.0, %v1807
  %1809 = vmatprep.mubr.f32.mxu0 0.0
  %1810 = vmatmul.mubr.f32.gmra.mxu0 %v719
  %v1811 = vpop.f32.mrf.mxu0
  %v1812 = vadd.f32 0.0, %v1811
  %v1813 = vpop.f32.mrf.mxu0
  %v1814 = vadd.f32 0.0, %v1813
  %1815 = vmatprep.mubr.f32.mxu0 0.0
  %1816 = vmatmul.mubr.f32.gmra.mxu0 %v722
  %v1817 = vpop.f32.mrf.mxu0
  %v1818 = vadd.f32 0.0, %v1817
  %v1819 = vpop.f32.mrf.mxu0
  %v1820 = vadd.f32 0.0, %v1819
  %1821 = vmatprep.mubr.f32.mxu0 0.0
  %1822 = vmatmul.mubr.f32.gmra.mxu0 %v725
  %v1823 = vpop.f32.mrf.mxu0
  %v1824 = vadd.f32 0.0, %v1823
  %v1825 = vpop.f32.mrf.mxu0
  %v1826 = vadd.f32 0.0, %v1825
  %1827 = vmatprep.mubr.f32.mxu0 0.0
  %1828 = vmatmul.mubr.f32.gmra.mxu0 %v728
  %v1829 = vpop.f32.mrf.mxu0
  %v1830 = vadd.f32 0.0, %v1829
  %v1831 = vpop.f32.mrf.mxu0
  %v1832 = vadd.f32 0.0, %v1831
  %1833 = vmatprep.mubr.f32.mxu0 0.0
  %1834 = vmatmul.mubr.f32.gmra.mxu0 %v731
  %v1835 = vpop.f32.mrf.mxu0
  %v1836 = vadd.f32 0.0, %v1835
  %v1837 = vpop.f32.mrf.mxu0
  %v1838 = vadd.f32 0.0, %v1837
  %1839 = vmatprep.mubr.f32.mxu0 0.0
  %1840 = vmatmul.mubr.f32.gmra.mxu0 %v734
  %v1841 = vpop.f32.mrf.mxu0
  %v1842 = vadd.f32 0.0, %v1841
  %v1843 = vpop.f32.mrf.mxu0
  %v1844 = vadd.f32 0.0, %v1843
  %1845 = vmatprep.mubr.f32.mxu0 0.0
  %1846 = vmatmul.mubr.f32.gmra.mxu0 %v737
  %v1847 = vpop.f32.mrf.mxu0
  %v1848 = vadd.f32 0.0, %v1847
  %v1849 = vpop.f32.mrf.mxu0
  %v1850 = vadd.f32 0.0, %v1849
  %1851 = vmatprep.mubr.f32.mxu0 0.0
  %1852 = vmatmul.mubr.f32.gmra.mxu0 %v740
  %v1853 = vpop.f32.mrf.mxu0
  %v1854 = vadd.f32 0.0, %v1853
  %v1855 = vpop.f32.mrf.mxu0
  %v1856 = vadd.f32 0.0, %v1855
  %1857 = vmatprep.mubr.f32.mxu0 0.0
  %1858 = vmatmul.mubr.f32.gmra.mxu0 %v743
  %v1859 = vpop.f32.mrf.mxu0
  %v1860 = vadd.f32 0.0, %v1859
  %v1861 = vpop.f32.mrf.mxu0
  %v1862 = vadd.f32 0.0, %v1861
  %1863 = vmatprep.mubr.f32.mxu0 0.0
  %1864 = vmatmul.mubr.f32.gmra.mxu0 %v746
  %v1865 = vpop.f32.mrf.mxu0
  %v1866 = vadd.f32 0.0, %v1865
  %v1867 = vpop.f32.mrf.mxu0
  %v1868 = vadd.f32 0.0, %v1867
  %1869 = vmatprep.mubr.f32.mxu0 0.0
  %1870 = vmatmul.mubr.f32.gmra.mxu0 %v749
  %v1871 = vpop.f32.mrf.mxu0
  %v1872 = vadd.f32 0.0, %v1871
  %v1873 = vpop.f32.mrf.mxu0
  %v1874 = vadd.f32 0.0, %v1873
  %1875 = vmatprep.mubr.f32.mxu0 0.0
  %1876 = vmatmul.mubr.f32.gmra.mxu0 %v752
  %v1877 = vpop.f32.mrf.mxu0
  %v1878 = vadd.f32 0.0, %v1877
  %v1879 = vpop.f32.mrf.mxu0
  %v1880 = vadd.f32 0.0, %v1879
  %1881 = vmatprep.mubr.f32.mxu0 0.0
  %1882 = vmatmul.mubr.f32.gmra.mxu0 %v755
  %v1883 = vpop.f32.mrf.mxu0
  %v1884 = vadd.f32 0.0, %v1883
  %v1885 = vpop.f32.mrf.mxu0
  %v1886 = vadd.f32 0.0, %v1885
  %1887 = vmatprep.mubr.f32.mxu0 0.0
  %1888 = vmatmul.mubr.f32.gmra.mxu0 %v758
  %v1889 = vpop.f32.mrf.mxu0
  %v1890 = vadd.f32 0.0, %v1889
  %v1891 = vpop.f32.mrf.mxu0
  %v1892 = vadd.f32 0.0, %v1891
  %1893 = vmatprep.mubr.f32.mxu0 0.0
  %1894 = vmatmul.mubr.f32.gmra.mxu0 %v761
  %v1895 = vpop.f32.mrf.mxu0
  %v1896 = vadd.f32 0.0, %v1895
  %v1897 = vpop.f32.mrf.mxu0
  %v1898 = vadd.f32 0.0, %v1897
  %1899 = vmatprep.mubr.f32.mxu0 0.0
  %1900 = vmatmul.mubr.f32.gmra.mxu0 %v764
  %v1901 = vpop.f32.mrf.mxu0
  %v1902 = vadd.f32 0.0, %v1901
  %v1903 = vpop.f32.mrf.mxu0
  %v1904 = vadd.f32 0.0, %v1903
  %1905 = vmatprep.mubr.f32.mxu0 0.0
  %1906 = vmatmul.mubr.f32.gmra.mxu0 %v767
  %v1907 = vpop.f32.mrf.mxu0
  %v1908 = vadd.f32 0.0, %v1907
  %v1909 = vpop.f32.mrf.mxu0
  %v1910 = vadd.f32 0.0, %v1909
  %1911 = vmatprep.mubr.f32.mxu0 0.0
  %1912 = vmatmul.mubr.f32.gmra.mxu0 %v770
  %v1913 = vpop.f32.mrf.mxu0
  %v1914 = vadd.f32 0.0, %v1913
  %v1915 = vpop.f32.mrf.mxu0
  %v1916 = vadd.f32 0.0, %v1915
  %1917 = vmatprep.mubr.f32.mxu0 0.0
  %1918 = vmatmul.mubr.f32.gmra.mxu0 %v773
  %v1919 = vpop.f32.mrf.mxu0
  %v1920 = vadd.f32 0.0, %v1919
  %v1921 = vpop.f32.mrf.mxu0
  %v1922 = vadd.f32 0.0, %v1921
  %1923 = vmatprep.mubr.f32.mxu0 0.0
  %1924 = vmatmul.mubr.f32.gmra.mxu0 %v776
  %v1925 = vpop.f32.mrf.mxu0
  %v1926 = vadd.f32 0.0, %v1925
  %v1927 = vpop.f32.mrf.mxu0
  %v1928 = vadd.f32 0.0, %v1927
  %1929 = vmatprep.mubr.f32.mxu0 0.0
  %1930 = vmatmul.mubr.f32.gmra.mxu0 %v779
  %v1931 = vpop.f32.mrf.mxu0
  %v1932 = vadd.f32 0.0, %v1931
  %v1933 = vpop.f32.mrf.mxu0
  %v1934 = vadd.f32 0.0, %v1933
  %1935 = vmatprep.mubr.f32.mxu0 0.0
  %1936 = vmatmul.mubr.f32.gmra.mxu0 %v782
  %v1937 = vpop.f32.mrf.mxu0
  %v1938 = vadd.f32 0.0, %v1937
  %v1939 = vpop.f32.mrf.mxu0
  %v1940 = vadd.f32 0.0, %v1939
  %1941 = vmatprep.mubr.f32.mxu0 0.0
  %1942 = vmatmul.mubr.f32.gmra.mxu0 %v785
  %v1943 = vpop.f32.mrf.mxu0
  %v1944 = vadd.f32 0.0, %v1943
  %v1945 = vpop.f32.mrf.mxu0
  %v1946 = vadd.f32 0.0, %v1945
  %1947 = vmatprep.mubr.f32.mxu0 0.0
  %1948 = vmatmul.mubr.f32.gmra.mxu0 %v788
  %v1949 = vpop.f32.mrf.mxu0
  %v1950 = vadd.f32 0.0, %v1949
  %v1951 = vpop.f32.mrf.mxu0
  %v1952 = vadd.f32 0.0, %v1951
  %1953 = vmatprep.mubr.f32.mxu0 0.0
  %1954 = vmatmul.mubr.f32.gmra.mxu0 %v791
  %v1955 = vpop.f32.mrf.mxu0
  %v1956 = vadd.f32 0.0, %v1955
  %v1957 = vpop.f32.mrf.mxu0
  %v1958 = vadd.f32 0.0, %v1957
  %1959 = vmatprep.mubr.f32.mxu0 0.0
  %1960 = vmatmul.mubr.f32.gmra.mxu0 %v794
  %v1961 = vpop.f32.mrf.mxu0
  %v1962 = vadd.f32 0.0, %v1961
  %v1963 = vpop.f32.mrf.mxu0
  %v1964 = vadd.f32 0.0, %v1963
  %1965 = vmatprep.mubr.f32.mxu0 0.0
  %1966 = vmatmul.mubr.f32.gmra.mxu0 %v797
  %v1967 = vpop.f32.mrf.mxu0
  %v1968 = vadd.f32 0.0, %v1967
  %v1969 = vpop.f32.mrf.mxu0
  %v1970 = vadd.f32 0.0, %v1969
  %1971 = vmatprep.mubr.f32.mxu0 0.0
  %1972 = vmatmul.mubr.f32.gmra.mxu0 %v800
  %v1973 = vpop.f32.mrf.mxu0
  %v1974 = vadd.f32 0.0, %v1973
  %v1975 = vpop.f32.mrf.mxu0
  %v1976 = vadd.f32 0.0, %v1975
  %1977 = vmatprep.mubr.f32.mxu0 0.0
  %1978 = vmatmul.mubr.f32.gmra.mxu0 %v803
  %v1979 = vpop.f32.mrf.mxu0
  %v1980 = vadd.f32 0.0, %v1979
  %v1981 = vpop.f32.mrf.mxu0
  %v1982 = vadd.f32 0.0, %v1981
  %1983 = vmatprep.mubr.f32.mxu0 0.0
  %1984 = vmatmul.mubr.f32.gmra.mxu0 %v806
  %v1985 = vpop.f32.mrf.mxu0
  %v1986 = vadd.f32 0.0, %v1985
  %v1987 = vpop.f32.mrf.mxu0
  %v1988 = vadd.f32 0.0, %v1987
  %1989 = vmatprep.mubr.f32.mxu0 0.0
  %1990 = vmatmul.mubr.f32.gmra.mxu0 %v809
  %v1991 = vpop.f32.mrf.mxu0
  %v1992 = vadd.f32 0.0, %v1991
  %v1993 = vpop.f32.mrf.mxu0
  %v1994 = vadd.f32 0.0, %v1993
  %1995 = vmatprep.mubr.f32.mxu0 0.0
  %1996 = vmatmul.mubr.f32.gmra.mxu0 %v812
  %v1997 = vpop.f32.mrf.mxu0
  %v1998 = vadd.f32 0.0, %v1997
  %v1999 = vpop.f32.mrf.mxu0
  %v2000 = vadd.f32 0.0, %v1999
  %2001 = vmatprep.mubr.f32.mxu0 0.0
  %2002 = vmatmul.mubr.f32.gmra.mxu0 %v815
  %v2003 = vpop.f32.mrf.mxu0
  %v2004 = vadd.f32 0.0, %v2003
  %v2005 = vpop.f32.mrf.mxu0
  %v2006 = vadd.f32 0.0, %v2005
  %2007 = vmatprep.mubr.f32.mxu0 0.0
  %2008 = vmatmul.mubr.f32.gmra.mxu0 %v818
  %v2009 = vpop.f32.mrf.mxu0
  %v2010 = vadd.f32 0.0, %v2009
  %v2011 = vpop.f32.mrf.mxu0
  %v2012 = vadd.f32 0.0, %v2011
  %2013 = vmatprep.mubr.f32.mxu0 0.0
  %2014 = vmatmul.mubr.f32.gmra.mxu0 %v821
  %v2015 = vpop.f32.mrf.mxu0
  %v2016 = vadd.f32 0.0, %v2015
  %v2017 = vpop.f32.mrf.mxu0
  %v2018 = vadd.f32 0.0, %v2017
  %2019 = vmatprep.mubr.f32.mxu0 0.0
  %2020 = vmatmul.mubr.f32.gmra.mxu0 %v824
  %v2021 = vpop.f32.mrf.mxu0
  %v2022 = vadd.f32 0.0, %v2021
  %v2023 = vpop.f32.mrf.mxu0
  %v2024 = vadd.f32 0.0, %v2023
  %2025 = vmatprep.mubr.f32.mxu0 0.0
  %2026 = vmatmul.mubr.f32.gmra.mxu0 %v827
  %v2027 = vpop.f32.mrf.mxu0
  %v2028 = vadd.f32 0.0, %v2027
  %v2029 = vpop.f32.mrf.mxu0
  %v2030 = vadd.f32 0.0, %v2029
  %2031 = vmatprep.mubr.f32.mxu0 0.0
  %2032 = vmatmul.mubr.f32.gmra.mxu0 %v830
  %v2033 = vpop.f32.mrf.mxu0
  %v2034 = vadd.f32 0.0, %v2033
  %v2035 = vpop.f32.mrf.mxu0
  %v2036 = vadd.f32 0.0, %v2035
  %2037 = vmatprep.mubr.f32.mxu0 0.0
  %2038 = vmatmul.mubr.f32.gmra.mxu0 %v833
  %v2039 = vpop.f32.mrf.mxu0
  %v2040 = vadd.f32 0.0, %v2039
  %v2041 = vpop.f32.mrf.mxu0
  %v2042 = vadd.f32 0.0, %v2041
  %2043 = vmatprep.mubr.f32.mxu0 0.0
  %2044 = vmatmul.mubr.f32.gmra.mxu0 %v836
  %v2045 = vpop.f32.mrf.mxu0
  %v2046 = vadd.f32 0.0, %v2045
  %v2047 = vpop.f32.mrf.mxu0
  %v2048 = vadd.f32 0.0, %v2047
  %2049 = vmatprep.mubr.f32.mxu0 0.0
  %2050 = vmatmul.mubr.f32.gmra.mxu0 %v839
  %v2051 = vpop.f32.mrf.mxu0
  %v2052 = vadd.f32 0.0, %v2051
  %v2053 = vpop.f32.mrf.mxu0
  %v2054 = vadd.f32 0.0, %v2053
  %2055 = vmatprep.mubr.f32.mxu0 0.0
  %2056 = vmatmul.mubr.f32.gmra.mxu0 %v842
  %v2057 = vpop.f32.mrf.mxu0
  %v2058 = vadd.f32 0.0, %v2057
  %v2059 = vpop.f32.mrf.mxu0
  %v2060 = vadd.f32 0.0, %v2059
  %2061 = vmatprep.mubr.f32.mxu0 0.0
  %2062 = vmatmul.mubr.f32.gmra.mxu0 %v845
  %v2063 = vpop.f32.mrf.mxu0
  %v2064 = vadd.f32 0.0, %v2063
  %v2065 = vpop.f32.mrf.mxu0
  %v2066 = vadd.f32 0.0, %v2065
  %2067 = vmatprep.mubr.f32.mxu0 0.0
  %2068 = vmatmul.mubr.f32.gmra.mxu0 %v848
  %v2069 = vpop.f32.mrf.mxu0
  %v2070 = vadd.f32 0.0, %v2069
  %v2071 = vpop.f32.mrf.mxu0
  %v2072 = vadd.f32 0.0, %v2071
  %2073 = vdwg.mxu0
  %v2075 = vsel %vm273, %v32, 0
  %v2078 = vsel %vm273, %v33, 0
  %v2081 = vsel %vm273, %v34, 0
  %v2084 = vsel %vm273, %v35, 0
  %v2087 = vsel %vm273, %v36, 0
  %v2090 = vsel %vm273, %v37, 0
  %v2093 = vsel %vm273, %v38, 0
  %v2096 = vsel %vm273, %v39, 0
  %v2099 = vsel %vm850, %v262, 0
  %v2102 = vsel %vm850, %v263, 0
  %2104 = vmatprep.subr.mxu0 0.0
  %2105 = vmatpush1.msra.mxu0 0.0
  %2106 = vmatprep.subr.mxu0 0.0
  %2107 = vmatpush1.msra.mxu0 0.0
  %2108 = vmatprep.subr.mxu0 0.0
  %2109 = vmatpush1.msra.mxu0 0.0
  %2110 = vmatprep.subr.mxu0 0.0
  %2111 = vmatpush1.msra.mxu0 0.0
  %2112 = vmatprep.subr.mxu0 0.0
  %2113 = vmatpush1.msra.mxu0 0.0
  %2114 = vmatprep.subr.mxu0 0.0
  %2115 = vmatpush1.msra.mxu0 0.0
  %2116 = vmatprep.subr.mxu0 0.0
  %2117 = vmatpush1.msra.mxu0 0.0
  %2118 = vmatprep.subr.mxu0 0.0
  %2119 = vmatpush1.msra.mxu0 0.0
  %2120 = vmatprep.subr.mxu0 0.0
  %2121 = vmatpush1.msra.mxu0 0.0
  %2122 = vmatprep.subr.mxu0 0.0
  %2123 = vmatpush1.msra.mxu0 0.0
  %2124 = vmatprep.subr.mxu0 0.0
  %2125 = vmatpush1.msra.mxu0 0.0
  %2126 = vmatprep.subr.mxu0 0.0
  %2127 = vmatpush1.msra.mxu0 0.0
  %2128 = vmatprep.subr.mxu0 %v2102
  %2129 = vmatpush1.msra.mxu0 %v2099
  %2130 = vmatprep.subr.mxu0 %v261
  %2131 = vmatpush1.msra.mxu0 %v260
  %2132 = vmatprep.subr.mxu0 %v259
  %2133 = vmatpush1.msra.mxu0 %v258
  %2134 = vmatprep.subr.mxu0 %v257
  %2135 = vmatpush1.msra.mxu0 %v256
  %2136 = vmatprep.subr.mxu0 0.0
  %2137 = vmatpush2.msra.mxu0 0.0
  %2138 = vmatprep.subr.mxu0 0.0
  %2139 = vmatpush2.msra.mxu0 0.0
  %2140 = vmatprep.subr.mxu0 0.0
  %2141 = vmatpush2.msra.mxu0 0.0
  %2142 = vmatprep.subr.mxu0 0.0
  %2143 = vmatpush2.msra.mxu0 0.0
  %2144 = vmatprep.subr.mxu0 0.0
  %2145 = vmatpush2.msra.mxu0 0.0
  %2146 = vmatprep.subr.mxu0 0.0
  %2147 = vmatpush2.msra.mxu0 0.0
  %2148 = vmatprep.subr.mxu0 0.0
  %2149 = vmatpush2.msra.mxu0 0.0
  %2150 = vmatprep.subr.mxu0 0.0
  %2151 = vmatpush2.msra.mxu0 0.0
  %2152 = vmatprep.subr.mxu0 0.0
  %2153 = vmatpush2.msra.mxu0 0.0
  %2154 = vmatprep.subr.mxu0 0.0
  %2155 = vmatpush2.msra.mxu0 0.0
  %2156 = vmatprep.subr.mxu0 0.0
  %2157 = vmatpush2.msra.mxu0 0.0
  %2158 = vmatprep.subr.mxu0 0.0
  %2159 = vmatpush2.msra.mxu0 0.0
  %2160 = vmatprep.subr.mxu0 0.0
  %2161 = vmatpush2.msra.mxu0 0.0
  %2162 = vmatprep.subr.mxu0 0.0
  %2163 = vmatpush2.msra.mxu0 0.0
  %2164 = vmatprep.subr.mxu0 0.0
  %2165 = vmatpush2.msra.mxu0 0.0
  %2166 = vmatprep.subr.mxu0 0.0
  %2167 = vmatpush2.msra.mxu0 0.0
  %2168 = vmatprep.mubr.f32.mxu0 0.0
  %2169 = vmatmul.mubr.f32.gmra.mxu0 %v2075
  %v2170 = vpop.f32.mrf.mxu0
  %v2171 = vadd.f32 %v924, %v2170
  %v2172 = vpop.f32.mrf.mxu0
  %v2173 = vadd.f32 %v926, %v2172
  %2174 = vmatprep.mubr.f32.mxu0 0.0
  %2175 = vmatmul.mubr.f32.gmra.mxu0 %v2078
  %v2176 = vpop.f32.mrf.mxu0
  %v2177 = vadd.f32 %v930, %v2176
  %v2178 = vpop.f32.mrf.mxu0
  %v2179 = vadd.f32 %v932, %v2178
  %2180 = vmatprep.mubr.f32.mxu0 0.0
  %2181 = vmatmul.mubr.f32.gmra.mxu0 %v2081
  %v2182 = vpop.f32.mrf.mxu0
  %v2183 = vadd.f32 %v936, %v2182
  %v2184 = vpop.f32.mrf.mxu0
  %v2185 = vadd.f32 %v938, %v2184
  %2186 = vmatprep.mubr.f32.mxu0 0.0
  %2187 = vmatmul.mubr.f32.gmra.mxu0 %v2084
  %v2188 = vpop.f32.mrf.mxu0
  %v2189 = vadd.f32 %v942, %v2188
  %v2190 = vpop.f32.mrf.mxu0
  %v2191 = vadd.f32 %v944, %v2190
  %2192 = vmatprep.mubr.f32.mxu0 0.0
  %2193 = vmatmul.mubr.f32.gmra.mxu0 %v2087
  %v2194 = vpop.f32.mrf.mxu0
  %v2195 = vadd.f32 %v948, %v2194
  %v2196 = vpop.f32.mrf.mxu0
  %v2197 = vadd.f32 %v950, %v2196
  %2198 = vmatprep.mubr.f32.mxu0 0.0
  %2199 = vmatmul.mubr.f32.gmra.mxu0 %v2090
  %v2200 = vpop.f32.mrf.mxu0
  %v2201 = vadd.f32 %v954, %v2200
  %v2202 = vpop.f32.mrf.mxu0
  %v2203 = vadd.f32 %v956, %v2202
  %2204 = vmatprep.mubr.f32.mxu0 0.0
  %2205 = vmatmul.mubr.f32.gmra.mxu0 %v2093
  %v2206 = vpop.f32.mrf.mxu0
  %v2207 = vadd.f32 %v960, %v2206
  %v2208 = vpop.f32.mrf.mxu0
  %v2209 = vadd.f32 %v962, %v2208
  %2210 = vmatprep.mubr.f32.mxu0 0.0
  %2211 = vmatmul.mubr.f32.gmra.mxu0 %v2096
  %v2212 = vpop.f32.mrf.mxu0
  %v2213 = vadd.f32 %v966, %v2212
  %v2214 = vpop.f32.mrf.mxu0
  %v2215 = vadd.f32 %v968, %v2214
  %2216 = vmatprep.mubr.f32.mxu0 0.0
  %2217 = vmatmul.mubr.f32.gmra.mxu0 %v275
  %v2218 = vpop.f32.mrf.mxu0
  %v2219 = vadd.f32 %v972, %v2218
  %v2220 = vpop.f32.mrf.mxu0
  %v2221 = vadd.f32 %v974, %v2220
  %2222 = vmatprep.mubr.f32.mxu0 0.0
  %2223 = vmatmul.mubr.f32.gmra.mxu0 %v278
  %v2224 = vpop.f32.mrf.mxu0
  %v2225 = vadd.f32 %v978, %v2224
  %v2226 = vpop.f32.mrf.mxu0
  %v2227 = vadd.f32 %v980, %v2226
  %2228 = vmatprep.mubr.f32.mxu0 0.0
  %2229 = vmatmul.mubr.f32.gmra.mxu0 %v281
  %v2230 = vpop.f32.mrf.mxu0
  %v2231 = vadd.f32 %v984, %v2230
  %v2232 = vpop.f32.mrf.mxu0
  %v2233 = vadd.f32 %v986, %v2232
  %2234 = vmatprep.mubr.f32.mxu0 0.0
  %2235 = vmatmul.mubr.f32.gmra.mxu0 %v284
  %v2236 = vpop.f32.mrf.mxu0
  %v2237 = vadd.f32 %v990, %v2236
  %v2238 = vpop.f32.mrf.mxu0
  %v2239 = vadd.f32 %v992, %v2238
  %2240 = vmatprep.mubr.f32.mxu0 0.0
  %2241 = vmatmul.mubr.f32.gmra.mxu0 %v287
  %v2242 = vpop.f32.mrf.mxu0
  %v2243 = vadd.f32 %v996, %v2242
  %v2244 = vpop.f32.mrf.mxu0
  %v2245 = vadd.f32 %v998, %v2244
  %2246 = vmatprep.mubr.f32.mxu0 0.0
  %2247 = vmatmul.mubr.f32.gmra.mxu0 %v290
  %v2248 = vpop.f32.mrf.mxu0
  %v2249 = vadd.f32 %v1002, %v2248
  %v2250 = vpop.f32.mrf.mxu0
  %v2251 = vadd.f32 %v1004, %v2250
  %2252 = vmatprep.mubr.f32.mxu0 0.0
  %2253 = vmatmul.mubr.f32.gmra.mxu0 %v293
  %v2254 = vpop.f32.mrf.mxu0
  %v2255 = vadd.f32 %v1008, %v2254
  %v2256 = vpop.f32.mrf.mxu0
  %v2257 = vadd.f32 %v1010, %v2256
  %2258 = vmatprep.mubr.f32.mxu0 0.0
  %2259 = vmatmul.mubr.f32.gmra.mxu0 %v296
  %v2260 = vpop.f32.mrf.mxu0
  %v2261 = vadd.f32 %v1014, %v2260
  %v2262 = vpop.f32.mrf.mxu0
  %v2263 = vadd.f32 %v1016, %v2262
  %2264 = vmatprep.mubr.f32.mxu0 0.0
  %2265 = vmatmul.mubr.f32.gmra.mxu0 %v299
  %v2266 = vpop.f32.mrf.mxu0
  %v2267 = vadd.f32 %v1020, %v2266
  %v2268 = vpop.f32.mrf.mxu0
  %v2269 = vadd.f32 %v1022, %v2268
  %2270 = vmatprep.mubr.f32.mxu0 0.0
  %2271 = vmatmul.mubr.f32.gmra.mxu0 %v302
  %v2272 = vpop.f32.mrf.mxu0
  %v2273 = vadd.f32 %v1026, %v2272
  %v2274 = vpop.f32.mrf.mxu0
  %v2275 = vadd.f32 %v1028, %v2274
  %2276 = vmatprep.mubr.f32.mxu0 0.0
  %2277 = vmatmul.mubr.f32.gmra.mxu0 %v305
  %v2278 = vpop.f32.mrf.mxu0
  %v2279 = vadd.f32 %v1032, %v2278
  %v2280 = vpop.f32.mrf.mxu0
  %v2281 = vadd.f32 %v1034, %v2280
  %2282 = vmatprep.mubr.f32.mxu0 0.0
  %2283 = vmatmul.mubr.f32.gmra.mxu0 %v308
  %v2284 = vpop.f32.mrf.mxu0
  %v2285 = vadd.f32 %v1038, %v2284
  %v2286 = vpop.f32.mrf.mxu0
  %v2287 = vadd.f32 %v1040, %v2286
  %2288 = vmatprep.mubr.f32.mxu0 0.0
  %2289 = vmatmul.mubr.f32.gmra.mxu0 %v311
  %v2290 = vpop.f32.mrf.mxu0
  %v2291 = vadd.f32 %v1044, %v2290
  %v2292 = vpop.f32.mrf.mxu0
  %v2293 = vadd.f32 %v1046, %v2292
  %2294 = vmatprep.mubr.f32.mxu0 0.0
  %2295 = vmatmul.mubr.f32.gmra.mxu0 %v314
  %v2296 = vpop.f32.mrf.mxu0
  %v2297 = vadd.f32 %v1050, %v2296
  %v2298 = vpop.f32.mrf.mxu0
  %v2299 = vadd.f32 %v1052, %v2298
  %2300 = vmatprep.mubr.f32.mxu0 0.0
  %2301 = vmatmul.mubr.f32.gmra.mxu0 %v317
  %v2302 = vpop.f32.mrf.mxu0
  %v2303 = vadd.f32 %v1056, %v2302
  %v2304 = vpop.f32.mrf.mxu0
  %v2305 = vadd.f32 %v1058, %v2304
  %2306 = vmatprep.mubr.f32.mxu0 0.0
  %2307 = vmatmul.mubr.f32.gmra.mxu0 %v320
  %v2308 = vpop.f32.mrf.mxu0
  %v2309 = vadd.f32 %v1062, %v2308
  %v2310 = vpop.f32.mrf.mxu0
  %v2311 = vadd.f32 %v1064, %v2310
  %2312 = vmatprep.mubr.f32.mxu0 0.0
  %2313 = vmatmul.mubr.f32.gmra.mxu0 %v323
  %v2314 = vpop.f32.mrf.mxu0
  %v2315 = vadd.f32 %v1068, %v2314
  %v2316 = vpop.f32.mrf.mxu0
  %v2317 = vadd.f32 %v1070, %v2316
  %2318 = vmatprep.mubr.f32.mxu0 0.0
  %2319 = vmatmul.mubr.f32.gmra.mxu0 %v326
  %v2320 = vpop.f32.mrf.mxu0
  %v2321 = vadd.f32 %v1074, %v2320
  %v2322 = vpop.f32.mrf.mxu0
  %v2323 = vadd.f32 %v1076, %v2322
  %2324 = vmatprep.mubr.f32.mxu0 0.0
  %2325 = vmatmul.mubr.f32.gmra.mxu0 %v329
  %v2326 = vpop.f32.mrf.mxu0
  %v2327 = vadd.f32 %v1080, %v2326
  %v2328 = vpop.f32.mrf.mxu0
  %v2329 = vadd.f32 %v1082, %v2328
  %2330 = vmatprep.mubr.f32.mxu0 0.0
  %2331 = vmatmul.mubr.f32.gmra.mxu0 %v332
  %v2332 = vpop.f32.mrf.mxu0
  %v2333 = vadd.f32 %v1086, %v2332
  %v2334 = vpop.f32.mrf.mxu0
  %v2335 = vadd.f32 %v1088, %v2334
  %2336 = vmatprep.mubr.f32.mxu0 0.0
  %2337 = vmatmul.mubr.f32.gmra.mxu0 %v335
  %v2338 = vpop.f32.mrf.mxu0
  %v2339 = vadd.f32 %v1092, %v2338
  %v2340 = vpop.f32.mrf.mxu0
  %v2341 = vadd.f32 %v1094, %v2340
  %2342 = vmatprep.mubr.f32.mxu0 0.0
  %2343 = vmatmul.mubr.f32.gmra.mxu0 %v338
  %v2344 = vpop.f32.mrf.mxu0
  %v2345 = vadd.f32 %v1098, %v2344
  %v2346 = vpop.f32.mrf.mxu0
  %v2347 = vadd.f32 %v1100, %v2346
  %2348 = vmatprep.mubr.f32.mxu0 0.0
  %2349 = vmatmul.mubr.f32.gmra.mxu0 %v341
  %v2350 = vpop.f32.mrf.mxu0
  %v2351 = vadd.f32 %v1104, %v2350
  %v2352 = vpop.f32.mrf.mxu0
  %v2353 = vadd.f32 %v1106, %v2352
  %2354 = vmatprep.mubr.f32.mxu0 0.0
  %2355 = vmatmul.mubr.f32.gmra.mxu0 %v344
  %v2356 = vpop.f32.mrf.mxu0
  %v2357 = vadd.f32 %v1110, %v2356
  %v2358 = vpop.f32.mrf.mxu0
  %v2359 = vadd.f32 %v1112, %v2358
  %2360 = vmatprep.mubr.f32.mxu0 0.0
  %2361 = vmatmul.mubr.f32.gmra.mxu0 %v347
  %v2362 = vpop.f32.mrf.mxu0
  %v2363 = vadd.f32 %v1116, %v2362
  %v2364 = vpop.f32.mrf.mxu0
  %v2365 = vadd.f32 %v1118, %v2364
  %2366 = vmatprep.mubr.f32.mxu0 0.0
  %2367 = vmatmul.mubr.f32.gmra.mxu0 %v350
  %v2368 = vpop.f32.mrf.mxu0
  %v2369 = vadd.f32 %v1122, %v2368
  %v2370 = vpop.f32.mrf.mxu0
  %v2371 = vadd.f32 %v1124, %v2370
  %2372 = vmatprep.mubr.f32.mxu0 0.0
  %2373 = vmatmul.mubr.f32.gmra.mxu0 %v353
  %v2374 = vpop.f32.mrf.mxu0
  %v2375 = vadd.f32 %v1128, %v2374
  %v2376 = vpop.f32.mrf.mxu0
  %v2377 = vadd.f32 %v1130, %v2376
  %2378 = vmatprep.mubr.f32.mxu0 0.0
  %2379 = vmatmul.mubr.f32.gmra.mxu0 %v356
  %v2380 = vpop.f32.mrf.mxu0
  %v2381 = vadd.f32 %v1134, %v2380
  %v2382 = vpop.f32.mrf.mxu0
  %v2383 = vadd.f32 %v1136, %v2382
  %2384 = vmatprep.mubr.f32.mxu0 0.0
  %2385 = vmatmul.mubr.f32.gmra.mxu0 %v359
  %v2386 = vpop.f32.mrf.mxu0
  %v2387 = vadd.f32 %v1140, %v2386
  %v2388 = vpop.f32.mrf.mxu0
  %v2389 = vadd.f32 %v1142, %v2388
  %2390 = vmatprep.mubr.f32.mxu0 0.0
  %2391 = vmatmul.mubr.f32.gmra.mxu0 %v362
  %v2392 = vpop.f32.mrf.mxu0
  %v2393 = vadd.f32 %v1146, %v2392
  %v2394 = vpop.f32.mrf.mxu0
  %v2395 = vadd.f32 %v1148, %v2394
  %2396 = vmatprep.mubr.f32.mxu0 0.0
  %2397 = vmatmul.mubr.f32.gmra.mxu0 %v365
  %v2398 = vpop.f32.mrf.mxu0
  %v2399 = vadd.f32 %v1152, %v2398
  %v2400 = vpop.f32.mrf.mxu0
  %v2401 = vadd.f32 %v1154, %v2400
  %2402 = vmatprep.mubr.f32.mxu0 0.0
  %2403 = vmatmul.mubr.f32.gmra.mxu0 %v368
  %v2404 = vpop.f32.mrf.mxu0
  %v2405 = vadd.f32 %v1158, %v2404
  %v2406 = vpop.f32.mrf.mxu0
  %v2407 = vadd.f32 %v1160, %v2406
  %2408 = vmatprep.mubr.f32.mxu0 0.0
  %2409 = vmatmul.mubr.f32.gmra.mxu0 %v371
  %v2410 = vpop.f32.mrf.mxu0
  %v2411 = vadd.f32 %v1164, %v2410
  %v2412 = vpop.f32.mrf.mxu0
  %v2413 = vadd.f32 %v1166, %v2412
  %2414 = vmatprep.mubr.f32.mxu0 0.0
  %2415 = vmatmul.mubr.f32.gmra.mxu0 %v374
  %v2416 = vpop.f32.mrf.mxu0
  %v2417 = vadd.f32 %v1170, %v2416
  %v2418 = vpop.f32.mrf.mxu0
  %v2419 = vadd.f32 %v1172, %v2418
  %2420 = vmatprep.mubr.f32.mxu0 0.0
  %2421 = vmatmul.mubr.f32.gmra.mxu0 %v377
  %v2422 = vpop.f32.mrf.mxu0
  %v2423 = vadd.f32 %v1176, %v2422
  %v2424 = vpop.f32.mrf.mxu0
  %v2425 = vadd.f32 %v1178, %v2424
  %2426 = vmatprep.mubr.f32.mxu0 0.0
  %2427 = vmatmul.mubr.f32.gmra.mxu0 %v380
  %v2428 = vpop.f32.mrf.mxu0
  %v2429 = vadd.f32 %v1182, %v2428
  %v2430 = vpop.f32.mrf.mxu0
  %v2431 = vadd.f32 %v1184, %v2430
  %2432 = vmatprep.mubr.f32.mxu0 0.0
  %2433 = vmatmul.mubr.f32.gmra.mxu0 %v383
  %v2434 = vpop.f32.mrf.mxu0
  %v2435 = vadd.f32 %v1188, %v2434
  %v2436 = vpop.f32.mrf.mxu0
  %v2437 = vadd.f32 %v1190, %v2436
  %2438 = vmatprep.mubr.f32.mxu0 0.0
  %2439 = vmatmul.mubr.f32.gmra.mxu0 %v386
  %v2440 = vpop.f32.mrf.mxu0
  %v2441 = vadd.f32 %v1194, %v2440
  %v2442 = vpop.f32.mrf.mxu0
  %v2443 = vadd.f32 %v1196, %v2442
  %2444 = vmatprep.mubr.f32.mxu0 0.0
  %2445 = vmatmul.mubr.f32.gmra.mxu0 %v389
  %v2446 = vpop.f32.mrf.mxu0
  %v2447 = vadd.f32 %v1200, %v2446
  %v2448 = vpop.f32.mrf.mxu0
  %v2449 = vadd.f32 %v1202, %v2448
  %2450 = vmatprep.mubr.f32.mxu0 0.0
  %2451 = vmatmul.mubr.f32.gmra.mxu0 %v392
  %v2452 = vpop.f32.mrf.mxu0
  %v2453 = vadd.f32 %v1206, %v2452
  %v2454 = vpop.f32.mrf.mxu0
  %v2455 = vadd.f32 %v1208, %v2454
  %2456 = vmatprep.mubr.f32.mxu0 0.0
  %2457 = vmatmul.mubr.f32.gmra.mxu0 %v395
  %v2458 = vpop.f32.mrf.mxu0
  %v2459 = vadd.f32 %v1212, %v2458
  %v2460 = vpop.f32.mrf.mxu0
  %v2461 = vadd.f32 %v1214, %v2460
  %2462 = vmatprep.mubr.f32.mxu0 0.0
  %2463 = vmatmul.mubr.f32.gmra.mxu0 %v398
  %v2464 = vpop.f32.mrf.mxu0
  %v2465 = vadd.f32 %v1218, %v2464
  %v2466 = vpop.f32.mrf.mxu0
  %v2467 = vadd.f32 %v1220, %v2466
  %2468 = vmatprep.mubr.f32.mxu0 0.0
  %2469 = vmatmul.mubr.f32.gmra.mxu0 %v401
  %v2470 = vpop.f32.mrf.mxu0
  %v2471 = vadd.f32 %v1224, %v2470
  %v2472 = vpop.f32.mrf.mxu0
  %v2473 = vadd.f32 %v1226, %v2472
  %2474 = vmatprep.mubr.f32.mxu0 0.0
  %2475 = vmatmul.mubr.f32.gmra.mxu0 %v404
  %v2476 = vpop.f32.mrf.mxu0
  %v2477 = vadd.f32 %v1230, %v2476
  %v2478 = vpop.f32.mrf.mxu0
  %v2479 = vadd.f32 %v1232, %v2478
  %2480 = vmatprep.mubr.f32.mxu0 0.0
  %2481 = vmatmul.mubr.f32.gmra.mxu0 %v407
  %v2482 = vpop.f32.mrf.mxu0
  %v2483 = vadd.f32 %v1236, %v2482
  %v2484 = vpop.f32.mrf.mxu0
  %v2485 = vadd.f32 %v1238, %v2484
  %2486 = vmatprep.mubr.f32.mxu0 0.0
  %2487 = vmatmul.mubr.f32.gmra.mxu0 %v410
  %v2488 = vpop.f32.mrf.mxu0
  %v2489 = vadd.f32 %v1242, %v2488
  %v2490 = vpop.f32.mrf.mxu0
  %v2491 = vadd.f32 %v1244, %v2490
  %2492 = vmatprep.mubr.f32.mxu0 0.0
  %2493 = vmatmul.mubr.f32.gmra.mxu0 %v413
  %v2494 = vpop.f32.mrf.mxu0
  %v2495 = vadd.f32 %v1248, %v2494
  %v2496 = vpop.f32.mrf.mxu0
  %v2497 = vadd.f32 %v1250, %v2496
  %2498 = vmatprep.mubr.f32.mxu0 0.0
  %2499 = vmatmul.mubr.f32.gmra.mxu0 %v416
  %v2500 = vpop.f32.mrf.mxu0
  %v2501 = vadd.f32 %v1254, %v2500
  %v2502 = vpop.f32.mrf.mxu0
  %v2503 = vadd.f32 %v1256, %v2502
  %2504 = vmatprep.mubr.f32.mxu0 0.0
  %2505 = vmatmul.mubr.f32.gmra.mxu0 %v419
  %v2506 = vpop.f32.mrf.mxu0
  %v2507 = vadd.f32 %v1260, %v2506
  %v2508 = vpop.f32.mrf.mxu0
  %v2509 = vadd.f32 %v1262, %v2508
  %2510 = vmatprep.mubr.f32.mxu0 0.0
  %2511 = vmatmul.mubr.f32.gmra.mxu0 %v422
  %v2512 = vpop.f32.mrf.mxu0
  %v2513 = vadd.f32 %v1266, %v2512
  %v2514 = vpop.f32.mrf.mxu0
  %v2515 = vadd.f32 %v1268, %v2514
  %2516 = vmatprep.mubr.f32.mxu0 0.0
  %2517 = vmatmul.mubr.f32.gmra.mxu0 %v425
  %v2518 = vpop.f32.mrf.mxu0
  %v2519 = vadd.f32 %v1272, %v2518
  %v2520 = vpop.f32.mrf.mxu0
  %v2521 = vadd.f32 %v1274, %v2520
  %2522 = vmatprep.mubr.f32.mxu0 0.0
  %2523 = vmatmul.mubr.f32.gmra.mxu0 %v428
  %v2524 = vpop.f32.mrf.mxu0
  %v2525 = vadd.f32 %v1278, %v2524
  %v2526 = vpop.f32.mrf.mxu0
  %v2527 = vadd.f32 %v1280, %v2526
  %2528 = vmatprep.mubr.f32.mxu0 0.0
  %2529 = vmatmul.mubr.f32.gmra.mxu0 %v431
  %v2530 = vpop.f32.mrf.mxu0
  %v2531 = vadd.f32 %v1284, %v2530
  %v2532 = vpop.f32.mrf.mxu0
  %v2533 = vadd.f32 %v1286, %v2532
  %2534 = vmatprep.mubr.f32.mxu0 0.0
  %2535 = vmatmul.mubr.f32.gmra.mxu0 %v434
  %v2536 = vpop.f32.mrf.mxu0
  %v2537 = vadd.f32 %v1290, %v2536
  %v2538 = vpop.f32.mrf.mxu0
  %v2539 = vadd.f32 %v1292, %v2538
  %2540 = vmatprep.mubr.f32.mxu0 0.0
  %2541 = vmatmul.mubr.f32.gmra.mxu0 %v437
  %v2542 = vpop.f32.mrf.mxu0
  %v2543 = vadd.f32 %v1296, %v2542
  %v2544 = vpop.f32.mrf.mxu0
  %v2545 = vadd.f32 %v1298, %v2544
  %2546 = vmatprep.mubr.f32.mxu0 0.0
  %2547 = vmatmul.mubr.f32.gmra.mxu0 %v440
  %v2548 = vpop.f32.mrf.mxu0
  %v2549 = vadd.f32 %v1302, %v2548
  %v2550 = vpop.f32.mrf.mxu0
  %v2551 = vadd.f32 %v1304, %v2550
  %2552 = vmatprep.mubr.f32.mxu0 0.0
  %2553 = vmatmul.mubr.f32.gmra.mxu0 %v443
  %v2554 = vpop.f32.mrf.mxu0
  %v2555 = vadd.f32 %v1308, %v2554
  %v2556 = vpop.f32.mrf.mxu0
  %v2557 = vadd.f32 %v1310, %v2556
  %2558 = vmatprep.mubr.f32.mxu0 0.0
  %2559 = vmatmul.mubr.f32.gmra.mxu0 %v446
  %v2560 = vpop.f32.mrf.mxu0
  %v2561 = vadd.f32 %v1314, %v2560
  %v2562 = vpop.f32.mrf.mxu0
  %v2563 = vadd.f32 %v1316, %v2562
  %2564 = vmatprep.mubr.f32.mxu0 0.0
  %2565 = vmatmul.mubr.f32.gmra.mxu0 %v449
  %v2566 = vpop.f32.mrf.mxu0
  %v2567 = vadd.f32 %v1320, %v2566
  %v2568 = vpop.f32.mrf.mxu0
  %v2569 = vadd.f32 %v1322, %v2568
  %2570 = vmatprep.mubr.f32.mxu0 0.0
  %2571 = vmatmul.mubr.f32.gmra.mxu0 %v452
  %v2572 = vpop.f32.mrf.mxu0
  %v2573 = vadd.f32 %v1326, %v2572
  %v2574 = vpop.f32.mrf.mxu0
  %v2575 = vadd.f32 %v1328, %v2574
  %2576 = vmatprep.mubr.f32.mxu0 0.0
  %2577 = vmatmul.mubr.f32.gmra.mxu0 %v455
  %v2578 = vpop.f32.mrf.mxu0
  %v2579 = vadd.f32 %v1332, %v2578
  %v2580 = vpop.f32.mrf.mxu0
  %v2581 = vadd.f32 %v1334, %v2580
  %2582 = vmatprep.mubr.f32.mxu0 0.0
  %2583 = vmatmul.mubr.f32.gmra.mxu0 %v458
  %v2584 = vpop.f32.mrf.mxu0
  %v2585 = vadd.f32 %v1338, %v2584
  %v2586 = vpop.f32.mrf.mxu0
  %v2587 = vadd.f32 %v1340, %v2586
  %2588 = vmatprep.mubr.f32.mxu0 0.0
  %2589 = vmatmul.mubr.f32.gmra.mxu0 %v461
  %v2590 = vpop.f32.mrf.mxu0
  %v2591 = vadd.f32 %v1344, %v2590
  %v2592 = vpop.f32.mrf.mxu0
  %v2593 = vadd.f32 %v1346, %v2592
  %2594 = vmatprep.mubr.f32.mxu0 0.0
  %2595 = vmatmul.mubr.f32.gmra.mxu0 %v464
  %v2596 = vpop.f32.mrf.mxu0
  %v2597 = vadd.f32 %v1350, %v2596
  %v2598 = vpop.f32.mrf.mxu0
  %v2599 = vadd.f32 %v1352, %v2598
  %2600 = vmatprep.mubr.f32.mxu0 0.0
  %2601 = vmatmul.mubr.f32.gmra.mxu0 %v467
  %v2602 = vpop.f32.mrf.mxu0
  %v2603 = vadd.f32 %v1356, %v2602
  %v2604 = vpop.f32.mrf.mxu0
  %v2605 = vadd.f32 %v1358, %v2604
  %2606 = vmatprep.mubr.f32.mxu0 0.0
  %2607 = vmatmul.mubr.f32.gmra.mxu0 %v470
  %v2608 = vpop.f32.mrf.mxu0
  %v2609 = vadd.f32 %v1362, %v2608
  %v2610 = vpop.f32.mrf.mxu0
  %v2611 = vadd.f32 %v1364, %v2610
  %2612 = vmatprep.mubr.f32.mxu0 0.0
  %2613 = vmatmul.mubr.f32.gmra.mxu0 %v473
  %v2614 = vpop.f32.mrf.mxu0
  %v2615 = vadd.f32 %v1368, %v2614
  %v2616 = vpop.f32.mrf.mxu0
  %v2617 = vadd.f32 %v1370, %v2616
  %2618 = vmatprep.mubr.f32.mxu0 0.0
  %2619 = vmatmul.mubr.f32.gmra.mxu0 %v476
  %v2620 = vpop.f32.mrf.mxu0
  %v2621 = vadd.f32 %v1374, %v2620
  %v2622 = vpop.f32.mrf.mxu0
  %v2623 = vadd.f32 %v1376, %v2622
  %2624 = vmatprep.mubr.f32.mxu0 0.0
  %2625 = vmatmul.mubr.f32.gmra.mxu0 %v479
  %v2626 = vpop.f32.mrf.mxu0
  %v2627 = vadd.f32 %v1380, %v2626
  %v2628 = vpop.f32.mrf.mxu0
  %v2629 = vadd.f32 %v1382, %v2628
  %2630 = vmatprep.mubr.f32.mxu0 0.0
  %2631 = vmatmul.mubr.f32.gmra.mxu0 %v482
  %v2632 = vpop.f32.mrf.mxu0
  %v2633 = vadd.f32 %v1386, %v2632
  %v2634 = vpop.f32.mrf.mxu0
  %v2635 = vadd.f32 %v1388, %v2634
  %2636 = vmatprep.mubr.f32.mxu0 0.0
  %2637 = vmatmul.mubr.f32.gmra.mxu0 %v485
  %v2638 = vpop.f32.mrf.mxu0
  %v2639 = vadd.f32 %v1392, %v2638
  %v2640 = vpop.f32.mrf.mxu0
  %v2641 = vadd.f32 %v1394, %v2640
  %2642 = vmatprep.mubr.f32.mxu0 0.0
  %2643 = vmatmul.mubr.f32.gmra.mxu0 %v488
  %v2644 = vpop.f32.mrf.mxu0
  %v2645 = vadd.f32 %v1398, %v2644
  %v2646 = vpop.f32.mrf.mxu0
  %v2647 = vadd.f32 %v1400, %v2646
  %2648 = vmatprep.mubr.f32.mxu0 0.0
  %2649 = vmatmul.mubr.f32.gmra.mxu0 %v491
  %v2650 = vpop.f32.mrf.mxu0
  %v2651 = vadd.f32 %v1404, %v2650
  %v2652 = vpop.f32.mrf.mxu0
  %v2653 = vadd.f32 %v1406, %v2652
  %2654 = vmatprep.mubr.f32.mxu0 0.0
  %2655 = vmatmul.mubr.f32.gmra.mxu0 %v494
  %v2656 = vpop.f32.mrf.mxu0
  %v2657 = vadd.f32 %v1410, %v2656
  %v2658 = vpop.f32.mrf.mxu0
  %v2659 = vadd.f32 %v1412, %v2658
  %2660 = vmatprep.mubr.f32.mxu0 0.0
  %2661 = vmatmul.mubr.f32.gmra.mxu0 %v497
  %v2662 = vpop.f32.mrf.mxu0
  %v2663 = vadd.f32 %v1416, %v2662
  %v2664 = vpop.f32.mrf.mxu0
  %v2665 = vadd.f32 %v1418, %v2664
  %2666 = vmatprep.mubr.f32.mxu0 0.0
  %2667 = vmatmul.mubr.f32.gmra.mxu0 %v500
  %v2668 = vpop.f32.mrf.mxu0
  %v2669 = vadd.f32 %v1422, %v2668
  %v2670 = vpop.f32.mrf.mxu0
  %v2671 = vadd.f32 %v1424, %v2670
  %2672 = vmatprep.mubr.f32.mxu0 0.0
  %2673 = vmatmul.mubr.f32.gmra.mxu0 %v503
  %v2674 = vpop.f32.mrf.mxu0
  %v2675 = vadd.f32 %v1428, %v2674
  %v2676 = vpop.f32.mrf.mxu0
  %v2677 = vadd.f32 %v1430, %v2676
  %2678 = vmatprep.mubr.f32.mxu0 0.0
  %2679 = vmatmul.mubr.f32.gmra.mxu0 %v506
  %v2680 = vpop.f32.mrf.mxu0
  %v2681 = vadd.f32 %v1434, %v2680
  %v2682 = vpop.f32.mrf.mxu0
  %v2683 = vadd.f32 %v1436, %v2682
  %2684 = vmatprep.mubr.f32.mxu0 0.0
  %2685 = vmatmul.mubr.f32.gmra.mxu0 %v509
  %v2686 = vpop.f32.mrf.mxu0
  %v2687 = vadd.f32 %v1440, %v2686
  %v2688 = vpop.f32.mrf.mxu0
  %v2689 = vadd.f32 %v1442, %v2688
  %2690 = vmatprep.mubr.f32.mxu0 0.0
  %2691 = vmatmul.mubr.f32.gmra.mxu0 %v512
  %v2692 = vpop.f32.mrf.mxu0
  %v2693 = vadd.f32 %v1446, %v2692
  %v2694 = vpop.f32.mrf.mxu0
  %v2695 = vadd.f32 %v1448, %v2694
  %2696 = vmatprep.mubr.f32.mxu0 0.0
  %2697 = vmatmul.mubr.f32.gmra.mxu0 %v515
  %v2698 = vpop.f32.mrf.mxu0
  %v2699 = vadd.f32 %v1452, %v2698
  %v2700 = vpop.f32.mrf.mxu0
  %v2701 = vadd.f32 %v1454, %v2700
  %2702 = vmatprep.mubr.f32.mxu0 0.0
  %2703 = vmatmul.mubr.f32.gmra.mxu0 %v518
  %v2704 = vpop.f32.mrf.mxu0
  %v2705 = vadd.f32 %v1458, %v2704
  %v2706 = vpop.f32.mrf.mxu0
  %v2707 = vadd.f32 %v1460, %v2706
  %2708 = vmatprep.mubr.f32.mxu0 0.0
  %2709 = vmatmul.mubr.f32.gmra.mxu0 %v521
  %v2710 = vpop.f32.mrf.mxu0
  %v2711 = vadd.f32 %v1464, %v2710
  %v2712 = vpop.f32.mrf.mxu0
  %v2713 = vadd.f32 %v1466, %v2712
  %2714 = vmatprep.mubr.f32.mxu0 0.0
  %2715 = vmatmul.mubr.f32.gmra.mxu0 %v524
  %v2716 = vpop.f32.mrf.mxu0
  %v2717 = vadd.f32 %v1470, %v2716
  %v2718 = vpop.f32.mrf.mxu0
  %v2719 = vadd.f32 %v1472, %v2718
  %2720 = vmatprep.mubr.f32.mxu0 0.0
  %2721 = vmatmul.mubr.f32.gmra.mxu0 %v527
  %v2722 = vpop.f32.mrf.mxu0
  %v2723 = vadd.f32 %v1476, %v2722
  %v2724 = vpop.f32.mrf.mxu0
  %v2725 = vadd.f32 %v1478, %v2724
  %2726 = vmatprep.mubr.f32.mxu0 0.0
  %2727 = vmatmul.mubr.f32.gmra.mxu0 %v530
  %v2728 = vpop.f32.mrf.mxu0
  %v2729 = vadd.f32 %v1482, %v2728
  %v2730 = vpop.f32.mrf.mxu0
  %v2731 = vadd.f32 %v1484, %v2730
  %2732 = vmatprep.mubr.f32.mxu0 0.0
  %2733 = vmatmul.mubr.f32.gmra.mxu0 %v533
  %v2734 = vpop.f32.mrf.mxu0
  %v2735 = vadd.f32 %v1488, %v2734
  %v2736 = vpop.f32.mrf.mxu0
  %v2737 = vadd.f32 %v1490, %v2736
  %2738 = vmatprep.mubr.f32.mxu0 0.0
  %2739 = vmatmul.mubr.f32.gmra.mxu0 %v536
  %v2740 = vpop.f32.mrf.mxu0
  %v2741 = vadd.f32 %v1494, %v2740
  %v2742 = vpop.f32.mrf.mxu0
  %v2743 = vadd.f32 %v1496, %v2742
  %2744 = vmatprep.mubr.f32.mxu0 0.0
  %2745 = vmatmul.mubr.f32.gmra.mxu0 %v539
  %v2746 = vpop.f32.mrf.mxu0
  %v2747 = vadd.f32 %v1500, %v2746
  %v2748 = vpop.f32.mrf.mxu0
  %v2749 = vadd.f32 %v1502, %v2748
  %2750 = vmatprep.mubr.f32.mxu0 0.0
  %2751 = vmatmul.mubr.f32.gmra.mxu0 %v542
  %v2752 = vpop.f32.mrf.mxu0
  %v2753 = vadd.f32 %v1506, %v2752
  %v2754 = vpop.f32.mrf.mxu0
  %v2755 = vadd.f32 %v1508, %v2754
  %2756 = vmatprep.mubr.f32.mxu0 0.0
  %2757 = vmatmul.mubr.f32.gmra.mxu0 %v545
  %v2758 = vpop.f32.mrf.mxu0
  %v2759 = vadd.f32 %v1512, %v2758
  %v2760 = vpop.f32.mrf.mxu0
  %v2761 = vadd.f32 %v1514, %v2760
  %2762 = vmatprep.mubr.f32.mxu0 0.0
  %2763 = vmatmul.mubr.f32.gmra.mxu0 %v548
  %v2764 = vpop.f32.mrf.mxu0
  %v2765 = vadd.f32 %v1518, %v2764
  %v2766 = vpop.f32.mrf.mxu0
  %v2767 = vadd.f32 %v1520, %v2766
  %2768 = vmatprep.mubr.f32.mxu0 0.0
  %2769 = vmatmul.mubr.f32.gmra.mxu0 %v551
  %v2770 = vpop.f32.mrf.mxu0
  %v2771 = vadd.f32 %v1524, %v2770
  %v2772 = vpop.f32.mrf.mxu0
  %v2773 = vadd.f32 %v1526, %v2772
  %2774 = vmatprep.mubr.f32.mxu0 0.0
  %2775 = vmatmul.mubr.f32.gmra.mxu0 %v554
  %v2776 = vpop.f32.mrf.mxu0
  %v2777 = vadd.f32 %v1530, %v2776
  %v2778 = vpop.f32.mrf.mxu0
  %v2779 = vadd.f32 %v1532, %v2778
  %2780 = vmatprep.mubr.f32.mxu0 0.0
  %2781 = vmatmul.mubr.f32.gmra.mxu0 %v557
  %v2782 = vpop.f32.mrf.mxu0
  %v2783 = vadd.f32 %v1536, %v2782
  %v2784 = vpop.f32.mrf.mxu0
  %v2785 = vadd.f32 %v1538, %v2784
  %2786 = vmatprep.mubr.f32.mxu0 0.0
  %2787 = vmatmul.mubr.f32.gmra.mxu0 %v560
  %v2788 = vpop.f32.mrf.mxu0
  %v2789 = vadd.f32 %v1542, %v2788
  %v2790 = vpop.f32.mrf.mxu0
  %v2791 = vadd.f32 %v1544, %v2790
  %2792 = vmatprep.mubr.f32.mxu0 0.0
  %2793 = vmatmul.mubr.f32.gmra.mxu0 %v563
  %v2794 = vpop.f32.mrf.mxu0
  %v2795 = vadd.f32 %v1548, %v2794
  %v2796 = vpop.f32.mrf.mxu0
  %v2797 = vadd.f32 %v1550, %v2796
  %2798 = vmatprep.mubr.f32.mxu0 0.0
  %2799 = vmatmul.mubr.f32.gmra.mxu0 %v566
  %v2800 = vpop.f32.mrf.mxu0
  %v2801 = vadd.f32 %v1554, %v2800
  %v2802 = vpop.f32.mrf.mxu0
  %v2803 = vadd.f32 %v1556, %v2802
  %2804 = vmatprep.mubr.f32.mxu0 0.0
  %2805 = vmatmul.mubr.f32.gmra.mxu0 %v569
  %v2806 = vpop.f32.mrf.mxu0
  %v2807 = vadd.f32 %v1560, %v2806
  %v2808 = vpop.f32.mrf.mxu0
  %v2809 = vadd.f32 %v1562, %v2808
  %2810 = vmatprep.mubr.f32.mxu0 0.0
  %2811 = vmatmul.mubr.f32.gmra.mxu0 %v572
  %v2812 = vpop.f32.mrf.mxu0
  %v2813 = vadd.f32 %v1566, %v2812
  %v2814 = vpop.f32.mrf.mxu0
  %v2815 = vadd.f32 %v1568, %v2814
  %2816 = vmatprep.mubr.f32.mxu0 0.0
  %2817 = vmatmul.mubr.f32.gmra.mxu0 %v575
  %v2818 = vpop.f32.mrf.mxu0
  %v2819 = vadd.f32 %v1572, %v2818
  %v2820 = vpop.f32.mrf.mxu0
  %v2821 = vadd.f32 %v1574, %v2820
  %2822 = vmatprep.mubr.f32.mxu0 0.0
  %2823 = vmatmul.mubr.f32.gmra.mxu0 %v578
  %v2824 = vpop.f32.mrf.mxu0
  %v2825 = vadd.f32 %v1578, %v2824
  %v2826 = vpop.f32.mrf.mxu0
  %v2827 = vadd.f32 %v1580, %v2826
  %2828 = vmatprep.mubr.f32.mxu0 0.0
  %2829 = vmatmul.mubr.f32.gmra.mxu0 %v581
  %v2830 = vpop.f32.mrf.mxu0
  %v2831 = vadd.f32 %v1584, %v2830
  %v2832 = vpop.f32.mrf.mxu0
  %v2833 = vadd.f32 %v1586, %v2832
  %2834 = vmatprep.mubr.f32.mxu0 0.0
  %2835 = vmatmul.mubr.f32.gmra.mxu0 %v584
  %v2836 = vpop.f32.mrf.mxu0
  %v2837 = vadd.f32 %v1590, %v2836
  %v2838 = vpop.f32.mrf.mxu0
  %v2839 = vadd.f32 %v1592, %v2838
  %2840 = vmatprep.mubr.f32.mxu0 0.0
  %2841 = vmatmul.mubr.f32.gmra.mxu0 %v587
  %v2842 = vpop.f32.mrf.mxu0
  %v2843 = vadd.f32 %v1596, %v2842
  %v2844 = vpop.f32.mrf.mxu0
  %v2845 = vadd.f32 %v1598, %v2844
  %2846 = vmatprep.mubr.f32.mxu0 0.0
  %2847 = vmatmul.mubr.f32.gmra.mxu0 %v590
  %v2848 = vpop.f32.mrf.mxu0
  %v2849 = vadd.f32 %v1602, %v2848
  %v2850 = vpop.f32.mrf.mxu0
  %v2851 = vadd.f32 %v1604, %v2850
  %2852 = vmatprep.mubr.f32.mxu0 0.0
  %2853 = vmatmul.mubr.f32.gmra.mxu0 %v593
  %v2854 = vpop.f32.mrf.mxu0
  %v2855 = vadd.f32 %v1608, %v2854
  %v2856 = vpop.f32.mrf.mxu0
  %v2857 = vadd.f32 %v1610, %v2856
  %2858 = vmatprep.mubr.f32.mxu0 0.0
  %2859 = vmatmul.mubr.f32.gmra.mxu0 %v596
  %v2860 = vpop.f32.mrf.mxu0
  %v2861 = vadd.f32 %v1614, %v2860
  %v2862 = vpop.f32.mrf.mxu0
  %v2863 = vadd.f32 %v1616, %v2862
  %2864 = vmatprep.mubr.f32.mxu0 0.0
  %2865 = vmatmul.mubr.f32.gmra.mxu0 %v599
  %v2866 = vpop.f32.mrf.mxu0
  %v2867 = vadd.f32 %v1620, %v2866
  %v2868 = vpop.f32.mrf.mxu0
  %v2869 = vadd.f32 %v1622, %v2868
  %2870 = vmatprep.mubr.f32.mxu0 0.0
  %2871 = vmatmul.mubr.f32.gmra.mxu0 %v602
  %v2872 = vpop.f32.mrf.mxu0
  %v2873 = vadd.f32 %v1626, %v2872
  %v2874 = vpop.f32.mrf.mxu0
  %v2875 = vadd.f32 %v1628, %v2874
  %2876 = vmatprep.mubr.f32.mxu0 0.0
  %2877 = vmatmul.mubr.f32.gmra.mxu0 %v605
  %v2878 = vpop.f32.mrf.mxu0
  %v2879 = vadd.f32 %v1632, %v2878
  %v2880 = vpop.f32.mrf.mxu0
  %v2881 = vadd.f32 %v1634, %v2880
  %2882 = vmatprep.mubr.f32.mxu0 0.0
  %2883 = vmatmul.mubr.f32.gmra.mxu0 %v608
  %v2884 = vpop.f32.mrf.mxu0
  %v2885 = vadd.f32 %v1638, %v2884
  %v2886 = vpop.f32.mrf.mxu0
  %v2887 = vadd.f32 %v1640, %v2886
  %2888 = vmatprep.mubr.f32.mxu0 0.0
  %2889 = vmatmul.mubr.f32.gmra.mxu0 %v611
  %v2890 = vpop.f32.mrf.mxu0
  %v2891 = vadd.f32 %v1644, %v2890
  %v2892 = vpop.f32.mrf.mxu0
  %v2893 = vadd.f32 %v1646, %v2892
  %2894 = vmatprep.mubr.f32.mxu0 0.0
  %2895 = vmatmul.mubr.f32.gmra.mxu0 %v614
  %v2896 = vpop.f32.mrf.mxu0
  %v2897 = vadd.f32 %v1650, %v2896
  %v2898 = vpop.f32.mrf.mxu0
  %v2899 = vadd.f32 %v1652, %v2898
  %2900 = vmatprep.mubr.f32.mxu0 0.0
  %2901 = vmatmul.mubr.f32.gmra.mxu0 %v617
  %v2902 = vpop.f32.mrf.mxu0
  %v2903 = vadd.f32 %v1656, %v2902
  %v2904 = vpop.f32.mrf.mxu0
  %v2905 = vadd.f32 %v1658, %v2904
  %2906 = vmatprep.mubr.f32.mxu0 0.0
  %2907 = vmatmul.mubr.f32.gmra.mxu0 %v620
  %v2908 = vpop.f32.mrf.mxu0
  %v2909 = vadd.f32 %v1662, %v2908
  %v2910 = vpop.f32.mrf.mxu0
  %v2911 = vadd.f32 %v1664, %v2910
  %2912 = vmatprep.mubr.f32.mxu0 0.0
  %2913 = vmatmul.mubr.f32.gmra.mxu0 %v623
  %v2914 = vpop.f32.mrf.mxu0
  %v2915 = vadd.f32 %v1668, %v2914
  %v2916 = vpop.f32.mrf.mxu0
  %v2917 = vadd.f32 %v1670, %v2916
  %2918 = vmatprep.mubr.f32.mxu0 0.0
  %2919 = vmatmul.mubr.f32.gmra.mxu0 %v626
  %v2920 = vpop.f32.mrf.mxu0
  %v2921 = vadd.f32 %v1674, %v2920
  %v2922 = vpop.f32.mrf.mxu0
  %v2923 = vadd.f32 %v1676, %v2922
  %2924 = vmatprep.mubr.f32.mxu0 0.0
  %2925 = vmatmul.mubr.f32.gmra.mxu0 %v629
  %v2926 = vpop.f32.mrf.mxu0
  %v2927 = vadd.f32 %v1680, %v2926
  %v2928 = vpop.f32.mrf.mxu0
  %v2929 = vadd.f32 %v1682, %v2928
  %2930 = vmatprep.mubr.f32.mxu0 0.0
  %2931 = vmatmul.mubr.f32.gmra.mxu0 %v632
  %v2932 = vpop.f32.mrf.mxu0
  %v2933 = vadd.f32 %v1686, %v2932
  %v2934 = vpop.f32.mrf.mxu0
  %v2935 = vadd.f32 %v1688, %v2934
  %2936 = vmatprep.mubr.f32.mxu0 0.0
  %2937 = vmatmul.mubr.f32.gmra.mxu0 %v635
  %v2938 = vpop.f32.mrf.mxu0
  %v2939 = vadd.f32 %v1692, %v2938
  %v2940 = vpop.f32.mrf.mxu0
  %v2941 = vadd.f32 %v1694, %v2940
  %2942 = vmatprep.mubr.f32.mxu0 0.0
  %2943 = vmatmul.mubr.f32.gmra.mxu0 %v638
  %v2944 = vpop.f32.mrf.mxu0
  %v2945 = vadd.f32 %v1698, %v2944
  %v2946 = vpop.f32.mrf.mxu0
  %v2947 = vadd.f32 %v1700, %v2946
  %2948 = vmatprep.mubr.f32.mxu0 0.0
  %2949 = vmatmul.mubr.f32.gmra.mxu0 %v641
  %v2950 = vpop.f32.mrf.mxu0
  %v2951 = vadd.f32 %v1704, %v2950
  %v2952 = vpop.f32.mrf.mxu0
  %v2953 = vadd.f32 %v1706, %v2952
  %2954 = vmatprep.mubr.f32.mxu0 0.0
  %2955 = vmatmul.mubr.f32.gmra.mxu0 %v644
  %v2956 = vpop.f32.mrf.mxu0
  %v2957 = vadd.f32 %v1710, %v2956
  %v2958 = vpop.f32.mrf.mxu0
  %v2959 = vadd.f32 %v1712, %v2958
  %2960 = vmatprep.mubr.f32.mxu0 0.0
  %2961 = vmatmul.mubr.f32.gmra.mxu0 %v647
  %v2962 = vpop.f32.mrf.mxu0
  %v2963 = vadd.f32 %v1716, %v2962
  %v2964 = vpop.f32.mrf.mxu0
  %v2965 = vadd.f32 %v1718, %v2964
  %2966 = vmatprep.mubr.f32.mxu0 0.0
  %2967 = vmatmul.mubr.f32.gmra.mxu0 %v650
  %v2968 = vpop.f32.mrf.mxu0
  %v2969 = vadd.f32 %v1722, %v2968
  %v2970 = vpop.f32.mrf.mxu0
  %v2971 = vadd.f32 %v1724, %v2970
  %2972 = vmatprep.mubr.f32.mxu0 0.0
  %2973 = vmatmul.mubr.f32.gmra.mxu0 %v653
  %v2974 = vpop.f32.mrf.mxu0
  %v2975 = vadd.f32 %v1728, %v2974
  %v2976 = vpop.f32.mrf.mxu0
  %v2977 = vadd.f32 %v1730, %v2976
  %2978 = vmatprep.mubr.f32.mxu0 0.0
  %2979 = vmatmul.mubr.f32.gmra.mxu0 %v656
  %v2980 = vpop.f32.mrf.mxu0
  %v2981 = vadd.f32 %v1734, %v2980
  %v2982 = vpop.f32.mrf.mxu0
  %v2983 = vadd.f32 %v1736, %v2982
  %2984 = vmatprep.mubr.f32.mxu0 0.0
  %2985 = vmatmul.mubr.f32.gmra.mxu0 %v659
  %v2986 = vpop.f32.mrf.mxu0
  %v2987 = vadd.f32 %v1740, %v2986
  %v2988 = vpop.f32.mrf.mxu0
  %v2989 = vadd.f32 %v1742, %v2988
  %2990 = vmatprep.mubr.f32.mxu0 0.0
  %2991 = vmatmul.mubr.f32.gmra.mxu0 %v662
  %v2992 = vpop.f32.mrf.mxu0
  %v2993 = vadd.f32 %v1746, %v2992
  %v2994 = vpop.f32.mrf.mxu0
  %v2995 = vadd.f32 %v1748, %v2994
  %2996 = vmatprep.mubr.f32.mxu0 0.0
  %2997 = vmatmul.mubr.f32.gmra.mxu0 %v665
  %v2998 = vpop.f32.mrf.mxu0
  %v2999 = vadd.f32 %v1752, %v2998
  %v3000 = vpop.f32.mrf.mxu0
  %v3001 = vadd.f32 %v1754, %v3000
  %3002 = vmatprep.mubr.f32.mxu0 0.0
  %3003 = vmatmul.mubr.f32.gmra.mxu0 %v668
  %v3004 = vpop.f32.mrf.mxu0
  %v3005 = vadd.f32 %v1758, %v3004
  %v3006 = vpop.f32.mrf.mxu0
  %v3007 = vadd.f32 %v1760, %v3006
  %3008 = vmatprep.mubr.f32.mxu0 0.0
  %3009 = vmatmul.mubr.f32.gmra.mxu0 %v671
  %v3010 = vpop.f32.mrf.mxu0
  %v3011 = vadd.f32 %v1764, %v3010
  %v3012 = vpop.f32.mrf.mxu0
  %v3013 = vadd.f32 %v1766, %v3012
  %3014 = vmatprep.mubr.f32.mxu0 0.0
  %3015 = vmatmul.mubr.f32.gmra.mxu0 %v674
  %v3016 = vpop.f32.mrf.mxu0
  %v3017 = vadd.f32 %v1770, %v3016
  %v3018 = vpop.f32.mrf.mxu0
  %v3019 = vadd.f32 %v1772, %v3018
  %3020 = vmatprep.mubr.f32.mxu0 0.0
  %3021 = vmatmul.mubr.f32.gmra.mxu0 %v677
  %v3022 = vpop.f32.mrf.mxu0
  %v3023 = vadd.f32 %v1776, %v3022
  %v3024 = vpop.f32.mrf.mxu0
  %v3025 = vadd.f32 %v1778, %v3024
  %3026 = vmatprep.mubr.f32.mxu0 0.0
  %3027 = vmatmul.mubr.f32.gmra.mxu0 %v680
  %v3028 = vpop.f32.mrf.mxu0
  %v3029 = vadd.f32 %v1782, %v3028
  %v3030 = vpop.f32.mrf.mxu0
  %v3031 = vadd.f32 %v1784, %v3030
  %3032 = vmatprep.mubr.f32.mxu0 0.0
  %3033 = vmatmul.mubr.f32.gmra.mxu0 %v683
  %v3034 = vpop.f32.mrf.mxu0
  %v3035 = vadd.f32 %v1788, %v3034
  %v3036 = vpop.f32.mrf.mxu0
  %v3037 = vadd.f32 %v1790, %v3036
  %3038 = vmatprep.mubr.f32.mxu0 0.0
  %3039 = vmatmul.mubr.f32.gmra.mxu0 %v686
  %v3040 = vpop.f32.mrf.mxu0
  %v3041 = vadd.f32 %v1794, %v3040
  %v3042 = vpop.f32.mrf.mxu0
  %v3043 = vadd.f32 %v1796, %v3042
  %3044 = vmatprep.mubr.f32.mxu0 0.0
  %3045 = vmatmul.mubr.f32.gmra.mxu0 %v689
  %v3046 = vpop.f32.mrf.mxu0
  %v3047 = vadd.f32 %v1800, %v3046
  %v3048 = vpop.f32.mrf.mxu0
  %v3049 = vadd.f32 %v1802, %v3048
  %3050 = vmatprep.mubr.f32.mxu0 0.0
  %3051 = vmatmul.mubr.f32.gmra.mxu0 %v692
  %v3052 = vpop.f32.mrf.mxu0
  %v3053 = vadd.f32 %v1806, %v3052
  %v3054 = vpop.f32.mrf.mxu0
  %v3055 = vadd.f32 %v1808, %v3054
  %3056 = vmatprep.mubr.f32.mxu0 0.0
  %3057 = vmatmul.mubr.f32.gmra.mxu0 %v695
  %v3058 = vpop.f32.mrf.mxu0
  %v3059 = vadd.f32 %v1812, %v3058
  %v3060 = vpop.f32.mrf.mxu0
  %v3061 = vadd.f32 %v1814, %v3060
  %3062 = vmatprep.mubr.f32.mxu0 0.0
  %3063 = vmatmul.mubr.f32.gmra.mxu0 %v698
  %v3064 = vpop.f32.mrf.mxu0
  %v3065 = vadd.f32 %v1818, %v3064
  %v3066 = vpop.f32.mrf.mxu0
  %v3067 = vadd.f32 %v1820, %v3066
  %3068 = vmatprep.mubr.f32.mxu0 0.0
  %3069 = vmatmul.mubr.f32.gmra.mxu0 %v701
  %v3070 = vpop.f32.mrf.mxu0
  %v3071 = vadd.f32 %v1824, %v3070
  %v3072 = vpop.f32.mrf.mxu0
  %v3073 = vadd.f32 %v1826, %v3072
  %3074 = vmatprep.mubr.f32.mxu0 0.0
  %3075 = vmatmul.mubr.f32.gmra.mxu0 %v704
  %v3076 = vpop.f32.mrf.mxu0
  %v3077 = vadd.f32 %v1830, %v3076
  %v3078 = vpop.f32.mrf.mxu0
  %v3079 = vadd.f32 %v1832, %v3078
  %3080 = vmatprep.mubr.f32.mxu0 0.0
  %3081 = vmatmul.mubr.f32.gmra.mxu0 %v707
  %v3082 = vpop.f32.mrf.mxu0
  %v3083 = vadd.f32 %v1836, %v3082
  %v3084 = vpop.f32.mrf.mxu0
  %v3085 = vadd.f32 %v1838, %v3084
  %3086 = vmatprep.mubr.f32.mxu0 0.0
  %3087 = vmatmul.mubr.f32.gmra.mxu0 %v710
  %v3088 = vpop.f32.mrf.mxu0
  %v3089 = vadd.f32 %v1842, %v3088
  %v3090 = vpop.f32.mrf.mxu0
  %v3091 = vadd.f32 %v1844, %v3090
  %3092 = vmatprep.mubr.f32.mxu0 0.0
  %3093 = vmatmul.mubr.f32.gmra.mxu0 %v713
  %v3094 = vpop.f32.mrf.mxu0
  %v3095 = vadd.f32 %v1848, %v3094
  %v3096 = vpop.f32.mrf.mxu0
  %v3097 = vadd.f32 %v1850, %v3096
  %3098 = vmatprep.mubr.f32.mxu0 0.0
  %3099 = vmatmul.mubr.f32.gmra.mxu0 %v716
  %v3100 = vpop.f32.mrf.mxu0
  %v3101 = vadd.f32 %v1854, %v3100
  %v3102 = vpop.f32.mrf.mxu0
  %v3103 = vadd.f32 %v1856, %v3102
  %3104 = vmatprep.mubr.f32.mxu0 0.0
  %3105 = vmatmul.mubr.f32.gmra.mxu0 %v719
  %v3106 = vpop.f32.mrf.mxu0
  %v3107 = vadd.f32 %v1860, %v3106
  %v3108 = vpop.f32.mrf.mxu0
  %v3109 = vadd.f32 %v1862, %v3108
  %3110 = vmatprep.mubr.f32.mxu0 0.0
  %3111 = vmatmul.mubr.f32.gmra.mxu0 %v722
  %v3112 = vpop.f32.mrf.mxu0
  %v3113 = vadd.f32 %v1866, %v3112
  %v3114 = vpop.f32.mrf.mxu0
  %v3115 = vadd.f32 %v1868, %v3114
  %3116 = vmatprep.mubr.f32.mxu0 0.0
  %3117 = vmatmul.mubr.f32.gmra.mxu0 %v725
  %v3118 = vpop.f32.mrf.mxu0
  %v3119 = vadd.f32 %v1872, %v3118
  %v3120 = vpop.f32.mrf.mxu0
  %v3121 = vadd.f32 %v1874, %v3120
  %3122 = vmatprep.mubr.f32.mxu0 0.0
  %3123 = vmatmul.mubr.f32.gmra.mxu0 %v728
  %v3124 = vpop.f32.mrf.mxu0
  %v3125 = vadd.f32 %v1878, %v3124
  %v3126 = vpop.f32.mrf.mxu0
  %v3127 = vadd.f32 %v1880, %v3126
  %3128 = vmatprep.mubr.f32.mxu0 0.0
  %3129 = vmatmul.mubr.f32.gmra.mxu0 %v731
  %v3130 = vpop.f32.mrf.mxu0
  %v3131 = vadd.f32 %v1884, %v3130
  %v3132 = vpop.f32.mrf.mxu0
  %v3133 = vadd.f32 %v1886, %v3132
  %3134 = vmatprep.mubr.f32.mxu0 0.0
  %3135 = vmatmul.mubr.f32.gmra.mxu0 %v734
  %v3136 = vpop.f32.mrf.mxu0
  %v3137 = vadd.f32 %v1890, %v3136
  %v3138 = vpop.f32.mrf.mxu0
  %v3139 = vadd.f32 %v1892, %v3138
  %3140 = vmatprep.mubr.f32.mxu0 0.0
  %3141 = vmatmul.mubr.f32.gmra.mxu0 %v737
  %v3142 = vpop.f32.mrf.mxu0
  %v3143 = vadd.f32 %v1896, %v3142
  %v3144 = vpop.f32.mrf.mxu0
  %v3145 = vadd.f32 %v1898, %v3144
  %3146 = vmatprep.mubr.f32.mxu0 0.0
  %3147 = vmatmul.mubr.f32.gmra.mxu0 %v740
  %v3148 = vpop.f32.mrf.mxu0
  %v3149 = vadd.f32 %v1902, %v3148
  %v3150 = vpop.f32.mrf.mxu0
  %v3151 = vadd.f32 %v1904, %v3150
  %3152 = vmatprep.mubr.f32.mxu0 0.0
  %3153 = vmatmul.mubr.f32.gmra.mxu0 %v743
  %v3154 = vpop.f32.mrf.mxu0
  %v3155 = vadd.f32 %v1908, %v3154
  %v3156 = vpop.f32.mrf.mxu0
  %v3157 = vadd.f32 %v1910, %v3156
  %3158 = vmatprep.mubr.f32.mxu0 0.0
  %3159 = vmatmul.mubr.f32.gmra.mxu0 %v746
  %v3160 = vpop.f32.mrf.mxu0
  %v3161 = vadd.f32 %v1914, %v3160
  %v3162 = vpop.f32.mrf.mxu0
  %v3163 = vadd.f32 %v1916, %v3162
  %3164 = vmatprep.mubr.f32.mxu0 0.0
  %3165 = vmatmul.mubr.f32.gmra.mxu0 %v749
  %v3166 = vpop.f32.mrf.mxu0
  %v3167 = vadd.f32 %v1920, %v3166
  %v3168 = vpop.f32.mrf.mxu0
  %v3169 = vadd.f32 %v1922, %v3168
  %3170 = vmatprep.mubr.f32.mxu0 0.0
  %3171 = vmatmul.mubr.f32.gmra.mxu0 %v752
  %v3172 = vpop.f32.mrf.mxu0
  %v3173 = vadd.f32 %v1926, %v3172
  %v3174 = vpop.f32.mrf.mxu0
  %v3175 = vadd.f32 %v1928, %v3174
  %3176 = vmatprep.mubr.f32.mxu0 0.0
  %3177 = vmatmul.mubr.f32.gmra.mxu0 %v755
  %v3178 = vpop.f32.mrf.mxu0
  %v3179 = vadd.f32 %v1932, %v3178
  %v3180 = vpop.f32.mrf.mxu0
  %v3181 = vadd.f32 %v1934, %v3180
  %3182 = vmatprep.mubr.f32.mxu0 0.0
  %3183 = vmatmul.mubr.f32.gmra.mxu0 %v758
  %v3184 = vpop.f32.mrf.mxu0
  %v3185 = vadd.f32 %v1938, %v3184
  %v3186 = vpop.f32.mrf.mxu0
  %v3187 = vadd.f32 %v1940, %v3186
  %3188 = vmatprep.mubr.f32.mxu0 0.0
  %3189 = vmatmul.mubr.f32.gmra.mxu0 %v761
  %v3190 = vpop.f32.mrf.mxu0
  %v3191 = vadd.f32 %v1944, %v3190
  %v3192 = vpop.f32.mrf.mxu0
  %v3193 = vadd.f32 %v1946, %v3192
  %3194 = vmatprep.mubr.f32.mxu0 0.0
  %3195 = vmatmul.mubr.f32.gmra.mxu0 %v764
  %v3196 = vpop.f32.mrf.mxu0
  %v3197 = vadd.f32 %v1950, %v3196
  %v3198 = vpop.f32.mrf.mxu0
  %v3199 = vadd.f32 %v1952, %v3198
  %3200 = vmatprep.mubr.f32.mxu0 0.0
  %3201 = vmatmul.mubr.f32.gmra.mxu0 %v767
  %v3202 = vpop.f32.mrf.mxu0
  %v3203 = vadd.f32 %v1956, %v3202
  %v3204 = vpop.f32.mrf.mxu0
  %v3205 = vadd.f32 %v1958, %v3204
  %3206 = vmatprep.mubr.f32.mxu0 0.0
  %3207 = vmatmul.mubr.f32.gmra.mxu0 %v770
  %v3208 = vpop.f32.mrf.mxu0
  %v3209 = vadd.f32 %v1962, %v3208
  %v3210 = vpop.f32.mrf.mxu0
  %v3211 = vadd.f32 %v1964, %v3210
  %3212 = vmatprep.mubr.f32.mxu0 0.0
  %3213 = vmatmul.mubr.f32.gmra.mxu0 %v773
  %v3214 = vpop.f32.mrf.mxu0
  %v3215 = vadd.f32 %v1968, %v3214
  %v3216 = vpop.f32.mrf.mxu0
  %v3217 = vadd.f32 %v1970, %v3216
  %3218 = vmatprep.mubr.f32.mxu0 0.0
  %3219 = vmatmul.mubr.f32.gmra.mxu0 %v776
  %v3220 = vpop.f32.mrf.mxu0
  %v3221 = vadd.f32 %v1974, %v3220
  %v3222 = vpop.f32.mrf.mxu0
  %v3223 = vadd.f32 %v1976, %v3222
  %3224 = vmatprep.mubr.f32.mxu0 0.0
  %3225 = vmatmul.mubr.f32.gmra.mxu0 %v779
  %v3226 = vpop.f32.mrf.mxu0
  %v3227 = vadd.f32 %v1980, %v3226
  %v3228 = vpop.f32.mrf.mxu0
  %v3229 = vadd.f32 %v1982, %v3228
  %3230 = vmatprep.mubr.f32.mxu0 0.0
  %3231 = vmatmul.mubr.f32.gmra.mxu0 %v782
  %v3232 = vpop.f32.mrf.mxu0
  %v3233 = vadd.f32 %v1986, %v3232
  %v3234 = vpop.f32.mrf.mxu0
  %v3235 = vadd.f32 %v1988, %v3234
  %3236 = vmatprep.mubr.f32.mxu0 0.0
  %3237 = vmatmul.mubr.f32.gmra.mxu0 %v785
  %v3238 = vpop.f32.mrf.mxu0
  %v3239 = vadd.f32 %v1992, %v3238
  %v3240 = vpop.f32.mrf.mxu0
  %v3241 = vadd.f32 %v1994, %v3240
  %3242 = vmatprep.mubr.f32.mxu0 0.0
  %3243 = vmatmul.mubr.f32.gmra.mxu0 %v788
  %v3244 = vpop.f32.mrf.mxu0
  %v3245 = vadd.f32 %v1998, %v3244
  %v3246 = vpop.f32.mrf.mxu0
  %v3247 = vadd.f32 %v2000, %v3246
  %3248 = vmatprep.mubr.f32.mxu0 0.0
  %3249 = vmatmul.mubr.f32.gmra.mxu0 %v791
  %v3250 = vpop.f32.mrf.mxu0
  %v3251 = vadd.f32 %v2004, %v3250
  %v3252 = vpop.f32.mrf.mxu0
  %v3253 = vadd.f32 %v2006, %v3252
  %3254 = vmatprep.mubr.f32.mxu0 0.0
  %3255 = vmatmul.mubr.f32.gmra.mxu0 %v794
  %v3256 = vpop.f32.mrf.mxu0
  %v3257 = vadd.f32 %v2010, %v3256
  %v3258 = vpop.f32.mrf.mxu0
  %v3259 = vadd.f32 %v2012, %v3258
  %3260 = vmatprep.mubr.f32.mxu0 0.0
  %3261 = vmatmul.mubr.f32.gmra.mxu0 %v797
  %v3262 = vpop.f32.mrf.mxu0
  %v3263 = vadd.f32 %v2016, %v3262
  %v3264 = vpop.f32.mrf.mxu0
  %v3265 = vadd.f32 %v2018, %v3264
  %3266 = vmatprep.mubr.f32.mxu0 0.0
  %3267 = vmatmul.mubr.f32.gmra.mxu0 %v800
  %v3268 = vpop.f32.mrf.mxu0
  %v3269 = vadd.f32 %v2022, %v3268
  %v3270 = vpop.f32.mrf.mxu0
  %v3271 = vadd.f32 %v2024, %v3270
  %3272 = vmatprep.mubr.f32.mxu0 0.0
  %3273 = vmatmul.mubr.f32.gmra.mxu0 %v803
  %v3274 = vpop.f32.mrf.mxu0
  %v3275 = vadd.f32 %v2028, %v3274
  %v3276 = vpop.f32.mrf.mxu0
  %v3277 = vadd.f32 %v2030, %v3276
  %3278 = vmatprep.mubr.f32.mxu0 0.0
  %3279 = vmatmul.mubr.f32.gmra.mxu0 %v806
  %v3280 = vpop.f32.mrf.mxu0
  %v3281 = vadd.f32 %v2034, %v3280
  %v3282 = vpop.f32.mrf.mxu0
  %v3283 = vadd.f32 %v2036, %v3282
  %3284 = vmatprep.mubr.f32.mxu0 0.0
  %3285 = vmatmul.mubr.f32.gmra.mxu0 %v809
  %v3286 = vpop.f32.mrf.mxu0
  %v3287 = vadd.f32 %v2040, %v3286
  %v3288 = vpop.f32.mrf.mxu0
  %v3289 = vadd.f32 %v2042, %v3288
  %3290 = vmatprep.mubr.f32.mxu0 0.0
  %3291 = vmatmul.mubr.f32.gmra.mxu0 %v812
  %v3292 = vpop.f32.mrf.mxu0
  %v3293 = vadd.f32 %v2046, %v3292
  %v3294 = vpop.f32.mrf.mxu0
  %v3295 = vadd.f32 %v2048, %v3294
  %3296 = vmatprep.mubr.f32.mxu0 0.0
  %3297 = vmatmul.mubr.f32.gmra.mxu0 %v815
  %v3298 = vpop.f32.mrf.mxu0
  %v3299 = vadd.f32 %v2052, %v3298
  %v3300 = vpop.f32.mrf.mxu0
  %v3301 = vadd.f32 %v2054, %v3300
  %3302 = vmatprep.mubr.f32.mxu0 0.0
  %3303 = vmatmul.mubr.f32.gmra.mxu0 %v818
  %v3304 = vpop.f32.mrf.mxu0
  %v3305 = vadd.f32 %v2058, %v3304
  %v3306 = vpop.f32.mrf.mxu0
  %v3307 = vadd.f32 %v2060, %v3306
  %3308 = vmatprep.mubr.f32.mxu0 0.0
  %3309 = vmatmul.mubr.f32.gmra.mxu0 %v821
  %v3310 = vpop.f32.mrf.mxu0
  %v3311 = vadd.f32 %v2064, %v3310
  %v3312 = vpop.f32.mrf.mxu0
  %v3313 = vadd.f32 %v2066, %v3312
  %3314 = vmatprep.mubr.f32.mxu0 0.0
  %3315 = vmatmul.mubr.f32.gmra.mxu0 %v824
  %v3316 = vpop.f32.mrf.mxu0
  %v3317 = vadd.f32 %v2070, %v3316
  %v3318 = vpop.f32.mrf.mxu0
  %v3319 = vadd.f32 %v2072, %v3318
  %3320 = vdwg.mxu0
  %s3321 = scalar_lea.vmem %s1, 128
  %v3322 = vld [vmem:[%s3321] sm:$0xff]
  %v3323 = vld [vmem:[%s3321 + $0x8] sm:$0xff]
  %v3324 = vld [vmem:[%s3321 + $0x10] sm:$0xff]
  %v3325 = vld [vmem:[%s3321 + $0x18] sm:$0xff]
  %v3326 = vld [vmem:[%s3321 + $0x20] sm:$0xff]
  %v3327 = vld [vmem:[%s3321 + $0x28] sm:$0xff]
  %v3328 = vld [vmem:[%s3321 + $0x30] sm:$0xf]
  %v3329 = vld [vmem:[%s3321 + $0x38] sm:$0xf]
  %v3331 = vsel %vm273, %v232, 0
  %v3334 = vsel %vm273, %v233, 0
  %v3337 = vsel %vm273, %v234, 0
  %v3340 = vsel %vm273, %v235, 0
  %v3343 = vsel %vm273, %v236, 0
  %v3346 = vsel %vm273, %v237, 0
  %v3349 = vsel %vm273, %v238, 0
  %v3352 = vsel %vm273, %v239, 0
  %v3355 = vsel %vm850, %v3328, 0
  %v3358 = vsel %vm850, %v3329, 0
  %3360 = vmatprep.subr.mxu0 0.0
  %3361 = vmatpush1.msra.mxu0 0.0
  %3362 = vmatprep.subr.mxu0 0.0
  %3363 = vmatpush1.msra.mxu0 0.0
  %3364 = vmatprep.subr.mxu0 0.0
  %3365 = vmatpush1.msra.mxu0 0.0
  %3366 = vmatprep.subr.mxu0 0.0
  %3367 = vmatpush1.msra.mxu0 0.0
  %3368 = vmatprep.subr.mxu0 0.0
  %3369 = vmatpush1.msra.mxu0 0.0
  %3370 = vmatprep.subr.mxu0 0.0
  %3371 = vmatpush1.msra.mxu0 0.0
  %3372 = vmatprep.subr.mxu0 0.0
  %3373 = vmatpush1.msra.mxu0 0.0
  %3374 = vmatprep.subr.mxu0 0.0
  %3375 = vmatpush1.msra.mxu0 0.0
  %3376 = vmatprep.subr.mxu0 0.0
  %3377 = vmatpush1.msra.mxu0 0.0
  %3378 = vmatprep.subr.mxu0 0.0
  %3379 = vmatpush1.msra.mxu0 0.0
  %3380 = vmatprep.subr.mxu0 0.0
  %3381 = vmatpush1.msra.mxu0 0.0
  %3382 = vmatprep.subr.mxu0 0.0
  %3383 = vmatpush1.msra.mxu0 0.0
  %3384 = vmatprep.subr.mxu0 %v3358
  %3385 = vmatpush1.msra.mxu0 %v3355
  %3386 = vmatprep.subr.mxu0 %v3327
  %3387 = vmatpush1.msra.mxu0 %v3326
  %3388 = vmatprep.subr.mxu0 %v3325
  %3389 = vmatpush1.msra.mxu0 %v3324
  %3390 = vmatprep.subr.mxu0 %v3323
  %3391 = vmatpush1.msra.mxu0 %v3322
  %3392 = vmatprep.subr.mxu0 0.0
  %3393 = vmatpush2.msra.mxu0 0.0
  %3394 = vmatprep.subr.mxu0 0.0
  %3395 = vmatpush2.msra.mxu0 0.0
  %3396 = vmatprep.subr.mxu0 0.0
  %3397 = vmatpush2.msra.mxu0 0.0
  %3398 = vmatprep.subr.mxu0 0.0
  %3399 = vmatpush2.msra.mxu0 0.0
  %3400 = vmatprep.subr.mxu0 0.0
  %3401 = vmatpush2.msra.mxu0 0.0
  %3402 = vmatprep.subr.mxu0 0.0
  %3403 = vmatpush2.msra.mxu0 0.0
  %3404 = vmatprep.subr.mxu0 0.0
  %3405 = vmatpush2.msra.mxu0 0.0
  %3406 = vmatprep.subr.mxu0 0.0
  %3407 = vmatpush2.msra.mxu0 0.0
  %3408 = vmatprep.subr.mxu0 0.0
  %3409 = vmatpush2.msra.mxu0 0.0
  %3410 = vmatprep.subr.mxu0 0.0
  %3411 = vmatpush2.msra.mxu0 0.0
  %3412 = vmatprep.subr.mxu0 0.0
  %3413 = vmatpush2.msra.mxu0 0.0
  %3414 = vmatprep.subr.mxu0 0.0
  %3415 = vmatpush2.msra.mxu0 0.0
  %3416 = vmatprep.subr.mxu0 0.0
  %3417 = vmatpush2.msra.mxu0 0.0
  %3418 = vmatprep.subr.mxu0 0.0
  %3419 = vmatpush2.msra.mxu0 0.0
  %3420 = vmatprep.subr.mxu0 0.0
  %3421 = vmatpush2.msra.mxu0 0.0
  %3422 = vmatprep.subr.mxu0 0.0
  %3423 = vmatpush2.msra.mxu0 0.0
  %3424 = vmatprep.mubr.f32.mxu0 0.0
  %3425 = vmatmul.mubr.f32.gmra.mxu0 %v299
  %v3426 = vpop.f32.mrf.mxu0
  %v3427 = vadd.f32 0.0, %v3426
  %v3428 = vpop.f32.mrf.mxu0
  %v3429 = vadd.f32 0.0, %v3428
  %3430 = vmatprep.mubr.f32.mxu0 0.0
  %3431 = vmatmul.mubr.f32.gmra.mxu0 %v302
  %v3432 = vpop.f32.mrf.mxu0
  %v3433 = vadd.f32 0.0, %v3432
  %v3434 = vpop.f32.mrf.mxu0
  %v3435 = vadd.f32 0.0, %v3434
  %3436 = vmatprep.mubr.f32.mxu0 0.0
  %3437 = vmatmul.mubr.f32.gmra.mxu0 %v305
  %v3438 = vpop.f32.mrf.mxu0
  %v3439 = vadd.f32 0.0, %v3438
  %v3440 = vpop.f32.mrf.mxu0
  %v3441 = vadd.f32 0.0, %v3440
  %3442 = vmatprep.mubr.f32.mxu0 0.0
  %3443 = vmatmul.mubr.f32.gmra.mxu0 %v308
  %v3444 = vpop.f32.mrf.mxu0
  %v3445 = vadd.f32 0.0, %v3444
  %v3446 = vpop.f32.mrf.mxu0
  %v3447 = vadd.f32 0.0, %v3446
  %3448 = vmatprep.mubr.f32.mxu0 0.0
  %3449 = vmatmul.mubr.f32.gmra.mxu0 %v311
  %v3450 = vpop.f32.mrf.mxu0
  %v3451 = vadd.f32 0.0, %v3450
  %v3452 = vpop.f32.mrf.mxu0
  %v3453 = vadd.f32 0.0, %v3452
  %3454 = vmatprep.mubr.f32.mxu0 0.0
  %3455 = vmatmul.mubr.f32.gmra.mxu0 %v314
  %v3456 = vpop.f32.mrf.mxu0
  %v3457 = vadd.f32 0.0, %v3456
  %v3458 = vpop.f32.mrf.mxu0
  %v3459 = vadd.f32 0.0, %v3458
  %3460 = vmatprep.mubr.f32.mxu0 0.0
  %3461 = vmatmul.mubr.f32.gmra.mxu0 %v317
  %v3462 = vpop.f32.mrf.mxu0
  %v3463 = vadd.f32 0.0, %v3462
  %v3464 = vpop.f32.mrf.mxu0
  %v3465 = vadd.f32 0.0, %v3464
  %3466 = vmatprep.mubr.f32.mxu0 0.0
  %3467 = vmatmul.mubr.f32.gmra.mxu0 %v320
  %v3468 = vpop.f32.mrf.mxu0
  %v3469 = vadd.f32 0.0, %v3468
  %v3470 = vpop.f32.mrf.mxu0
  %v3471 = vadd.f32 0.0, %v3470
  %3472 = vmatprep.mubr.f32.mxu0 0.0
  %3473 = vmatmul.mubr.f32.gmra.mxu0 %v323
  %v3474 = vpop.f32.mrf.mxu0
  %v3475 = vadd.f32 0.0, %v3474
  %v3476 = vpop.f32.mrf.mxu0
  %v3477 = vadd.f32 0.0, %v3476
  %3478 = vmatprep.mubr.f32.mxu0 0.0
  %3479 = vmatmul.mubr.f32.gmra.mxu0 %v326
  %v3480 = vpop.f32.mrf.mxu0
  %v3481 = vadd.f32 0.0, %v3480
  %v3482 = vpop.f32.mrf.mxu0
  %v3483 = vadd.f32 0.0, %v3482
  %3484 = vmatprep.mubr.f32.mxu0 0.0
  %3485 = vmatmul.mubr.f32.gmra.mxu0 %v329
  %v3486 = vpop.f32.mrf.mxu0
  %v3487 = vadd.f32 0.0, %v3486
  %v3488 = vpop.f32.mrf.mxu0
  %v3489 = vadd.f32 0.0, %v3488
  %3490 = vmatprep.mubr.f32.mxu0 0.0
  %3491 = vmatmul.mubr.f32.gmra.mxu0 %v332
  %v3492 = vpop.f32.mrf.mxu0
  %v3493 = vadd.f32 0.0, %v3492
  %v3494 = vpop.f32.mrf.mxu0
  %v3495 = vadd.f32 0.0, %v3494
  %3496 = vmatprep.mubr.f32.mxu0 0.0
  %3497 = vmatmul.mubr.f32.gmra.mxu0 %v335
  %v3498 = vpop.f32.mrf.mxu0
  %v3499 = vadd.f32 0.0, %v3498
  %v3500 = vpop.f32.mrf.mxu0
  %v3501 = vadd.f32 0.0, %v3500
  %3502 = vmatprep.mubr.f32.mxu0 0.0
  %3503 = vmatmul.mubr.f32.gmra.mxu0 %v338
  %v3504 = vpop.f32.mrf.mxu0
  %v3505 = vadd.f32 0.0, %v3504
  %v3506 = vpop.f32.mrf.mxu0
  %v3507 = vadd.f32 0.0, %v3506
  %3508 = vmatprep.mubr.f32.mxu0 0.0
  %3509 = vmatmul.mubr.f32.gmra.mxu0 %v341
  %v3510 = vpop.f32.mrf.mxu0
  %v3511 = vadd.f32 0.0, %v3510
  %v3512 = vpop.f32.mrf.mxu0
  %v3513 = vadd.f32 0.0, %v3512
  %3514 = vmatprep.mubr.f32.mxu0 0.0
  %3515 = vmatmul.mubr.f32.gmra.mxu0 %v344
  %v3516 = vpop.f32.mrf.mxu0
  %v3517 = vadd.f32 0.0, %v3516
  %v3518 = vpop.f32.mrf.mxu0
  %v3519 = vadd.f32 0.0, %v3518
  %3520 = vmatprep.mubr.f32.mxu0 0.0
  %3521 = vmatmul.mubr.f32.gmra.mxu0 %v347
  %v3522 = vpop.f32.mrf.mxu0
  %v3523 = vadd.f32 0.0, %v3522
  %v3524 = vpop.f32.mrf.mxu0
  %v3525 = vadd.f32 0.0, %v3524
  %3526 = vmatprep.mubr.f32.mxu0 0.0
  %3527 = vmatmul.mubr.f32.gmra.mxu0 %v350
  %v3528 = vpop.f32.mrf.mxu0
  %v3529 = vadd.f32 0.0, %v3528
  %v3530 = vpop.f32.mrf.mxu0
  %v3531 = vadd.f32 0.0, %v3530
  %3532 = vmatprep.mubr.f32.mxu0 0.0
  %3533 = vmatmul.mubr.f32.gmra.mxu0 %v353
  %v3534 = vpop.f32.mrf.mxu0
  %v3535 = vadd.f32 0.0, %v3534
  %v3536 = vpop.f32.mrf.mxu0
  %v3537 = vadd.f32 0.0, %v3536
  %3538 = vmatprep.mubr.f32.mxu0 0.0
  %3539 = vmatmul.mubr.f32.gmra.mxu0 %v356
  %v3540 = vpop.f32.mrf.mxu0
  %v3541 = vadd.f32 0.0, %v3540
  %v3542 = vpop.f32.mrf.mxu0
  %v3543 = vadd.f32 0.0, %v3542
  %3544 = vmatprep.mubr.f32.mxu0 0.0
  %3545 = vmatmul.mubr.f32.gmra.mxu0 %v359
  %v3546 = vpop.f32.mrf.mxu0
  %v3547 = vadd.f32 0.0, %v3546
  %v3548 = vpop.f32.mrf.mxu0
  %v3549 = vadd.f32 0.0, %v3548
  %3550 = vmatprep.mubr.f32.mxu0 0.0
  %3551 = vmatmul.mubr.f32.gmra.mxu0 %v362
  %v3552 = vpop.f32.mrf.mxu0
  %v3553 = vadd.f32 0.0, %v3552
  %v3554 = vpop.f32.mrf.mxu0
  %v3555 = vadd.f32 0.0, %v3554
  %3556 = vmatprep.mubr.f32.mxu0 0.0
  %3557 = vmatmul.mubr.f32.gmra.mxu0 %v365
  %v3558 = vpop.f32.mrf.mxu0
  %v3559 = vadd.f32 0.0, %v3558
  %v3560 = vpop.f32.mrf.mxu0
  %v3561 = vadd.f32 0.0, %v3560
  %3562 = vmatprep.mubr.f32.mxu0 0.0
  %3563 = vmatmul.mubr.f32.gmra.mxu0 %v368
  %v3564 = vpop.f32.mrf.mxu0
  %v3565 = vadd.f32 0.0, %v3564
  %v3566 = vpop.f32.mrf.mxu0
  %v3567 = vadd.f32 0.0, %v3566
  %3568 = vmatprep.mubr.f32.mxu0 0.0
  %3569 = vmatmul.mubr.f32.gmra.mxu0 %v371
  %v3570 = vpop.f32.mrf.mxu0
  %v3571 = vadd.f32 0.0, %v3570
  %v3572 = vpop.f32.mrf.mxu0
  %v3573 = vadd.f32 0.0, %v3572
  %3574 = vmatprep.mubr.f32.mxu0 0.0
  %3575 = vmatmul.mubr.f32.gmra.mxu0 %v374
  %v3576 = vpop.f32.mrf.mxu0
  %v3577 = vadd.f32 0.0, %v3576
  %v3578 = vpop.f32.mrf.mxu0
  %v3579 = vadd.f32 0.0, %v3578
  %3580 = vmatprep.mubr.f32.mxu0 0.0
  %3581 = vmatmul.mubr.f32.gmra.mxu0 %v377
  %v3582 = vpop.f32.mrf.mxu0
  %v3583 = vadd.f32 0.0, %v3582
  %v3584 = vpop.f32.mrf.mxu0
  %v3585 = vadd.f32 0.0, %v3584
  %3586 = vmatprep.mubr.f32.mxu0 0.0
  %3587 = vmatmul.mubr.f32.gmra.mxu0 %v380
  %v3588 = vpop.f32.mrf.mxu0
  %v3589 = vadd.f32 0.0, %v3588
  %v3590 = vpop.f32.mrf.mxu0
  %v3591 = vadd.f32 0.0, %v3590
  %3592 = vmatprep.mubr.f32.mxu0 0.0
  %3593 = vmatmul.mubr.f32.gmra.mxu0 %v383
  %v3594 = vpop.f32.mrf.mxu0
  %v3595 = vadd.f32 0.0, %v3594
  %v3596 = vpop.f32.mrf.mxu0
  %v3597 = vadd.f32 0.0, %v3596
  %3598 = vmatprep.mubr.f32.mxu0 0.0
  %3599 = vmatmul.mubr.f32.gmra.mxu0 %v386
  %v3600 = vpop.f32.mrf.mxu0
  %v3601 = vadd.f32 0.0, %v3600
  %v3602 = vpop.f32.mrf.mxu0
  %v3603 = vadd.f32 0.0, %v3602
  %3604 = vmatprep.mubr.f32.mxu0 0.0
  %3605 = vmatmul.mubr.f32.gmra.mxu0 %v389
  %v3606 = vpop.f32.mrf.mxu0
  %v3607 = vadd.f32 0.0, %v3606
  %v3608 = vpop.f32.mrf.mxu0
  %v3609 = vadd.f32 0.0, %v3608
  %3610 = vmatprep.mubr.f32.mxu0 0.0
  %3611 = vmatmul.mubr.f32.gmra.mxu0 %v392
  %v3612 = vpop.f32.mrf.mxu0
  %v3613 = vadd.f32 0.0, %v3612
  %v3614 = vpop.f32.mrf.mxu0
  %v3615 = vadd.f32 0.0, %v3614
  %3616 = vmatprep.mubr.f32.mxu0 0.0
  %3617 = vmatmul.mubr.f32.gmra.mxu0 %v395
  %v3618 = vpop.f32.mrf.mxu0
  %v3619 = vadd.f32 0.0, %v3618
  %v3620 = vpop.f32.mrf.mxu0
  %v3621 = vadd.f32 0.0, %v3620
  %3622 = vmatprep.mubr.f32.mxu0 0.0
  %3623 = vmatmul.mubr.f32.gmra.mxu0 %v398
  %v3624 = vpop.f32.mrf.mxu0
  %v3625 = vadd.f32 0.0, %v3624
  %v3626 = vpop.f32.mrf.mxu0
  %v3627 = vadd.f32 0.0, %v3626
  %3628 = vmatprep.mubr.f32.mxu0 0.0
  %3629 = vmatmul.mubr.f32.gmra.mxu0 %v401
  %v3630 = vpop.f32.mrf.mxu0
  %v3631 = vadd.f32 0.0, %v3630
  %v3632 = vpop.f32.mrf.mxu0
  %v3633 = vadd.f32 0.0, %v3632
  %3634 = vmatprep.mubr.f32.mxu0 0.0
  %3635 = vmatmul.mubr.f32.gmra.mxu0 %v404
  %v3636 = vpop.f32.mrf.mxu0
  %v3637 = vadd.f32 0.0, %v3636
  %v3638 = vpop.f32.mrf.mxu0
  %v3639 = vadd.f32 0.0, %v3638
  %3640 = vmatprep.mubr.f32.mxu0 0.0
  %3641 = vmatmul.mubr.f32.gmra.mxu0 %v407
  %v3642 = vpop.f32.mrf.mxu0
  %v3643 = vadd.f32 0.0, %v3642
  %v3644 = vpop.f32.mrf.mxu0
  %v3645 = vadd.f32 0.0, %v3644
  %3646 = vmatprep.mubr.f32.mxu0 0.0
  %3647 = vmatmul.mubr.f32.gmra.mxu0 %v410
  %v3648 = vpop.f32.mrf.mxu0
  %v3649 = vadd.f32 0.0, %v3648
  %v3650 = vpop.f32.mrf.mxu0
  %v3651 = vadd.f32 0.0, %v3650
  %3652 = vmatprep.mubr.f32.mxu0 0.0
  %3653 = vmatmul.mubr.f32.gmra.mxu0 %v413
  %v3654 = vpop.f32.mrf.mxu0
  %v3655 = vadd.f32 0.0, %v3654
  %v3656 = vpop.f32.mrf.mxu0
  %v3657 = vadd.f32 0.0, %v3656
  %3658 = vmatprep.mubr.f32.mxu0 0.0
  %3659 = vmatmul.mubr.f32.gmra.mxu0 %v416
  %v3660 = vpop.f32.mrf.mxu0
  %v3661 = vadd.f32 0.0, %v3660
  %v3662 = vpop.f32.mrf.mxu0
  %v3663 = vadd.f32 0.0, %v3662
  %3664 = vmatprep.mubr.f32.mxu0 0.0
  %3665 = vmatmul.mubr.f32.gmra.mxu0 %v419
  %v3666 = vpop.f32.mrf.mxu0
  %v3667 = vadd.f32 0.0, %v3666
  %v3668 = vpop.f32.mrf.mxu0
  %v3669 = vadd.f32 0.0, %v3668
  %3670 = vmatprep.mubr.f32.mxu0 0.0
  %3671 = vmatmul.mubr.f32.gmra.mxu0 %v422
  %v3672 = vpop.f32.mrf.mxu0
  %v3673 = vadd.f32 0.0, %v3672
  %v3674 = vpop.f32.mrf.mxu0
  %v3675 = vadd.f32 0.0, %v3674
  %3676 = vmatprep.mubr.f32.mxu0 0.0
  %3677 = vmatmul.mubr.f32.gmra.mxu0 %v425
  %v3678 = vpop.f32.mrf.mxu0
  %v3679 = vadd.f32 0.0, %v3678
  %v3680 = vpop.f32.mrf.mxu0
  %v3681 = vadd.f32 0.0, %v3680
  %3682 = vmatprep.mubr.f32.mxu0 0.0
  %3683 = vmatmul.mubr.f32.gmra.mxu0 %v428
  %v3684 = vpop.f32.mrf.mxu0
  %v3685 = vadd.f32 0.0, %v3684
  %v3686 = vpop.f32.mrf.mxu0
  %v3687 = vadd.f32 0.0, %v3686
  %3688 = vmatprep.mubr.f32.mxu0 0.0
  %3689 = vmatmul.mubr.f32.gmra.mxu0 %v431
  %v3690 = vpop.f32.mrf.mxu0
  %v3691 = vadd.f32 0.0, %v3690
  %v3692 = vpop.f32.mrf.mxu0
  %v3693 = vadd.f32 0.0, %v3692
  %3694 = vmatprep.mubr.f32.mxu0 0.0
  %3695 = vmatmul.mubr.f32.gmra.mxu0 %v434
  %v3696 = vpop.f32.mrf.mxu0
  %v3697 = vadd.f32 0.0, %v3696
  %v3698 = vpop.f32.mrf.mxu0
  %v3699 = vadd.f32 0.0, %v3698
  %3700 = vmatprep.mubr.f32.mxu0 0.0
  %3701 = vmatmul.mubr.f32.gmra.mxu0 %v437
  %v3702 = vpop.f32.mrf.mxu0
  %v3703 = vadd.f32 0.0, %v3702
  %v3704 = vpop.f32.mrf.mxu0
  %v3705 = vadd.f32 0.0, %v3704
  %3706 = vmatprep.mubr.f32.mxu0 0.0
  %3707 = vmatmul.mubr.f32.gmra.mxu0 %v440
  %v3708 = vpop.f32.mrf.mxu0
  %v3709 = vadd.f32 0.0, %v3708
  %v3710 = vpop.f32.mrf.mxu0
  %v3711 = vadd.f32 0.0, %v3710
  %3712 = vmatprep.mubr.f32.mxu0 0.0
  %3713 = vmatmul.mubr.f32.gmra.mxu0 %v443
  %v3714 = vpop.f32.mrf.mxu0
  %v3715 = vadd.f32 0.0, %v3714
  %v3716 = vpop.f32.mrf.mxu0
  %v3717 = vadd.f32 0.0, %v3716
  %3718 = vmatprep.mubr.f32.mxu0 0.0
  %3719 = vmatmul.mubr.f32.gmra.mxu0 %v446
  %v3720 = vpop.f32.mrf.mxu0
  %v3721 = vadd.f32 0.0, %v3720
  %v3722 = vpop.f32.mrf.mxu0
  %v3723 = vadd.f32 0.0, %v3722
  %3724 = vmatprep.mubr.f32.mxu0 0.0
  %3725 = vmatmul.mubr.f32.gmra.mxu0 %v449
  %v3726 = vpop.f32.mrf.mxu0
  %v3727 = vadd.f32 0.0, %v3726
  %v3728 = vpop.f32.mrf.mxu0
  %v3729 = vadd.f32 0.0, %v3728
  %3730 = vmatprep.mubr.f32.mxu0 0.0
  %3731 = vmatmul.mubr.f32.gmra.mxu0 %v452
  %v3732 = vpop.f32.mrf.mxu0
  %v3733 = vadd.f32 0.0, %v3732
  %v3734 = vpop.f32.mrf.mxu0
  %v3735 = vadd.f32 0.0, %v3734
  %3736 = vmatprep.mubr.f32.mxu0 0.0
  %3737 = vmatmul.mubr.f32.gmra.mxu0 %v455
  %v3738 = vpop.f32.mrf.mxu0
  %v3739 = vadd.f32 0.0, %v3738
  %v3740 = vpop.f32.mrf.mxu0
  %v3741 = vadd.f32 0.0, %v3740
  %3742 = vmatprep.mubr.f32.mxu0 0.0
  %3743 = vmatmul.mubr.f32.gmra.mxu0 %v458
  %v3744 = vpop.f32.mrf.mxu0
  %v3745 = vadd.f32 0.0, %v3744
  %v3746 = vpop.f32.mrf.mxu0
  %v3747 = vadd.f32 0.0, %v3746
  %3748 = vmatprep.mubr.f32.mxu0 0.0
  %3749 = vmatmul.mubr.f32.gmra.mxu0 %v461
  %v3750 = vpop.f32.mrf.mxu0
  %v3751 = vadd.f32 0.0, %v3750
  %v3752 = vpop.f32.mrf.mxu0
  %v3753 = vadd.f32 0.0, %v3752
  %3754 = vmatprep.mubr.f32.mxu0 0.0
  %3755 = vmatmul.mubr.f32.gmra.mxu0 %v464
  %v3756 = vpop.f32.mrf.mxu0
  %v3757 = vadd.f32 0.0, %v3756
  %v3758 = vpop.f32.mrf.mxu0
  %v3759 = vadd.f32 0.0, %v3758
  %3760 = vmatprep.mubr.f32.mxu0 0.0
  %3761 = vmatmul.mubr.f32.gmra.mxu0 %v467
  %v3762 = vpop.f32.mrf.mxu0
  %v3763 = vadd.f32 0.0, %v3762
  %v3764 = vpop.f32.mrf.mxu0
  %v3765 = vadd.f32 0.0, %v3764
  %3766 = vmatprep.mubr.f32.mxu0 0.0
  %3767 = vmatmul.mubr.f32.gmra.mxu0 %v470
  %v3768 = vpop.f32.mrf.mxu0
  %v3769 = vadd.f32 0.0, %v3768
  %v3770 = vpop.f32.mrf.mxu0
  %v3771 = vadd.f32 0.0, %v3770
  %3772 = vmatprep.mubr.f32.mxu0 0.0
  %3773 = vmatmul.mubr.f32.gmra.mxu0 %v473
  %v3774 = vpop.f32.mrf.mxu0
  %v3775 = vadd.f32 0.0, %v3774
  %v3776 = vpop.f32.mrf.mxu0
  %v3777 = vadd.f32 0.0, %v3776
  %3778 = vmatprep.mubr.f32.mxu0 0.0
  %3779 = vmatmul.mubr.f32.gmra.mxu0 %v476
  %v3780 = vpop.f32.mrf.mxu0
  %v3781 = vadd.f32 0.0, %v3780
  %v3782 = vpop.f32.mrf.mxu0
  %v3783 = vadd.f32 0.0, %v3782
  %3784 = vmatprep.mubr.f32.mxu0 0.0
  %3785 = vmatmul.mubr.f32.gmra.mxu0 %v479
  %v3786 = vpop.f32.mrf.mxu0
  %v3787 = vadd.f32 0.0, %v3786
  %v3788 = vpop.f32.mrf.mxu0
  %v3789 = vadd.f32 0.0, %v3788
  %3790 = vmatprep.mubr.f32.mxu0 0.0
  %3791 = vmatmul.mubr.f32.gmra.mxu0 %v482
  %v3792 = vpop.f32.mrf.mxu0
  %v3793 = vadd.f32 0.0, %v3792
  %v3794 = vpop.f32.mrf.mxu0
  %v3795 = vadd.f32 0.0, %v3794
  %3796 = vmatprep.mubr.f32.mxu0 0.0
  %3797 = vmatmul.mubr.f32.gmra.mxu0 %v485
  %v3798 = vpop.f32.mrf.mxu0
  %v3799 = vadd.f32 0.0, %v3798
  %v3800 = vpop.f32.mrf.mxu0
  %v3801 = vadd.f32 0.0, %v3800
  %3802 = vmatprep.mubr.f32.mxu0 0.0
  %3803 = vmatmul.mubr.f32.gmra.mxu0 %v488
  %v3804 = vpop.f32.mrf.mxu0
  %v3805 = vadd.f32 0.0, %v3804
  %v3806 = vpop.f32.mrf.mxu0
  %v3807 = vadd.f32 0.0, %v3806
  %3808 = vmatprep.mubr.f32.mxu0 0.0
  %3809 = vmatmul.mubr.f32.gmra.mxu0 %v491
  %v3810 = vpop.f32.mrf.mxu0
  %v3811 = vadd.f32 0.0, %v3810
  %v3812 = vpop.f32.mrf.mxu0
  %v3813 = vadd.f32 0.0, %v3812
  %3814 = vmatprep.mubr.f32.mxu0 0.0
  %3815 = vmatmul.mubr.f32.gmra.mxu0 %v494
  %v3816 = vpop.f32.mrf.mxu0
  %v3817 = vadd.f32 0.0, %v3816
  %v3818 = vpop.f32.mrf.mxu0
  %v3819 = vadd.f32 0.0, %v3818
  %3820 = vmatprep.mubr.f32.mxu0 0.0
  %3821 = vmatmul.mubr.f32.gmra.mxu0 %v497
  %v3822 = vpop.f32.mrf.mxu0
  %v3823 = vadd.f32 0.0, %v3822
  %v3824 = vpop.f32.mrf.mxu0
  %v3825 = vadd.f32 0.0, %v3824
  %3826 = vmatprep.mubr.f32.mxu0 0.0
  %3827 = vmatmul.mubr.f32.gmra.mxu0 %v500
  %v3828 = vpop.f32.mrf.mxu0
  %v3829 = vadd.f32 0.0, %v3828
  %v3830 = vpop.f32.mrf.mxu0
  %v3831 = vadd.f32 0.0, %v3830
  %3832 = vmatprep.mubr.f32.mxu0 0.0
  %3833 = vmatmul.mubr.f32.gmra.mxu0 %v503
  %v3834 = vpop.f32.mrf.mxu0
  %v3835 = vadd.f32 0.0, %v3834
  %v3836 = vpop.f32.mrf.mxu0
  %v3837 = vadd.f32 0.0, %v3836
  %3838 = vmatprep.mubr.f32.mxu0 0.0
  %3839 = vmatmul.mubr.f32.gmra.mxu0 %v506
  %v3840 = vpop.f32.mrf.mxu0
  %v3841 = vadd.f32 0.0, %v3840
  %v3842 = vpop.f32.mrf.mxu0
  %v3843 = vadd.f32 0.0, %v3842
  %3844 = vmatprep.mubr.f32.mxu0 0.0
  %3845 = vmatmul.mubr.f32.gmra.mxu0 %v509
  %v3846 = vpop.f32.mrf.mxu0
  %v3847 = vadd.f32 0.0, %v3846
  %v3848 = vpop.f32.mrf.mxu0
  %v3849 = vadd.f32 0.0, %v3848
  %3850 = vmatprep.mubr.f32.mxu0 0.0
  %3851 = vmatmul.mubr.f32.gmra.mxu0 %v512
  %v3852 = vpop.f32.mrf.mxu0
  %v3853 = vadd.f32 0.0, %v3852
  %v3854 = vpop.f32.mrf.mxu0
  %v3855 = vadd.f32 0.0, %v3854
  %3856 = vmatprep.mubr.f32.mxu0 0.0
  %3857 = vmatmul.mubr.f32.gmra.mxu0 %v515
  %v3858 = vpop.f32.mrf.mxu0
  %v3859 = vadd.f32 0.0, %v3858
  %v3860 = vpop.f32.mrf.mxu0
  %v3861 = vadd.f32 0.0, %v3860
  %3862 = vmatprep.mubr.f32.mxu0 0.0
  %3863 = vmatmul.mubr.f32.gmra.mxu0 %v518
  %v3864 = vpop.f32.mrf.mxu0
  %v3865 = vadd.f32 0.0, %v3864
  %v3866 = vpop.f32.mrf.mxu0
  %v3867 = vadd.f32 0.0, %v3866
  %3868 = vmatprep.mubr.f32.mxu0 0.0
  %3869 = vmatmul.mubr.f32.gmra.mxu0 %v521
  %v3870 = vpop.f32.mrf.mxu0
  %v3871 = vadd.f32 0.0, %v3870
  %v3872 = vpop.f32.mrf.mxu0
  %v3873 = vadd.f32 0.0, %v3872
  %3874 = vmatprep.mubr.f32.mxu0 0.0
  %3875 = vmatmul.mubr.f32.gmra.mxu0 %v524
  %v3876 = vpop.f32.mrf.mxu0
  %v3877 = vadd.f32 0.0, %v3876
  %v3878 = vpop.f32.mrf.mxu0
  %v3879 = vadd.f32 0.0, %v3878
  %3880 = vmatprep.mubr.f32.mxu0 0.0
  %3881 = vmatmul.mubr.f32.gmra.mxu0 %v527
  %v3882 = vpop.f32.mrf.mxu0
  %v3883 = vadd.f32 0.0, %v3882
  %v3884 = vpop.f32.mrf.mxu0
  %v3885 = vadd.f32 0.0, %v3884
  %3886 = vmatprep.mubr.f32.mxu0 0.0
  %3887 = vmatmul.mubr.f32.gmra.mxu0 %v530
  %v3888 = vpop.f32.mrf.mxu0
  %v3889 = vadd.f32 0.0, %v3888
  %v3890 = vpop.f32.mrf.mxu0
  %v3891 = vadd.f32 0.0, %v3890
  %3892 = vmatprep.mubr.f32.mxu0 0.0
  %3893 = vmatmul.mubr.f32.gmra.mxu0 %v533
  %v3894 = vpop.f32.mrf.mxu0
  %v3895 = vadd.f32 0.0, %v3894
  %v3896 = vpop.f32.mrf.mxu0
  %v3897 = vadd.f32 0.0, %v3896
  %3898 = vmatprep.mubr.f32.mxu0 0.0
  %3899 = vmatmul.mubr.f32.gmra.mxu0 %v536
  %v3900 = vpop.f32.mrf.mxu0
  %v3901 = vadd.f32 0.0, %v3900
  %v3902 = vpop.f32.mrf.mxu0
  %v3903 = vadd.f32 0.0, %v3902
  %3904 = vmatprep.mubr.f32.mxu0 0.0
  %3905 = vmatmul.mubr.f32.gmra.mxu0 %v539
  %v3906 = vpop.f32.mrf.mxu0
  %v3907 = vadd.f32 0.0, %v3906
  %v3908 = vpop.f32.mrf.mxu0
  %v3909 = vadd.f32 0.0, %v3908
  %3910 = vmatprep.mubr.f32.mxu0 0.0
  %3911 = vmatmul.mubr.f32.gmra.mxu0 %v542
  %v3912 = vpop.f32.mrf.mxu0
  %v3913 = vadd.f32 0.0, %v3912
  %v3914 = vpop.f32.mrf.mxu0
  %v3915 = vadd.f32 0.0, %v3914
  %3916 = vmatprep.mubr.f32.mxu0 0.0
  %3917 = vmatmul.mubr.f32.gmra.mxu0 %v545
  %v3918 = vpop.f32.mrf.mxu0
  %v3919 = vadd.f32 0.0, %v3918
  %v3920 = vpop.f32.mrf.mxu0
  %v3921 = vadd.f32 0.0, %v3920
  %3922 = vmatprep.mubr.f32.mxu0 0.0
  %3923 = vmatmul.mubr.f32.gmra.mxu0 %v548
  %v3924 = vpop.f32.mrf.mxu0
  %v3925 = vadd.f32 0.0, %v3924
  %v3926 = vpop.f32.mrf.mxu0
  %v3927 = vadd.f32 0.0, %v3926
  %3928 = vmatprep.mubr.f32.mxu0 0.0
  %3929 = vmatmul.mubr.f32.gmra.mxu0 %v551
  %v3930 = vpop.f32.mrf.mxu0
  %v3931 = vadd.f32 0.0, %v3930
  %v3932 = vpop.f32.mrf.mxu0
  %v3933 = vadd.f32 0.0, %v3932
  %3934 = vmatprep.mubr.f32.mxu0 0.0
  %3935 = vmatmul.mubr.f32.gmra.mxu0 %v554
  %v3936 = vpop.f32.mrf.mxu0
  %v3937 = vadd.f32 0.0, %v3936
  %v3938 = vpop.f32.mrf.mxu0
  %v3939 = vadd.f32 0.0, %v3938
  %3940 = vmatprep.mubr.f32.mxu0 0.0
  %3941 = vmatmul.mubr.f32.gmra.mxu0 %v557
  %v3942 = vpop.f32.mrf.mxu0
  %v3943 = vadd.f32 0.0, %v3942
  %v3944 = vpop.f32.mrf.mxu0
  %v3945 = vadd.f32 0.0, %v3944
  %3946 = vmatprep.mubr.f32.mxu0 0.0
  %3947 = vmatmul.mubr.f32.gmra.mxu0 %v560
  %v3948 = vpop.f32.mrf.mxu0
  %v3949 = vadd.f32 0.0, %v3948
  %v3950 = vpop.f32.mrf.mxu0
  %v3951 = vadd.f32 0.0, %v3950
  %3952 = vmatprep.mubr.f32.mxu0 0.0
  %3953 = vmatmul.mubr.f32.gmra.mxu0 %v563
  %v3954 = vpop.f32.mrf.mxu0
  %v3955 = vadd.f32 0.0, %v3954
  %v3956 = vpop.f32.mrf.mxu0
  %v3957 = vadd.f32 0.0, %v3956
  %3958 = vmatprep.mubr.f32.mxu0 0.0
  %3959 = vmatmul.mubr.f32.gmra.mxu0 %v566
  %v3960 = vpop.f32.mrf.mxu0
  %v3961 = vadd.f32 0.0, %v3960
  %v3962 = vpop.f32.mrf.mxu0
  %v3963 = vadd.f32 0.0, %v3962
  %3964 = vmatprep.mubr.f32.mxu0 0.0
  %3965 = vmatmul.mubr.f32.gmra.mxu0 %v569
  %v3966 = vpop.f32.mrf.mxu0
  %v3967 = vadd.f32 0.0, %v3966
  %v3968 = vpop.f32.mrf.mxu0
  %v3969 = vadd.f32 0.0, %v3968
  %3970 = vmatprep.mubr.f32.mxu0 0.0
  %3971 = vmatmul.mubr.f32.gmra.mxu0 %v572
  %v3972 = vpop.f32.mrf.mxu0
  %v3973 = vadd.f32 0.0, %v3972
  %v3974 = vpop.f32.mrf.mxu0
  %v3975 = vadd.f32 0.0, %v3974
  %3976 = vmatprep.mubr.f32.mxu0 0.0
  %3977 = vmatmul.mubr.f32.gmra.mxu0 %v575
  %v3978 = vpop.f32.mrf.mxu0
  %v3979 = vadd.f32 0.0, %v3978
  %v3980 = vpop.f32.mrf.mxu0
  %v3981 = vadd.f32 0.0, %v3980
  %3982 = vmatprep.mubr.f32.mxu0 0.0
  %3983 = vmatmul.mubr.f32.gmra.mxu0 %v578
  %v3984 = vpop.f32.mrf.mxu0
  %v3985 = vadd.f32 0.0, %v3984
  %v3986 = vpop.f32.mrf.mxu0
  %v3987 = vadd.f32 0.0, %v3986
  %3988 = vmatprep.mubr.f32.mxu0 0.0
  %3989 = vmatmul.mubr.f32.gmra.mxu0 %v581
  %v3990 = vpop.f32.mrf.mxu0
  %v3991 = vadd.f32 0.0, %v3990
  %v3992 = vpop.f32.mrf.mxu0
  %v3993 = vadd.f32 0.0, %v3992
  %3994 = vmatprep.mubr.f32.mxu0 0.0
  %3995 = vmatmul.mubr.f32.gmra.mxu0 %v584
  %v3996 = vpop.f32.mrf.mxu0
  %v3997 = vadd.f32 0.0, %v3996
  %v3998 = vpop.f32.mrf.mxu0
  %v3999 = vadd.f32 0.0, %v3998
  %4000 = vmatprep.mubr.f32.mxu0 0.0
  %4001 = vmatmul.mubr.f32.gmra.mxu0 %v587
  %v4002 = vpop.f32.mrf.mxu0
  %v4003 = vadd.f32 0.0, %v4002
  %v4004 = vpop.f32.mrf.mxu0
  %v4005 = vadd.f32 0.0, %v4004
  %4006 = vmatprep.mubr.f32.mxu0 0.0
  %4007 = vmatmul.mubr.f32.gmra.mxu0 %v590
  %v4008 = vpop.f32.mrf.mxu0
  %v4009 = vadd.f32 0.0, %v4008
  %v4010 = vpop.f32.mrf.mxu0
  %v4011 = vadd.f32 0.0, %v4010
  %4012 = vmatprep.mubr.f32.mxu0 0.0
  %4013 = vmatmul.mubr.f32.gmra.mxu0 %v593
  %v4014 = vpop.f32.mrf.mxu0
  %v4015 = vadd.f32 0.0, %v4014
  %v4016 = vpop.f32.mrf.mxu0
  %v4017 = vadd.f32 0.0, %v4016
  %4018 = vmatprep.mubr.f32.mxu0 0.0
  %4019 = vmatmul.mubr.f32.gmra.mxu0 %v596
  %v4020 = vpop.f32.mrf.mxu0
  %v4021 = vadd.f32 0.0, %v4020
  %v4022 = vpop.f32.mrf.mxu0
  %v4023 = vadd.f32 0.0, %v4022
  %4024 = vmatprep.mubr.f32.mxu0 0.0
  %4025 = vmatmul.mubr.f32.gmra.mxu0 %v599
  %v4026 = vpop.f32.mrf.mxu0
  %v4027 = vadd.f32 0.0, %v4026
  %v4028 = vpop.f32.mrf.mxu0
  %v4029 = vadd.f32 0.0, %v4028
  %4030 = vmatprep.mubr.f32.mxu0 0.0
  %4031 = vmatmul.mubr.f32.gmra.mxu0 %v602
  %v4032 = vpop.f32.mrf.mxu0
  %v4033 = vadd.f32 0.0, %v4032
  %v4034 = vpop.f32.mrf.mxu0
  %v4035 = vadd.f32 0.0, %v4034
  %4036 = vmatprep.mubr.f32.mxu0 0.0
  %4037 = vmatmul.mubr.f32.gmra.mxu0 %v605
  %v4038 = vpop.f32.mrf.mxu0
  %v4039 = vadd.f32 0.0, %v4038
  %v4040 = vpop.f32.mrf.mxu0
  %v4041 = vadd.f32 0.0, %v4040
  %4042 = vmatprep.mubr.f32.mxu0 0.0
  %4043 = vmatmul.mubr.f32.gmra.mxu0 %v608
  %v4044 = vpop.f32.mrf.mxu0
  %v4045 = vadd.f32 0.0, %v4044
  %v4046 = vpop.f32.mrf.mxu0
  %v4047 = vadd.f32 0.0, %v4046
  %4048 = vmatprep.mubr.f32.mxu0 0.0
  %4049 = vmatmul.mubr.f32.gmra.mxu0 %v611
  %v4050 = vpop.f32.mrf.mxu0
  %v4051 = vadd.f32 0.0, %v4050
  %v4052 = vpop.f32.mrf.mxu0
  %v4053 = vadd.f32 0.0, %v4052
  %4054 = vmatprep.mubr.f32.mxu0 0.0
  %4055 = vmatmul.mubr.f32.gmra.mxu0 %v614
  %v4056 = vpop.f32.mrf.mxu0
  %v4057 = vadd.f32 0.0, %v4056
  %v4058 = vpop.f32.mrf.mxu0
  %v4059 = vadd.f32 0.0, %v4058
  %4060 = vmatprep.mubr.f32.mxu0 0.0
  %4061 = vmatmul.mubr.f32.gmra.mxu0 %v617
  %v4062 = vpop.f32.mrf.mxu0
  %v4063 = vadd.f32 0.0, %v4062
  %v4064 = vpop.f32.mrf.mxu0
  %v4065 = vadd.f32 0.0, %v4064
  %4066 = vmatprep.mubr.f32.mxu0 0.0
  %4067 = vmatmul.mubr.f32.gmra.mxu0 %v620
  %v4068 = vpop.f32.mrf.mxu0
  %v4069 = vadd.f32 0.0, %v4068
  %v4070 = vpop.f32.mrf.mxu0
  %v4071 = vadd.f32 0.0, %v4070
  %4072 = vmatprep.mubr.f32.mxu0 0.0
  %4073 = vmatmul.mubr.f32.gmra.mxu0 %v623
  %v4074 = vpop.f32.mrf.mxu0
  %v4075 = vadd.f32 0.0, %v4074
  %v4076 = vpop.f32.mrf.mxu0
  %v4077 = vadd.f32 0.0, %v4076
  %4078 = vmatprep.mubr.f32.mxu0 0.0
  %4079 = vmatmul.mubr.f32.gmra.mxu0 %v626
  %v4080 = vpop.f32.mrf.mxu0
  %v4081 = vadd.f32 0.0, %v4080
  %v4082 = vpop.f32.mrf.mxu0
  %v4083 = vadd.f32 0.0, %v4082
  %4084 = vmatprep.mubr.f32.mxu0 0.0
  %4085 = vmatmul.mubr.f32.gmra.mxu0 %v629
  %v4086 = vpop.f32.mrf.mxu0
  %v4087 = vadd.f32 0.0, %v4086
  %v4088 = vpop.f32.mrf.mxu0
  %v4089 = vadd.f32 0.0, %v4088
  %4090 = vmatprep.mubr.f32.mxu0 0.0
  %4091 = vmatmul.mubr.f32.gmra.mxu0 %v632
  %v4092 = vpop.f32.mrf.mxu0
  %v4093 = vadd.f32 0.0, %v4092
  %v4094 = vpop.f32.mrf.mxu0
  %v4095 = vadd.f32 0.0, %v4094
  %4096 = vmatprep.mubr.f32.mxu0 0.0
  %4097 = vmatmul.mubr.f32.gmra.mxu0 %v635
  %v4098 = vpop.f32.mrf.mxu0
  %v4099 = vadd.f32 0.0, %v4098
  %v4100 = vpop.f32.mrf.mxu0
  %v4101 = vadd.f32 0.0, %v4100
  %4102 = vmatprep.mubr.f32.mxu0 0.0
  %4103 = vmatmul.mubr.f32.gmra.mxu0 %v638
  %v4104 = vpop.f32.mrf.mxu0
  %v4105 = vadd.f32 0.0, %v4104
  %v4106 = vpop.f32.mrf.mxu0
  %v4107 = vadd.f32 0.0, %v4106
  %4108 = vmatprep.mubr.f32.mxu0 0.0
  %4109 = vmatmul.mubr.f32.gmra.mxu0 %v641
  %v4110 = vpop.f32.mrf.mxu0
  %v4111 = vadd.f32 0.0, %v4110
  %v4112 = vpop.f32.mrf.mxu0
  %v4113 = vadd.f32 0.0, %v4112
  %4114 = vmatprep.mubr.f32.mxu0 0.0
  %4115 = vmatmul.mubr.f32.gmra.mxu0 %v644
  %v4116 = vpop.f32.mrf.mxu0
  %v4117 = vadd.f32 0.0, %v4116
  %v4118 = vpop.f32.mrf.mxu0
  %v4119 = vadd.f32 0.0, %v4118
  %4120 = vmatprep.mubr.f32.mxu0 0.0
  %4121 = vmatmul.mubr.f32.gmra.mxu0 %v647
  %v4122 = vpop.f32.mrf.mxu0
  %v4123 = vadd.f32 0.0, %v4122
  %v4124 = vpop.f32.mrf.mxu0
  %v4125 = vadd.f32 0.0, %v4124
  %4126 = vmatprep.mubr.f32.mxu0 0.0
  %4127 = vmatmul.mubr.f32.gmra.mxu0 %v650
  %v4128 = vpop.f32.mrf.mxu0
  %v4129 = vadd.f32 0.0, %v4128
  %v4130 = vpop.f32.mrf.mxu0
  %v4131 = vadd.f32 0.0, %v4130
  %4132 = vmatprep.mubr.f32.mxu0 0.0
  %4133 = vmatmul.mubr.f32.gmra.mxu0 %v653
  %v4134 = vpop.f32.mrf.mxu0
  %v4135 = vadd.f32 0.0, %v4134
  %v4136 = vpop.f32.mrf.mxu0
  %v4137 = vadd.f32 0.0, %v4136
  %4138 = vmatprep.mubr.f32.mxu0 0.0
  %4139 = vmatmul.mubr.f32.gmra.mxu0 %v656
  %v4140 = vpop.f32.mrf.mxu0
  %v4141 = vadd.f32 0.0, %v4140
  %v4142 = vpop.f32.mrf.mxu0
  %v4143 = vadd.f32 0.0, %v4142
  %4144 = vmatprep.mubr.f32.mxu0 0.0
  %4145 = vmatmul.mubr.f32.gmra.mxu0 %v659
  %v4146 = vpop.f32.mrf.mxu0
  %v4147 = vadd.f32 0.0, %v4146
  %v4148 = vpop.f32.mrf.mxu0
  %v4149 = vadd.f32 0.0, %v4148
  %4150 = vmatprep.mubr.f32.mxu0 0.0
  %4151 = vmatmul.mubr.f32.gmra.mxu0 %v662
  %v4152 = vpop.f32.mrf.mxu0
  %v4153 = vadd.f32 0.0, %v4152
  %v4154 = vpop.f32.mrf.mxu0
  %v4155 = vadd.f32 0.0, %v4154
  %4156 = vmatprep.mubr.f32.mxu0 0.0
  %4157 = vmatmul.mubr.f32.gmra.mxu0 %v665
  %v4158 = vpop.f32.mrf.mxu0
  %v4159 = vadd.f32 0.0, %v4158
  %v4160 = vpop.f32.mrf.mxu0
  %v4161 = vadd.f32 0.0, %v4160
  %4162 = vmatprep.mubr.f32.mxu0 0.0
  %4163 = vmatmul.mubr.f32.gmra.mxu0 %v668
  %v4164 = vpop.f32.mrf.mxu0
  %v4165 = vadd.f32 0.0, %v4164
  %v4166 = vpop.f32.mrf.mxu0
  %v4167 = vadd.f32 0.0, %v4166
  %4168 = vmatprep.mubr.f32.mxu0 0.0
  %4169 = vmatmul.mubr.f32.gmra.mxu0 %v671
  %v4170 = vpop.f32.mrf.mxu0
  %v4171 = vadd.f32 0.0, %v4170
  %v4172 = vpop.f32.mrf.mxu0
  %v4173 = vadd.f32 0.0, %v4172
  %4174 = vmatprep.mubr.f32.mxu0 0.0
  %4175 = vmatmul.mubr.f32.gmra.mxu0 %v674
  %v4176 = vpop.f32.mrf.mxu0
  %v4177 = vadd.f32 0.0, %v4176
  %v4178 = vpop.f32.mrf.mxu0
  %v4179 = vadd.f32 0.0, %v4178
  %4180 = vmatprep.mubr.f32.mxu0 0.0
  %4181 = vmatmul.mubr.f32.gmra.mxu0 %v677
  %v4182 = vpop.f32.mrf.mxu0
  %v4183 = vadd.f32 0.0, %v4182
  %v4184 = vpop.f32.mrf.mxu0
  %v4185 = vadd.f32 0.0, %v4184
  %4186 = vmatprep.mubr.f32.mxu0 0.0
  %4187 = vmatmul.mubr.f32.gmra.mxu0 %v680
  %v4188 = vpop.f32.mrf.mxu0
  %v4189 = vadd.f32 0.0, %v4188
  %v4190 = vpop.f32.mrf.mxu0
  %v4191 = vadd.f32 0.0, %v4190
  %4192 = vmatprep.mubr.f32.mxu0 0.0
  %4193 = vmatmul.mubr.f32.gmra.mxu0 %v683
  %v4194 = vpop.f32.mrf.mxu0
  %v4195 = vadd.f32 0.0, %v4194
  %v4196 = vpop.f32.mrf.mxu0
  %v4197 = vadd.f32 0.0, %v4196
  %4198 = vmatprep.mubr.f32.mxu0 0.0
  %4199 = vmatmul.mubr.f32.gmra.mxu0 %v686
  %v4200 = vpop.f32.mrf.mxu0
  %v4201 = vadd.f32 0.0, %v4200
  %v4202 = vpop.f32.mrf.mxu0
  %v4203 = vadd.f32 0.0, %v4202
  %4204 = vmatprep.mubr.f32.mxu0 0.0
  %4205 = vmatmul.mubr.f32.gmra.mxu0 %v689
  %v4206 = vpop.f32.mrf.mxu0
  %v4207 = vadd.f32 0.0, %v4206
  %v4208 = vpop.f32.mrf.mxu0
  %v4209 = vadd.f32 0.0, %v4208
  %4210 = vmatprep.mubr.f32.mxu0 0.0
  %4211 = vmatmul.mubr.f32.gmra.mxu0 %v692
  %v4212 = vpop.f32.mrf.mxu0
  %v4213 = vadd.f32 0.0, %v4212
  %v4214 = vpop.f32.mrf.mxu0
  %v4215 = vadd.f32 0.0, %v4214
  %4216 = vmatprep.mubr.f32.mxu0 0.0
  %4217 = vmatmul.mubr.f32.gmra.mxu0 %v695
  %v4218 = vpop.f32.mrf.mxu0
  %v4219 = vadd.f32 0.0, %v4218
  %v4220 = vpop.f32.mrf.mxu0
  %v4221 = vadd.f32 0.0, %v4220
  %4222 = vmatprep.mubr.f32.mxu0 0.0
  %4223 = vmatmul.mubr.f32.gmra.mxu0 %v698
  %v4224 = vpop.f32.mrf.mxu0
  %v4225 = vadd.f32 0.0, %v4224
  %v4226 = vpop.f32.mrf.mxu0
  %v4227 = vadd.f32 0.0, %v4226
  %4228 = vmatprep.mubr.f32.mxu0 0.0
  %4229 = vmatmul.mubr.f32.gmra.mxu0 %v701
  %v4230 = vpop.f32.mrf.mxu0
  %v4231 = vadd.f32 0.0, %v4230
  %v4232 = vpop.f32.mrf.mxu0
  %v4233 = vadd.f32 0.0, %v4232
  %4234 = vmatprep.mubr.f32.mxu0 0.0
  %4235 = vmatmul.mubr.f32.gmra.mxu0 %v704
  %v4236 = vpop.f32.mrf.mxu0
  %v4237 = vadd.f32 0.0, %v4236
  %v4238 = vpop.f32.mrf.mxu0
  %v4239 = vadd.f32 0.0, %v4238
  %4240 = vmatprep.mubr.f32.mxu0 0.0
  %4241 = vmatmul.mubr.f32.gmra.mxu0 %v707
  %v4242 = vpop.f32.mrf.mxu0
  %v4243 = vadd.f32 0.0, %v4242
  %v4244 = vpop.f32.mrf.mxu0
  %v4245 = vadd.f32 0.0, %v4244
  %4246 = vmatprep.mubr.f32.mxu0 0.0
  %4247 = vmatmul.mubr.f32.gmra.mxu0 %v710
  %v4248 = vpop.f32.mrf.mxu0
  %v4249 = vadd.f32 0.0, %v4248
  %v4250 = vpop.f32.mrf.mxu0
  %v4251 = vadd.f32 0.0, %v4250
  %4252 = vmatprep.mubr.f32.mxu0 0.0
  %4253 = vmatmul.mubr.f32.gmra.mxu0 %v713
  %v4254 = vpop.f32.mrf.mxu0
  %v4255 = vadd.f32 0.0, %v4254
  %v4256 = vpop.f32.mrf.mxu0
  %v4257 = vadd.f32 0.0, %v4256
  %4258 = vmatprep.mubr.f32.mxu0 0.0
  %4259 = vmatmul.mubr.f32.gmra.mxu0 %v716
  %v4260 = vpop.f32.mrf.mxu0
  %v4261 = vadd.f32 0.0, %v4260
  %v4262 = vpop.f32.mrf.mxu0
  %v4263 = vadd.f32 0.0, %v4262
  %4264 = vmatprep.mubr.f32.mxu0 0.0
  %4265 = vmatmul.mubr.f32.gmra.mxu0 %v719
  %v4266 = vpop.f32.mrf.mxu0
  %v4267 = vadd.f32 0.0, %v4266
  %v4268 = vpop.f32.mrf.mxu0
  %v4269 = vadd.f32 0.0, %v4268
  %4270 = vmatprep.mubr.f32.mxu0 0.0
  %4271 = vmatmul.mubr.f32.gmra.mxu0 %v722
  %v4272 = vpop.f32.mrf.mxu0
  %v4273 = vadd.f32 0.0, %v4272
  %v4274 = vpop.f32.mrf.mxu0
  %v4275 = vadd.f32 0.0, %v4274
  %4276 = vmatprep.mubr.f32.mxu0 0.0
  %4277 = vmatmul.mubr.f32.gmra.mxu0 %v725
  %v4278 = vpop.f32.mrf.mxu0
  %v4279 = vadd.f32 0.0, %v4278
  %v4280 = vpop.f32.mrf.mxu0
  %v4281 = vadd.f32 0.0, %v4280
  %4282 = vmatprep.mubr.f32.mxu0 0.0
  %4283 = vmatmul.mubr.f32.gmra.mxu0 %v728
  %v4284 = vpop.f32.mrf.mxu0
  %v4285 = vadd.f32 0.0, %v4284
  %v4286 = vpop.f32.mrf.mxu0
  %v4287 = vadd.f32 0.0, %v4286
  %4288 = vmatprep.mubr.f32.mxu0 0.0
  %4289 = vmatmul.mubr.f32.gmra.mxu0 %v731
  %v4290 = vpop.f32.mrf.mxu0
  %v4291 = vadd.f32 0.0, %v4290
  %v4292 = vpop.f32.mrf.mxu0
  %v4293 = vadd.f32 0.0, %v4292
  %4294 = vmatprep.mubr.f32.mxu0 0.0
  %4295 = vmatmul.mubr.f32.gmra.mxu0 %v734
  %v4296 = vpop.f32.mrf.mxu0
  %v4297 = vadd.f32 0.0, %v4296
  %v4298 = vpop.f32.mrf.mxu0
  %v4299 = vadd.f32 0.0, %v4298
  %4300 = vmatprep.mubr.f32.mxu0 0.0
  %4301 = vmatmul.mubr.f32.gmra.mxu0 %v737
  %v4302 = vpop.f32.mrf.mxu0
  %v4303 = vadd.f32 0.0, %v4302
  %v4304 = vpop.f32.mrf.mxu0
  %v4305 = vadd.f32 0.0, %v4304
  %4306 = vmatprep.mubr.f32.mxu0 0.0
  %4307 = vmatmul.mubr.f32.gmra.mxu0 %v740
  %v4308 = vpop.f32.mrf.mxu0
  %v4309 = vadd.f32 0.0, %v4308
  %v4310 = vpop.f32.mrf.mxu0
  %v4311 = vadd.f32 0.0, %v4310
  %4312 = vmatprep.mubr.f32.mxu0 0.0
  %4313 = vmatmul.mubr.f32.gmra.mxu0 %v743
  %v4314 = vpop.f32.mrf.mxu0
  %v4315 = vadd.f32 0.0, %v4314
  %v4316 = vpop.f32.mrf.mxu0
  %v4317 = vadd.f32 0.0, %v4316
  %4318 = vmatprep.mubr.f32.mxu0 0.0
  %4319 = vmatmul.mubr.f32.gmra.mxu0 %v746
  %v4320 = vpop.f32.mrf.mxu0
  %v4321 = vadd.f32 0.0, %v4320
  %v4322 = vpop.f32.mrf.mxu0
  %v4323 = vadd.f32 0.0, %v4322
  %4324 = vmatprep.mubr.f32.mxu0 0.0
  %4325 = vmatmul.mubr.f32.gmra.mxu0 %v749
  %v4326 = vpop.f32.mrf.mxu0
  %v4327 = vadd.f32 0.0, %v4326
  %v4328 = vpop.f32.mrf.mxu0
  %v4329 = vadd.f32 0.0, %v4328
  %4330 = vmatprep.mubr.f32.mxu0 0.0
  %4331 = vmatmul.mubr.f32.gmra.mxu0 %v752
  %v4332 = vpop.f32.mrf.mxu0
  %v4333 = vadd.f32 0.0, %v4332
  %v4334 = vpop.f32.mrf.mxu0
  %v4335 = vadd.f32 0.0, %v4334
  %4336 = vmatprep.mubr.f32.mxu0 0.0
  %4337 = vmatmul.mubr.f32.gmra.mxu0 %v755
  %v4338 = vpop.f32.mrf.mxu0
  %v4339 = vadd.f32 0.0, %v4338
  %v4340 = vpop.f32.mrf.mxu0
  %v4341 = vadd.f32 0.0, %v4340
  %4342 = vmatprep.mubr.f32.mxu0 0.0
  %4343 = vmatmul.mubr.f32.gmra.mxu0 %v758
  %v4344 = vpop.f32.mrf.mxu0
  %v4345 = vadd.f32 0.0, %v4344
  %v4346 = vpop.f32.mrf.mxu0
  %v4347 = vadd.f32 0.0, %v4346
  %4348 = vmatprep.mubr.f32.mxu0 0.0
  %4349 = vmatmul.mubr.f32.gmra.mxu0 %v761
  %v4350 = vpop.f32.mrf.mxu0
  %v4351 = vadd.f32 0.0, %v4350
  %v4352 = vpop.f32.mrf.mxu0
  %v4353 = vadd.f32 0.0, %v4352
  %4354 = vmatprep.mubr.f32.mxu0 0.0
  %4355 = vmatmul.mubr.f32.gmra.mxu0 %v764
  %v4356 = vpop.f32.mrf.mxu0
  %v4357 = vadd.f32 0.0, %v4356
  %v4358 = vpop.f32.mrf.mxu0
  %v4359 = vadd.f32 0.0, %v4358
  %4360 = vmatprep.mubr.f32.mxu0 0.0
  %4361 = vmatmul.mubr.f32.gmra.mxu0 %v767
  %v4362 = vpop.f32.mrf.mxu0
  %v4363 = vadd.f32 0.0, %v4362
  %v4364 = vpop.f32.mrf.mxu0
  %v4365 = vadd.f32 0.0, %v4364
  %4366 = vmatprep.mubr.f32.mxu0 0.0
  %4367 = vmatmul.mubr.f32.gmra.mxu0 %v770
  %v4368 = vpop.f32.mrf.mxu0
  %v4369 = vadd.f32 0.0, %v4368
  %v4370 = vpop.f32.mrf.mxu0
  %v4371 = vadd.f32 0.0, %v4370
  %4372 = vmatprep.mubr.f32.mxu0 0.0
  %4373 = vmatmul.mubr.f32.gmra.mxu0 %v773
  %v4374 = vpop.f32.mrf.mxu0
  %v4375 = vadd.f32 0.0, %v4374
  %v4376 = vpop.f32.mrf.mxu0
  %v4377 = vadd.f32 0.0, %v4376
  %4378 = vmatprep.mubr.f32.mxu0 0.0
  %4379 = vmatmul.mubr.f32.gmra.mxu0 %v776
  %v4380 = vpop.f32.mrf.mxu0
  %v4381 = vadd.f32 0.0, %v4380
  %v4382 = vpop.f32.mrf.mxu0
  %v4383 = vadd.f32 0.0, %v4382
  %4384 = vmatprep.mubr.f32.mxu0 0.0
  %4385 = vmatmul.mubr.f32.gmra.mxu0 %v779
  %v4386 = vpop.f32.mrf.mxu0
  %v4387 = vadd.f32 0.0, %v4386
  %v4388 = vpop.f32.mrf.mxu0
  %v4389 = vadd.f32 0.0, %v4388
  %4390 = vmatprep.mubr.f32.mxu0 0.0
  %4391 = vmatmul.mubr.f32.gmra.mxu0 %v782
  %v4392 = vpop.f32.mrf.mxu0
  %v4393 = vadd.f32 0.0, %v4392
  %v4394 = vpop.f32.mrf.mxu0
  %v4395 = vadd.f32 0.0, %v4394
  %4396 = vmatprep.mubr.f32.mxu0 0.0
  %4397 = vmatmul.mubr.f32.gmra.mxu0 %v785
  %v4398 = vpop.f32.mrf.mxu0
  %v4399 = vadd.f32 0.0, %v4398
  %v4400 = vpop.f32.mrf.mxu0
  %v4401 = vadd.f32 0.0, %v4400
  %4402 = vmatprep.mubr.f32.mxu0 0.0
  %4403 = vmatmul.mubr.f32.gmra.mxu0 %v788
  %v4404 = vpop.f32.mrf.mxu0
  %v4405 = vadd.f32 0.0, %v4404
  %v4406 = vpop.f32.mrf.mxu0
  %v4407 = vadd.f32 0.0, %v4406
  %4408 = vmatprep.mubr.f32.mxu0 0.0
  %4409 = vmatmul.mubr.f32.gmra.mxu0 %v791
  %v4410 = vpop.f32.mrf.mxu0
  %v4411 = vadd.f32 0.0, %v4410
  %v4412 = vpop.f32.mrf.mxu0
  %v4413 = vadd.f32 0.0, %v4412
  %4414 = vmatprep.mubr.f32.mxu0 0.0
  %4415 = vmatmul.mubr.f32.gmra.mxu0 %v794
  %v4416 = vpop.f32.mrf.mxu0
  %v4417 = vadd.f32 0.0, %v4416
  %v4418 = vpop.f32.mrf.mxu0
  %v4419 = vadd.f32 0.0, %v4418
  %4420 = vmatprep.mubr.f32.mxu0 0.0
  %4421 = vmatmul.mubr.f32.gmra.mxu0 %v797
  %v4422 = vpop.f32.mrf.mxu0
  %v4423 = vadd.f32 0.0, %v4422
  %v4424 = vpop.f32.mrf.mxu0
  %v4425 = vadd.f32 0.0, %v4424
  %4426 = vmatprep.mubr.f32.mxu0 0.0
  %4427 = vmatmul.mubr.f32.gmra.mxu0 %v800
  %v4428 = vpop.f32.mrf.mxu0
  %v4429 = vadd.f32 0.0, %v4428
  %v4430 = vpop.f32.mrf.mxu0
  %v4431 = vadd.f32 0.0, %v4430
  %4432 = vmatprep.mubr.f32.mxu0 0.0
  %4433 = vmatmul.mubr.f32.gmra.mxu0 %v803
  %v4434 = vpop.f32.mrf.mxu0
  %v4435 = vadd.f32 0.0, %v4434
  %v4436 = vpop.f32.mrf.mxu0
  %v4437 = vadd.f32 0.0, %v4436
  %4438 = vmatprep.mubr.f32.mxu0 0.0
  %4439 = vmatmul.mubr.f32.gmra.mxu0 %v806
  %v4440 = vpop.f32.mrf.mxu0
  %v4441 = vadd.f32 0.0, %v4440
  %v4442 = vpop.f32.mrf.mxu0
  %v4443 = vadd.f32 0.0, %v4442
  %4444 = vmatprep.mubr.f32.mxu0 0.0
  %4445 = vmatmul.mubr.f32.gmra.mxu0 %v809
  %v4446 = vpop.f32.mrf.mxu0
  %v4447 = vadd.f32 0.0, %v4446
  %v4448 = vpop.f32.mrf.mxu0
  %v4449 = vadd.f32 0.0, %v4448
  %4450 = vmatprep.mubr.f32.mxu0 0.0
  %4451 = vmatmul.mubr.f32.gmra.mxu0 %v812
  %v4452 = vpop.f32.mrf.mxu0
  %v4453 = vadd.f32 0.0, %v4452
  %v4454 = vpop.f32.mrf.mxu0
  %v4455 = vadd.f32 0.0, %v4454
  %4456 = vmatprep.mubr.f32.mxu0 0.0
  %4457 = vmatmul.mubr.f32.gmra.mxu0 %v815
  %v4458 = vpop.f32.mrf.mxu0
  %v4459 = vadd.f32 0.0, %v4458
  %v4460 = vpop.f32.mrf.mxu0
  %v4461 = vadd.f32 0.0, %v4460
  %4462 = vmatprep.mubr.f32.mxu0 0.0
  %4463 = vmatmul.mubr.f32.gmra.mxu0 %v818
  %v4464 = vpop.f32.mrf.mxu0
  %v4465 = vadd.f32 0.0, %v4464
  %v4466 = vpop.f32.mrf.mxu0
  %v4467 = vadd.f32 0.0, %v4466
  %4468 = vmatprep.mubr.f32.mxu0 0.0
  %4469 = vmatmul.mubr.f32.gmra.mxu0 %v821
  %v4470 = vpop.f32.mrf.mxu0
  %v4471 = vadd.f32 0.0, %v4470
  %v4472 = vpop.f32.mrf.mxu0
  %v4473 = vadd.f32 0.0, %v4472
  %4474 = vmatprep.mubr.f32.mxu0 0.0
  %4475 = vmatmul.mubr.f32.gmra.mxu0 %v824
  %v4476 = vpop.f32.mrf.mxu0
  %v4477 = vadd.f32 0.0, %v4476
  %v4478 = vpop.f32.mrf.mxu0
  %v4479 = vadd.f32 0.0, %v4478
  %4480 = vmatprep.mubr.f32.mxu0 0.0
  %4481 = vmatmul.mubr.f32.gmra.mxu0 %v827
  %v4482 = vpop.f32.mrf.mxu0
  %v4483 = vadd.f32 0.0, %v4482
  %v4484 = vpop.f32.mrf.mxu0
  %v4485 = vadd.f32 0.0, %v4484
  %4486 = vmatprep.mubr.f32.mxu0 0.0
  %4487 = vmatmul.mubr.f32.gmra.mxu0 %v830
  %v4488 = vpop.f32.mrf.mxu0
  %v4489 = vadd.f32 0.0, %v4488
  %v4490 = vpop.f32.mrf.mxu0
  %v4491 = vadd.f32 0.0, %v4490
  %4492 = vmatprep.mubr.f32.mxu0 0.0
  %4493 = vmatmul.mubr.f32.gmra.mxu0 %v833
  %v4494 = vpop.f32.mrf.mxu0
  %v4495 = vadd.f32 0.0, %v4494
  %v4496 = vpop.f32.mrf.mxu0
  %v4497 = vadd.f32 0.0, %v4496
  %4498 = vmatprep.mubr.f32.mxu0 0.0
  %4499 = vmatmul.mubr.f32.gmra.mxu0 %v836
  %v4500 = vpop.f32.mrf.mxu0
  %v4501 = vadd.f32 0.0, %v4500
  %v4502 = vpop.f32.mrf.mxu0
  %v4503 = vadd.f32 0.0, %v4502
  %4504 = vmatprep.mubr.f32.mxu0 0.0
  %4505 = vmatmul.mubr.f32.gmra.mxu0 %v839
  %v4506 = vpop.f32.mrf.mxu0
  %v4507 = vadd.f32 0.0, %v4506
  %v4508 = vpop.f32.mrf.mxu0
  %v4509 = vadd.f32 0.0, %v4508
  %4510 = vmatprep.mubr.f32.mxu0 0.0
  %4511 = vmatmul.mubr.f32.gmra.mxu0 %v842
  %v4512 = vpop.f32.mrf.mxu0
  %v4513 = vadd.f32 0.0, %v4512
  %v4514 = vpop.f32.mrf.mxu0
  %v4515 = vadd.f32 0.0, %v4514
  %4516 = vmatprep.mubr.f32.mxu0 0.0
  %4517 = vmatmul.mubr.f32.gmra.mxu0 %v845
  %v4518 = vpop.f32.mrf.mxu0
  %v4519 = vadd.f32 0.0, %v4518
  %v4520 = vpop.f32.mrf.mxu0
  %v4521 = vadd.f32 0.0, %v4520
  %4522 = vmatprep.mubr.f32.mxu0 0.0
  %4523 = vmatmul.mubr.f32.gmra.mxu0 %v848
  %v4524 = vpop.f32.mrf.mxu0
  %v4525 = vadd.f32 0.0, %v4524
  %v4526 = vpop.f32.mrf.mxu0
  %v4527 = vadd.f32 0.0, %v4526
  %4528 = vmatprep.mubr.f32.mxu0 0.0
  %4529 = vmatmul.mubr.f32.gmra.mxu0 %v3331
  %v4530 = vpop.f32.mrf.mxu0
  %v4531 = vadd.f32 0.0, %v4530
  %v4532 = vpop.f32.mrf.mxu0
  %v4533 = vadd.f32 0.0, %v4532
  %4534 = vmatprep.mubr.f32.mxu0 0.0
  %4535 = vmatmul.mubr.f32.gmra.mxu0 %v3334
  %v4536 = vpop.f32.mrf.mxu0
  %v4537 = vadd.f32 0.0, %v4536
  %v4538 = vpop.f32.mrf.mxu0
  %v4539 = vadd.f32 0.0, %v4538
  %4540 = vmatprep.mubr.f32.mxu0 0.0
  %4541 = vmatmul.mubr.f32.gmra.mxu0 %v3337
  %v4542 = vpop.f32.mrf.mxu0
  %v4543 = vadd.f32 0.0, %v4542
  %v4544 = vpop.f32.mrf.mxu0
  %v4545 = vadd.f32 0.0, %v4544
  %4546 = vmatprep.mubr.f32.mxu0 0.0
  %4547 = vmatmul.mubr.f32.gmra.mxu0 %v3340
  %v4548 = vpop.f32.mrf.mxu0
  %v4549 = vadd.f32 0.0, %v4548
  %v4550 = vpop.f32.mrf.mxu0
  %v4551 = vadd.f32 0.0, %v4550
  %4552 = vmatprep.mubr.f32.mxu0 0.0
  %4553 = vmatmul.mubr.f32.gmra.mxu0 %v3343
  %v4554 = vpop.f32.mrf.mxu0
  %v4555 = vadd.f32 0.0, %v4554
  %v4556 = vpop.f32.mrf.mxu0
  %v4557 = vadd.f32 0.0, %v4556
  %4558 = vmatprep.mubr.f32.mxu0 0.0
  %4559 = vmatmul.mubr.f32.gmra.mxu0 %v3346
  %v4560 = vpop.f32.mrf.mxu0
  %v4561 = vadd.f32 0.0, %v4560
  %v4562 = vpop.f32.mrf.mxu0
  %v4563 = vadd.f32 0.0, %v4562
  %4564 = vmatprep.mubr.f32.mxu0 0.0
  %4565 = vmatmul.mubr.f32.gmra.mxu0 %v3349
  %v4566 = vpop.f32.mrf.mxu0
  %v4567 = vadd.f32 0.0, %v4566
  %v4568 = vpop.f32.mrf.mxu0
  %v4569 = vadd.f32 0.0, %v4568
  %4570 = vmatprep.mubr.f32.mxu0 0.0
  %4571 = vmatmul.mubr.f32.gmra.mxu0 %v3352
  %v4572 = vpop.f32.mrf.mxu0
  %v4573 = vadd.f32 0.0, %v4572
  %v4574 = vpop.f32.mrf.mxu0
  %v4575 = vadd.f32 0.0, %v4574
  %4576 = vdwg.mxu0
  %v4577 = vadd.f32 %v2171, %v3427
  %v4578 = vadd.f32 %v2173, %v3429
  %v4579 = vadd.f32 %v2177, %v3433
  %v4580 = vadd.f32 %v2179, %v3435
  %v4581 = vadd.f32 %v2183, %v3439
  %v4582 = vadd.f32 %v2185, %v3441
  %v4583 = vadd.f32 %v2189, %v3445
  %v4584 = vadd.f32 %v2191, %v3447
  %v4585 = vadd.f32 %v2195, %v3451
  %v4586 = vadd.f32 %v2197, %v3453
  %v4587 = vadd.f32 %v2201, %v3457
  %v4588 = vadd.f32 %v2203, %v3459
  %v4589 = vadd.f32 %v2207, %v3463
  %v4590 = vadd.f32 %v2209, %v3465
  %v4591 = vadd.f32 %v2213, %v3469
  %v4592 = vadd.f32 %v2215, %v3471
  %v4593 = vadd.f32 %v2219, %v3475
  %v4594 = vadd.f32 %v2221, %v3477
  %v4595 = vadd.f32 %v2225, %v3481
  %v4596 = vadd.f32 %v2227, %v3483
  %v4597 = vadd.f32 %v2231, %v3487
  %v4598 = vadd.f32 %v2233, %v3489
  %v4599 = vadd.f32 %v2237, %v3493
  %v4600 = vadd.f32 %v2239, %v3495
  %v4601 = vadd.f32 %v2243, %v3499
  %v4602 = vadd.f32 %v2245, %v3501
  %v4603 = vadd.f32 %v2249, %v3505
  %v4604 = vadd.f32 %v2251, %v3507
  %v4605 = vadd.f32 %v2255, %v3511
  %v4606 = vadd.f32 %v2257, %v3513
  %v4607 = vadd.f32 %v2261, %v3517
  %v4608 = vadd.f32 %v2263, %v3519
  %v4609 = vadd.f32 %v2267, %v3523
  %v4610 = vadd.f32 %v2269, %v3525
  %v4611 = vadd.f32 %v2273, %v3529
  %v4612 = vadd.f32 %v2275, %v3531
  %v4613 = vadd.f32 %v2279, %v3535
  %v4614 = vadd.f32 %v2281, %v3537
  %v4615 = vadd.f32 %v2285, %v3541
  %v4616 = vadd.f32 %v2287, %v3543
  %v4617 = vadd.f32 %v2291, %v3547
  %v4618 = vadd.f32 %v2293, %v3549
  %v4619 = vadd.f32 %v2297, %v3553
  %v4620 = vadd.f32 %v2299, %v3555
  %v4621 = vadd.f32 %v2303, %v3559
  %v4622 = vadd.f32 %v2305, %v3561
  %v4623 = vadd.f32 %v2309, %v3565
  %v4624 = vadd.f32 %v2311, %v3567
  %v4625 = vadd.f32 %v2315, %v3571
  %v4626 = vadd.f32 %v2317, %v3573
  %v4627 = vadd.f32 %v2321, %v3577
  %v4628 = vadd.f32 %v2323, %v3579
  %v4629 = vadd.f32 %v2327, %v3583
  %v4630 = vadd.f32 %v2329, %v3585
  %v4631 = vadd.f32 %v2333, %v3589
  %v4632 = vadd.f32 %v2335, %v3591
  %v4633 = vadd.f32 %v2339, %v3595
  %v4634 = vadd.f32 %v2341, %v3597
  %v4635 = vadd.f32 %v2345, %v3601
  %v4636 = vadd.f32 %v2347, %v3603
  %v4637 = vadd.f32 %v2351, %v3607
  %v4638 = vadd.f32 %v2353, %v3609
  %v4639 = vadd.f32 %v2357, %v3613
  %v4640 = vadd.f32 %v2359, %v3615
  %v4641 = vadd.f32 %v2363, %v3619
  %v4642 = vadd.f32 %v2365, %v3621
  %v4643 = vadd.f32 %v2369, %v3625
  %v4644 = vadd.f32 %v2371, %v3627
  %v4645 = vadd.f32 %v2375, %v3631
  %v4646 = vadd.f32 %v2377, %v3633
  %v4647 = vadd.f32 %v2381, %v3637
  %v4648 = vadd.f32 %v2383, %v3639
  %v4649 = vadd.f32 %v2387, %v3643
  %v4650 = vadd.f32 %v2389, %v3645
  %v4651 = vadd.f32 %v2393, %v3649
  %v4652 = vadd.f32 %v2395, %v3651
  %v4653 = vadd.f32 %v2399, %v3655
  %v4654 = vadd.f32 %v2401, %v3657
  %v4655 = vadd.f32 %v2405, %v3661
  %v4656 = vadd.f32 %v2407, %v3663
  %v4657 = vadd.f32 %v2411, %v3667
  %v4658 = vadd.f32 %v2413, %v3669
  %v4659 = vadd.f32 %v2417, %v3673
  %v4660 = vadd.f32 %v2419, %v3675
  %v4661 = vadd.f32 %v2423, %v3679
  %v4662 = vadd.f32 %v2425, %v3681
  %v4663 = vadd.f32 %v2429, %v3685
  %v4664 = vadd.f32 %v2431, %v3687
  %v4665 = vadd.f32 %v2435, %v3691
  %v4666 = vadd.f32 %v2437, %v3693
  %v4667 = vadd.f32 %v2441, %v3697
  %v4668 = vadd.f32 %v2443, %v3699
  %v4669 = vadd.f32 %v2447, %v3703
  %v4670 = vadd.f32 %v2449, %v3705
  %v4671 = vadd.f32 %v2453, %v3709
  %v4672 = vadd.f32 %v2455, %v3711
  %v4673 = vadd.f32 %v2459, %v3715
  %v4674 = vadd.f32 %v2461, %v3717
  %v4675 = vadd.f32 %v2465, %v3721
  %v4676 = vadd.f32 %v2467, %v3723
  %v4677 = vadd.f32 %v2471, %v3727
  %v4678 = vadd.f32 %v2473, %v3729
  %v4679 = vadd.f32 %v2477, %v3733
  %v4680 = vadd.f32 %v2479, %v3735
  %v4681 = vadd.f32 %v2483, %v3739
  %v4682 = vadd.f32 %v2485, %v3741
  %v4683 = vadd.f32 %v2489, %v3745
  %v4684 = vadd.f32 %v2491, %v3747
  %v4685 = vadd.f32 %v2495, %v3751
  %v4686 = vadd.f32 %v2497, %v3753
  %v4687 = vadd.f32 %v2501, %v3757
  %v4688 = vadd.f32 %v2503, %v3759
  %v4689 = vadd.f32 %v2507, %v3763
  %v4690 = vadd.f32 %v2509, %v3765
  %v4691 = vadd.f32 %v2513, %v3769
  %v4692 = vadd.f32 %v2515, %v3771
  %v4693 = vadd.f32 %v2519, %v3775
  %v4694 = vadd.f32 %v2521, %v3777
  %v4695 = vadd.f32 %v2525, %v3781
  %v4696 = vadd.f32 %v2527, %v3783
  %v4697 = vadd.f32 %v2531, %v3787
  %v4698 = vadd.f32 %v2533, %v3789
  %v4699 = vadd.f32 %v2537, %v3793
  %v4700 = vadd.f32 %v2539, %v3795
  %v4701 = vadd.f32 %v2543, %v3799
  %v4702 = vadd.f32 %v2545, %v3801
  %v4703 = vadd.f32 %v2549, %v3805
  %v4704 = vadd.f32 %v2551, %v3807
  %v4705 = vadd.f32 %v2555, %v3811
  %v4706 = vadd.f32 %v2557, %v3813
  %v4707 = vadd.f32 %v2561, %v3817
  %v4708 = vadd.f32 %v2563, %v3819
  %v4709 = vadd.f32 %v2567, %v3823
  %v4710 = vadd.f32 %v2569, %v3825
  %v4711 = vadd.f32 %v2573, %v3829
  %v4712 = vadd.f32 %v2575, %v3831
  %v4713 = vadd.f32 %v2579, %v3835
  %v4714 = vadd.f32 %v2581, %v3837
  %v4715 = vadd.f32 %v2585, %v3841
  %v4716 = vadd.f32 %v2587, %v3843
  %v4717 = vadd.f32 %v2591, %v3847
  %v4718 = vadd.f32 %v2593, %v3849
  %v4719 = vadd.f32 %v2597, %v3853
  %v4720 = vadd.f32 %v2599, %v3855
  %v4721 = vadd.f32 %v2603, %v3859
  %v4722 = vadd.f32 %v2605, %v3861
  %v4723 = vadd.f32 %v2609, %v3865
  %v4724 = vadd.f32 %v2611, %v3867
  %v4725 = vadd.f32 %v2615, %v3871
  %v4726 = vadd.f32 %v2617, %v3873
  %v4727 = vadd.f32 %v2621, %v3877
  %v4728 = vadd.f32 %v2623, %v3879
  %v4729 = vadd.f32 %v2627, %v3883
  %v4730 = vadd.f32 %v2629, %v3885
  %v4731 = vadd.f32 %v2633, %v3889
  %v4732 = vadd.f32 %v2635, %v3891
  %v4733 = vadd.f32 %v2639, %v3895
  %v4734 = vadd.f32 %v2641, %v3897
  %v4735 = vadd.f32 %v2645, %v3901
  %v4736 = vadd.f32 %v2647, %v3903
  %v4737 = vadd.f32 %v2651, %v3907
  %v4738 = vadd.f32 %v2653, %v3909
  %v4739 = vadd.f32 %v2657, %v3913
  %v4740 = vadd.f32 %v2659, %v3915
  %v4741 = vadd.f32 %v2663, %v3919
  %v4742 = vadd.f32 %v2665, %v3921
  %v4743 = vadd.f32 %v2669, %v3925
  %v4744 = vadd.f32 %v2671, %v3927
  %v4745 = vadd.f32 %v2675, %v3931
  %v4746 = vadd.f32 %v2677, %v3933
  %v4747 = vadd.f32 %v2681, %v3937
  %v4748 = vadd.f32 %v2683, %v3939
  %v4749 = vadd.f32 %v2687, %v3943
  %v4750 = vadd.f32 %v2689, %v3945
  %v4751 = vadd.f32 %v2693, %v3949
  %v4752 = vadd.f32 %v2695, %v3951
  %v4753 = vadd.f32 %v2699, %v3955
  %v4754 = vadd.f32 %v2701, %v3957
  %v4755 = vadd.f32 %v2705, %v3961
  %v4756 = vadd.f32 %v2707, %v3963
  %v4757 = vadd.f32 %v2711, %v3967
  %v4758 = vadd.f32 %v2713, %v3969
  %v4759 = vadd.f32 %v2717, %v3973
  %v4760 = vadd.f32 %v2719, %v3975
  %v4761 = vadd.f32 %v2723, %v3979
  %v4762 = vadd.f32 %v2725, %v3981
  %v4763 = vadd.f32 %v2729, %v3985
  %v4764 = vadd.f32 %v2731, %v3987
  %v4765 = vadd.f32 %v2735, %v3991
  %v4766 = vadd.f32 %v2737, %v3993
  %v4767 = vadd.f32 %v2741, %v3997
  %v4768 = vadd.f32 %v2743, %v3999
  %v4769 = vadd.f32 %v2747, %v4003
  %v4770 = vadd.f32 %v2749, %v4005
  %v4771 = vadd.f32 %v2753, %v4009
  %v4772 = vadd.f32 %v2755, %v4011
  %v4773 = vadd.f32 %v2759, %v4015
  %v4774 = vadd.f32 %v2761, %v4017
  %v4775 = vadd.f32 %v2765, %v4021
  %v4776 = vadd.f32 %v2767, %v4023
  %v4777 = vadd.f32 %v2771, %v4027
  %v4778 = vadd.f32 %v2773, %v4029
  %v4779 = vadd.f32 %v2777, %v4033
  %v4780 = vadd.f32 %v2779, %v4035
  %v4781 = vadd.f32 %v2783, %v4039
  %v4782 = vadd.f32 %v2785, %v4041
  %v4783 = vadd.f32 %v2789, %v4045
  %v4784 = vadd.f32 %v2791, %v4047
  %v4785 = vadd.f32 %v2795, %v4051
  %v4786 = vadd.f32 %v2797, %v4053
  %v4787 = vadd.f32 %v2801, %v4057
  %v4788 = vadd.f32 %v2803, %v4059
  %v4789 = vadd.f32 %v2807, %v4063
  %v4790 = vadd.f32 %v2809, %v4065
  %v4791 = vadd.f32 %v2813, %v4069
  %v4792 = vadd.f32 %v2815, %v4071
  %v4793 = vadd.f32 %v2819, %v4075
  %v4794 = vadd.f32 %v2821, %v4077
  %v4795 = vadd.f32 %v2825, %v4081
  %v4796 = vadd.f32 %v2827, %v4083
  %v4797 = vadd.f32 %v2831, %v4087
  %v4798 = vadd.f32 %v2833, %v4089
  %v4799 = vadd.f32 %v2837, %v4093
  %v4800 = vadd.f32 %v2839, %v4095
  %v4801 = vadd.f32 %v2843, %v4099
  %v4802 = vadd.f32 %v2845, %v4101
  %v4803 = vadd.f32 %v2849, %v4105
  %v4804 = vadd.f32 %v2851, %v4107
  %v4805 = vadd.f32 %v2855, %v4111
  %v4806 = vadd.f32 %v2857, %v4113
  %v4807 = vadd.f32 %v2861, %v4117
  %v4808 = vadd.f32 %v2863, %v4119
  %v4809 = vadd.f32 %v2867, %v4123
  %v4810 = vadd.f32 %v2869, %v4125
  %v4811 = vadd.f32 %v2873, %v4129
  %v4812 = vadd.f32 %v2875, %v4131
  %v4813 = vadd.f32 %v2879, %v4135
  %v4814 = vadd.f32 %v2881, %v4137
  %v4815 = vadd.f32 %v2885, %v4141
  %v4816 = vadd.f32 %v2887, %v4143
  %v4817 = vadd.f32 %v2891, %v4147
  %v4818 = vadd.f32 %v2893, %v4149
  %v4819 = vadd.f32 %v2897, %v4153
  %v4820 = vadd.f32 %v2899, %v4155
  %v4821 = vadd.f32 %v2903, %v4159
  %v4822 = vadd.f32 %v2905, %v4161
  %v4823 = vadd.f32 %v2909, %v4165
  %v4824 = vadd.f32 %v2911, %v4167
  %v4825 = vadd.f32 %v2915, %v4171
  %v4826 = vadd.f32 %v2917, %v4173
  %v4827 = vadd.f32 %v2921, %v4177
  %v4828 = vadd.f32 %v2923, %v4179
  %v4829 = vadd.f32 %v2927, %v4183
  %v4830 = vadd.f32 %v2929, %v4185
  %v4831 = vadd.f32 %v2933, %v4189
  %v4832 = vadd.f32 %v2935, %v4191
  %v4833 = vadd.f32 %v2939, %v4195
  %v4834 = vadd.f32 %v2941, %v4197
  %v4835 = vadd.f32 %v2945, %v4201
  %v4836 = vadd.f32 %v2947, %v4203
  %v4837 = vadd.f32 %v2951, %v4207
  %v4838 = vadd.f32 %v2953, %v4209
  %v4839 = vadd.f32 %v2957, %v4213
  %v4840 = vadd.f32 %v2959, %v4215
  %v4841 = vadd.f32 %v2963, %v4219
  %v4842 = vadd.f32 %v2965, %v4221
  %v4843 = vadd.f32 %v2969, %v4225
  %v4844 = vadd.f32 %v2971, %v4227
  %v4845 = vadd.f32 %v2975, %v4231
  %v4846 = vadd.f32 %v2977, %v4233
  %v4847 = vadd.f32 %v2981, %v4237
  %v4848 = vadd.f32 %v2983, %v4239
  %v4849 = vadd.f32 %v2987, %v4243
  %v4850 = vadd.f32 %v2989, %v4245
  %v4851 = vadd.f32 %v2993, %v4249
  %v4852 = vadd.f32 %v2995, %v4251
  %v4853 = vadd.f32 %v2999, %v4255
  %v4854 = vadd.f32 %v3001, %v4257
  %v4855 = vadd.f32 %v3005, %v4261
  %v4856 = vadd.f32 %v3007, %v4263
  %v4857 = vadd.f32 %v3011, %v4267
  %v4858 = vadd.f32 %v3013, %v4269
  %v4859 = vadd.f32 %v3017, %v4273
  %v4860 = vadd.f32 %v3019, %v4275
  %v4861 = vadd.f32 %v3023, %v4279
  %v4862 = vadd.f32 %v3025, %v4281
  %v4863 = vadd.f32 %v3029, %v4285
  %v4864 = vadd.f32 %v3031, %v4287
  %v4865 = vadd.f32 %v3035, %v4291
  %v4866 = vadd.f32 %v3037, %v4293
  %v4867 = vadd.f32 %v3041, %v4297
  %v4868 = vadd.f32 %v3043, %v4299
  %v4869 = vadd.f32 %v3047, %v4303
  %v4870 = vadd.f32 %v3049, %v4305
  %v4871 = vadd.f32 %v3053, %v4309
  %v4872 = vadd.f32 %v3055, %v4311
  %v4873 = vadd.f32 %v3059, %v4315
  %v4874 = vadd.f32 %v3061, %v4317
  %v4875 = vadd.f32 %v3065, %v4321
  %v4876 = vadd.f32 %v3067, %v4323
  %v4877 = vadd.f32 %v3071, %v4327
  %v4878 = vadd.f32 %v3073, %v4329
  %v4879 = vadd.f32 %v3077, %v4333
  %v4880 = vadd.f32 %v3079, %v4335
  %v4881 = vadd.f32 %v3083, %v4339
  %v4882 = vadd.f32 %v3085, %v4341
  %v4883 = vadd.f32 %v3089, %v4345
  %v4884 = vadd.f32 %v3091, %v4347
  %v4885 = vadd.f32 %v3095, %v4351
  %v4886 = vadd.f32 %v3097, %v4353
  %v4887 = vadd.f32 %v3101, %v4357
  %v4888 = vadd.f32 %v3103, %v4359
  %v4889 = vadd.f32 %v3107, %v4363
  %v4890 = vadd.f32 %v3109, %v4365
  %v4891 = vadd.f32 %v3113, %v4369
  %v4892 = vadd.f32 %v3115, %v4371
  %v4893 = vadd.f32 %v3119, %v4375
  %v4894 = vadd.f32 %v3121, %v4377
  %v4895 = vadd.f32 %v3125, %v4381
  %v4896 = vadd.f32 %v3127, %v4383
  %v4897 = vadd.f32 %v3131, %v4387
  %v4898 = vadd.f32 %v3133, %v4389
  %v4899 = vadd.f32 %v3137, %v4393
  %v4900 = vadd.f32 %v3139, %v4395
  %v4901 = vadd.f32 %v3143, %v4399
  %v4902 = vadd.f32 %v3145, %v4401
  %v4903 = vadd.f32 %v3149, %v4405
  %v4904 = vadd.f32 %v3151, %v4407
  %v4905 = vadd.f32 %v3155, %v4411
  %v4906 = vadd.f32 %v3157, %v4413
  %v4907 = vadd.f32 %v3161, %v4417
  %v4908 = vadd.f32 %v3163, %v4419
  %v4909 = vadd.f32 %v3167, %v4423
  %v4910 = vadd.f32 %v3169, %v4425
  %v4911 = vadd.f32 %v3173, %v4429
  %v4912 = vadd.f32 %v3175, %v4431
  %v4913 = vadd.f32 %v3179, %v4435
  %v4914 = vadd.f32 %v3181, %v4437
  %v4915 = vadd.f32 %v3185, %v4441
  %v4916 = vadd.f32 %v3187, %v4443
  %v4917 = vadd.f32 %v3191, %v4447
  %v4918 = vadd.f32 %v3193, %v4449
  %v4919 = vadd.f32 %v3197, %v4453
  %v4920 = vadd.f32 %v3199, %v4455
  %v4921 = vadd.f32 %v3203, %v4459
  %v4922 = vadd.f32 %v3205, %v4461
  %v4923 = vadd.f32 %v3209, %v4465
  %v4924 = vadd.f32 %v3211, %v4467
  %v4925 = vadd.f32 %v3215, %v4471
  %v4926 = vadd.f32 %v3217, %v4473
  %v4927 = vadd.f32 %v3221, %v4477
  %v4928 = vadd.f32 %v3223, %v4479
  %v4929 = vadd.f32 %v3227, %v4483
  %v4930 = vadd.f32 %v3229, %v4485
  %v4931 = vadd.f32 %v3233, %v4489
  %v4932 = vadd.f32 %v3235, %v4491
  %v4933 = vadd.f32 %v3239, %v4495
  %v4934 = vadd.f32 %v3241, %v4497
  %v4935 = vadd.f32 %v3245, %v4501
  %v4936 = vadd.f32 %v3247, %v4503
  %v4937 = vadd.f32 %v3251, %v4507
  %v4938 = vadd.f32 %v3253, %v4509
  %v4939 = vadd.f32 %v3257, %v4513
  %v4940 = vadd.f32 %v3259, %v4515
  %v4941 = vadd.f32 %v3263, %v4519
  %v4942 = vadd.f32 %v3265, %v4521
  %v4943 = vadd.f32 %v3269, %v4525
  %v4944 = vadd.f32 %v3271, %v4527
  %v4945 = vadd.f32 %v3275, %v4531
  %v4946 = vadd.f32 %v3277, %v4533
  %v4947 = vadd.f32 %v3281, %v4537
  %v4948 = vadd.f32 %v3283, %v4539
  %v4949 = vadd.f32 %v3287, %v4543
  %v4950 = vadd.f32 %v3289, %v4545
  %v4951 = vadd.f32 %v3293, %v4549
  %v4952 = vadd.f32 %v3295, %v4551
  %v4953 = vadd.f32 %v3299, %v4555
  %v4954 = vadd.f32 %v3301, %v4557
  %v4955 = vadd.f32 %v3305, %v4561
  %v4956 = vadd.f32 %v3307, %v4563
  %v4957 = vadd.f32 %v3311, %v4567
  %v4958 = vadd.f32 %v3313, %v4569
  %v4959 = vadd.f32 %v3317, %v4573
  %v4960 = vadd.f32 %v3319, %v4575
  %s4961 = scalar_lea.vmem %s1, 192
  %v4962 = vld [vmem:[%s4961] sm:$0xff]
  %v4963 = vld [vmem:[%s4961 + $0x8] sm:$0xff]
  %v4964 = vld [vmem:[%s4961 + $0x10] sm:$0xff]
  %v4965 = vld [vmem:[%s4961 + $0x18] sm:$0xff]
  %v4966 = vld [vmem:[%s4961 + $0x20] sm:$0xff]
  %v4967 = vld [vmem:[%s4961 + $0x28] sm:$0xff]
  %v4968 = vld [vmem:[%s4961 + $0x30] sm:$0xf]
  %v4969 = vld [vmem:[%s4961 + $0x38] sm:$0xf]
  %v4971 = vsel %vm273, %v240, 0
  %v4974 = vsel %vm273, %v241, 0
  %v4977 = vsel %vm273, %v242, 0
  %v4980 = vsel %vm273, %v243, 0
  %v4983 = vsel %vm273, %v244, 0
  %v4986 = vsel %vm273, %v245, 0
  %v4989 = vsel %vm273, %v246, 0
  %v4992 = vsel %vm273, %v247, 0
  %v4995 = vsel %vm850, %v4968, 0
  %v4998 = vsel %vm850, %v4969, 0
  %5000 = vmatprep.subr.mxu0 0.0
  %5001 = vmatpush1.msra.mxu0 0.0
  %5002 = vmatprep.subr.mxu0 0.0
  %5003 = vmatpush1.msra.mxu0 0.0
  %5004 = vmatprep.subr.mxu0 0.0
  %5005 = vmatpush1.msra.mxu0 0.0
  %5006 = vmatprep.subr.mxu0 0.0
  %5007 = vmatpush1.msra.mxu0 0.0
  %5008 = vmatprep.subr.mxu0 0.0
  %5009 = vmatpush1.msra.mxu0 0.0
  %5010 = vmatprep.subr.mxu0 0.0
  %5011 = vmatpush1.msra.mxu0 0.0
  %5012 = vmatprep.subr.mxu0 0.0
  %5013 = vmatpush1.msra.mxu0 0.0
  %5014 = vmatprep.subr.mxu0 0.0
  %5015 = vmatpush1.msra.mxu0 0.0
  %5016 = vmatprep.subr.mxu0 0.0
  %5017 = vmatpush1.msra.mxu0 0.0
  %5018 = vmatprep.subr.mxu0 0.0
  %5019 = vmatpush1.msra.mxu0 0.0
  %5020 = vmatprep.subr.mxu0 0.0
  %5021 = vmatpush1.msra.mxu0 0.0
  %5022 = vmatprep.subr.mxu0 0.0
  %5023 = vmatpush1.msra.mxu0 0.0
  %5024 = vmatprep.subr.mxu0 %v4998
  %5025 = vmatpush1.msra.mxu0 %v4995
  %5026 = vmatprep.subr.mxu0 %v4967
  %5027 = vmatpush1.msra.mxu0 %v4966
  %5028 = vmatprep.subr.mxu0 %v4965
  %5029 = vmatpush1.msra.mxu0 %v4964
  %5030 = vmatprep.subr.mxu0 %v4963
  %5031 = vmatpush1.msra.mxu0 %v4962
  %5032 = vmatprep.subr.mxu0 0.0
  %5033 = vmatpush2.msra.mxu0 0.0
  %5034 = vmatprep.subr.mxu0 0.0
  %5035 = vmatpush2.msra.mxu0 0.0
  %5036 = vmatprep.subr.mxu0 0.0
  %5037 = vmatpush2.msra.mxu0 0.0
  %5038 = vmatprep.subr.mxu0 0.0
  %5039 = vmatpush2.msra.mxu0 0.0
  %5040 = vmatprep.subr.mxu0 0.0
  %5041 = vmatpush2.msra.mxu0 0.0
  %5042 = vmatprep.subr.mxu0 0.0
  %5043 = vmatpush2.msra.mxu0 0.0
  %5044 = vmatprep.subr.mxu0 0.0
  %5045 = vmatpush2.msra.mxu0 0.0
  %5046 = vmatprep.subr.mxu0 0.0
  %5047 = vmatpush2.msra.mxu0 0.0
  %5048 = vmatprep.subr.mxu0 0.0
  %5049 = vmatpush2.msra.mxu0 0.0
  %5050 = vmatprep.subr.mxu0 0.0
  %5051 = vmatpush2.msra.mxu0 0.0
  %5052 = vmatprep.subr.mxu0 0.0
  %5053 = vmatpush2.msra.mxu0 0.0
  %5054 = vmatprep.subr.mxu0 0.0
  %5055 = vmatpush2.msra.mxu0 0.0
  %5056 = vmatprep.subr.mxu0 0.0
  %5057 = vmatpush2.msra.mxu0 0.0
  %5058 = vmatprep.subr.mxu0 0.0
  %5059 = vmatpush2.msra.mxu0 0.0
  %5060 = vmatprep.subr.mxu0 0.0
  %5061 = vmatpush2.msra.mxu0 0.0
  %5062 = vmatprep.subr.mxu0 0.0
  %5063 = vmatpush2.msra.mxu0 0.0
  %5064 = vmatprep.mubr.f32.mxu0 0.0
  %5065 = vmatmul.mubr.f32.gmra.mxu0 %v323
  %v5066 = vpop.f32.mrf.mxu0
  %v5067 = vadd.f32 0.0, %v5066
  %v5068 = vpop.f32.mrf.mxu0
  %v5069 = vadd.f32 0.0, %v5068
  %5070 = vmatprep.mubr.f32.mxu0 0.0
  %5071 = vmatmul.mubr.f32.gmra.mxu0 %v326
  %v5072 = vpop.f32.mrf.mxu0
  %v5073 = vadd.f32 0.0, %v5072
  %v5074 = vpop.f32.mrf.mxu0
  %v5075 = vadd.f32 0.0, %v5074
  %5076 = vmatprep.mubr.f32.mxu0 0.0
  %5077 = vmatmul.mubr.f32.gmra.mxu0 %v329
  %v5078 = vpop.f32.mrf.mxu0
  %v5079 = vadd.f32 0.0, %v5078
  %v5080 = vpop.f32.mrf.mxu0
  %v5081 = vadd.f32 0.0, %v5080
  %5082 = vmatprep.mubr.f32.mxu0 0.0
  %5083 = vmatmul.mubr.f32.gmra.mxu0 %v332
  %v5084 = vpop.f32.mrf.mxu0
  %v5085 = vadd.f32 0.0, %v5084
  %v5086 = vpop.f32.mrf.mxu0
  %v5087 = vadd.f32 0.0, %v5086
  %5088 = vmatprep.mubr.f32.mxu0 0.0
  %5089 = vmatmul.mubr.f32.gmra.mxu0 %v335
  %v5090 = vpop.f32.mrf.mxu0
  %v5091 = vadd.f32 0.0, %v5090
  %v5092 = vpop.f32.mrf.mxu0
  %v5093 = vadd.f32 0.0, %v5092
  %5094 = vmatprep.mubr.f32.mxu0 0.0
  %5095 = vmatmul.mubr.f32.gmra.mxu0 %v338
  %v5096 = vpop.f32.mrf.mxu0
  %v5097 = vadd.f32 0.0, %v5096
  %v5098 = vpop.f32.mrf.mxu0
  %v5099 = vadd.f32 0.0, %v5098
  %5100 = vmatprep.mubr.f32.mxu0 0.0
  %5101 = vmatmul.mubr.f32.gmra.mxu0 %v341
  %v5102 = vpop.f32.mrf.mxu0
  %v5103 = vadd.f32 0.0, %v5102
  %v5104 = vpop.f32.mrf.mxu0
  %v5105 = vadd.f32 0.0, %v5104
  %5106 = vmatprep.mubr.f32.mxu0 0.0
  %5107 = vmatmul.mubr.f32.gmra.mxu0 %v344
  %v5108 = vpop.f32.mrf.mxu0
  %v5109 = vadd.f32 0.0, %v5108
  %v5110 = vpop.f32.mrf.mxu0
  %v5111 = vadd.f32 0.0, %v5110
  %5112 = vmatprep.mubr.f32.mxu0 0.0
  %5113 = vmatmul.mubr.f32.gmra.mxu0 %v347
  %v5114 = vpop.f32.mrf.mxu0
  %v5115 = vadd.f32 0.0, %v5114
  %v5116 = vpop.f32.mrf.mxu0
  %v5117 = vadd.f32 0.0, %v5116
  %5118 = vmatprep.mubr.f32.mxu0 0.0
  %5119 = vmatmul.mubr.f32.gmra.mxu0 %v350
  %v5120 = vpop.f32.mrf.mxu0
  %v5121 = vadd.f32 0.0, %v5120
  %v5122 = vpop.f32.mrf.mxu0
  %v5123 = vadd.f32 0.0, %v5122
  %5124 = vmatprep.mubr.f32.mxu0 0.0
  %5125 = vmatmul.mubr.f32.gmra.mxu0 %v353
  %v5126 = vpop.f32.mrf.mxu0
  %v5127 = vadd.f32 0.0, %v5126
  %v5128 = vpop.f32.mrf.mxu0
  %v5129 = vadd.f32 0.0, %v5128
  %5130 = vmatprep.mubr.f32.mxu0 0.0
  %5131 = vmatmul.mubr.f32.gmra.mxu0 %v356
  %v5132 = vpop.f32.mrf.mxu0
  %v5133 = vadd.f32 0.0, %v5132
  %v5134 = vpop.f32.mrf.mxu0
  %v5135 = vadd.f32 0.0, %v5134
  %5136 = vmatprep.mubr.f32.mxu0 0.0
  %5137 = vmatmul.mubr.f32.gmra.mxu0 %v359
  %v5138 = vpop.f32.mrf.mxu0
  %v5139 = vadd.f32 0.0, %v5138
  %v5140 = vpop.f32.mrf.mxu0
  %v5141 = vadd.f32 0.0, %v5140
  %5142 = vmatprep.mubr.f32.mxu0 0.0
  %5143 = vmatmul.mubr.f32.gmra.mxu0 %v362
  %v5144 = vpop.f32.mrf.mxu0
  %v5145 = vadd.f32 0.0, %v5144
  %v5146 = vpop.f32.mrf.mxu0
  %v5147 = vadd.f32 0.0, %v5146
  %5148 = vmatprep.mubr.f32.mxu0 0.0
  %5149 = vmatmul.mubr.f32.gmra.mxu0 %v365
  %v5150 = vpop.f32.mrf.mxu0
  %v5151 = vadd.f32 0.0, %v5150
  %v5152 = vpop.f32.mrf.mxu0
  %v5153 = vadd.f32 0.0, %v5152
  %5154 = vmatprep.mubr.f32.mxu0 0.0
  %5155 = vmatmul.mubr.f32.gmra.mxu0 %v368
  %v5156 = vpop.f32.mrf.mxu0
  %v5157 = vadd.f32 0.0, %v5156
  %v5158 = vpop.f32.mrf.mxu0
  %v5159 = vadd.f32 0.0, %v5158
  %5160 = vmatprep.mubr.f32.mxu0 0.0
  %5161 = vmatmul.mubr.f32.gmra.mxu0 %v371
  %v5162 = vpop.f32.mrf.mxu0
  %v5163 = vadd.f32 0.0, %v5162
  %v5164 = vpop.f32.mrf.mxu0
  %v5165 = vadd.f32 0.0, %v5164
  %5166 = vmatprep.mubr.f32.mxu0 0.0
  %5167 = vmatmul.mubr.f32.gmra.mxu0 %v374
  %v5168 = vpop.f32.mrf.mxu0
  %v5169 = vadd.f32 0.0, %v5168
  %v5170 = vpop.f32.mrf.mxu0
  %v5171 = vadd.f32 0.0, %v5170
  %5172 = vmatprep.mubr.f32.mxu0 0.0
  %5173 = vmatmul.mubr.f32.gmra.mxu0 %v377
  %v5174 = vpop.f32.mrf.mxu0
  %v5175 = vadd.f32 0.0, %v5174
  %v5176 = vpop.f32.mrf.mxu0
  %v5177 = vadd.f32 0.0, %v5176
  %5178 = vmatprep.mubr.f32.mxu0 0.0
  %5179 = vmatmul.mubr.f32.gmra.mxu0 %v380
  %v5180 = vpop.f32.mrf.mxu0
  %v5181 = vadd.f32 0.0, %v5180
  %v5182 = vpop.f32.mrf.mxu0
  %v5183 = vadd.f32 0.0, %v5182
  %5184 = vmatprep.mubr.f32.mxu0 0.0
  %5185 = vmatmul.mubr.f32.gmra.mxu0 %v383
  %v5186 = vpop.f32.mrf.mxu0
  %v5187 = vadd.f32 0.0, %v5186
  %v5188 = vpop.f32.mrf.mxu0
  %v5189 = vadd.f32 0.0, %v5188
  %5190 = vmatprep.mubr.f32.mxu0 0.0
  %5191 = vmatmul.mubr.f32.gmra.mxu0 %v386
  %v5192 = vpop.f32.mrf.mxu0
  %v5193 = vadd.f32 0.0, %v5192
  %v5194 = vpop.f32.mrf.mxu0
  %v5195 = vadd.f32 0.0, %v5194
  %5196 = vmatprep.mubr.f32.mxu0 0.0
  %5197 = vmatmul.mubr.f32.gmra.mxu0 %v389
  %v5198 = vpop.f32.mrf.mxu0
  %v5199 = vadd.f32 0.0, %v5198
  %v5200 = vpop.f32.mrf.mxu0
  %v5201 = vadd.f32 0.0, %v5200
  %5202 = vmatprep.mubr.f32.mxu0 0.0
  %5203 = vmatmul.mubr.f32.gmra.mxu0 %v392
  %v5204 = vpop.f32.mrf.mxu0
  %v5205 = vadd.f32 0.0, %v5204
  %v5206 = vpop.f32.mrf.mxu0
  %v5207 = vadd.f32 0.0, %v5206
  %5208 = vmatprep.mubr.f32.mxu0 0.0
  %5209 = vmatmul.mubr.f32.gmra.mxu0 %v395
  %v5210 = vpop.f32.mrf.mxu0
  %v5211 = vadd.f32 0.0, %v5210
  %v5212 = vpop.f32.mrf.mxu0
  %v5213 = vadd.f32 0.0, %v5212
  %5214 = vmatprep.mubr.f32.mxu0 0.0
  %5215 = vmatmul.mubr.f32.gmra.mxu0 %v398
  %v5216 = vpop.f32.mrf.mxu0
  %v5217 = vadd.f32 0.0, %v5216
  %v5218 = vpop.f32.mrf.mxu0
  %v5219 = vadd.f32 0.0, %v5218
  %5220 = vmatprep.mubr.f32.mxu0 0.0
  %5221 = vmatmul.mubr.f32.gmra.mxu0 %v401
  %v5222 = vpop.f32.mrf.mxu0
  %v5223 = vadd.f32 0.0, %v5222
  %v5224 = vpop.f32.mrf.mxu0
  %v5225 = vadd.f32 0.0, %v5224
  %5226 = vmatprep.mubr.f32.mxu0 0.0
  %5227 = vmatmul.mubr.f32.gmra.mxu0 %v404
  %v5228 = vpop.f32.mrf.mxu0
  %v5229 = vadd.f32 0.0, %v5228
  %v5230 = vpop.f32.mrf.mxu0
  %v5231 = vadd.f32 0.0, %v5230
  %5232 = vmatprep.mubr.f32.mxu0 0.0
  %5233 = vmatmul.mubr.f32.gmra.mxu0 %v407
  %v5234 = vpop.f32.mrf.mxu0
  %v5235 = vadd.f32 0.0, %v5234
  %v5236 = vpop.f32.mrf.mxu0
  %v5237 = vadd.f32 0.0, %v5236
  %5238 = vmatprep.mubr.f32.mxu0 0.0
  %5239 = vmatmul.mubr.f32.gmra.mxu0 %v410
  %v5240 = vpop.f32.mrf.mxu0
  %v5241 = vadd.f32 0.0, %v5240
  %v5242 = vpop.f32.mrf.mxu0
  %v5243 = vadd.f32 0.0, %v5242
  %5244 = vmatprep.mubr.f32.mxu0 0.0
  %5245 = vmatmul.mubr.f32.gmra.mxu0 %v413
  %v5246 = vpop.f32.mrf.mxu0
  %v5247 = vadd.f32 0.0, %v5246
  %v5248 = vpop.f32.mrf.mxu0
  %v5249 = vadd.f32 0.0, %v5248
  %5250 = vmatprep.mubr.f32.mxu0 0.0
  %5251 = vmatmul.mubr.f32.gmra.mxu0 %v416
  %v5252 = vpop.f32.mrf.mxu0
  %v5253 = vadd.f32 0.0, %v5252
  %v5254 = vpop.f32.mrf.mxu0
  %v5255 = vadd.f32 0.0, %v5254
  %5256 = vmatprep.mubr.f32.mxu0 0.0
  %5257 = vmatmul.mubr.f32.gmra.mxu0 %v419
  %v5258 = vpop.f32.mrf.mxu0
  %v5259 = vadd.f32 0.0, %v5258
  %v5260 = vpop.f32.mrf.mxu0
  %v5261 = vadd.f32 0.0, %v5260
  %5262 = vmatprep.mubr.f32.mxu0 0.0
  %5263 = vmatmul.mubr.f32.gmra.mxu0 %v422
  %v5264 = vpop.f32.mrf.mxu0
  %v5265 = vadd.f32 0.0, %v5264
  %v5266 = vpop.f32.mrf.mxu0
  %v5267 = vadd.f32 0.0, %v5266
  %5268 = vmatprep.mubr.f32.mxu0 0.0
  %5269 = vmatmul.mubr.f32.gmra.mxu0 %v425
  %v5270 = vpop.f32.mrf.mxu0
  %v5271 = vadd.f32 0.0, %v5270
  %v5272 = vpop.f32.mrf.mxu0
  %v5273 = vadd.f32 0.0, %v5272
  %5274 = vmatprep.mubr.f32.mxu0 0.0
  %5275 = vmatmul.mubr.f32.gmra.mxu0 %v428
  %v5276 = vpop.f32.mrf.mxu0
  %v5277 = vadd.f32 0.0, %v5276
  %v5278 = vpop.f32.mrf.mxu0
  %v5279 = vadd.f32 0.0, %v5278
  %5280 = vmatprep.mubr.f32.mxu0 0.0
  %5281 = vmatmul.mubr.f32.gmra.mxu0 %v431
  %v5282 = vpop.f32.mrf.mxu0
  %v5283 = vadd.f32 0.0, %v5282
  %v5284 = vpop.f32.mrf.mxu0
  %v5285 = vadd.f32 0.0, %v5284
  %5286 = vmatprep.mubr.f32.mxu0 0.0
  %5287 = vmatmul.mubr.f32.gmra.mxu0 %v434
  %v5288 = vpop.f32.mrf.mxu0
  %v5289 = vadd.f32 0.0, %v5288
  %v5290 = vpop.f32.mrf.mxu0
  %v5291 = vadd.f32 0.0, %v5290
  %5292 = vmatprep.mubr.f32.mxu0 0.0
  %5293 = vmatmul.mubr.f32.gmra.mxu0 %v437
  %v5294 = vpop.f32.mrf.mxu0
  %v5295 = vadd.f32 0.0, %v5294
  %v5296 = vpop.f32.mrf.mxu0
  %v5297 = vadd.f32 0.0, %v5296
  %5298 = vmatprep.mubr.f32.mxu0 0.0
  %5299 = vmatmul.mubr.f32.gmra.mxu0 %v440
  %v5300 = vpop.f32.mrf.mxu0
  %v5301 = vadd.f32 0.0, %v5300
  %v5302 = vpop.f32.mrf.mxu0
  %v5303 = vadd.f32 0.0, %v5302
  %5304 = vmatprep.mubr.f32.mxu0 0.0
  %5305 = vmatmul.mubr.f32.gmra.mxu0 %v443
  %v5306 = vpop.f32.mrf.mxu0
  %v5307 = vadd.f32 0.0, %v5306
  %v5308 = vpop.f32.mrf.mxu0
  %v5309 = vadd.f32 0.0, %v5308
  %5310 = vmatprep.mubr.f32.mxu0 0.0
  %5311 = vmatmul.mubr.f32.gmra.mxu0 %v446
  %v5312 = vpop.f32.mrf.mxu0
  %v5313 = vadd.f32 0.0, %v5312
  %v5314 = vpop.f32.mrf.mxu0
  %v5315 = vadd.f32 0.0, %v5314
  %5316 = vmatprep.mubr.f32.mxu0 0.0
  %5317 = vmatmul.mubr.f32.gmra.mxu0 %v449
  %v5318 = vpop.f32.mrf.mxu0
  %v5319 = vadd.f32 0.0, %v5318
  %v5320 = vpop.f32.mrf.mxu0
  %v5321 = vadd.f32 0.0, %v5320
  %5322 = vmatprep.mubr.f32.mxu0 0.0
  %5323 = vmatmul.mubr.f32.gmra.mxu0 %v452
  %v5324 = vpop.f32.mrf.mxu0
  %v5325 = vadd.f32 0.0, %v5324
  %v5326 = vpop.f32.mrf.mxu0
  %v5327 = vadd.f32 0.0, %v5326
  %5328 = vmatprep.mubr.f32.mxu0 0.0
  %5329 = vmatmul.mubr.f32.gmra.mxu0 %v455
  %v5330 = vpop.f32.mrf.mxu0
  %v5331 = vadd.f32 0.0, %v5330
  %v5332 = vpop.f32.mrf.mxu0
  %v5333 = vadd.f32 0.0, %v5332
  %5334 = vmatprep.mubr.f32.mxu0 0.0
  %5335 = vmatmul.mubr.f32.gmra.mxu0 %v458
  %v5336 = vpop.f32.mrf.mxu0
  %v5337 = vadd.f32 0.0, %v5336
  %v5338 = vpop.f32.mrf.mxu0
  %v5339 = vadd.f32 0.0, %v5338
  %5340 = vmatprep.mubr.f32.mxu0 0.0
  %5341 = vmatmul.mubr.f32.gmra.mxu0 %v461
  %v5342 = vpop.f32.mrf.mxu0
  %v5343 = vadd.f32 0.0, %v5342
  %v5344 = vpop.f32.mrf.mxu0
  %v5345 = vadd.f32 0.0, %v5344
  %5346 = vmatprep.mubr.f32.mxu0 0.0
  %5347 = vmatmul.mubr.f32.gmra.mxu0 %v464
  %v5348 = vpop.f32.mrf.mxu0
  %v5349 = vadd.f32 0.0, %v5348
  %v5350 = vpop.f32.mrf.mxu0
  %v5351 = vadd.f32 0.0, %v5350
  %5352 = vmatprep.mubr.f32.mxu0 0.0
  %5353 = vmatmul.mubr.f32.gmra.mxu0 %v467
  %v5354 = vpop.f32.mrf.mxu0
  %v5355 = vadd.f32 0.0, %v5354
  %v5356 = vpop.f32.mrf.mxu0
  %v5357 = vadd.f32 0.0, %v5356
  %5358 = vmatprep.mubr.f32.mxu0 0.0
  %5359 = vmatmul.mubr.f32.gmra.mxu0 %v470
  %v5360 = vpop.f32.mrf.mxu0
  %v5361 = vadd.f32 0.0, %v5360
  %v5362 = vpop.f32.mrf.mxu0
  %v5363 = vadd.f32 0.0, %v5362
  %5364 = vmatprep.mubr.f32.mxu0 0.0
  %5365 = vmatmul.mubr.f32.gmra.mxu0 %v473
  %v5366 = vpop.f32.mrf.mxu0
  %v5367 = vadd.f32 0.0, %v5366
  %v5368 = vpop.f32.mrf.mxu0
  %v5369 = vadd.f32 0.0, %v5368
  %5370 = vmatprep.mubr.f32.mxu0 0.0
  %5371 = vmatmul.mubr.f32.gmra.mxu0 %v476
  %v5372 = vpop.f32.mrf.mxu0
  %v5373 = vadd.f32 0.0, %v5372
  %v5374 = vpop.f32.mrf.mxu0
  %v5375 = vadd.f32 0.0, %v5374
  %5376 = vmatprep.mubr.f32.mxu0 0.0
  %5377 = vmatmul.mubr.f32.gmra.mxu0 %v479
  %v5378 = vpop.f32.mrf.mxu0
  %v5379 = vadd.f32 0.0, %v5378
  %v5380 = vpop.f32.mrf.mxu0
  %v5381 = vadd.f32 0.0, %v5380
  %5382 = vmatprep.mubr.f32.mxu0 0.0
  %5383 = vmatmul.mubr.f32.gmra.mxu0 %v482
  %v5384 = vpop.f32.mrf.mxu0
  %v5385 = vadd.f32 0.0, %v5384
  %v5386 = vpop.f32.mrf.mxu0
  %v5387 = vadd.f32 0.0, %v5386
  %5388 = vmatprep.mubr.f32.mxu0 0.0
  %5389 = vmatmul.mubr.f32.gmra.mxu0 %v485
  %v5390 = vpop.f32.mrf.mxu0
  %v5391 = vadd.f32 0.0, %v5390
  %v5392 = vpop.f32.mrf.mxu0
  %v5393 = vadd.f32 0.0, %v5392
  %5394 = vmatprep.mubr.f32.mxu0 0.0
  %5395 = vmatmul.mubr.f32.gmra.mxu0 %v488
  %v5396 = vpop.f32.mrf.mxu0
  %v5397 = vadd.f32 0.0, %v5396
  %v5398 = vpop.f32.mrf.mxu0
  %v5399 = vadd.f32 0.0, %v5398
  %5400 = vmatprep.mubr.f32.mxu0 0.0
  %5401 = vmatmul.mubr.f32.gmra.mxu0 %v491
  %v5402 = vpop.f32.mrf.mxu0
  %v5403 = vadd.f32 0.0, %v5402
  %v5404 = vpop.f32.mrf.mxu0
  %v5405 = vadd.f32 0.0, %v5404
  %5406 = vmatprep.mubr.f32.mxu0 0.0
  %5407 = vmatmul.mubr.f32.gmra.mxu0 %v494
  %v5408 = vpop.f32.mrf.mxu0
  %v5409 = vadd.f32 0.0, %v5408
  %v5410 = vpop.f32.mrf.mxu0
  %v5411 = vadd.f32 0.0, %v5410
  %5412 = vmatprep.mubr.f32.mxu0 0.0
  %5413 = vmatmul.mubr.f32.gmra.mxu0 %v497
  %v5414 = vpop.f32.mrf.mxu0
  %v5415 = vadd.f32 0.0, %v5414
  %v5416 = vpop.f32.mrf.mxu0
  %v5417 = vadd.f32 0.0, %v5416
  %5418 = vmatprep.mubr.f32.mxu0 0.0
  %5419 = vmatmul.mubr.f32.gmra.mxu0 %v500
  %v5420 = vpop.f32.mrf.mxu0
  %v5421 = vadd.f32 0.0, %v5420
  %v5422 = vpop.f32.mrf.mxu0
  %v5423 = vadd.f32 0.0, %v5422
  %5424 = vmatprep.mubr.f32.mxu0 0.0
  %5425 = vmatmul.mubr.f32.gmra.mxu0 %v503
  %v5426 = vpop.f32.mrf.mxu0
  %v5427 = vadd.f32 0.0, %v5426
  %v5428 = vpop.f32.mrf.mxu0
  %v5429 = vadd.f32 0.0, %v5428
  %5430 = vmatprep.mubr.f32.mxu0 0.0
  %5431 = vmatmul.mubr.f32.gmra.mxu0 %v506
  %v5432 = vpop.f32.mrf.mxu0
  %v5433 = vadd.f32 0.0, %v5432
  %v5434 = vpop.f32.mrf.mxu0
  %v5435 = vadd.f32 0.0, %v5434
  %5436 = vmatprep.mubr.f32.mxu0 0.0
  %5437 = vmatmul.mubr.f32.gmra.mxu0 %v509
  %v5438 = vpop.f32.mrf.mxu0
  %v5439 = vadd.f32 0.0, %v5438
  %v5440 = vpop.f32.mrf.mxu0
  %v5441 = vadd.f32 0.0, %v5440
  %5442 = vmatprep.mubr.f32.mxu0 0.0
  %5443 = vmatmul.mubr.f32.gmra.mxu0 %v512
  %v5444 = vpop.f32.mrf.mxu0
  %v5445 = vadd.f32 0.0, %v5444
  %v5446 = vpop.f32.mrf.mxu0
  %v5447 = vadd.f32 0.0, %v5446
  %5448 = vmatprep.mubr.f32.mxu0 0.0
  %5449 = vmatmul.mubr.f32.gmra.mxu0 %v515
  %v5450 = vpop.f32.mrf.mxu0
  %v5451 = vadd.f32 0.0, %v5450
  %v5452 = vpop.f32.mrf.mxu0
  %v5453 = vadd.f32 0.0, %v5452
  %5454 = vmatprep.mubr.f32.mxu0 0.0
  %5455 = vmatmul.mubr.f32.gmra.mxu0 %v518
  %v5456 = vpop.f32.mrf.mxu0
  %v5457 = vadd.f32 0.0, %v5456
  %v5458 = vpop.f32.mrf.mxu0
  %v5459 = vadd.f32 0.0, %v5458
  %5460 = vmatprep.mubr.f32.mxu0 0.0
  %5461 = vmatmul.mubr.f32.gmra.mxu0 %v521
  %v5462 = vpop.f32.mrf.mxu0
  %v5463 = vadd.f32 0.0, %v5462
  %v5464 = vpop.f32.mrf.mxu0
  %v5465 = vadd.f32 0.0, %v5464
  %5466 = vmatprep.mubr.f32.mxu0 0.0
  %5467 = vmatmul.mubr.f32.gmra.mxu0 %v524
  %v5468 = vpop.f32.mrf.mxu0
  %v5469 = vadd.f32 0.0, %v5468
  %v5470 = vpop.f32.mrf.mxu0
  %v5471 = vadd.f32 0.0, %v5470
  %5472 = vmatprep.mubr.f32.mxu0 0.0
  %5473 = vmatmul.mubr.f32.gmra.mxu0 %v527
  %v5474 = vpop.f32.mrf.mxu0
  %v5475 = vadd.f32 0.0, %v5474
  %v5476 = vpop.f32.mrf.mxu0
  %v5477 = vadd.f32 0.0, %v5476
  %5478 = vmatprep.mubr.f32.mxu0 0.0
  %5479 = vmatmul.mubr.f32.gmra.mxu0 %v530
  %v5480 = vpop.f32.mrf.mxu0
  %v5481 = vadd.f32 0.0, %v5480
  %v5482 = vpop.f32.mrf.mxu0
  %v5483 = vadd.f32 0.0, %v5482
  %5484 = vmatprep.mubr.f32.mxu0 0.0
  %5485 = vmatmul.mubr.f32.gmra.mxu0 %v533
  %v5486 = vpop.f32.mrf.mxu0
  %v5487 = vadd.f32 0.0, %v5486
  %v5488 = vpop.f32.mrf.mxu0
  %v5489 = vadd.f32 0.0, %v5488
  %5490 = vmatprep.mubr.f32.mxu0 0.0
  %5491 = vmatmul.mubr.f32.gmra.mxu0 %v536
  %v5492 = vpop.f32.mrf.mxu0
  %v5493 = vadd.f32 0.0, %v5492
  %v5494 = vpop.f32.mrf.mxu0
  %v5495 = vadd.f32 0.0, %v5494
  %5496 = vmatprep.mubr.f32.mxu0 0.0
  %5497 = vmatmul.mubr.f32.gmra.mxu0 %v539
  %v5498 = vpop.f32.mrf.mxu0
  %v5499 = vadd.f32 0.0, %v5498
  %v5500 = vpop.f32.mrf.mxu0
  %v5501 = vadd.f32 0.0, %v5500
  %5502 = vmatprep.mubr.f32.mxu0 0.0
  %5503 = vmatmul.mubr.f32.gmra.mxu0 %v542
  %v5504 = vpop.f32.mrf.mxu0
  %v5505 = vadd.f32 0.0, %v5504
  %v5506 = vpop.f32.mrf.mxu0
  %v5507 = vadd.f32 0.0, %v5506
  %5508 = vmatprep.mubr.f32.mxu0 0.0
  %5509 = vmatmul.mubr.f32.gmra.mxu0 %v545
  %v5510 = vpop.f32.mrf.mxu0
  %v5511 = vadd.f32 0.0, %v5510
  %v5512 = vpop.f32.mrf.mxu0
  %v5513 = vadd.f32 0.0, %v5512
  %5514 = vmatprep.mubr.f32.mxu0 0.0
  %5515 = vmatmul.mubr.f32.gmra.mxu0 %v548
  %v5516 = vpop.f32.mrf.mxu0
  %v5517 = vadd.f32 0.0, %v5516
  %v5518 = vpop.f32.mrf.mxu0
  %v5519 = vadd.f32 0.0, %v5518
  %5520 = vmatprep.mubr.f32.mxu0 0.0
  %5521 = vmatmul.mubr.f32.gmra.mxu0 %v551
  %v5522 = vpop.f32.mrf.mxu0
  %v5523 = vadd.f32 0.0, %v5522
  %v5524 = vpop.f32.mrf.mxu0
  %v5525 = vadd.f32 0.0, %v5524
  %5526 = vmatprep.mubr.f32.mxu0 0.0
  %5527 = vmatmul.mubr.f32.gmra.mxu0 %v554
  %v5528 = vpop.f32.mrf.mxu0
  %v5529 = vadd.f32 0.0, %v5528
  %v5530 = vpop.f32.mrf.mxu0
  %v5531 = vadd.f32 0.0, %v5530
  %5532 = vmatprep.mubr.f32.mxu0 0.0
  %5533 = vmatmul.mubr.f32.gmra.mxu0 %v557
  %v5534 = vpop.f32.mrf.mxu0
  %v5535 = vadd.f32 0.0, %v5534
  %v5536 = vpop.f32.mrf.mxu0
  %v5537 = vadd.f32 0.0, %v5536
  %5538 = vmatprep.mubr.f32.mxu0 0.0
  %5539 = vmatmul.mubr.f32.gmra.mxu0 %v560
  %v5540 = vpop.f32.mrf.mxu0
  %v5541 = vadd.f32 0.0, %v5540
  %v5542 = vpop.f32.mrf.mxu0
  %v5543 = vadd.f32 0.0, %v5542
  %5544 = vmatprep.mubr.f32.mxu0 0.0
  %5545 = vmatmul.mubr.f32.gmra.mxu0 %v563
  %v5546 = vpop.f32.mrf.mxu0
  %v5547 = vadd.f32 0.0, %v5546
  %v5548 = vpop.f32.mrf.mxu0
  %v5549 = vadd.f32 0.0, %v5548
  %5550 = vmatprep.mubr.f32.mxu0 0.0
  %5551 = vmatmul.mubr.f32.gmra.mxu0 %v566
  %v5552 = vpop.f32.mrf.mxu0
  %v5553 = vadd.f32 0.0, %v5552
  %v5554 = vpop.f32.mrf.mxu0
  %v5555 = vadd.f32 0.0, %v5554
  %5556 = vmatprep.mubr.f32.mxu0 0.0
  %5557 = vmatmul.mubr.f32.gmra.mxu0 %v569
  %v5558 = vpop.f32.mrf.mxu0
  %v5559 = vadd.f32 0.0, %v5558
  %v5560 = vpop.f32.mrf.mxu0
  %v5561 = vadd.f32 0.0, %v5560
  %5562 = vmatprep.mubr.f32.mxu0 0.0
  %5563 = vmatmul.mubr.f32.gmra.mxu0 %v572
  %v5564 = vpop.f32.mrf.mxu0
  %v5565 = vadd.f32 0.0, %v5564
  %v5566 = vpop.f32.mrf.mxu0
  %v5567 = vadd.f32 0.0, %v5566
  %5568 = vmatprep.mubr.f32.mxu0 0.0
  %5569 = vmatmul.mubr.f32.gmra.mxu0 %v575
  %v5570 = vpop.f32.mrf.mxu0
  %v5571 = vadd.f32 0.0, %v5570
  %v5572 = vpop.f32.mrf.mxu0
  %v5573 = vadd.f32 0.0, %v5572
  %5574 = vmatprep.mubr.f32.mxu0 0.0
  %5575 = vmatmul.mubr.f32.gmra.mxu0 %v578
  %v5576 = vpop.f32.mrf.mxu0
  %v5577 = vadd.f32 0.0, %v5576
  %v5578 = vpop.f32.mrf.mxu0
  %v5579 = vadd.f32 0.0, %v5578
  %5580 = vmatprep.mubr.f32.mxu0 0.0
  %5581 = vmatmul.mubr.f32.gmra.mxu0 %v581
  %v5582 = vpop.f32.mrf.mxu0
  %v5583 = vadd.f32 0.0, %v5582
  %v5584 = vpop.f32.mrf.mxu0
  %v5585 = vadd.f32 0.0, %v5584
  %5586 = vmatprep.mubr.f32.mxu0 0.0
  %5587 = vmatmul.mubr.f32.gmra.mxu0 %v584
  %v5588 = vpop.f32.mrf.mxu0
  %v5589 = vadd.f32 0.0, %v5588
  %v5590 = vpop.f32.mrf.mxu0
  %v5591 = vadd.f32 0.0, %v5590
  %5592 = vmatprep.mubr.f32.mxu0 0.0
  %5593 = vmatmul.mubr.f32.gmra.mxu0 %v587
  %v5594 = vpop.f32.mrf.mxu0
  %v5595 = vadd.f32 0.0, %v5594
  %v5596 = vpop.f32.mrf.mxu0
  %v5597 = vadd.f32 0.0, %v5596
  %5598 = vmatprep.mubr.f32.mxu0 0.0
  %5599 = vmatmul.mubr.f32.gmra.mxu0 %v590
  %v5600 = vpop.f32.mrf.mxu0
  %v5601 = vadd.f32 0.0, %v5600
  %v5602 = vpop.f32.mrf.mxu0
  %v5603 = vadd.f32 0.0, %v5602
  %5604 = vmatprep.mubr.f32.mxu0 0.0
  %5605 = vmatmul.mubr.f32.gmra.mxu0 %v593
  %v5606 = vpop.f32.mrf.mxu0
  %v5607 = vadd.f32 0.0, %v5606
  %v5608 = vpop.f32.mrf.mxu0
  %v5609 = vadd.f32 0.0, %v5608
  %5610 = vmatprep.mubr.f32.mxu0 0.0
  %5611 = vmatmul.mubr.f32.gmra.mxu0 %v596
  %v5612 = vpop.f32.mrf.mxu0
  %v5613 = vadd.f32 0.0, %v5612
  %v5614 = vpop.f32.mrf.mxu0
  %v5615 = vadd.f32 0.0, %v5614
  %5616 = vmatprep.mubr.f32.mxu0 0.0
  %5617 = vmatmul.mubr.f32.gmra.mxu0 %v599
  %v5618 = vpop.f32.mrf.mxu0
  %v5619 = vadd.f32 0.0, %v5618
  %v5620 = vpop.f32.mrf.mxu0
  %v5621 = vadd.f32 0.0, %v5620
  %5622 = vmatprep.mubr.f32.mxu0 0.0
  %5623 = vmatmul.mubr.f32.gmra.mxu0 %v602
  %v5624 = vpop.f32.mrf.mxu0
  %v5625 = vadd.f32 0.0, %v5624
  %v5626 = vpop.f32.mrf.mxu0
  %v5627 = vadd.f32 0.0, %v5626
  %5628 = vmatprep.mubr.f32.mxu0 0.0
  %5629 = vmatmul.mubr.f32.gmra.mxu0 %v605
  %v5630 = vpop.f32.mrf.mxu0
  %v5631 = vadd.f32 0.0, %v5630
  %v5632 = vpop.f32.mrf.mxu0
  %v5633 = vadd.f32 0.0, %v5632
  %5634 = vmatprep.mubr.f32.mxu0 0.0
  %5635 = vmatmul.mubr.f32.gmra.mxu0 %v608
  %v5636 = vpop.f32.mrf.mxu0
  %v5637 = vadd.f32 0.0, %v5636
  %v5638 = vpop.f32.mrf.mxu0
  %v5639 = vadd.f32 0.0, %v5638
  %5640 = vmatprep.mubr.f32.mxu0 0.0
  %5641 = vmatmul.mubr.f32.gmra.mxu0 %v611
  %v5642 = vpop.f32.mrf.mxu0
  %v5643 = vadd.f32 0.0, %v5642
  %v5644 = vpop.f32.mrf.mxu0
  %v5645 = vadd.f32 0.0, %v5644
  %5646 = vmatprep.mubr.f32.mxu0 0.0
  %5647 = vmatmul.mubr.f32.gmra.mxu0 %v614
  %v5648 = vpop.f32.mrf.mxu0
  %v5649 = vadd.f32 0.0, %v5648
  %v5650 = vpop.f32.mrf.mxu0
  %v5651 = vadd.f32 0.0, %v5650
  %5652 = vmatprep.mubr.f32.mxu0 0.0
  %5653 = vmatmul.mubr.f32.gmra.mxu0 %v617
  %v5654 = vpop.f32.mrf.mxu0
  %v5655 = vadd.f32 0.0, %v5654
  %v5656 = vpop.f32.mrf.mxu0
  %v5657 = vadd.f32 0.0, %v5656
  %5658 = vmatprep.mubr.f32.mxu0 0.0
  %5659 = vmatmul.mubr.f32.gmra.mxu0 %v620
  %v5660 = vpop.f32.mrf.mxu0
  %v5661 = vadd.f32 0.0, %v5660
  %v5662 = vpop.f32.mrf.mxu0
  %v5663 = vadd.f32 0.0, %v5662
  %5664 = vmatprep.mubr.f32.mxu0 0.0
  %5665 = vmatmul.mubr.f32.gmra.mxu0 %v623
  %v5666 = vpop.f32.mrf.mxu0
  %v5667 = vadd.f32 0.0, %v5666
  %v5668 = vpop.f32.mrf.mxu0
  %v5669 = vadd.f32 0.0, %v5668
  %5670 = vmatprep.mubr.f32.mxu0 0.0
  %5671 = vmatmul.mubr.f32.gmra.mxu0 %v626
  %v5672 = vpop.f32.mrf.mxu0
  %v5673 = vadd.f32 0.0, %v5672
  %v5674 = vpop.f32.mrf.mxu0
  %v5675 = vadd.f32 0.0, %v5674
  %5676 = vmatprep.mubr.f32.mxu0 0.0
  %5677 = vmatmul.mubr.f32.gmra.mxu0 %v629
  %v5678 = vpop.f32.mrf.mxu0
  %v5679 = vadd.f32 0.0, %v5678
  %v5680 = vpop.f32.mrf.mxu0
  %v5681 = vadd.f32 0.0, %v5680
  %5682 = vmatprep.mubr.f32.mxu0 0.0
  %5683 = vmatmul.mubr.f32.gmra.mxu0 %v632
  %v5684 = vpop.f32.mrf.mxu0
  %v5685 = vadd.f32 0.0, %v5684
  %v5686 = vpop.f32.mrf.mxu0
  %v5687 = vadd.f32 0.0, %v5686
  %5688 = vmatprep.mubr.f32.mxu0 0.0
  %5689 = vmatmul.mubr.f32.gmra.mxu0 %v635
  %v5690 = vpop.f32.mrf.mxu0
  %v5691 = vadd.f32 0.0, %v5690
  %v5692 = vpop.f32.mrf.mxu0
  %v5693 = vadd.f32 0.0, %v5692
  %5694 = vmatprep.mubr.f32.mxu0 0.0
  %5695 = vmatmul.mubr.f32.gmra.mxu0 %v638
  %v5696 = vpop.f32.mrf.mxu0
  %v5697 = vadd.f32 0.0, %v5696
  %v5698 = vpop.f32.mrf.mxu0
  %v5699 = vadd.f32 0.0, %v5698
  %5700 = vmatprep.mubr.f32.mxu0 0.0
  %5701 = vmatmul.mubr.f32.gmra.mxu0 %v641
  %v5702 = vpop.f32.mrf.mxu0
  %v5703 = vadd.f32 0.0, %v5702
  %v5704 = vpop.f32.mrf.mxu0
  %v5705 = vadd.f32 0.0, %v5704
  %5706 = vmatprep.mubr.f32.mxu0 0.0
  %5707 = vmatmul.mubr.f32.gmra.mxu0 %v644
  %v5708 = vpop.f32.mrf.mxu0
  %v5709 = vadd.f32 0.0, %v5708
  %v5710 = vpop.f32.mrf.mxu0
  %v5711 = vadd.f32 0.0, %v5710
  %5712 = vmatprep.mubr.f32.mxu0 0.0
  %5713 = vmatmul.mubr.f32.gmra.mxu0 %v647
  %v5714 = vpop.f32.mrf.mxu0
  %v5715 = vadd.f32 0.0, %v5714
  %v5716 = vpop.f32.mrf.mxu0
  %v5717 = vadd.f32 0.0, %v5716
  %5718 = vmatprep.mubr.f32.mxu0 0.0
  %5719 = vmatmul.mubr.f32.gmra.mxu0 %v650
  %v5720 = vpop.f32.mrf.mxu0
  %v5721 = vadd.f32 0.0, %v5720
  %v5722 = vpop.f32.mrf.mxu0
  %v5723 = vadd.f32 0.0, %v5722
  %5724 = vmatprep.mubr.f32.mxu0 0.0
  %5725 = vmatmul.mubr.f32.gmra.mxu0 %v653
  %v5726 = vpop.f32.mrf.mxu0
  %v5727 = vadd.f32 0.0, %v5726
  %v5728 = vpop.f32.mrf.mxu0
  %v5729 = vadd.f32 0.0, %v5728
  %5730 = vmatprep.mubr.f32.mxu0 0.0
  %5731 = vmatmul.mubr.f32.gmra.mxu0 %v656
  %v5732 = vpop.f32.mrf.mxu0
  %v5733 = vadd.f32 0.0, %v5732
  %v5734 = vpop.f32.mrf.mxu0
  %v5735 = vadd.f32 0.0, %v5734
  %5736 = vmatprep.mubr.f32.mxu0 0.0
  %5737 = vmatmul.mubr.f32.gmra.mxu0 %v659
  %v5738 = vpop.f32.mrf.mxu0
  %v5739 = vadd.f32 0.0, %v5738
  %v5740 = vpop.f32.mrf.mxu0
  %v5741 = vadd.f32 0.0, %v5740
  %5742 = vmatprep.mubr.f32.mxu0 0.0
  %5743 = vmatmul.mubr.f32.gmra.mxu0 %v662
  %v5744 = vpop.f32.mrf.mxu0
  %v5745 = vadd.f32 0.0, %v5744
  %v5746 = vpop.f32.mrf.mxu0
  %v5747 = vadd.f32 0.0, %v5746
  %5748 = vmatprep.mubr.f32.mxu0 0.0
  %5749 = vmatmul.mubr.f32.gmra.mxu0 %v665
  %v5750 = vpop.f32.mrf.mxu0
  %v5751 = vadd.f32 0.0, %v5750
  %v5752 = vpop.f32.mrf.mxu0
  %v5753 = vadd.f32 0.0, %v5752
  %5754 = vmatprep.mubr.f32.mxu0 0.0
  %5755 = vmatmul.mubr.f32.gmra.mxu0 %v668
  %v5756 = vpop.f32.mrf.mxu0
  %v5757 = vadd.f32 0.0, %v5756
  %v5758 = vpop.f32.mrf.mxu0
  %v5759 = vadd.f32 0.0, %v5758
  %5760 = vmatprep.mubr.f32.mxu0 0.0
  %5761 = vmatmul.mubr.f32.gmra.mxu0 %v671
  %v5762 = vpop.f32.mrf.mxu0
  %v5763 = vadd.f32 0.0, %v5762
  %v5764 = vpop.f32.mrf.mxu0
  %v5765 = vadd.f32 0.0, %v5764
  %5766 = vmatprep.mubr.f32.mxu0 0.0
  %5767 = vmatmul.mubr.f32.gmra.mxu0 %v674
  %v5768 = vpop.f32.mrf.mxu0
  %v5769 = vadd.f32 0.0, %v5768
  %v5770 = vpop.f32.mrf.mxu0
  %v5771 = vadd.f32 0.0, %v5770
  %5772 = vmatprep.mubr.f32.mxu0 0.0
  %5773 = vmatmul.mubr.f32.gmra.mxu0 %v677
  %v5774 = vpop.f32.mrf.mxu0
  %v5775 = vadd.f32 0.0, %v5774
  %v5776 = vpop.f32.mrf.mxu0
  %v5777 = vadd.f32 0.0, %v5776
  %5778 = vmatprep.mubr.f32.mxu0 0.0
  %5779 = vmatmul.mubr.f32.gmra.mxu0 %v680
  %v5780 = vpop.f32.mrf.mxu0
  %v5781 = vadd.f32 0.0, %v5780
  %v5782 = vpop.f32.mrf.mxu0
  %v5783 = vadd.f32 0.0, %v5782
  %5784 = vmatprep.mubr.f32.mxu0 0.0
  %5785 = vmatmul.mubr.f32.gmra.mxu0 %v683
  %v5786 = vpop.f32.mrf.mxu0
  %v5787 = vadd.f32 0.0, %v5786
  %v5788 = vpop.f32.mrf.mxu0
  %v5789 = vadd.f32 0.0, %v5788
  %5790 = vmatprep.mubr.f32.mxu0 0.0
  %5791 = vmatmul.mubr.f32.gmra.mxu0 %v686
  %v5792 = vpop.f32.mrf.mxu0
  %v5793 = vadd.f32 0.0, %v5792
  %v5794 = vpop.f32.mrf.mxu0
  %v5795 = vadd.f32 0.0, %v5794
  %5796 = vmatprep.mubr.f32.mxu0 0.0
  %5797 = vmatmul.mubr.f32.gmra.mxu0 %v689
  %v5798 = vpop.f32.mrf.mxu0
  %v5799 = vadd.f32 0.0, %v5798
  %v5800 = vpop.f32.mrf.mxu0
  %v5801 = vadd.f32 0.0, %v5800
  %5802 = vmatprep.mubr.f32.mxu0 0.0
  %5803 = vmatmul.mubr.f32.gmra.mxu0 %v692
  %v5804 = vpop.f32.mrf.mxu0
  %v5805 = vadd.f32 0.0, %v5804
  %v5806 = vpop.f32.mrf.mxu0
  %v5807 = vadd.f32 0.0, %v5806
  %5808 = vmatprep.mubr.f32.mxu0 0.0
  %5809 = vmatmul.mubr.f32.gmra.mxu0 %v695
  %v5810 = vpop.f32.mrf.mxu0
  %v5811 = vadd.f32 0.0, %v5810
  %v5812 = vpop.f32.mrf.mxu0
  %v5813 = vadd.f32 0.0, %v5812
  %5814 = vmatprep.mubr.f32.mxu0 0.0
  %5815 = vmatmul.mubr.f32.gmra.mxu0 %v698
  %v5816 = vpop.f32.mrf.mxu0
  %v5817 = vadd.f32 0.0, %v5816
  %v5818 = vpop.f32.mrf.mxu0
  %v5819 = vadd.f32 0.0, %v5818
  %5820 = vmatprep.mubr.f32.mxu0 0.0
  %5821 = vmatmul.mubr.f32.gmra.mxu0 %v701
  %v5822 = vpop.f32.mrf.mxu0
  %v5823 = vadd.f32 0.0, %v5822
  %v5824 = vpop.f32.mrf.mxu0
  %v5825 = vadd.f32 0.0, %v5824
  %5826 = vmatprep.mubr.f32.mxu0 0.0
  %5827 = vmatmul.mubr.f32.gmra.mxu0 %v704
  %v5828 = vpop.f32.mrf.mxu0
  %v5829 = vadd.f32 0.0, %v5828
  %v5830 = vpop.f32.mrf.mxu0
  %v5831 = vadd.f32 0.0, %v5830
  %5832 = vmatprep.mubr.f32.mxu0 0.0
  %5833 = vmatmul.mubr.f32.gmra.mxu0 %v707
  %v5834 = vpop.f32.mrf.mxu0
  %v5835 = vadd.f32 0.0, %v5834
  %v5836 = vpop.f32.mrf.mxu0
  %v5837 = vadd.f32 0.0, %v5836
  %5838 = vmatprep.mubr.f32.mxu0 0.0
  %5839 = vmatmul.mubr.f32.gmra.mxu0 %v710
  %v5840 = vpop.f32.mrf.mxu0
  %v5841 = vadd.f32 0.0, %v5840
  %v5842 = vpop.f32.mrf.mxu0
  %v5843 = vadd.f32 0.0, %v5842
  %5844 = vmatprep.mubr.f32.mxu0 0.0
  %5845 = vmatmul.mubr.f32.gmra.mxu0 %v713
  %v5846 = vpop.f32.mrf.mxu0
  %v5847 = vadd.f32 0.0, %v5846
  %v5848 = vpop.f32.mrf.mxu0
  %v5849 = vadd.f32 0.0, %v5848
  %5850 = vmatprep.mubr.f32.mxu0 0.0
  %5851 = vmatmul.mubr.f32.gmra.mxu0 %v716
  %v5852 = vpop.f32.mrf.mxu0
  %v5853 = vadd.f32 0.0, %v5852
  %v5854 = vpop.f32.mrf.mxu0
  %v5855 = vadd.f32 0.0, %v5854
  %5856 = vmatprep.mubr.f32.mxu0 0.0
  %5857 = vmatmul.mubr.f32.gmra.mxu0 %v719
  %v5858 = vpop.f32.mrf.mxu0
  %v5859 = vadd.f32 0.0, %v5858
  %v5860 = vpop.f32.mrf.mxu0
  %v5861 = vadd.f32 0.0, %v5860
  %5862 = vmatprep.mubr.f32.mxu0 0.0
  %5863 = vmatmul.mubr.f32.gmra.mxu0 %v722
  %v5864 = vpop.f32.mrf.mxu0
  %v5865 = vadd.f32 0.0, %v5864
  %v5866 = vpop.f32.mrf.mxu0
  %v5867 = vadd.f32 0.0, %v5866
  %5868 = vmatprep.mubr.f32.mxu0 0.0
  %5869 = vmatmul.mubr.f32.gmra.mxu0 %v725
  %v5870 = vpop.f32.mrf.mxu0
  %v5871 = vadd.f32 0.0, %v5870
  %v5872 = vpop.f32.mrf.mxu0
  %v5873 = vadd.f32 0.0, %v5872
  %5874 = vmatprep.mubr.f32.mxu0 0.0
  %5875 = vmatmul.mubr.f32.gmra.mxu0 %v728
  %v5876 = vpop.f32.mrf.mxu0
  %v5877 = vadd.f32 0.0, %v5876
  %v5878 = vpop.f32.mrf.mxu0
  %v5879 = vadd.f32 0.0, %v5878
  %5880 = vmatprep.mubr.f32.mxu0 0.0
  %5881 = vmatmul.mubr.f32.gmra.mxu0 %v731
  %v5882 = vpop.f32.mrf.mxu0
  %v5883 = vadd.f32 0.0, %v5882
  %v5884 = vpop.f32.mrf.mxu0
  %v5885 = vadd.f32 0.0, %v5884
  %5886 = vmatprep.mubr.f32.mxu0 0.0
  %5887 = vmatmul.mubr.f32.gmra.mxu0 %v734
  %v5888 = vpop.f32.mrf.mxu0
  %v5889 = vadd.f32 0.0, %v5888
  %v5890 = vpop.f32.mrf.mxu0
  %v5891 = vadd.f32 0.0, %v5890
  %5892 = vmatprep.mubr.f32.mxu0 0.0
  %5893 = vmatmul.mubr.f32.gmra.mxu0 %v737
  %v5894 = vpop.f32.mrf.mxu0
  %v5895 = vadd.f32 0.0, %v5894
  %v5896 = vpop.f32.mrf.mxu0
  %v5897 = vadd.f32 0.0, %v5896
  %5898 = vmatprep.mubr.f32.mxu0 0.0
  %5899 = vmatmul.mubr.f32.gmra.mxu0 %v740
  %v5900 = vpop.f32.mrf.mxu0
  %v5901 = vadd.f32 0.0, %v5900
  %v5902 = vpop.f32.mrf.mxu0
  %v5903 = vadd.f32 0.0, %v5902
  %5904 = vmatprep.mubr.f32.mxu0 0.0
  %5905 = vmatmul.mubr.f32.gmra.mxu0 %v743
  %v5906 = vpop.f32.mrf.mxu0
  %v5907 = vadd.f32 0.0, %v5906
  %v5908 = vpop.f32.mrf.mxu0
  %v5909 = vadd.f32 0.0, %v5908
  %5910 = vmatprep.mubr.f32.mxu0 0.0
  %5911 = vmatmul.mubr.f32.gmra.mxu0 %v746
  %v5912 = vpop.f32.mrf.mxu0
  %v5913 = vadd.f32 0.0, %v5912
  %v5914 = vpop.f32.mrf.mxu0
  %v5915 = vadd.f32 0.0, %v5914
  %5916 = vmatprep.mubr.f32.mxu0 0.0
  %5917 = vmatmul.mubr.f32.gmra.mxu0 %v749
  %v5918 = vpop.f32.mrf.mxu0
  %v5919 = vadd.f32 0.0, %v5918
  %v5920 = vpop.f32.mrf.mxu0
  %v5921 = vadd.f32 0.0, %v5920
  %5922 = vmatprep.mubr.f32.mxu0 0.0
  %5923 = vmatmul.mubr.f32.gmra.mxu0 %v752
  %v5924 = vpop.f32.mrf.mxu0
  %v5925 = vadd.f32 0.0, %v5924
  %v5926 = vpop.f32.mrf.mxu0
  %v5927 = vadd.f32 0.0, %v5926
  %5928 = vmatprep.mubr.f32.mxu0 0.0
  %5929 = vmatmul.mubr.f32.gmra.mxu0 %v755
  %v5930 = vpop.f32.mrf.mxu0
  %v5931 = vadd.f32 0.0, %v5930
  %v5932 = vpop.f32.mrf.mxu0
  %v5933 = vadd.f32 0.0, %v5932
  %5934 = vmatprep.mubr.f32.mxu0 0.0
  %5935 = vmatmul.mubr.f32.gmra.mxu0 %v758
  %v5936 = vpop.f32.mrf.mxu0
  %v5937 = vadd.f32 0.0, %v5936
  %v5938 = vpop.f32.mrf.mxu0
  %v5939 = vadd.f32 0.0, %v5938
  %5940 = vmatprep.mubr.f32.mxu0 0.0
  %5941 = vmatmul.mubr.f32.gmra.mxu0 %v761
  %v5942 = vpop.f32.mrf.mxu0
  %v5943 = vadd.f32 0.0, %v5942
  %v5944 = vpop.f32.mrf.mxu0
  %v5945 = vadd.f32 0.0, %v5944
  %5946 = vmatprep.mubr.f32.mxu0 0.0
  %5947 = vmatmul.mubr.f32.gmra.mxu0 %v764
  %v5948 = vpop.f32.mrf.mxu0
  %v5949 = vadd.f32 0.0, %v5948
  %v5950 = vpop.f32.mrf.mxu0
  %v5951 = vadd.f32 0.0, %v5950
  %5952 = vmatprep.mubr.f32.mxu0 0.0
  %5953 = vmatmul.mubr.f32.gmra.mxu0 %v767
  %v5954 = vpop.f32.mrf.mxu0
  %v5955 = vadd.f32 0.0, %v5954
  %v5956 = vpop.f32.mrf.mxu0
  %v5957 = vadd.f32 0.0, %v5956
  %5958 = vmatprep.mubr.f32.mxu0 0.0
  %5959 = vmatmul.mubr.f32.gmra.mxu0 %v770
  %v5960 = vpop.f32.mrf.mxu0
  %v5961 = vadd.f32 0.0, %v5960
  %v5962 = vpop.f32.mrf.mxu0
  %v5963 = vadd.f32 0.0, %v5962
  %5964 = vmatprep.mubr.f32.mxu0 0.0
  %5965 = vmatmul.mubr.f32.gmra.mxu0 %v773
  %v5966 = vpop.f32.mrf.mxu0
  %v5967 = vadd.f32 0.0, %v5966
  %v5968 = vpop.f32.mrf.mxu0
  %v5969 = vadd.f32 0.0, %v5968
  %5970 = vmatprep.mubr.f32.mxu0 0.0
  %5971 = vmatmul.mubr.f32.gmra.mxu0 %v776
  %v5972 = vpop.f32.mrf.mxu0
  %v5973 = vadd.f32 0.0, %v5972
  %v5974 = vpop.f32.mrf.mxu0
  %v5975 = vadd.f32 0.0, %v5974
  %5976 = vmatprep.mubr.f32.mxu0 0.0
  %5977 = vmatmul.mubr.f32.gmra.mxu0 %v779
  %v5978 = vpop.f32.mrf.mxu0
  %v5979 = vadd.f32 0.0, %v5978
  %v5980 = vpop.f32.mrf.mxu0
  %v5981 = vadd.f32 0.0, %v5980
  %5982 = vmatprep.mubr.f32.mxu0 0.0
  %5983 = vmatmul.mubr.f32.gmra.mxu0 %v782
  %v5984 = vpop.f32.mrf.mxu0
  %v5985 = vadd.f32 0.0, %v5984
  %v5986 = vpop.f32.mrf.mxu0
  %v5987 = vadd.f32 0.0, %v5986
  %5988 = vmatprep.mubr.f32.mxu0 0.0
  %5989 = vmatmul.mubr.f32.gmra.mxu0 %v785
  %v5990 = vpop.f32.mrf.mxu0
  %v5991 = vadd.f32 0.0, %v5990
  %v5992 = vpop.f32.mrf.mxu0
  %v5993 = vadd.f32 0.0, %v5992
  %5994 = vmatprep.mubr.f32.mxu0 0.0
  %5995 = vmatmul.mubr.f32.gmra.mxu0 %v788
  %v5996 = vpop.f32.mrf.mxu0
  %v5997 = vadd.f32 0.0, %v5996
  %v5998 = vpop.f32.mrf.mxu0
  %v5999 = vadd.f32 0.0, %v5998
  %6000 = vmatprep.mubr.f32.mxu0 0.0
  %6001 = vmatmul.mubr.f32.gmra.mxu0 %v791
  %v6002 = vpop.f32.mrf.mxu0
  %v6003 = vadd.f32 0.0, %v6002
  %v6004 = vpop.f32.mrf.mxu0
  %v6005 = vadd.f32 0.0, %v6004
  %6006 = vmatprep.mubr.f32.mxu0 0.0
  %6007 = vmatmul.mubr.f32.gmra.mxu0 %v794
  %v6008 = vpop.f32.mrf.mxu0
  %v6009 = vadd.f32 0.0, %v6008
  %v6010 = vpop.f32.mrf.mxu0
  %v6011 = vadd.f32 0.0, %v6010
  %6012 = vmatprep.mubr.f32.mxu0 0.0
  %6013 = vmatmul.mubr.f32.gmra.mxu0 %v797
  %v6014 = vpop.f32.mrf.mxu0
  %v6015 = vadd.f32 0.0, %v6014
  %v6016 = vpop.f32.mrf.mxu0
  %v6017 = vadd.f32 0.0, %v6016
  %6018 = vmatprep.mubr.f32.mxu0 0.0
  %6019 = vmatmul.mubr.f32.gmra.mxu0 %v800
  %v6020 = vpop.f32.mrf.mxu0
  %v6021 = vadd.f32 0.0, %v6020
  %v6022 = vpop.f32.mrf.mxu0
  %v6023 = vadd.f32 0.0, %v6022
  %6024 = vmatprep.mubr.f32.mxu0 0.0
  %6025 = vmatmul.mubr.f32.gmra.mxu0 %v803
  %v6026 = vpop.f32.mrf.mxu0
  %v6027 = vadd.f32 0.0, %v6026
  %v6028 = vpop.f32.mrf.mxu0
  %v6029 = vadd.f32 0.0, %v6028
  %6030 = vmatprep.mubr.f32.mxu0 0.0
  %6031 = vmatmul.mubr.f32.gmra.mxu0 %v806
  %v6032 = vpop.f32.mrf.mxu0
  %v6033 = vadd.f32 0.0, %v6032
  %v6034 = vpop.f32.mrf.mxu0
  %v6035 = vadd.f32 0.0, %v6034
  %6036 = vmatprep.mubr.f32.mxu0 0.0
  %6037 = vmatmul.mubr.f32.gmra.mxu0 %v809
  %v6038 = vpop.f32.mrf.mxu0
  %v6039 = vadd.f32 0.0, %v6038
  %v6040 = vpop.f32.mrf.mxu0
  %v6041 = vadd.f32 0.0, %v6040
  %6042 = vmatprep.mubr.f32.mxu0 0.0
  %6043 = vmatmul.mubr.f32.gmra.mxu0 %v812
  %v6044 = vpop.f32.mrf.mxu0
  %v6045 = vadd.f32 0.0, %v6044
  %v6046 = vpop.f32.mrf.mxu0
  %v6047 = vadd.f32 0.0, %v6046
  %6048 = vmatprep.mubr.f32.mxu0 0.0
  %6049 = vmatmul.mubr.f32.gmra.mxu0 %v815
  %v6050 = vpop.f32.mrf.mxu0
  %v6051 = vadd.f32 0.0, %v6050
  %v6052 = vpop.f32.mrf.mxu0
  %v6053 = vadd.f32 0.0, %v6052
  %6054 = vmatprep.mubr.f32.mxu0 0.0
  %6055 = vmatmul.mubr.f32.gmra.mxu0 %v818
  %v6056 = vpop.f32.mrf.mxu0
  %v6057 = vadd.f32 0.0, %v6056
  %v6058 = vpop.f32.mrf.mxu0
  %v6059 = vadd.f32 0.0, %v6058
  %6060 = vmatprep.mubr.f32.mxu0 0.0
  %6061 = vmatmul.mubr.f32.gmra.mxu0 %v821
  %v6062 = vpop.f32.mrf.mxu0
  %v6063 = vadd.f32 0.0, %v6062
  %v6064 = vpop.f32.mrf.mxu0
  %v6065 = vadd.f32 0.0, %v6064
  %6066 = vmatprep.mubr.f32.mxu0 0.0
  %6067 = vmatmul.mubr.f32.gmra.mxu0 %v824
  %v6068 = vpop.f32.mrf.mxu0
  %v6069 = vadd.f32 0.0, %v6068
  %v6070 = vpop.f32.mrf.mxu0
  %v6071 = vadd.f32 0.0, %v6070
  %6072 = vmatprep.mubr.f32.mxu0 0.0
  %6073 = vmatmul.mubr.f32.gmra.mxu0 %v827
  %v6074 = vpop.f32.mrf.mxu0
  %v6075 = vadd.f32 0.0, %v6074
  %v6076 = vpop.f32.mrf.mxu0
  %v6077 = vadd.f32 0.0, %v6076
  %6078 = vmatprep.mubr.f32.mxu0 0.0
  %6079 = vmatmul.mubr.f32.gmra.mxu0 %v830
  %v6080 = vpop.f32.mrf.mxu0
  %v6081 = vadd.f32 0.0, %v6080
  %v6082 = vpop.f32.mrf.mxu0
  %v6083 = vadd.f32 0.0, %v6082
  %6084 = vmatprep.mubr.f32.mxu0 0.0
  %6085 = vmatmul.mubr.f32.gmra.mxu0 %v833
  %v6086 = vpop.f32.mrf.mxu0
  %v6087 = vadd.f32 0.0, %v6086
  %v6088 = vpop.f32.mrf.mxu0
  %v6089 = vadd.f32 0.0, %v6088
  %6090 = vmatprep.mubr.f32.mxu0 0.0
  %6091 = vmatmul.mubr.f32.gmra.mxu0 %v836
  %v6092 = vpop.f32.mrf.mxu0
  %v6093 = vadd.f32 0.0, %v6092
  %v6094 = vpop.f32.mrf.mxu0
  %v6095 = vadd.f32 0.0, %v6094
  %6096 = vmatprep.mubr.f32.mxu0 0.0
  %6097 = vmatmul.mubr.f32.gmra.mxu0 %v839
  %v6098 = vpop.f32.mrf.mxu0
  %v6099 = vadd.f32 0.0, %v6098
  %v6100 = vpop.f32.mrf.mxu0
  %v6101 = vadd.f32 0.0, %v6100
  %6102 = vmatprep.mubr.f32.mxu0 0.0
  %6103 = vmatmul.mubr.f32.gmra.mxu0 %v842
  %v6104 = vpop.f32.mrf.mxu0
  %v6105 = vadd.f32 0.0, %v6104
  %v6106 = vpop.f32.mrf.mxu0
  %v6107 = vadd.f32 0.0, %v6106
  %6108 = vmatprep.mubr.f32.mxu0 0.0
  %6109 = vmatmul.mubr.f32.gmra.mxu0 %v845
  %v6110 = vpop.f32.mrf.mxu0
  %v6111 = vadd.f32 0.0, %v6110
  %v6112 = vpop.f32.mrf.mxu0
  %v6113 = vadd.f32 0.0, %v6112
  %6114 = vmatprep.mubr.f32.mxu0 0.0
  %6115 = vmatmul.mubr.f32.gmra.mxu0 %v848
  %v6116 = vpop.f32.mrf.mxu0
  %v6117 = vadd.f32 0.0, %v6116
  %v6118 = vpop.f32.mrf.mxu0
  %v6119 = vadd.f32 0.0, %v6118
  %6120 = vmatprep.mubr.f32.mxu0 0.0
  %6121 = vmatmul.mubr.f32.gmra.mxu0 %v3331
  %v6122 = vpop.f32.mrf.mxu0
  %v6123 = vadd.f32 0.0, %v6122
  %v6124 = vpop.f32.mrf.mxu0
  %v6125 = vadd.f32 0.0, %v6124
  %6126 = vmatprep.mubr.f32.mxu0 0.0
  %6127 = vmatmul.mubr.f32.gmra.mxu0 %v3334
  %v6128 = vpop.f32.mrf.mxu0
  %v6129 = vadd.f32 0.0, %v6128
  %v6130 = vpop.f32.mrf.mxu0
  %v6131 = vadd.f32 0.0, %v6130
  %6132 = vmatprep.mubr.f32.mxu0 0.0
  %6133 = vmatmul.mubr.f32.gmra.mxu0 %v3337
  %v6134 = vpop.f32.mrf.mxu0
  %v6135 = vadd.f32 0.0, %v6134
  %v6136 = vpop.f32.mrf.mxu0
  %v6137 = vadd.f32 0.0, %v6136
  %6138 = vmatprep.mubr.f32.mxu0 0.0
  %6139 = vmatmul.mubr.f32.gmra.mxu0 %v3340
  %v6140 = vpop.f32.mrf.mxu0
  %v6141 = vadd.f32 0.0, %v6140
  %v6142 = vpop.f32.mrf.mxu0
  %v6143 = vadd.f32 0.0, %v6142
  %6144 = vmatprep.mubr.f32.mxu0 0.0
  %6145 = vmatmul.mubr.f32.gmra.mxu0 %v3343
  %v6146 = vpop.f32.mrf.mxu0
  %v6147 = vadd.f32 0.0, %v6146
  %v6148 = vpop.f32.mrf.mxu0
  %v6149 = vadd.f32 0.0, %v6148
  %6150 = vmatprep.mubr.f32.mxu0 0.0
  %6151 = vmatmul.mubr.f32.gmra.mxu0 %v3346
  %v6152 = vpop.f32.mrf.mxu0
  %v6153 = vadd.f32 0.0, %v6152
  %v6154 = vpop.f32.mrf.mxu0
  %v6155 = vadd.f32 0.0, %v6154
  %6156 = vmatprep.mubr.f32.mxu0 0.0
  %6157 = vmatmul.mubr.f32.gmra.mxu0 %v3349
  %v6158 = vpop.f32.mrf.mxu0
  %v6159 = vadd.f32 0.0, %v6158
  %v6160 = vpop.f32.mrf.mxu0
  %v6161 = vadd.f32 0.0, %v6160
  %6162 = vmatprep.mubr.f32.mxu0 0.0
  %6163 = vmatmul.mubr.f32.gmra.mxu0 %v3352
  %v6164 = vpop.f32.mrf.mxu0
  %v6165 = vadd.f32 0.0, %v6164
  %v6166 = vpop.f32.mrf.mxu0
  %v6167 = vadd.f32 0.0, %v6166
  %6168 = vmatprep.mubr.f32.mxu0 0.0
  %6169 = vmatmul.mubr.f32.gmra.mxu0 %v4971
  %v6170 = vpop.f32.mrf.mxu0
  %v6171 = vadd.f32 0.0, %v6170
  %v6172 = vpop.f32.mrf.mxu0
  %v6173 = vadd.f32 0.0, %v6172
  %6174 = vmatprep.mubr.f32.mxu0 0.0
  %6175 = vmatmul.mubr.f32.gmra.mxu0 %v4974
  %v6176 = vpop.f32.mrf.mxu0
  %v6177 = vadd.f32 0.0, %v6176
  %v6178 = vpop.f32.mrf.mxu0
  %v6179 = vadd.f32 0.0, %v6178
  %6180 = vmatprep.mubr.f32.mxu0 0.0
  %6181 = vmatmul.mubr.f32.gmra.mxu0 %v4977
  %v6182 = vpop.f32.mrf.mxu0
  %v6183 = vadd.f32 0.0, %v6182
  %v6184 = vpop.f32.mrf.mxu0
  %v6185 = vadd.f32 0.0, %v6184
  %6186 = vmatprep.mubr.f32.mxu0 0.0
  %6187 = vmatmul.mubr.f32.gmra.mxu0 %v4980
  %v6188 = vpop.f32.mrf.mxu0
  %v6189 = vadd.f32 0.0, %v6188
  %v6190 = vpop.f32.mrf.mxu0
  %v6191 = vadd.f32 0.0, %v6190
  %6192 = vmatprep.mubr.f32.mxu0 0.0
  %6193 = vmatmul.mubr.f32.gmra.mxu0 %v4983
  %v6194 = vpop.f32.mrf.mxu0
  %v6195 = vadd.f32 0.0, %v6194
  %v6196 = vpop.f32.mrf.mxu0
  %v6197 = vadd.f32 0.0, %v6196
  %6198 = vmatprep.mubr.f32.mxu0 0.0
  %6199 = vmatmul.mubr.f32.gmra.mxu0 %v4986
  %v6200 = vpop.f32.mrf.mxu0
  %v6201 = vadd.f32 0.0, %v6200
  %v6202 = vpop.f32.mrf.mxu0
  %v6203 = vadd.f32 0.0, %v6202
  %6204 = vmatprep.mubr.f32.mxu0 0.0
  %6205 = vmatmul.mubr.f32.gmra.mxu0 %v4989
  %v6206 = vpop.f32.mrf.mxu0
  %v6207 = vadd.f32 0.0, %v6206
  %v6208 = vpop.f32.mrf.mxu0
  %v6209 = vadd.f32 0.0, %v6208
  %6210 = vmatprep.mubr.f32.mxu0 0.0
  %6211 = vmatmul.mubr.f32.gmra.mxu0 %v4992
  %v6212 = vpop.f32.mrf.mxu0
  %v6213 = vadd.f32 0.0, %v6212
  %v6214 = vpop.f32.mrf.mxu0
  %v6215 = vadd.f32 0.0, %v6214
  %6216 = vdwg.mxu0
  %v6217 = vadd.f32 %v4577, %v5067
  %v6218 = vadd.f32 %v4578, %v5069
  %v6219 = vadd.f32 %v4579, %v5073
  %v6220 = vadd.f32 %v4580, %v5075
  %v6221 = vadd.f32 %v4581, %v5079
  %v6222 = vadd.f32 %v4582, %v5081
  %v6223 = vadd.f32 %v4583, %v5085
  %v6224 = vadd.f32 %v4584, %v5087
  %v6225 = vadd.f32 %v4585, %v5091
  %v6226 = vadd.f32 %v4586, %v5093
  %v6227 = vadd.f32 %v4587, %v5097
  %v6228 = vadd.f32 %v4588, %v5099
  %v6229 = vadd.f32 %v4589, %v5103
  %v6230 = vadd.f32 %v4590, %v5105
  %v6231 = vadd.f32 %v4591, %v5109
  %v6232 = vadd.f32 %v4592, %v5111
  %v6233 = vadd.f32 %v4593, %v5115
  %v6234 = vadd.f32 %v4594, %v5117
  %v6235 = vadd.f32 %v4595, %v5121
  %v6236 = vadd.f32 %v4596, %v5123
  %v6237 = vadd.f32 %v4597, %v5127
  %v6238 = vadd.f32 %v4598, %v5129
  %v6239 = vadd.f32 %v4599, %v5133
  %v6240 = vadd.f32 %v4600, %v5135
  %v6241 = vadd.f32 %v4601, %v5139
  %v6242 = vadd.f32 %v4602, %v5141
  %v6243 = vadd.f32 %v4603, %v5145
  %v6244 = vadd.f32 %v4604, %v5147
  %v6245 = vadd.f32 %v4605, %v5151
  %v6246 = vadd.f32 %v4606, %v5153
  %v6247 = vadd.f32 %v4607, %v5157
  %v6248 = vadd.f32 %v4608, %v5159
  %v6249 = vadd.f32 %v4609, %v5163
  %v6250 = vadd.f32 %v4610, %v5165
  %v6251 = vadd.f32 %v4611, %v5169
  %v6252 = vadd.f32 %v4612, %v5171
  %v6253 = vadd.f32 %v4613, %v5175
  %v6254 = vadd.f32 %v4614, %v5177
  %v6255 = vadd.f32 %v4615, %v5181
  %v6256 = vadd.f32 %v4616, %v5183
  %v6257 = vadd.f32 %v4617, %v5187
  %v6258 = vadd.f32 %v4618, %v5189
  %v6259 = vadd.f32 %v4619, %v5193
  %v6260 = vadd.f32 %v4620, %v5195
  %v6261 = vadd.f32 %v4621, %v5199
  %v6262 = vadd.f32 %v4622, %v5201
  %v6263 = vadd.f32 %v4623, %v5205
  %v6264 = vadd.f32 %v4624, %v5207
  %v6265 = vadd.f32 %v4625, %v5211
  %v6266 = vadd.f32 %v4626, %v5213
  %v6267 = vadd.f32 %v4627, %v5217
  %v6268 = vadd.f32 %v4628, %v5219
  %v6269 = vadd.f32 %v4629, %v5223
  %v6270 = vadd.f32 %v4630, %v5225
  %v6271 = vadd.f32 %v4631, %v5229
  %v6272 = vadd.f32 %v4632, %v5231
  %v6273 = vadd.f32 %v4633, %v5235
  %v6274 = vadd.f32 %v4634, %v5237
  %v6275 = vadd.f32 %v4635, %v5241
  %v6276 = vadd.f32 %v4636, %v5243
  %v6277 = vadd.f32 %v4637, %v5247
  %v6278 = vadd.f32 %v4638, %v5249
  %v6279 = vadd.f32 %v4639, %v5253
  %v6280 = vadd.f32 %v4640, %v5255
  %v6281 = vadd.f32 %v4641, %v5259
  %v6282 = vadd.f32 %v4642, %v5261
  %v6283 = vadd.f32 %v4643, %v5265
  %v6284 = vadd.f32 %v4644, %v5267
  %v6285 = vadd.f32 %v4645, %v5271
  %v6286 = vadd.f32 %v4646, %v5273
  %v6287 = vadd.f32 %v4647, %v5277
  %v6288 = vadd.f32 %v4648, %v5279
  %v6289 = vadd.f32 %v4649, %v5283
  %v6290 = vadd.f32 %v4650, %v5285
  %v6291 = vadd.f32 %v4651, %v5289
  %v6292 = vadd.f32 %v4652, %v5291
  %v6293 = vadd.f32 %v4653, %v5295
  %v6294 = vadd.f32 %v4654, %v5297
  %v6295 = vadd.f32 %v4655, %v5301
  %v6296 = vadd.f32 %v4656, %v5303
  %v6297 = vadd.f32 %v4657, %v5307
  %v6298 = vadd.f32 %v4658, %v5309
  %v6299 = vadd.f32 %v4659, %v5313
  %v6300 = vadd.f32 %v4660, %v5315
  %v6301 = vadd.f32 %v4661, %v5319
  %v6302 = vadd.f32 %v4662, %v5321
  %v6303 = vadd.f32 %v4663, %v5325
  %v6304 = vadd.f32 %v4664, %v5327
  %v6305 = vadd.f32 %v4665, %v5331
  %v6306 = vadd.f32 %v4666, %v5333
  %v6307 = vadd.f32 %v4667, %v5337
  %v6308 = vadd.f32 %v4668, %v5339
  %v6309 = vadd.f32 %v4669, %v5343
  %v6310 = vadd.f32 %v4670, %v5345
  %v6311 = vadd.f32 %v4671, %v5349
  %v6312 = vadd.f32 %v4672, %v5351
  %v6313 = vadd.f32 %v4673, %v5355
  %v6314 = vadd.f32 %v4674, %v5357
  %v6315 = vadd.f32 %v4675, %v5361
  %v6316 = vadd.f32 %v4676, %v5363
  %v6317 = vadd.f32 %v4677, %v5367
  %v6318 = vadd.f32 %v4678, %v5369
  %v6319 = vadd.f32 %v4679, %v5373
  %v6320 = vadd.f32 %v4680, %v5375
  %v6321 = vadd.f32 %v4681, %v5379
  %v6322 = vadd.f32 %v4682, %v5381
  %v6323 = vadd.f32 %v4683, %v5385
  %v6324 = vadd.f32 %v4684, %v5387
  %v6325 = vadd.f32 %v4685, %v5391
  %v6326 = vadd.f32 %v4686, %v5393
  %v6327 = vadd.f32 %v4687, %v5397
  %v6328 = vadd.f32 %v4688, %v5399
  %v6329 = vadd.f32 %v4689, %v5403
  %v6330 = vadd.f32 %v4690, %v5405
  %v6331 = vadd.f32 %v4691, %v5409
  %v6332 = vadd.f32 %v4692, %v5411
  %v6333 = vadd.f32 %v4693, %v5415
  %v6334 = vadd.f32 %v4694, %v5417
  %v6335 = vadd.f32 %v4695, %v5421
  %v6336 = vadd.f32 %v4696, %v5423
  %v6337 = vadd.f32 %v4697, %v5427
  %v6338 = vadd.f32 %v4698, %v5429
  %v6339 = vadd.f32 %v4699, %v5433
  %v6340 = vadd.f32 %v4700, %v5435
  %v6341 = vadd.f32 %v4701, %v5439
  %v6342 = vadd.f32 %v4702, %v5441
  %v6343 = vadd.f32 %v4703, %v5445
  %v6344 = vadd.f32 %v4704, %v5447
  %v6345 = vadd.f32 %v4705, %v5451
  %v6346 = vadd.f32 %v4706, %v5453
  %v6347 = vadd.f32 %v4707, %v5457
  %v6348 = vadd.f32 %v4708, %v5459
  %v6349 = vadd.f32 %v4709, %v5463
  %v6350 = vadd.f32 %v4710, %v5465
  %v6351 = vadd.f32 %v4711, %v5469
  %v6352 = vadd.f32 %v4712, %v5471
  %v6353 = vadd.f32 %v4713, %v5475
  %v6354 = vadd.f32 %v4714, %v5477
  %v6355 = vadd.f32 %v4715, %v5481
  %v6356 = vadd.f32 %v4716, %v5483
  %v6357 = vadd.f32 %v4717, %v5487
  %v6358 = vadd.f32 %v4718, %v5489
  %v6359 = vadd.f32 %v4719, %v5493
  %v6360 = vadd.f32 %v4720, %v5495
  %v6361 = vadd.f32 %v4721, %v5499
  %v6362 = vadd.f32 %v4722, %v5501
  %v6363 = vadd.f32 %v4723, %v5505
  %v6364 = vadd.f32 %v4724, %v5507
  %v6365 = vadd.f32 %v4725, %v5511
  %v6366 = vadd.f32 %v4726, %v5513
  %v6367 = vadd.f32 %v4727, %v5517
  %v6368 = vadd.f32 %v4728, %v5519
  %v6369 = vadd.f32 %v4729, %v5523
  %v6370 = vadd.f32 %v4730, %v5525
  %v6371 = vadd.f32 %v4731, %v5529
  %v6372 = vadd.f32 %v4732, %v5531
  %v6373 = vadd.f32 %v4733, %v5535
  %v6374 = vadd.f32 %v4734, %v5537
  %v6375 = vadd.f32 %v4735, %v5541
  %v6376 = vadd.f32 %v4736, %v5543
  %v6377 = vadd.f32 %v4737, %v5547
  %v6378 = vadd.f32 %v4738, %v5549
  %v6379 = vadd.f32 %v4739, %v5553
  %v6380 = vadd.f32 %v4740, %v5555
  %v6381 = vadd.f32 %v4741, %v5559
  %v6382 = vadd.f32 %v4742, %v5561
  %v6383 = vadd.f32 %v4743, %v5565
  %v6384 = vadd.f32 %v4744, %v5567
  %v6385 = vadd.f32 %v4745, %v5571
  %v6386 = vadd.f32 %v4746, %v5573
  %v6387 = vadd.f32 %v4747, %v5577
  %v6388 = vadd.f32 %v4748, %v5579
  %v6389 = vadd.f32 %v4749, %v5583
  %v6390 = vadd.f32 %v4750, %v5585
  %v6391 = vadd.f32 %v4751, %v5589
  %v6392 = vadd.f32 %v4752, %v5591
  %v6393 = vadd.f32 %v4753, %v5595
  %v6394 = vadd.f32 %v4754, %v5597
  %v6395 = vadd.f32 %v4755, %v5601
  %v6396 = vadd.f32 %v4756, %v5603
  %v6397 = vadd.f32 %v4757, %v5607
  %v6398 = vadd.f32 %v4758, %v5609
  %v6399 = vadd.f32 %v4759, %v5613
  %v6400 = vadd.f32 %v4760, %v5615
  %v6401 = vadd.f32 %v4761, %v5619
  %v6402 = vadd.f32 %v4762, %v5621
  %v6403 = vadd.f32 %v4763, %v5625
  %v6404 = vadd.f32 %v4764, %v5627
  %v6405 = vadd.f32 %v4765, %v5631
  %v6406 = vadd.f32 %v4766, %v5633
  %v6407 = vadd.f32 %v4767, %v5637
  %v6408 = vadd.f32 %v4768, %v5639
  %v6409 = vadd.f32 %v4769, %v5643
  %v6410 = vadd.f32 %v4770, %v5645
  %v6411 = vadd.f32 %v4771, %v5649
  %v6412 = vadd.f32 %v4772, %v5651
  %v6413 = vadd.f32 %v4773, %v5655
  %v6414 = vadd.f32 %v4774, %v5657
  %v6415 = vadd.f32 %v4775, %v5661
  %v6416 = vadd.f32 %v4776, %v5663
  %v6417 = vadd.f32 %v4777, %v5667
  %v6418 = vadd.f32 %v4778, %v5669
  %v6419 = vadd.f32 %v4779, %v5673
  %v6420 = vadd.f32 %v4780, %v5675
  %v6421 = vadd.f32 %v4781, %v5679
  %v6422 = vadd.f32 %v4782, %v5681
  %v6423 = vadd.f32 %v4783, %v5685
  %v6424 = vadd.f32 %v4784, %v5687
  %v6425 = vadd.f32 %v4785, %v5691
  %v6426 = vadd.f32 %v4786, %v5693
  %v6427 = vadd.f32 %v4787, %v5697
  %v6428 = vadd.f32 %v4788, %v5699
  %v6429 = vadd.f32 %v4789, %v5703
  %v6430 = vadd.f32 %v4790, %v5705
  %v6431 = vadd.f32 %v4791, %v5709
  %v6432 = vadd.f32 %v4792, %v5711
  %v6433 = vadd.f32 %v4793, %v5715
  %v6434 = vadd.f32 %v4794, %v5717
  %v6435 = vadd.f32 %v4795, %v5721
  %v6436 = vadd.f32 %v4796, %v5723
  %v6437 = vadd.f32 %v4797, %v5727
  %v6438 = vadd.f32 %v4798, %v5729
  %v6439 = vadd.f32 %v4799, %v5733
  %v6440 = vadd.f32 %v4800, %v5735
  %v6441 = vadd.f32 %v4801, %v5739
  %v6442 = vadd.f32 %v4802, %v5741
  %v6443 = vadd.f32 %v4803, %v5745
  %v6444 = vadd.f32 %v4804, %v5747
  %v6445 = vadd.f32 %v4805, %v5751
  %v6446 = vadd.f32 %v4806, %v5753
  %v6447 = vadd.f32 %v4807, %v5757
  %v6448 = vadd.f32 %v4808, %v5759
  %v6449 = vadd.f32 %v4809, %v5763
  %v6450 = vadd.f32 %v4810, %v5765
  %v6451 = vadd.f32 %v4811, %v5769
  %v6452 = vadd.f32 %v4812, %v5771
  %v6453 = vadd.f32 %v4813, %v5775
  %v6454 = vadd.f32 %v4814, %v5777
  %v6455 = vadd.f32 %v4815, %v5781
  %v6456 = vadd.f32 %v4816, %v5783
  %v6457 = vadd.f32 %v4817, %v5787
  %v6458 = vadd.f32 %v4818, %v5789
  %v6459 = vadd.f32 %v4819, %v5793
  %v6460 = vadd.f32 %v4820, %v5795
  %v6461 = vadd.f32 %v4821, %v5799
  %v6462 = vadd.f32 %v4822, %v5801
  %v6463 = vadd.f32 %v4823, %v5805
  %v6464 = vadd.f32 %v4824, %v5807
  %v6465 = vadd.f32 %v4825, %v5811
  %v6466 = vadd.f32 %v4826, %v5813
  %v6467 = vadd.f32 %v4827, %v5817
  %v6468 = vadd.f32 %v4828, %v5819
  %v6469 = vadd.f32 %v4829, %v5823
  %v6470 = vadd.f32 %v4830, %v5825
  %v6471 = vadd.f32 %v4831, %v5829
  %v6472 = vadd.f32 %v4832, %v5831
  %v6473 = vadd.f32 %v4833, %v5835
  %v6474 = vadd.f32 %v4834, %v5837
  %v6475 = vadd.f32 %v4835, %v5841
  %v6476 = vadd.f32 %v4836, %v5843
  %v6477 = vadd.f32 %v4837, %v5847
  %v6478 = vadd.f32 %v4838, %v5849
  %v6479 = vadd.f32 %v4839, %v5853
  %v6480 = vadd.f32 %v4840, %v5855
  %v6481 = vadd.f32 %v4841, %v5859
  %v6482 = vadd.f32 %v4842, %v5861
  %v6483 = vadd.f32 %v4843, %v5865
  %v6484 = vadd.f32 %v4844, %v5867
  %v6485 = vadd.f32 %v4845, %v5871
  %v6486 = vadd.f32 %v4846, %v5873
  %v6487 = vadd.f32 %v4847, %v5877
  %v6488 = vadd.f32 %v4848, %v5879
  %v6489 = vadd.f32 %v4849, %v5883
  %v6490 = vadd.f32 %v4850, %v5885
  %v6491 = vadd.f32 %v4851, %v5889
  %v6492 = vadd.f32 %v4852, %v5891
  %v6493 = vadd.f32 %v4853, %v5895
  %v6494 = vadd.f32 %v4854, %v5897
  %v6495 = vadd.f32 %v4855, %v5901
  %v6496 = vadd.f32 %v4856, %v5903
  %v6497 = vadd.f32 %v4857, %v5907
  %v6498 = vadd.f32 %v4858, %v5909
  %v6499 = vadd.f32 %v4859, %v5913
  %v6500 = vadd.f32 %v4860, %v5915
  %v6501 = vadd.f32 %v4861, %v5919
  %v6502 = vadd.f32 %v4862, %v5921
  %v6503 = vadd.f32 %v4863, %v5925
  %v6504 = vadd.f32 %v4864, %v5927
  %v6505 = vadd.f32 %v4865, %v5931
  %v6506 = vadd.f32 %v4866, %v5933
  %v6507 = vadd.f32 %v4867, %v5937
  %v6508 = vadd.f32 %v4868, %v5939
  %v6509 = vadd.f32 %v4869, %v5943
  %v6510 = vadd.f32 %v4870, %v5945
  %v6511 = vadd.f32 %v4871, %v5949
  %v6512 = vadd.f32 %v4872, %v5951
  %v6513 = vadd.f32 %v4873, %v5955
  %v6514 = vadd.f32 %v4874, %v5957
  %v6515 = vadd.f32 %v4875, %v5961
  %v6516 = vadd.f32 %v4876, %v5963
  %v6517 = vadd.f32 %v4877, %v5967
  %v6518 = vadd.f32 %v4878, %v5969
  %v6519 = vadd.f32 %v4879, %v5973
  %v6520 = vadd.f32 %v4880, %v5975
  %v6521 = vadd.f32 %v4881, %v5979
  %v6522 = vadd.f32 %v4882, %v5981
  %v6523 = vadd.f32 %v4883, %v5985
  %v6524 = vadd.f32 %v4884, %v5987
  %v6525 = vadd.f32 %v4885, %v5991
  %v6526 = vadd.f32 %v4886, %v5993
  %v6527 = vadd.f32 %v4887, %v5997
  %v6528 = vadd.f32 %v4888, %v5999
  %v6529 = vadd.f32 %v4889, %v6003
  %v6530 = vadd.f32 %v4890, %v6005
  %v6531 = vadd.f32 %v4891, %v6009
  %v6532 = vadd.f32 %v4892, %v6011
  %v6533 = vadd.f32 %v4893, %v6015
  %v6534 = vadd.f32 %v4894, %v6017
  %v6535 = vadd.f32 %v4895, %v6021
  %v6536 = vadd.f32 %v4896, %v6023
  %v6537 = vadd.f32 %v4897, %v6027
  %v6538 = vadd.f32 %v4898, %v6029
  %v6539 = vadd.f32 %v4899, %v6033
  %v6540 = vadd.f32 %v4900, %v6035
  %v6541 = vadd.f32 %v4901, %v6039
  %v6542 = vadd.f32 %v4902, %v6041
  %v6543 = vadd.f32 %v4903, %v6045
  %v6544 = vadd.f32 %v4904, %v6047
  %v6545 = vadd.f32 %v4905, %v6051
  %v6546 = vadd.f32 %v4906, %v6053
  %v6547 = vadd.f32 %v4907, %v6057
  %v6548 = vadd.f32 %v4908, %v6059
  %v6549 = vadd.f32 %v4909, %v6063
  %v6550 = vadd.f32 %v4910, %v6065
  %v6551 = vadd.f32 %v4911, %v6069
  %v6552 = vadd.f32 %v4912, %v6071
  %v6553 = vadd.f32 %v4913, %v6075
  %v6554 = vadd.f32 %v4914, %v6077
  %v6555 = vadd.f32 %v4915, %v6081
  %v6556 = vadd.f32 %v4916, %v6083
  %v6557 = vadd.f32 %v4917, %v6087
  %v6558 = vadd.f32 %v4918, %v6089
  %v6559 = vadd.f32 %v4919, %v6093
  %v6560 = vadd.f32 %v4920, %v6095
  %v6561 = vadd.f32 %v4921, %v6099
  %v6562 = vadd.f32 %v4922, %v6101
  %v6563 = vadd.f32 %v4923, %v6105
  %v6564 = vadd.f32 %v4924, %v6107
  %v6565 = vadd.f32 %v4925, %v6111
  %v6566 = vadd.f32 %v4926, %v6113
  %v6567 = vadd.f32 %v4927, %v6117
  %v6568 = vadd.f32 %v4928, %v6119
  %v6569 = vadd.f32 %v4929, %v6123
  %v6570 = vadd.f32 %v4930, %v6125
  %v6571 = vadd.f32 %v4931, %v6129
  %v6572 = vadd.f32 %v4932, %v6131
  %v6573 = vadd.f32 %v4933, %v6135
  %v6574 = vadd.f32 %v4934, %v6137
  %v6575 = vadd.f32 %v4935, %v6141
  %v6576 = vadd.f32 %v4936, %v6143
  %v6577 = vadd.f32 %v4937, %v6147
  %v6578 = vadd.f32 %v4938, %v6149
  %v6579 = vadd.f32 %v4939, %v6153
  %v6580 = vadd.f32 %v4940, %v6155
  %v6581 = vadd.f32 %v4941, %v6159
  %v6582 = vadd.f32 %v4942, %v6161
  %v6583 = vadd.f32 %v4943, %v6165
  %v6584 = vadd.f32 %v4944, %v6167
  %v6585 = vadd.f32 %v4945, %v6171
  %v6586 = vadd.f32 %v4946, %v6173
  %v6587 = vadd.f32 %v4947, %v6177
  %v6588 = vadd.f32 %v4948, %v6179
  %v6589 = vadd.f32 %v4949, %v6183
  %v6590 = vadd.f32 %v4950, %v6185
  %v6591 = vadd.f32 %v4951, %v6189
  %v6592 = vadd.f32 %v4952, %v6191
  %v6593 = vadd.f32 %v4953, %v6195
  %v6594 = vadd.f32 %v4954, %v6197
  %v6595 = vadd.f32 %v4955, %v6201
  %v6596 = vadd.f32 %v4956, %v6203
  %v6597 = vadd.f32 %v4957, %v6207
  %v6598 = vadd.f32 %v4958, %v6209
  %v6599 = vadd.f32 %v4959, %v6213
  %v6600 = vadd.f32 %v4960, %v6215
  %s6601 = scalar_lea.vmem %s1, 256
  %v6602 = vld [vmem:[%s6601] sm:$0xff]
  %v6603 = vld [vmem:[%s6601 + $0x8] sm:$0xff]
  %v6604 = vld [vmem:[%s6601 + $0x10] sm:$0xff]
  %v6605 = vld [vmem:[%s6601 + $0x18] sm:$0xff]
  %v6606 = vld [vmem:[%s6601 + $0x20] sm:$0xff]
  %v6607 = vld [vmem:[%s6601 + $0x28] sm:$0xff]
  %v6608 = vld [vmem:[%s6601 + $0x30] sm:$0xf]
  %v6609 = vld [vmem:[%s6601 + $0x38] sm:$0xf]
  %v6611 = vsel %vm273, %v248, 0
  %v6614 = vsel %vm273, %v249, 0
  %v6617 = vsel %vm273, %v250, 0
  %v6620 = vsel %vm273, %v251, 0
  %v6623 = vsel %vm273, %v252, 0
  %v6626 = vsel %vm273, %v253, 0
  %v6629 = vsel %vm273, %v254, 0
  %v6632 = vsel %vm273, %v255, 0
  %v6635 = vsel %vm850, %v6608, 0
  %v6638 = vsel %vm850, %v6609, 0
  %6640 = vmatprep.subr.mxu0 0.0
  %6641 = vmatpush1.msra.mxu0 0.0
  %6642 = vmatprep.subr.mxu0 0.0
  %6643 = vmatpush1.msra.mxu0 0.0
  %6644 = vmatprep.subr.mxu0 0.0
  %6645 = vmatpush1.msra.mxu0 0.0
  %6646 = vmatprep.subr.mxu0 0.0
  %6647 = vmatpush1.msra.mxu0 0.0
  %6648 = vmatprep.subr.mxu0 0.0
  %6649 = vmatpush1.msra.mxu0 0.0
  %6650 = vmatprep.subr.mxu0 0.0
  %6651 = vmatpush1.msra.mxu0 0.0
  %6652 = vmatprep.subr.mxu0 0.0
  %6653 = vmatpush1.msra.mxu0 0.0
  %6654 = vmatprep.subr.mxu0 0.0
  %6655 = vmatpush1.msra.mxu0 0.0
  %6656 = vmatprep.subr.mxu0 0.0
  %6657 = vmatpush1.msra.mxu0 0.0
  %6658 = vmatprep.subr.mxu0 0.0
  %6659 = vmatpush1.msra.mxu0 0.0
  %6660 = vmatprep.subr.mxu0 0.0
  %6661 = vmatpush1.msra.mxu0 0.0
  %6662 = vmatprep.subr.mxu0 0.0
  %6663 = vmatpush1.msra.mxu0 0.0
  %6664 = vmatprep.subr.mxu0 %v6638
  %6665 = vmatpush1.msra.mxu0 %v6635
  %6666 = vmatprep.subr.mxu0 %v6607
  %6667 = vmatpush1.msra.mxu0 %v6606
  %6668 = vmatprep.subr.mxu0 %v6605
  %6669 = vmatpush1.msra.mxu0 %v6604
  %6670 = vmatprep.subr.mxu0 %v6603
  %6671 = vmatpush1.msra.mxu0 %v6602
  %6672 = vmatprep.subr.mxu0 0.0
  %6673 = vmatpush2.msra.mxu0 0.0
  %6674 = vmatprep.subr.mxu0 0.0
  %6675 = vmatpush2.msra.mxu0 0.0
  %6676 = vmatprep.subr.mxu0 0.0
  %6677 = vmatpush2.msra.mxu0 0.0
  %6678 = vmatprep.subr.mxu0 0.0
  %6679 = vmatpush2.msra.mxu0 0.0
  %6680 = vmatprep.subr.mxu0 0.0
  %6681 = vmatpush2.msra.mxu0 0.0
  %6682 = vmatprep.subr.mxu0 0.0
  %6683 = vmatpush2.msra.mxu0 0.0
  %6684 = vmatprep.subr.mxu0 0.0
  %6685 = vmatpush2.msra.mxu0 0.0
  %6686 = vmatprep.subr.mxu0 0.0
  %6687 = vmatpush2.msra.mxu0 0.0
  %6688 = vmatprep.subr.mxu0 0.0
  %6689 = vmatpush2.msra.mxu0 0.0
  %6690 = vmatprep.subr.mxu0 0.0
  %6691 = vmatpush2.msra.mxu0 0.0
  %6692 = vmatprep.subr.mxu0 0.0
  %6693 = vmatpush2.msra.mxu0 0.0
  %6694 = vmatprep.subr.mxu0 0.0
  %6695 = vmatpush2.msra.mxu0 0.0
  %6696 = vmatprep.subr.mxu0 0.0
  %6697 = vmatpush2.msra.mxu0 0.0
  %6698 = vmatprep.subr.mxu0 0.0
  %6699 = vmatpush2.msra.mxu0 0.0
  %6700 = vmatprep.subr.mxu0 0.0
  %6701 = vmatpush2.msra.mxu0 0.0
  %6702 = vmatprep.subr.mxu0 0.0
  %6703 = vmatpush2.msra.mxu0 0.0
  %6704 = vmatprep.mubr.f32.mxu0 0.0
  %6705 = vmatmul.mubr.f32.gmra.mxu0 %v347
  %v6706 = vpop.f32.mrf.mxu0
  %v6707 = vadd.f32 0.0, %v6706
  %v6708 = vpop.f32.mrf.mxu0
  %v6709 = vadd.f32 0.0, %v6708
  %6710 = vmatprep.mubr.f32.mxu0 0.0
  %6711 = vmatmul.mubr.f32.gmra.mxu0 %v350
  %v6712 = vpop.f32.mrf.mxu0
  %v6713 = vadd.f32 0.0, %v6712
  %v6714 = vpop.f32.mrf.mxu0
  %v6715 = vadd.f32 0.0, %v6714
  %6716 = vmatprep.mubr.f32.mxu0 0.0
  %6717 = vmatmul.mubr.f32.gmra.mxu0 %v353
  %v6718 = vpop.f32.mrf.mxu0
  %v6719 = vadd.f32 0.0, %v6718
  %v6720 = vpop.f32.mrf.mxu0
  %v6721 = vadd.f32 0.0, %v6720
  %6722 = vmatprep.mubr.f32.mxu0 0.0
  %6723 = vmatmul.mubr.f32.gmra.mxu0 %v356
  %v6724 = vpop.f32.mrf.mxu0
  %v6725 = vadd.f32 0.0, %v6724
  %v6726 = vpop.f32.mrf.mxu0
  %v6727 = vadd.f32 0.0, %v6726
  %6728 = vmatprep.mubr.f32.mxu0 0.0
  %6729 = vmatmul.mubr.f32.gmra.mxu0 %v359
  %v6730 = vpop.f32.mrf.mxu0
  %v6731 = vadd.f32 0.0, %v6730
  %v6732 = vpop.f32.mrf.mxu0
  %v6733 = vadd.f32 0.0, %v6732
  %6734 = vmatprep.mubr.f32.mxu0 0.0
  %6735 = vmatmul.mubr.f32.gmra.mxu0 %v362
  %v6736 = vpop.f32.mrf.mxu0
  %v6737 = vadd.f32 0.0, %v6736
  %v6738 = vpop.f32.mrf.mxu0
  %v6739 = vadd.f32 0.0, %v6738
  %6740 = vmatprep.mubr.f32.mxu0 0.0
  %6741 = vmatmul.mubr.f32.gmra.mxu0 %v365
  %v6742 = vpop.f32.mrf.mxu0
  %v6743 = vadd.f32 0.0, %v6742
  %v6744 = vpop.f32.mrf.mxu0
  %v6745 = vadd.f32 0.0, %v6744
  %6746 = vmatprep.mubr.f32.mxu0 0.0
  %6747 = vmatmul.mubr.f32.gmra.mxu0 %v368
  %v6748 = vpop.f32.mrf.mxu0
  %v6749 = vadd.f32 0.0, %v6748
  %v6750 = vpop.f32.mrf.mxu0
  %v6751 = vadd.f32 0.0, %v6750
  %6752 = vmatprep.mubr.f32.mxu0 0.0
  %6753 = vmatmul.mubr.f32.gmra.mxu0 %v371
  %v6754 = vpop.f32.mrf.mxu0
  %v6755 = vadd.f32 0.0, %v6754
  %v6756 = vpop.f32.mrf.mxu0
  %v6757 = vadd.f32 0.0, %v6756
  %6758 = vmatprep.mubr.f32.mxu0 0.0
  %6759 = vmatmul.mubr.f32.gmra.mxu0 %v374
  %v6760 = vpop.f32.mrf.mxu0
  %v6761 = vadd.f32 0.0, %v6760
  %v6762 = vpop.f32.mrf.mxu0
  %v6763 = vadd.f32 0.0, %v6762
  %6764 = vmatprep.mubr.f32.mxu0 0.0
  %6765 = vmatmul.mubr.f32.gmra.mxu0 %v377
  %v6766 = vpop.f32.mrf.mxu0
  %v6767 = vadd.f32 0.0, %v6766
  %v6768 = vpop.f32.mrf.mxu0
  %v6769 = vadd.f32 0.0, %v6768
  %6770 = vmatprep.mubr.f32.mxu0 0.0
  %6771 = vmatmul.mubr.f32.gmra.mxu0 %v380
  %v6772 = vpop.f32.mrf.mxu0
  %v6773 = vadd.f32 0.0, %v6772
  %v6774 = vpop.f32.mrf.mxu0
  %v6775 = vadd.f32 0.0, %v6774
  %6776 = vmatprep.mubr.f32.mxu0 0.0
  %6777 = vmatmul.mubr.f32.gmra.mxu0 %v383
  %v6778 = vpop.f32.mrf.mxu0
  %v6779 = vadd.f32 0.0, %v6778
  %v6780 = vpop.f32.mrf.mxu0
  %v6781 = vadd.f32 0.0, %v6780
  %6782 = vmatprep.mubr.f32.mxu0 0.0
  %6783 = vmatmul.mubr.f32.gmra.mxu0 %v386
  %v6784 = vpop.f32.mrf.mxu0
  %v6785 = vadd.f32 0.0, %v6784
  %v6786 = vpop.f32.mrf.mxu0
  %v6787 = vadd.f32 0.0, %v6786
  %6788 = vmatprep.mubr.f32.mxu0 0.0
  %6789 = vmatmul.mubr.f32.gmra.mxu0 %v389
  %v6790 = vpop.f32.mrf.mxu0
  %v6791 = vadd.f32 0.0, %v6790
  %v6792 = vpop.f32.mrf.mxu0
  %v6793 = vadd.f32 0.0, %v6792
  %6794 = vmatprep.mubr.f32.mxu0 0.0
  %6795 = vmatmul.mubr.f32.gmra.mxu0 %v392
  %v6796 = vpop.f32.mrf.mxu0
  %v6797 = vadd.f32 0.0, %v6796
  %v6798 = vpop.f32.mrf.mxu0
  %v6799 = vadd.f32 0.0, %v6798
  %6800 = vmatprep.mubr.f32.mxu0 0.0
  %6801 = vmatmul.mubr.f32.gmra.mxu0 %v395
  %v6802 = vpop.f32.mrf.mxu0
  %v6803 = vadd.f32 0.0, %v6802
  %v6804 = vpop.f32.mrf.mxu0
  %v6805 = vadd.f32 0.0, %v6804
  %6806 = vmatprep.mubr.f32.mxu0 0.0
  %6807 = vmatmul.mubr.f32.gmra.mxu0 %v398
  %v6808 = vpop.f32.mrf.mxu0
  %v6809 = vadd.f32 0.0, %v6808
  %v6810 = vpop.f32.mrf.mxu0
  %v6811 = vadd.f32 0.0, %v6810
  %6812 = vmatprep.mubr.f32.mxu0 0.0
  %6813 = vmatmul.mubr.f32.gmra.mxu0 %v401
  %v6814 = vpop.f32.mrf.mxu0
  %v6815 = vadd.f32 0.0, %v6814
  %v6816 = vpop.f32.mrf.mxu0
  %v6817 = vadd.f32 0.0, %v6816
  %6818 = vmatprep.mubr.f32.mxu0 0.0
  %6819 = vmatmul.mubr.f32.gmra.mxu0 %v404
  %v6820 = vpop.f32.mrf.mxu0
  %v6821 = vadd.f32 0.0, %v6820
  %v6822 = vpop.f32.mrf.mxu0
  %v6823 = vadd.f32 0.0, %v6822
  %6824 = vmatprep.mubr.f32.mxu0 0.0
  %6825 = vmatmul.mubr.f32.gmra.mxu0 %v407
  %v6826 = vpop.f32.mrf.mxu0
  %v6827 = vadd.f32 0.0, %v6826
  %v6828 = vpop.f32.mrf.mxu0
  %v6829 = vadd.f32 0.0, %v6828
  %6830 = vmatprep.mubr.f32.mxu0 0.0
  %6831 = vmatmul.mubr.f32.gmra.mxu0 %v410
  %v6832 = vpop.f32.mrf.mxu0
  %v6833 = vadd.f32 0.0, %v6832
  %v6834 = vpop.f32.mrf.mxu0
  %v6835 = vadd.f32 0.0, %v6834
  %6836 = vmatprep.mubr.f32.mxu0 0.0
  %6837 = vmatmul.mubr.f32.gmra.mxu0 %v413
  %v6838 = vpop.f32.mrf.mxu0
  %v6839 = vadd.f32 0.0, %v6838
  %v6840 = vpop.f32.mrf.mxu0
  %v6841 = vadd.f32 0.0, %v6840
  %6842 = vmatprep.mubr.f32.mxu0 0.0
  %6843 = vmatmul.mubr.f32.gmra.mxu0 %v416
  %v6844 = vpop.f32.mrf.mxu0
  %v6845 = vadd.f32 0.0, %v6844
  %v6846 = vpop.f32.mrf.mxu0
  %v6847 = vadd.f32 0.0, %v6846
  %6848 = vmatprep.mubr.f32.mxu0 0.0
  %6849 = vmatmul.mubr.f32.gmra.mxu0 %v419
  %v6850 = vpop.f32.mrf.mxu0
  %v6851 = vadd.f32 0.0, %v6850
  %v6852 = vpop.f32.mrf.mxu0
  %v6853 = vadd.f32 0.0, %v6852
  %6854 = vmatprep.mubr.f32.mxu0 0.0
  %6855 = vmatmul.mubr.f32.gmra.mxu0 %v422
  %v6856 = vpop.f32.mrf.mxu0
  %v6857 = vadd.f32 0.0, %v6856
  %v6858 = vpop.f32.mrf.mxu0
  %v6859 = vadd.f32 0.0, %v6858
  %6860 = vmatprep.mubr.f32.mxu0 0.0
  %6861 = vmatmul.mubr.f32.gmra.mxu0 %v425
  %v6862 = vpop.f32.mrf.mxu0
  %v6863 = vadd.f32 0.0, %v6862
  %v6864 = vpop.f32.mrf.mxu0
  %v6865 = vadd.f32 0.0, %v6864
  %6866 = vmatprep.mubr.f32.mxu0 0.0
  %6867 = vmatmul.mubr.f32.gmra.mxu0 %v428
  %v6868 = vpop.f32.mrf.mxu0
  %v6869 = vadd.f32 0.0, %v6868
  %v6870 = vpop.f32.mrf.mxu0
  %v6871 = vadd.f32 0.0, %v6870
  %6872 = vmatprep.mubr.f32.mxu0 0.0
  %6873 = vmatmul.mubr.f32.gmra.mxu0 %v431
  %v6874 = vpop.f32.mrf.mxu0
  %v6875 = vadd.f32 0.0, %v6874
  %v6876 = vpop.f32.mrf.mxu0
  %v6877 = vadd.f32 0.0, %v6876
  %6878 = vmatprep.mubr.f32.mxu0 0.0
  %6879 = vmatmul.mubr.f32.gmra.mxu0 %v434
  %v6880 = vpop.f32.mrf.mxu0
  %v6881 = vadd.f32 0.0, %v6880
  %v6882 = vpop.f32.mrf.mxu0
  %v6883 = vadd.f32 0.0, %v6882
  %6884 = vmatprep.mubr.f32.mxu0 0.0
  %6885 = vmatmul.mubr.f32.gmra.mxu0 %v437
  %v6886 = vpop.f32.mrf.mxu0
  %v6887 = vadd.f32 0.0, %v6886
  %v6888 = vpop.f32.mrf.mxu0
  %v6889 = vadd.f32 0.0, %v6888
  %6890 = vmatprep.mubr.f32.mxu0 0.0
  %6891 = vmatmul.mubr.f32.gmra.mxu0 %v440
  %v6892 = vpop.f32.mrf.mxu0
  %v6893 = vadd.f32 0.0, %v6892
  %v6894 = vpop.f32.mrf.mxu0
  %v6895 = vadd.f32 0.0, %v6894
  %6896 = vmatprep.mubr.f32.mxu0 0.0
  %6897 = vmatmul.mubr.f32.gmra.mxu0 %v443
  %v6898 = vpop.f32.mrf.mxu0
  %v6899 = vadd.f32 0.0, %v6898
  %v6900 = vpop.f32.mrf.mxu0
  %v6901 = vadd.f32 0.0, %v6900
  %6902 = vmatprep.mubr.f32.mxu0 0.0
  %6903 = vmatmul.mubr.f32.gmra.mxu0 %v446
  %v6904 = vpop.f32.mrf.mxu0
  %v6905 = vadd.f32 0.0, %v6904
  %v6906 = vpop.f32.mrf.mxu0
  %v6907 = vadd.f32 0.0, %v6906
  %6908 = vmatprep.mubr.f32.mxu0 0.0
  %6909 = vmatmul.mubr.f32.gmra.mxu0 %v449
  %v6910 = vpop.f32.mrf.mxu0
  %v6911 = vadd.f32 0.0, %v6910
  %v6912 = vpop.f32.mrf.mxu0
  %v6913 = vadd.f32 0.0, %v6912
  %6914 = vmatprep.mubr.f32.mxu0 0.0
  %6915 = vmatmul.mubr.f32.gmra.mxu0 %v452
  %v6916 = vpop.f32.mrf.mxu0
  %v6917 = vadd.f32 0.0, %v6916
  %v6918 = vpop.f32.mrf.mxu0
  %v6919 = vadd.f32 0.0, %v6918
  %6920 = vmatprep.mubr.f32.mxu0 0.0
  %6921 = vmatmul.mubr.f32.gmra.mxu0 %v455
  %v6922 = vpop.f32.mrf.mxu0
  %v6923 = vadd.f32 0.0, %v6922
  %v6924 = vpop.f32.mrf.mxu0
  %v6925 = vadd.f32 0.0, %v6924
  %6926 = vmatprep.mubr.f32.mxu0 0.0
  %6927 = vmatmul.mubr.f32.gmra.mxu0 %v458
  %v6928 = vpop.f32.mrf.mxu0
  %v6929 = vadd.f32 0.0, %v6928
  %v6930 = vpop.f32.mrf.mxu0
  %v6931 = vadd.f32 0.0, %v6930
  %6932 = vmatprep.mubr.f32.mxu0 0.0
  %6933 = vmatmul.mubr.f32.gmra.mxu0 %v461
  %v6934 = vpop.f32.mrf.mxu0
  %v6935 = vadd.f32 0.0, %v6934
  %v6936 = vpop.f32.mrf.mxu0
  %v6937 = vadd.f32 0.0, %v6936
  %6938 = vmatprep.mubr.f32.mxu0 0.0
  %6939 = vmatmul.mubr.f32.gmra.mxu0 %v464
  %v6940 = vpop.f32.mrf.mxu0
  %v6941 = vadd.f32 0.0, %v6940
  %v6942 = vpop.f32.mrf.mxu0
  %v6943 = vadd.f32 0.0, %v6942
  %6944 = vmatprep.mubr.f32.mxu0 0.0
  %6945 = vmatmul.mubr.f32.gmra.mxu0 %v467
  %v6946 = vpop.f32.mrf.mxu0
  %v6947 = vadd.f32 0.0, %v6946
  %v6948 = vpop.f32.mrf.mxu0
  %v6949 = vadd.f32 0.0, %v6948
  %6950 = vmatprep.mubr.f32.mxu0 0.0
  %6951 = vmatmul.mubr.f32.gmra.mxu0 %v470
  %v6952 = vpop.f32.mrf.mxu0
  %v6953 = vadd.f32 0.0, %v6952
  %v6954 = vpop.f32.mrf.mxu0
  %v6955 = vadd.f32 0.0, %v6954
  %6956 = vmatprep.mubr.f32.mxu0 0.0
  %6957 = vmatmul.mubr.f32.gmra.mxu0 %v473
  %v6958 = vpop.f32.mrf.mxu0
  %v6959 = vadd.f32 0.0, %v6958
  %v6960 = vpop.f32.mrf.mxu0
  %v6961 = vadd.f32 0.0, %v6960
  %6962 = vmatprep.mubr.f32.mxu0 0.0
  %6963 = vmatmul.mubr.f32.gmra.mxu0 %v476
  %v6964 = vpop.f32.mrf.mxu0
  %v6965 = vadd.f32 0.0, %v6964
  %v6966 = vpop.f32.mrf.mxu0
  %v6967 = vadd.f32 0.0, %v6966
  %6968 = vmatprep.mubr.f32.mxu0 0.0
  %6969 = vmatmul.mubr.f32.gmra.mxu0 %v479
  %v6970 = vpop.f32.mrf.mxu0
  %v6971 = vadd.f32 0.0, %v6970
  %v6972 = vpop.f32.mrf.mxu0
  %v6973 = vadd.f32 0.0, %v6972
  %6974 = vmatprep.mubr.f32.mxu0 0.0
  %6975 = vmatmul.mubr.f32.gmra.mxu0 %v482
  %v6976 = vpop.f32.mrf.mxu0
  %v6977 = vadd.f32 0.0, %v6976
  %v6978 = vpop.f32.mrf.mxu0
  %v6979 = vadd.f32 0.0, %v6978
  %6980 = vmatprep.mubr.f32.mxu0 0.0
  %6981 = vmatmul.mubr.f32.gmra.mxu0 %v485
  %v6982 = vpop.f32.mrf.mxu0
  %v6983 = vadd.f32 0.0, %v6982
  %v6984 = vpop.f32.mrf.mxu0
  %v6985 = vadd.f32 0.0, %v6984
  %6986 = vmatprep.mubr.f32.mxu0 0.0
  %6987 = vmatmul.mubr.f32.gmra.mxu0 %v488
  %v6988 = vpop.f32.mrf.mxu0
  %v6989 = vadd.f32 0.0, %v6988
  %v6990 = vpop.f32.mrf.mxu0
  %v6991 = vadd.f32 0.0, %v6990
  %6992 = vmatprep.mubr.f32.mxu0 0.0
  %6993 = vmatmul.mubr.f32.gmra.mxu0 %v491
  %v6994 = vpop.f32.mrf.mxu0
  %v6995 = vadd.f32 0.0, %v6994
  %v6996 = vpop.f32.mrf.mxu0
  %v6997 = vadd.f32 0.0, %v6996
  %6998 = vmatprep.mubr.f32.mxu0 0.0
  %6999 = vmatmul.mubr.f32.gmra.mxu0 %v494
  %v7000 = vpop.f32.mrf.mxu0
  %v7001 = vadd.f32 0.0, %v7000
  %v7002 = vpop.f32.mrf.mxu0
  %v7003 = vadd.f32 0.0, %v7002
  %7004 = vmatprep.mubr.f32.mxu0 0.0
  %7005 = vmatmul.mubr.f32.gmra.mxu0 %v497
  %v7006 = vpop.f32.mrf.mxu0
  %v7007 = vadd.f32 0.0, %v7006
  %v7008 = vpop.f32.mrf.mxu0
  %v7009 = vadd.f32 0.0, %v7008
  %7010 = vmatprep.mubr.f32.mxu0 0.0
  %7011 = vmatmul.mubr.f32.gmra.mxu0 %v500
  %v7012 = vpop.f32.mrf.mxu0
  %v7013 = vadd.f32 0.0, %v7012
  %v7014 = vpop.f32.mrf.mxu0
  %v7015 = vadd.f32 0.0, %v7014
  %7016 = vmatprep.mubr.f32.mxu0 0.0
  %7017 = vmatmul.mubr.f32.gmra.mxu0 %v503
  %v7018 = vpop.f32.mrf.mxu0
  %v7019 = vadd.f32 0.0, %v7018
  %v7020 = vpop.f32.mrf.mxu0
  %v7021 = vadd.f32 0.0, %v7020
  %7022 = vmatprep.mubr.f32.mxu0 0.0
  %7023 = vmatmul.mubr.f32.gmra.mxu0 %v506
  %v7024 = vpop.f32.mrf.mxu0
  %v7025 = vadd.f32 0.0, %v7024
  %v7026 = vpop.f32.mrf.mxu0
  %v7027 = vadd.f32 0.0, %v7026
  %7028 = vmatprep.mubr.f32.mxu0 0.0
  %7029 = vmatmul.mubr.f32.gmra.mxu0 %v509
  %v7030 = vpop.f32.mrf.mxu0
  %v7031 = vadd.f32 0.0, %v7030
  %v7032 = vpop.f32.mrf.mxu0
  %v7033 = vadd.f32 0.0, %v7032
  %7034 = vmatprep.mubr.f32.mxu0 0.0
  %7035 = vmatmul.mubr.f32.gmra.mxu0 %v512
  %v7036 = vpop.f32.mrf.mxu0
  %v7037 = vadd.f32 0.0, %v7036
  %v7038 = vpop.f32.mrf.mxu0
  %v7039 = vadd.f32 0.0, %v7038
  %7040 = vmatprep.mubr.f32.mxu0 0.0
  %7041 = vmatmul.mubr.f32.gmra.mxu0 %v515
  %v7042 = vpop.f32.mrf.mxu0
  %v7043 = vadd.f32 0.0, %v7042
  %v7044 = vpop.f32.mrf.mxu0
  %v7045 = vadd.f32 0.0, %v7044
  %7046 = vmatprep.mubr.f32.mxu0 0.0
  %7047 = vmatmul.mubr.f32.gmra.mxu0 %v518
  %v7048 = vpop.f32.mrf.mxu0
  %v7049 = vadd.f32 0.0, %v7048
  %v7050 = vpop.f32.mrf.mxu0
  %v7051 = vadd.f32 0.0, %v7050
  %7052 = vmatprep.mubr.f32.mxu0 0.0
  %7053 = vmatmul.mubr.f32.gmra.mxu0 %v521
  %v7054 = vpop.f32.mrf.mxu0
  %v7055 = vadd.f32 0.0, %v7054
  %v7056 = vpop.f32.mrf.mxu0
  %v7057 = vadd.f32 0.0, %v7056
  %7058 = vmatprep.mubr.f32.mxu0 0.0
  %7059 = vmatmul.mubr.f32.gmra.mxu0 %v524
  %v7060 = vpop.f32.mrf.mxu0
  %v7061 = vadd.f32 0.0, %v7060
  %v7062 = vpop.f32.mrf.mxu0
  %v7063 = vadd.f32 0.0, %v7062
  %7064 = vmatprep.mubr.f32.mxu0 0.0
  %7065 = vmatmul.mubr.f32.gmra.mxu0 %v527
  %v7066 = vpop.f32.mrf.mxu0
  %v7067 = vadd.f32 0.0, %v7066
  %v7068 = vpop.f32.mrf.mxu0
  %v7069 = vadd.f32 0.0, %v7068
  %7070 = vmatprep.mubr.f32.mxu0 0.0
  %7071 = vmatmul.mubr.f32.gmra.mxu0 %v530
  %v7072 = vpop.f32.mrf.mxu0
  %v7073 = vadd.f32 0.0, %v7072
  %v7074 = vpop.f32.mrf.mxu0
  %v7075 = vadd.f32 0.0, %v7074
  %7076 = vmatprep.mubr.f32.mxu0 0.0
  %7077 = vmatmul.mubr.f32.gmra.mxu0 %v533
  %v7078 = vpop.f32.mrf.mxu0
  %v7079 = vadd.f32 0.0, %v7078
  %v7080 = vpop.f32.mrf.mxu0
  %v7081 = vadd.f32 0.0, %v7080
  %7082 = vmatprep.mubr.f32.mxu0 0.0
  %7083 = vmatmul.mubr.f32.gmra.mxu0 %v536
  %v7084 = vpop.f32.mrf.mxu0
  %v7085 = vadd.f32 0.0, %v7084
  %v7086 = vpop.f32.mrf.mxu0
  %v7087 = vadd.f32 0.0, %v7086
  %7088 = vmatprep.mubr.f32.mxu0 0.0
  %7089 = vmatmul.mubr.f32.gmra.mxu0 %v539
  %v7090 = vpop.f32.mrf.mxu0
  %v7091 = vadd.f32 0.0, %v7090
  %v7092 = vpop.f32.mrf.mxu0
  %v7093 = vadd.f32 0.0, %v7092
  %7094 = vmatprep.mubr.f32.mxu0 0.0
  %7095 = vmatmul.mubr.f32.gmra.mxu0 %v542
  %v7096 = vpop.f32.mrf.mxu0
  %v7097 = vadd.f32 0.0, %v7096
  %v7098 = vpop.f32.mrf.mxu0
  %v7099 = vadd.f32 0.0, %v7098
  %7100 = vmatprep.mubr.f32.mxu0 0.0
  %7101 = vmatmul.mubr.f32.gmra.mxu0 %v545
  %v7102 = vpop.f32.mrf.mxu0
  %v7103 = vadd.f32 0.0, %v7102
  %v7104 = vpop.f32.mrf.mxu0
  %v7105 = vadd.f32 0.0, %v7104
  %7106 = vmatprep.mubr.f32.mxu0 0.0
  %7107 = vmatmul.mubr.f32.gmra.mxu0 %v548
  %v7108 = vpop.f32.mrf.mxu0
  %v7109 = vadd.f32 0.0, %v7108
  %v7110 = vpop.f32.mrf.mxu0
  %v7111 = vadd.f32 0.0, %v7110
  %7112 = vmatprep.mubr.f32.mxu0 0.0
  %7113 = vmatmul.mubr.f32.gmra.mxu0 %v551
  %v7114 = vpop.f32.mrf.mxu0
  %v7115 = vadd.f32 0.0, %v7114
  %v7116 = vpop.f32.mrf.mxu0
  %v7117 = vadd.f32 0.0, %v7116
  %7118 = vmatprep.mubr.f32.mxu0 0.0
  %7119 = vmatmul.mubr.f32.gmra.mxu0 %v554
  %v7120 = vpop.f32.mrf.mxu0
  %v7121 = vadd.f32 0.0, %v7120
  %v7122 = vpop.f32.mrf.mxu0
  %v7123 = vadd.f32 0.0, %v7122
  %7124 = vmatprep.mubr.f32.mxu0 0.0
  %7125 = vmatmul.mubr.f32.gmra.mxu0 %v557
  %v7126 = vpop.f32.mrf.mxu0
  %v7127 = vadd.f32 0.0, %v7126
  %v7128 = vpop.f32.mrf.mxu0
  %v7129 = vadd.f32 0.0, %v7128
  %7130 = vmatprep.mubr.f32.mxu0 0.0
  %7131 = vmatmul.mubr.f32.gmra.mxu0 %v560
  %v7132 = vpop.f32.mrf.mxu0
  %v7133 = vadd.f32 0.0, %v7132
  %v7134 = vpop.f32.mrf.mxu0
  %v7135 = vadd.f32 0.0, %v7134
  %7136 = vmatprep.mubr.f32.mxu0 0.0
  %7137 = vmatmul.mubr.f32.gmra.mxu0 %v563
  %v7138 = vpop.f32.mrf.mxu0
  %v7139 = vadd.f32 0.0, %v7138
  %v7140 = vpop.f32.mrf.mxu0
  %v7141 = vadd.f32 0.0, %v7140
  %7142 = vmatprep.mubr.f32.mxu0 0.0
  %7143 = vmatmul.mubr.f32.gmra.mxu0 %v566
  %v7144 = vpop.f32.mrf.mxu0
  %v7145 = vadd.f32 0.0, %v7144
  %v7146 = vpop.f32.mrf.mxu0
  %v7147 = vadd.f32 0.0, %v7146
  %7148 = vmatprep.mubr.f32.mxu0 0.0
  %7149 = vmatmul.mubr.f32.gmra.mxu0 %v569
  %v7150 = vpop.f32.mrf.mxu0
  %v7151 = vadd.f32 0.0, %v7150
  %v7152 = vpop.f32.mrf.mxu0
  %v7153 = vadd.f32 0.0, %v7152
  %7154 = vmatprep.mubr.f32.mxu0 0.0
  %7155 = vmatmul.mubr.f32.gmra.mxu0 %v572
  %v7156 = vpop.f32.mrf.mxu0
  %v7157 = vadd.f32 0.0, %v7156
  %v7158 = vpop.f32.mrf.mxu0
  %v7159 = vadd.f32 0.0, %v7158
  %7160 = vmatprep.mubr.f32.mxu0 0.0
  %7161 = vmatmul.mubr.f32.gmra.mxu0 %v575
  %v7162 = vpop.f32.mrf.mxu0
  %v7163 = vadd.f32 0.0, %v7162
  %v7164 = vpop.f32.mrf.mxu0
  %v7165 = vadd.f32 0.0, %v7164
  %7166 = vmatprep.mubr.f32.mxu0 0.0
  %7167 = vmatmul.mubr.f32.gmra.mxu0 %v578
  %v7168 = vpop.f32.mrf.mxu0
  %v7169 = vadd.f32 0.0, %v7168
  %v7170 = vpop.f32.mrf.mxu0
  %v7171 = vadd.f32 0.0, %v7170
  %7172 = vmatprep.mubr.f32.mxu0 0.0
  %7173 = vmatmul.mubr.f32.gmra.mxu0 %v581
  %v7174 = vpop.f32.mrf.mxu0
  %v7175 = vadd.f32 0.0, %v7174
  %v7176 = vpop.f32.mrf.mxu0
  %v7177 = vadd.f32 0.0, %v7176
  %7178 = vmatprep.mubr.f32.mxu0 0.0
  %7179 = vmatmul.mubr.f32.gmra.mxu0 %v584
  %v7180 = vpop.f32.mrf.mxu0
  %v7181 = vadd.f32 0.0, %v7180
  %v7182 = vpop.f32.mrf.mxu0
  %v7183 = vadd.f32 0.0, %v7182
  %7184 = vmatprep.mubr.f32.mxu0 0.0
  %7185 = vmatmul.mubr.f32.gmra.mxu0 %v587
  %v7186 = vpop.f32.mrf.mxu0
  %v7187 = vadd.f32 0.0, %v7186
  %v7188 = vpop.f32.mrf.mxu0
  %v7189 = vadd.f32 0.0, %v7188
  %7190 = vmatprep.mubr.f32.mxu0 0.0
  %7191 = vmatmul.mubr.f32.gmra.mxu0 %v590
  %v7192 = vpop.f32.mrf.mxu0
  %v7193 = vadd.f32 0.0, %v7192
  %v7194 = vpop.f32.mrf.mxu0
  %v7195 = vadd.f32 0.0, %v7194
  %7196 = vmatprep.mubr.f32.mxu0 0.0
  %7197 = vmatmul.mubr.f32.gmra.mxu0 %v593
  %v7198 = vpop.f32.mrf.mxu0
  %v7199 = vadd.f32 0.0, %v7198
  %v7200 = vpop.f32.mrf.mxu0
  %v7201 = vadd.f32 0.0, %v7200
  %7202 = vmatprep.mubr.f32.mxu0 0.0
  %7203 = vmatmul.mubr.f32.gmra.mxu0 %v596
  %v7204 = vpop.f32.mrf.mxu0
  %v7205 = vadd.f32 0.0, %v7204
  %v7206 = vpop.f32.mrf.mxu0
  %v7207 = vadd.f32 0.0, %v7206
  %7208 = vmatprep.mubr.f32.mxu0 0.0
  %7209 = vmatmul.mubr.f32.gmra.mxu0 %v599
  %v7210 = vpop.f32.mrf.mxu0
  %v7211 = vadd.f32 0.0, %v7210
  %v7212 = vpop.f32.mrf.mxu0
  %v7213 = vadd.f32 0.0, %v7212
  %7214 = vmatprep.mubr.f32.mxu0 0.0
  %7215 = vmatmul.mubr.f32.gmra.mxu0 %v602
  %v7216 = vpop.f32.mrf.mxu0
  %v7217 = vadd.f32 0.0, %v7216
  %v7218 = vpop.f32.mrf.mxu0
  %v7219 = vadd.f32 0.0, %v7218
  %7220 = vmatprep.mubr.f32.mxu0 0.0
  %7221 = vmatmul.mubr.f32.gmra.mxu0 %v605
  %v7222 = vpop.f32.mrf.mxu0
  %v7223 = vadd.f32 0.0, %v7222
  %v7224 = vpop.f32.mrf.mxu0
  %v7225 = vadd.f32 0.0, %v7224
  %7226 = vmatprep.mubr.f32.mxu0 0.0
  %7227 = vmatmul.mubr.f32.gmra.mxu0 %v608
  %v7228 = vpop.f32.mrf.mxu0
  %v7229 = vadd.f32 0.0, %v7228
  %v7230 = vpop.f32.mrf.mxu0
  %v7231 = vadd.f32 0.0, %v7230
  %7232 = vmatprep.mubr.f32.mxu0 0.0
  %7233 = vmatmul.mubr.f32.gmra.mxu0 %v611
  %v7234 = vpop.f32.mrf.mxu0
  %v7235 = vadd.f32 0.0, %v7234
  %v7236 = vpop.f32.mrf.mxu0
  %v7237 = vadd.f32 0.0, %v7236
  %7238 = vmatprep.mubr.f32.mxu0 0.0
  %7239 = vmatmul.mubr.f32.gmra.mxu0 %v614
  %v7240 = vpop.f32.mrf.mxu0
  %v7241 = vadd.f32 0.0, %v7240
  %v7242 = vpop.f32.mrf.mxu0
  %v7243 = vadd.f32 0.0, %v7242
  %7244 = vmatprep.mubr.f32.mxu0 0.0
  %7245 = vmatmul.mubr.f32.gmra.mxu0 %v617
  %v7246 = vpop.f32.mrf.mxu0
  %v7247 = vadd.f32 0.0, %v7246
  %v7248 = vpop.f32.mrf.mxu0
  %v7249 = vadd.f32 0.0, %v7248
  %7250 = vmatprep.mubr.f32.mxu0 0.0
  %7251 = vmatmul.mubr.f32.gmra.mxu0 %v620
  %v7252 = vpop.f32.mrf.mxu0
  %v7253 = vadd.f32 0.0, %v7252
  %v7254 = vpop.f32.mrf.mxu0
  %v7255 = vadd.f32 0.0, %v7254
  %7256 = vmatprep.mubr.f32.mxu0 0.0
  %7257 = vmatmul.mubr.f32.gmra.mxu0 %v623
  %v7258 = vpop.f32.mrf.mxu0
  %v7259 = vadd.f32 0.0, %v7258
  %v7260 = vpop.f32.mrf.mxu0
  %v7261 = vadd.f32 0.0, %v7260
  %7262 = vmatprep.mubr.f32.mxu0 0.0
  %7263 = vmatmul.mubr.f32.gmra.mxu0 %v626
  %v7264 = vpop.f32.mrf.mxu0
  %v7265 = vadd.f32 0.0, %v7264
  %v7266 = vpop.f32.mrf.mxu0
  %v7267 = vadd.f32 0.0, %v7266
  %7268 = vmatprep.mubr.f32.mxu0 0.0
  %7269 = vmatmul.mubr.f32.gmra.mxu0 %v629
  %v7270 = vpop.f32.mrf.mxu0
  %v7271 = vadd.f32 0.0, %v7270
  %v7272 = vpop.f32.mrf.mxu0
  %v7273 = vadd.f32 0.0, %v7272
  %7274 = vmatprep.mubr.f32.mxu0 0.0
  %7275 = vmatmul.mubr.f32.gmra.mxu0 %v632
  %v7276 = vpop.f32.mrf.mxu0
  %v7277 = vadd.f32 0.0, %v7276
  %v7278 = vpop.f32.mrf.mxu0
  %v7279 = vadd.f32 0.0, %v7278
  %7280 = vmatprep.mubr.f32.mxu0 0.0
  %7281 = vmatmul.mubr.f32.gmra.mxu0 %v635
  %v7282 = vpop.f32.mrf.mxu0
  %v7283 = vadd.f32 0.0, %v7282
  %v7284 = vpop.f32.mrf.mxu0
  %v7285 = vadd.f32 0.0, %v7284
  %7286 = vmatprep.mubr.f32.mxu0 0.0
  %7287 = vmatmul.mubr.f32.gmra.mxu0 %v638
  %v7288 = vpop.f32.mrf.mxu0
  %v7289 = vadd.f32 0.0, %v7288
  %v7290 = vpop.f32.mrf.mxu0
  %v7291 = vadd.f32 0.0, %v7290
  %7292 = vmatprep.mubr.f32.mxu0 0.0
  %7293 = vmatmul.mubr.f32.gmra.mxu0 %v641
  %v7294 = vpop.f32.mrf.mxu0
  %v7295 = vadd.f32 0.0, %v7294
  %v7296 = vpop.f32.mrf.mxu0
  %v7297 = vadd.f32 0.0, %v7296
  %7298 = vmatprep.mubr.f32.mxu0 0.0
  %7299 = vmatmul.mubr.f32.gmra.mxu0 %v644
  %v7300 = vpop.f32.mrf.mxu0
  %v7301 = vadd.f32 0.0, %v7300
  %v7302 = vpop.f32.mrf.mxu0
  %v7303 = vadd.f32 0.0, %v7302
  %7304 = vmatprep.mubr.f32.mxu0 0.0
  %7305 = vmatmul.mubr.f32.gmra.mxu0 %v647
  %v7306 = vpop.f32.mrf.mxu0
  %v7307 = vadd.f32 0.0, %v7306
  %v7308 = vpop.f32.mrf.mxu0
  %v7309 = vadd.f32 0.0, %v7308
  %7310 = vmatprep.mubr.f32.mxu0 0.0
  %7311 = vmatmul.mubr.f32.gmra.mxu0 %v650
  %v7312 = vpop.f32.mrf.mxu0
  %v7313 = vadd.f32 0.0, %v7312
  %v7314 = vpop.f32.mrf.mxu0
  %v7315 = vadd.f32 0.0, %v7314
  %7316 = vmatprep.mubr.f32.mxu0 0.0
  %7317 = vmatmul.mubr.f32.gmra.mxu0 %v653
  %v7318 = vpop.f32.mrf.mxu0
  %v7319 = vadd.f32 0.0, %v7318
  %v7320 = vpop.f32.mrf.mxu0
  %v7321 = vadd.f32 0.0, %v7320
  %7322 = vmatprep.mubr.f32.mxu0 0.0
  %7323 = vmatmul.mubr.f32.gmra.mxu0 %v656
  %v7324 = vpop.f32.mrf.mxu0
  %v7325 = vadd.f32 0.0, %v7324
  %v7326 = vpop.f32.mrf.mxu0
  %v7327 = vadd.f32 0.0, %v7326
  %7328 = vmatprep.mubr.f32.mxu0 0.0
  %7329 = vmatmul.mubr.f32.gmra.mxu0 %v659
  %v7330 = vpop.f32.mrf.mxu0
  %v7331 = vadd.f32 0.0, %v7330
  %v7332 = vpop.f32.mrf.mxu0
  %v7333 = vadd.f32 0.0, %v7332
  %7334 = vmatprep.mubr.f32.mxu0 0.0
  %7335 = vmatmul.mubr.f32.gmra.mxu0 %v662
  %v7336 = vpop.f32.mrf.mxu0
  %v7337 = vadd.f32 0.0, %v7336
  %v7338 = vpop.f32.mrf.mxu0
  %v7339 = vadd.f32 0.0, %v7338
  %7340 = vmatprep.mubr.f32.mxu0 0.0
  %7341 = vmatmul.mubr.f32.gmra.mxu0 %v665
  %v7342 = vpop.f32.mrf.mxu0
  %v7343 = vadd.f32 0.0, %v7342
  %v7344 = vpop.f32.mrf.mxu0
  %v7345 = vadd.f32 0.0, %v7344
  %7346 = vmatprep.mubr.f32.mxu0 0.0
  %7347 = vmatmul.mubr.f32.gmra.mxu0 %v668
  %v7348 = vpop.f32.mrf.mxu0
  %v7349 = vadd.f32 0.0, %v7348
  %v7350 = vpop.f32.mrf.mxu0
  %v7351 = vadd.f32 0.0, %v7350
  %7352 = vmatprep.mubr.f32.mxu0 0.0
  %7353 = vmatmul.mubr.f32.gmra.mxu0 %v671
  %v7354 = vpop.f32.mrf.mxu0
  %v7355 = vadd.f32 0.0, %v7354
  %v7356 = vpop.f32.mrf.mxu0
  %v7357 = vadd.f32 0.0, %v7356
  %7358 = vmatprep.mubr.f32.mxu0 0.0
  %7359 = vmatmul.mubr.f32.gmra.mxu0 %v674
  %v7360 = vpop.f32.mrf.mxu0
  %v7361 = vadd.f32 0.0, %v7360
  %v7362 = vpop.f32.mrf.mxu0
  %v7363 = vadd.f32 0.0, %v7362
  %7364 = vmatprep.mubr.f32.mxu0 0.0
  %7365 = vmatmul.mubr.f32.gmra.mxu0 %v677
  %v7366 = vpop.f32.mrf.mxu0
  %v7367 = vadd.f32 0.0, %v7366
  %v7368 = vpop.f32.mrf.mxu0
  %v7369 = vadd.f32 0.0, %v7368
  %7370 = vmatprep.mubr.f32.mxu0 0.0
  %7371 = vmatmul.mubr.f32.gmra.mxu0 %v680
  %v7372 = vpop.f32.mrf.mxu0
  %v7373 = vadd.f32 0.0, %v7372
  %v7374 = vpop.f32.mrf.mxu0
  %v7375 = vadd.f32 0.0, %v7374
  %7376 = vmatprep.mubr.f32.mxu0 0.0
  %7377 = vmatmul.mubr.f32.gmra.mxu0 %v683
  %v7378 = vpop.f32.mrf.mxu0
  %v7379 = vadd.f32 0.0, %v7378
  %v7380 = vpop.f32.mrf.mxu0
  %v7381 = vadd.f32 0.0, %v7380
  %7382 = vmatprep.mubr.f32.mxu0 0.0
  %7383 = vmatmul.mubr.f32.gmra.mxu0 %v686
  %v7384 = vpop.f32.mrf.mxu0
  %v7385 = vadd.f32 0.0, %v7384
  %v7386 = vpop.f32.mrf.mxu0
  %v7387 = vadd.f32 0.0, %v7386
  %7388 = vmatprep.mubr.f32.mxu0 0.0
  %7389 = vmatmul.mubr.f32.gmra.mxu0 %v689
  %v7390 = vpop.f32.mrf.mxu0
  %v7391 = vadd.f32 0.0, %v7390
  %v7392 = vpop.f32.mrf.mxu0
  %v7393 = vadd.f32 0.0, %v7392
  %7394 = vmatprep.mubr.f32.mxu0 0.0
  %7395 = vmatmul.mubr.f32.gmra.mxu0 %v692
  %v7396 = vpop.f32.mrf.mxu0
  %v7397 = vadd.f32 0.0, %v7396
  %v7398 = vpop.f32.mrf.mxu0
  %v7399 = vadd.f32 0.0, %v7398
  %7400 = vmatprep.mubr.f32.mxu0 0.0
  %7401 = vmatmul.mubr.f32.gmra.mxu0 %v695
  %v7402 = vpop.f32.mrf.mxu0
  %v7403 = vadd.f32 0.0, %v7402
  %v7404 = vpop.f32.mrf.mxu0
  %v7405 = vadd.f32 0.0, %v7404
  %7406 = vmatprep.mubr.f32.mxu0 0.0
  %7407 = vmatmul.mubr.f32.gmra.mxu0 %v698
  %v7408 = vpop.f32.mrf.mxu0
  %v7409 = vadd.f32 0.0, %v7408
  %v7410 = vpop.f32.mrf.mxu0
  %v7411 = vadd.f32 0.0, %v7410
  %7412 = vmatprep.mubr.f32.mxu0 0.0
  %7413 = vmatmul.mubr.f32.gmra.mxu0 %v701
  %v7414 = vpop.f32.mrf.mxu0
  %v7415 = vadd.f32 0.0, %v7414
  %v7416 = vpop.f32.mrf.mxu0
  %v7417 = vadd.f32 0.0, %v7416
  %7418 = vmatprep.mubr.f32.mxu0 0.0
  %7419 = vmatmul.mubr.f32.gmra.mxu0 %v704
  %v7420 = vpop.f32.mrf.mxu0
  %v7421 = vadd.f32 0.0, %v7420
  %v7422 = vpop.f32.mrf.mxu0
  %v7423 = vadd.f32 0.0, %v7422
  %7424 = vmatprep.mubr.f32.mxu0 0.0
  %7425 = vmatmul.mubr.f32.gmra.mxu0 %v707
  %v7426 = vpop.f32.mrf.mxu0
  %v7427 = vadd.f32 0.0, %v7426
  %v7428 = vpop.f32.mrf.mxu0
  %v7429 = vadd.f32 0.0, %v7428
  %7430 = vmatprep.mubr.f32.mxu0 0.0
  %7431 = vmatmul.mubr.f32.gmra.mxu0 %v710
  %v7432 = vpop.f32.mrf.mxu0
  %v7433 = vadd.f32 0.0, %v7432
  %v7434 = vpop.f32.mrf.mxu0
  %v7435 = vadd.f32 0.0, %v7434
  %7436 = vmatprep.mubr.f32.mxu0 0.0
  %7437 = vmatmul.mubr.f32.gmra.mxu0 %v713
  %v7438 = vpop.f32.mrf.mxu0
  %v7439 = vadd.f32 0.0, %v7438
  %v7440 = vpop.f32.mrf.mxu0
  %v7441 = vadd.f32 0.0, %v7440
  %7442 = vmatprep.mubr.f32.mxu0 0.0
  %7443 = vmatmul.mubr.f32.gmra.mxu0 %v716
  %v7444 = vpop.f32.mrf.mxu0
  %v7445 = vadd.f32 0.0, %v7444
  %v7446 = vpop.f32.mrf.mxu0
  %v7447 = vadd.f32 0.0, %v7446
  %7448 = vmatprep.mubr.f32.mxu0 0.0
  %7449 = vmatmul.mubr.f32.gmra.mxu0 %v719
  %v7450 = vpop.f32.mrf.mxu0
  %v7451 = vadd.f32 0.0, %v7450
  %v7452 = vpop.f32.mrf.mxu0
  %v7453 = vadd.f32 0.0, %v7452
  %7454 = vmatprep.mubr.f32.mxu0 0.0
  %7455 = vmatmul.mubr.f32.gmra.mxu0 %v722
  %v7456 = vpop.f32.mrf.mxu0
  %v7457 = vadd.f32 0.0, %v7456
  %v7458 = vpop.f32.mrf.mxu0
  %v7459 = vadd.f32 0.0, %v7458
  %7460 = vmatprep.mubr.f32.mxu0 0.0
  %7461 = vmatmul.mubr.f32.gmra.mxu0 %v725
  %v7462 = vpop.f32.mrf.mxu0
  %v7463 = vadd.f32 0.0, %v7462
  %v7464 = vpop.f32.mrf.mxu0
  %v7465 = vadd.f32 0.0, %v7464
  %7466 = vmatprep.mubr.f32.mxu0 0.0
  %7467 = vmatmul.mubr.f32.gmra.mxu0 %v728
  %v7468 = vpop.f32.mrf.mxu0
  %v7469 = vadd.f32 0.0, %v7468
  %v7470 = vpop.f32.mrf.mxu0
  %v7471 = vadd.f32 0.0, %v7470
  %7472 = vmatprep.mubr.f32.mxu0 0.0
  %7473 = vmatmul.mubr.f32.gmra.mxu0 %v731
  %v7474 = vpop.f32.mrf.mxu0
  %v7475 = vadd.f32 0.0, %v7474
  %v7476 = vpop.f32.mrf.mxu0
  %v7477 = vadd.f32 0.0, %v7476
  %7478 = vmatprep.mubr.f32.mxu0 0.0
  %7479 = vmatmul.mubr.f32.gmra.mxu0 %v734
  %v7480 = vpop.f32.mrf.mxu0
  %v7481 = vadd.f32 0.0, %v7480
  %v7482 = vpop.f32.mrf.mxu0
  %v7483 = vadd.f32 0.0, %v7482
  %7484 = vmatprep.mubr.f32.mxu0 0.0
  %7485 = vmatmul.mubr.f32.gmra.mxu0 %v737
  %v7486 = vpop.f32.mrf.mxu0
  %v7487 = vadd.f32 0.0, %v7486
  %v7488 = vpop.f32.mrf.mxu0
  %v7489 = vadd.f32 0.0, %v7488
  %7490 = vmatprep.mubr.f32.mxu0 0.0
  %7491 = vmatmul.mubr.f32.gmra.mxu0 %v740
  %v7492 = vpop.f32.mrf.mxu0
  %v7493 = vadd.f32 0.0, %v7492
  %v7494 = vpop.f32.mrf.mxu0
  %v7495 = vadd.f32 0.0, %v7494
  %7496 = vmatprep.mubr.f32.mxu0 0.0
  %7497 = vmatmul.mubr.f32.gmra.mxu0 %v743
  %v7498 = vpop.f32.mrf.mxu0
  %v7499 = vadd.f32 0.0, %v7498
  %v7500 = vpop.f32.mrf.mxu0
  %v7501 = vadd.f32 0.0, %v7500
  %7502 = vmatprep.mubr.f32.mxu0 0.0
  %7503 = vmatmul.mubr.f32.gmra.mxu0 %v746
  %v7504 = vpop.f32.mrf.mxu0
  %v7505 = vadd.f32 0.0, %v7504
  %v7506 = vpop.f32.mrf.mxu0
  %v7507 = vadd.f32 0.0, %v7506
  %7508 = vmatprep.mubr.f32.mxu0 0.0
  %7509 = vmatmul.mubr.f32.gmra.mxu0 %v749
  %v7510 = vpop.f32.mrf.mxu0
  %v7511 = vadd.f32 0.0, %v7510
  %v7512 = vpop.f32.mrf.mxu0
  %v7513 = vadd.f32 0.0, %v7512
  %7514 = vmatprep.mubr.f32.mxu0 0.0
  %7515 = vmatmul.mubr.f32.gmra.mxu0 %v752
  %v7516 = vpop.f32.mrf.mxu0
  %v7517 = vadd.f32 0.0, %v7516
  %v7518 = vpop.f32.mrf.mxu0
  %v7519 = vadd.f32 0.0, %v7518
  %7520 = vmatprep.mubr.f32.mxu0 0.0
  %7521 = vmatmul.mubr.f32.gmra.mxu0 %v755
  %v7522 = vpop.f32.mrf.mxu0
  %v7523 = vadd.f32 0.0, %v7522
  %v7524 = vpop.f32.mrf.mxu0
  %v7525 = vadd.f32 0.0, %v7524
  %7526 = vmatprep.mubr.f32.mxu0 0.0
  %7527 = vmatmul.mubr.f32.gmra.mxu0 %v758
  %v7528 = vpop.f32.mrf.mxu0
  %v7529 = vadd.f32 0.0, %v7528
  %v7530 = vpop.f32.mrf.mxu0
  %v7531 = vadd.f32 0.0, %v7530
  %7532 = vmatprep.mubr.f32.mxu0 0.0
  %7533 = vmatmul.mubr.f32.gmra.mxu0 %v761
  %v7534 = vpop.f32.mrf.mxu0
  %v7535 = vadd.f32 0.0, %v7534
  %v7536 = vpop.f32.mrf.mxu0
  %v7537 = vadd.f32 0.0, %v7536
  %7538 = vmatprep.mubr.f32.mxu0 0.0
  %7539 = vmatmul.mubr.f32.gmra.mxu0 %v764
  %v7540 = vpop.f32.mrf.mxu0
  %v7541 = vadd.f32 0.0, %v7540
  %v7542 = vpop.f32.mrf.mxu0
  %v7543 = vadd.f32 0.0, %v7542
  %7544 = vmatprep.mubr.f32.mxu0 0.0
  %7545 = vmatmul.mubr.f32.gmra.mxu0 %v767
  %v7546 = vpop.f32.mrf.mxu0
  %v7547 = vadd.f32 0.0, %v7546
  %v7548 = vpop.f32.mrf.mxu0
  %v7549 = vadd.f32 0.0, %v7548
  %7550 = vmatprep.mubr.f32.mxu0 0.0
  %7551 = vmatmul.mubr.f32.gmra.mxu0 %v770
  %v7552 = vpop.f32.mrf.mxu0
  %v7553 = vadd.f32 0.0, %v7552
  %v7554 = vpop.f32.mrf.mxu0
  %v7555 = vadd.f32 0.0, %v7554
  %7556 = vmatprep.mubr.f32.mxu0 0.0
  %7557 = vmatmul.mubr.f32.gmra.mxu0 %v773
  %v7558 = vpop.f32.mrf.mxu0
  %v7559 = vadd.f32 0.0, %v7558
  %v7560 = vpop.f32.mrf.mxu0
  %v7561 = vadd.f32 0.0, %v7560
  %7562 = vmatprep.mubr.f32.mxu0 0.0
  %7563 = vmatmul.mubr.f32.gmra.mxu0 %v776
  %v7564 = vpop.f32.mrf.mxu0
  %v7565 = vadd.f32 0.0, %v7564
  %v7566 = vpop.f32.mrf.mxu0
  %v7567 = vadd.f32 0.0, %v7566
  %7568 = vmatprep.mubr.f32.mxu0 0.0
  %7569 = vmatmul.mubr.f32.gmra.mxu0 %v779
  %v7570 = vpop.f32.mrf.mxu0
  %v7571 = vadd.f32 0.0, %v7570
  %v7572 = vpop.f32.mrf.mxu0
  %v7573 = vadd.f32 0.0, %v7572
  %7574 = vmatprep.mubr.f32.mxu0 0.0
  %7575 = vmatmul.mubr.f32.gmra.mxu0 %v782
  %v7576 = vpop.f32.mrf.mxu0
  %v7577 = vadd.f32 0.0, %v7576
  %v7578 = vpop.f32.mrf.mxu0
  %v7579 = vadd.f32 0.0, %v7578
  %7580 = vmatprep.mubr.f32.mxu0 0.0
  %7581 = vmatmul.mubr.f32.gmra.mxu0 %v785
  %v7582 = vpop.f32.mrf.mxu0
  %v7583 = vadd.f32 0.0, %v7582
  %v7584 = vpop.f32.mrf.mxu0
  %v7585 = vadd.f32 0.0, %v7584
  %7586 = vmatprep.mubr.f32.mxu0 0.0
  %7587 = vmatmul.mubr.f32.gmra.mxu0 %v788
  %v7588 = vpop.f32.mrf.mxu0
  %v7589 = vadd.f32 0.0, %v7588
  %v7590 = vpop.f32.mrf.mxu0
  %v7591 = vadd.f32 0.0, %v7590
  %7592 = vmatprep.mubr.f32.mxu0 0.0
  %7593 = vmatmul.mubr.f32.gmra.mxu0 %v791
  %v7594 = vpop.f32.mrf.mxu0
  %v7595 = vadd.f32 0.0, %v7594
  %v7596 = vpop.f32.mrf.mxu0
  %v7597 = vadd.f32 0.0, %v7596
  %7598 = vmatprep.mubr.f32.mxu0 0.0
  %7599 = vmatmul.mubr.f32.gmra.mxu0 %v794
  %v7600 = vpop.f32.mrf.mxu0
  %v7601 = vadd.f32 0.0, %v7600
  %v7602 = vpop.f32.mrf.mxu0
  %v7603 = vadd.f32 0.0, %v7602
  %7604 = vmatprep.mubr.f32.mxu0 0.0
  %7605 = vmatmul.mubr.f32.gmra.mxu0 %v797
  %v7606 = vpop.f32.mrf.mxu0
  %v7607 = vadd.f32 0.0, %v7606
  %v7608 = vpop.f32.mrf.mxu0
  %v7609 = vadd.f32 0.0, %v7608
  %7610 = vmatprep.mubr.f32.mxu0 0.0
  %7611 = vmatmul.mubr.f32.gmra.mxu0 %v800
  %v7612 = vpop.f32.mrf.mxu0
  %v7613 = vadd.f32 0.0, %v7612
  %v7614 = vpop.f32.mrf.mxu0
  %v7615 = vadd.f32 0.0, %v7614
  %7616 = vmatprep.mubr.f32.mxu0 0.0
  %7617 = vmatmul.mubr.f32.gmra.mxu0 %v803
  %v7618 = vpop.f32.mrf.mxu0
  %v7619 = vadd.f32 0.0, %v7618
  %v7620 = vpop.f32.mrf.mxu0
  %v7621 = vadd.f32 0.0, %v7620
  %7622 = vmatprep.mubr.f32.mxu0 0.0
  %7623 = vmatmul.mubr.f32.gmra.mxu0 %v806
  %v7624 = vpop.f32.mrf.mxu0
  %v7625 = vadd.f32 0.0, %v7624
  %v7626 = vpop.f32.mrf.mxu0
  %v7627 = vadd.f32 0.0, %v7626
  %7628 = vmatprep.mubr.f32.mxu0 0.0
  %7629 = vmatmul.mubr.f32.gmra.mxu0 %v809
  %v7630 = vpop.f32.mrf.mxu0
  %v7631 = vadd.f32 0.0, %v7630
  %v7632 = vpop.f32.mrf.mxu0
  %v7633 = vadd.f32 0.0, %v7632
  %7634 = vmatprep.mubr.f32.mxu0 0.0
  %7635 = vmatmul.mubr.f32.gmra.mxu0 %v812
  %v7636 = vpop.f32.mrf.mxu0
  %v7637 = vadd.f32 0.0, %v7636
  %v7638 = vpop.f32.mrf.mxu0
  %v7639 = vadd.f32 0.0, %v7638
  %7640 = vmatprep.mubr.f32.mxu0 0.0
  %7641 = vmatmul.mubr.f32.gmra.mxu0 %v815
  %v7642 = vpop.f32.mrf.mxu0
  %v7643 = vadd.f32 0.0, %v7642
  %v7644 = vpop.f32.mrf.mxu0
  %v7645 = vadd.f32 0.0, %v7644
  %7646 = vmatprep.mubr.f32.mxu0 0.0
  %7647 = vmatmul.mubr.f32.gmra.mxu0 %v818
  %v7648 = vpop.f32.mrf.mxu0
  %v7649 = vadd.f32 0.0, %v7648
  %v7650 = vpop.f32.mrf.mxu0
  %v7651 = vadd.f32 0.0, %v7650
  %7652 = vmatprep.mubr.f32.mxu0 0.0
  %7653 = vmatmul.mubr.f32.gmra.mxu0 %v821
  %v7654 = vpop.f32.mrf.mxu0
  %v7655 = vadd.f32 0.0, %v7654
  %v7656 = vpop.f32.mrf.mxu0
  %v7657 = vadd.f32 0.0, %v7656
  %7658 = vmatprep.mubr.f32.mxu0 0.0
  %7659 = vmatmul.mubr.f32.gmra.mxu0 %v824
  %v7660 = vpop.f32.mrf.mxu0
  %v7661 = vadd.f32 0.0, %v7660
  %v7662 = vpop.f32.mrf.mxu0
  %v7663 = vadd.f32 0.0, %v7662
  %7664 = vmatprep.mubr.f32.mxu0 0.0
  %7665 = vmatmul.mubr.f32.gmra.mxu0 %v827
  %v7666 = vpop.f32.mrf.mxu0
  %v7667 = vadd.f32 0.0, %v7666
  %v7668 = vpop.f32.mrf.mxu0
  %v7669 = vadd.f32 0.0, %v7668
  %7670 = vmatprep.mubr.f32.mxu0 0.0
  %7671 = vmatmul.mubr.f32.gmra.mxu0 %v830
  %v7672 = vpop.f32.mrf.mxu0
  %v7673 = vadd.f32 0.0, %v7672
  %v7674 = vpop.f32.mrf.mxu0
  %v7675 = vadd.f32 0.0, %v7674
  %7676 = vmatprep.mubr.f32.mxu0 0.0
  %7677 = vmatmul.mubr.f32.gmra.mxu0 %v833
  %v7678 = vpop.f32.mrf.mxu0
  %v7679 = vadd.f32 0.0, %v7678
  %v7680 = vpop.f32.mrf.mxu0
  %v7681 = vadd.f32 0.0, %v7680
  %7682 = vmatprep.mubr.f32.mxu0 0.0
  %7683 = vmatmul.mubr.f32.gmra.mxu0 %v836
  %v7684 = vpop.f32.mrf.mxu0
  %v7685 = vadd.f32 0.0, %v7684
  %v7686 = vpop.f32.mrf.mxu0
  %v7687 = vadd.f32 0.0, %v7686
  %7688 = vmatprep.mubr.f32.mxu0 0.0
  %7689 = vmatmul.mubr.f32.gmra.mxu0 %v839
  %v7690 = vpop.f32.mrf.mxu0
  %v7691 = vadd.f32 0.0, %v7690
  %v7692 = vpop.f32.mrf.mxu0
  %v7693 = vadd.f32 0.0, %v7692
  %7694 = vmatprep.mubr.f32.mxu0 0.0
  %7695 = vmatmul.mubr.f32.gmra.mxu0 %v842
  %v7696 = vpop.f32.mrf.mxu0
  %v7697 = vadd.f32 0.0, %v7696
  %v7698 = vpop.f32.mrf.mxu0
  %v7699 = vadd.f32 0.0, %v7698
  %7700 = vmatprep.mubr.f32.mxu0 0.0
  %7701 = vmatmul.mubr.f32.gmra.mxu0 %v845
  %v7702 = vpop.f32.mrf.mxu0
  %v7703 = vadd.f32 0.0, %v7702
  %v7704 = vpop.f32.mrf.mxu0
  %v7705 = vadd.f32 0.0, %v7704
  %7706 = vmatprep.mubr.f32.mxu0 0.0
  %7707 = vmatmul.mubr.f32.gmra.mxu0 %v848
  %v7708 = vpop.f32.mrf.mxu0
  %v7709 = vadd.f32 0.0, %v7708
  %v7710 = vpop.f32.mrf.mxu0
  %v7711 = vadd.f32 0.0, %v7710
  %7712 = vmatprep.mubr.f32.mxu0 0.0
  %7713 = vmatmul.mubr.f32.gmra.mxu0 %v3331
  %v7714 = vpop.f32.mrf.mxu0
  %v7715 = vadd.f32 0.0, %v7714
  %v7716 = vpop.f32.mrf.mxu0
  %v7717 = vadd.f32 0.0, %v7716
  %7718 = vmatprep.mubr.f32.mxu0 0.0
  %7719 = vmatmul.mubr.f32.gmra.mxu0 %v3334
  %v7720 = vpop.f32.mrf.mxu0
  %v7721 = vadd.f32 0.0, %v7720
  %v7722 = vpop.f32.mrf.mxu0
  %v7723 = vadd.f32 0.0, %v7722
  %7724 = vmatprep.mubr.f32.mxu0 0.0
  %7725 = vmatmul.mubr.f32.gmra.mxu0 %v3337
  %v7726 = vpop.f32.mrf.mxu0
  %v7727 = vadd.f32 0.0, %v7726
  %v7728 = vpop.f32.mrf.mxu0
  %v7729 = vadd.f32 0.0, %v7728
  %7730 = vmatprep.mubr.f32.mxu0 0.0
  %7731 = vmatmul.mubr.f32.gmra.mxu0 %v3340
  %v7732 = vpop.f32.mrf.mxu0
  %v7733 = vadd.f32 0.0, %v7732
  %v7734 = vpop.f32.mrf.mxu0
  %v7735 = vadd.f32 0.0, %v7734
  %7736 = vmatprep.mubr.f32.mxu0 0.0
  %7737 = vmatmul.mubr.f32.gmra.mxu0 %v3343
  %v7738 = vpop.f32.mrf.mxu0
  %v7739 = vadd.f32 0.0, %v7738
  %v7740 = vpop.f32.mrf.mxu0
  %v7741 = vadd.f32 0.0, %v7740
  %7742 = vmatprep.mubr.f32.mxu0 0.0
  %7743 = vmatmul.mubr.f32.gmra.mxu0 %v3346
  %v7744 = vpop.f32.mrf.mxu0
  %v7745 = vadd.f32 0.0, %v7744
  %v7746 = vpop.f32.mrf.mxu0
  %v7747 = vadd.f32 0.0, %v7746
  %7748 = vmatprep.mubr.f32.mxu0 0.0
  %7749 = vmatmul.mubr.f32.gmra.mxu0 %v3349
  %v7750 = vpop.f32.mrf.mxu0
  %v7751 = vadd.f32 0.0, %v7750
  %v7752 = vpop.f32.mrf.mxu0
  %v7753 = vadd.f32 0.0, %v7752
  %7754 = vmatprep.mubr.f32.mxu0 0.0
  %7755 = vmatmul.mubr.f32.gmra.mxu0 %v3352
  %v7756 = vpop.f32.mrf.mxu0
  %v7757 = vadd.f32 0.0, %v7756
  %v7758 = vpop.f32.mrf.mxu0
  %v7759 = vadd.f32 0.0, %v7758
  %7760 = vmatprep.mubr.f32.mxu0 0.0
  %7761 = vmatmul.mubr.f32.gmra.mxu0 %v4971
  %v7762 = vpop.f32.mrf.mxu0
  %v7763 = vadd.f32 0.0, %v7762
  %v7764 = vpop.f32.mrf.mxu0
  %v7765 = vadd.f32 0.0, %v7764
  %7766 = vmatprep.mubr.f32.mxu0 0.0
  %7767 = vmatmul.mubr.f32.gmra.mxu0 %v4974
  %v7768 = vpop.f32.mrf.mxu0
  %v7769 = vadd.f32 0.0, %v7768
  %v7770 = vpop.f32.mrf.mxu0
  %v7771 = vadd.f32 0.0, %v7770
  %7772 = vmatprep.mubr.f32.mxu0 0.0
  %7773 = vmatmul.mubr.f32.gmra.mxu0 %v4977
  %v7774 = vpop.f32.mrf.mxu0
  %v7775 = vadd.f32 0.0, %v7774
  %v7776 = vpop.f32.mrf.mxu0
  %v7777 = vadd.f32 0.0, %v7776
  %7778 = vmatprep.mubr.f32.mxu0 0.0
  %7779 = vmatmul.mubr.f32.gmra.mxu0 %v4980
  %v7780 = vpop.f32.mrf.mxu0
  %v7781 = vadd.f32 0.0, %v7780
  %v7782 = vpop.f32.mrf.mxu0
  %v7783 = vadd.f32 0.0, %v7782
  %7784 = vmatprep.mubr.f32.mxu0 0.0
  %7785 = vmatmul.mubr.f32.gmra.mxu0 %v4983
  %v7786 = vpop.f32.mrf.mxu0
  %v7787 = vadd.f32 0.0, %v7786
  %v7788 = vpop.f32.mrf.mxu0
  %v7789 = vadd.f32 0.0, %v7788
  %7790 = vmatprep.mubr.f32.mxu0 0.0
  %7791 = vmatmul.mubr.f32.gmra.mxu0 %v4986
  %v7792 = vpop.f32.mrf.mxu0
  %v7793 = vadd.f32 0.0, %v7792
  %v7794 = vpop.f32.mrf.mxu0
  %v7795 = vadd.f32 0.0, %v7794
  %7796 = vmatprep.mubr.f32.mxu0 0.0
  %7797 = vmatmul.mubr.f32.gmra.mxu0 %v4989
  %v7798 = vpop.f32.mrf.mxu0
  %v7799 = vadd.f32 0.0, %v7798
  %v7800 = vpop.f32.mrf.mxu0
  %v7801 = vadd.f32 0.0, %v7800
  %7802 = vmatprep.mubr.f32.mxu0 0.0
  %7803 = vmatmul.mubr.f32.gmra.mxu0 %v4992
  %v7804 = vpop.f32.mrf.mxu0
  %v7805 = vadd.f32 0.0, %v7804
  %v7806 = vpop.f32.mrf.mxu0
  %v7807 = vadd.f32 0.0, %v7806
  %7808 = vmatprep.mubr.f32.mxu0 0.0
  %7809 = vmatmul.mubr.f32.gmra.mxu0 %v6611
  %v7810 = vpop.f32.mrf.mxu0
  %v7811 = vadd.f32 0.0, %v7810
  %v7812 = vpop.f32.mrf.mxu0
  %v7813 = vadd.f32 0.0, %v7812
  %7814 = vmatprep.mubr.f32.mxu0 0.0
  %7815 = vmatmul.mubr.f32.gmra.mxu0 %v6614
  %v7816 = vpop.f32.mrf.mxu0
  %v7817 = vadd.f32 0.0, %v7816
  %v7818 = vpop.f32.mrf.mxu0
  %v7819 = vadd.f32 0.0, %v7818
  %7820 = vmatprep.mubr.f32.mxu0 0.0
  %7821 = vmatmul.mubr.f32.gmra.mxu0 %v6617
  %v7822 = vpop.f32.mrf.mxu0
  %v7823 = vadd.f32 0.0, %v7822
  %v7824 = vpop.f32.mrf.mxu0
  %v7825 = vadd.f32 0.0, %v7824
  %7826 = vmatprep.mubr.f32.mxu0 0.0
  %7827 = vmatmul.mubr.f32.gmra.mxu0 %v6620
  %v7828 = vpop.f32.mrf.mxu0
  %v7829 = vadd.f32 0.0, %v7828
  %v7830 = vpop.f32.mrf.mxu0
  %v7831 = vadd.f32 0.0, %v7830
  %7832 = vmatprep.mubr.f32.mxu0 0.0
  %7833 = vmatmul.mubr.f32.gmra.mxu0 %v6623
  %v7834 = vpop.f32.mrf.mxu0
  %v7835 = vadd.f32 0.0, %v7834
  %v7836 = vpop.f32.mrf.mxu0
  %v7837 = vadd.f32 0.0, %v7836
  %7838 = vmatprep.mubr.f32.mxu0 0.0
  %7839 = vmatmul.mubr.f32.gmra.mxu0 %v6626
  %v7840 = vpop.f32.mrf.mxu0
  %v7841 = vadd.f32 0.0, %v7840
  %v7842 = vpop.f32.mrf.mxu0
  %v7843 = vadd.f32 0.0, %v7842
  %7844 = vmatprep.mubr.f32.mxu0 0.0
  %7845 = vmatmul.mubr.f32.gmra.mxu0 %v6629
  %v7846 = vpop.f32.mrf.mxu0
  %v7847 = vadd.f32 0.0, %v7846
  %v7848 = vpop.f32.mrf.mxu0
  %v7849 = vadd.f32 0.0, %v7848
  %7850 = vmatprep.mubr.f32.mxu0 0.0
  %7851 = vmatmul.mubr.f32.gmra.mxu0 %v6632
  %v7852 = vpop.f32.mrf.mxu0
  %v7853 = vadd.f32 0.0, %v7852
  %v7854 = vpop.f32.mrf.mxu0
  %v7855 = vadd.f32 0.0, %v7854
  %7856 = vdwg.mxu0
  %v7857 = vadd.f32 %v6217, %v6707
  %v7858 = vadd.f32 %v6218, %v6709
  %v7859 = vadd.f32 %v6219, %v6713
  %v7860 = vadd.f32 %v6220, %v6715
  %v7861 = vadd.f32 %v6221, %v6719
  %v7862 = vadd.f32 %v6222, %v6721
  %v7863 = vadd.f32 %v6223, %v6725
  %v7864 = vadd.f32 %v6224, %v6727
  %v7865 = vadd.f32 %v6225, %v6731
  %v7866 = vadd.f32 %v6226, %v6733
  %v7867 = vadd.f32 %v6227, %v6737
  %v7868 = vadd.f32 %v6228, %v6739
  %v7869 = vadd.f32 %v6229, %v6743
  %v7870 = vadd.f32 %v6230, %v6745
  %v7871 = vadd.f32 %v6231, %v6749
  %v7872 = vadd.f32 %v6232, %v6751
  %v7873 = vadd.f32 %v6233, %v6755
  %v7874 = vadd.f32 %v6234, %v6757
  %v7875 = vadd.f32 %v6235, %v6761
  %v7876 = vadd.f32 %v6236, %v6763
  %v7877 = vadd.f32 %v6237, %v6767
  %v7878 = vadd.f32 %v6238, %v6769
  %v7879 = vadd.f32 %v6239, %v6773
  %v7880 = vadd.f32 %v6240, %v6775
  %v7881 = vadd.f32 %v6241, %v6779
  %v7882 = vadd.f32 %v6242, %v6781
  %v7883 = vadd.f32 %v6243, %v6785
  %v7884 = vadd.f32 %v6244, %v6787
  %v7885 = vadd.f32 %v6245, %v6791
  %v7886 = vadd.f32 %v6246, %v6793
  %v7887 = vadd.f32 %v6247, %v6797
  %v7888 = vadd.f32 %v6248, %v6799
  %v7889 = vadd.f32 %v6249, %v6803
  %v7890 = vadd.f32 %v6250, %v6805
  %v7891 = vadd.f32 %v6251, %v6809
  %v7892 = vadd.f32 %v6252, %v6811
  %v7893 = vadd.f32 %v6253, %v6815
  %v7894 = vadd.f32 %v6254, %v6817
  %v7895 = vadd.f32 %v6255, %v6821
  %v7896 = vadd.f32 %v6256, %v6823
  %v7897 = vadd.f32 %v6257, %v6827
  %v7898 = vadd.f32 %v6258, %v6829
  %v7899 = vadd.f32 %v6259, %v6833
  %v7900 = vadd.f32 %v6260, %v6835
  %v7901 = vadd.f32 %v6261, %v6839
  %v7902 = vadd.f32 %v6262, %v6841
  %v7903 = vadd.f32 %v6263, %v6845
  %v7904 = vadd.f32 %v6264, %v6847
  %v7905 = vadd.f32 %v6265, %v6851
  %v7906 = vadd.f32 %v6266, %v6853
  %v7907 = vadd.f32 %v6267, %v6857
  %v7908 = vadd.f32 %v6268, %v6859
  %v7909 = vadd.f32 %v6269, %v6863
  %v7910 = vadd.f32 %v6270, %v6865
  %v7911 = vadd.f32 %v6271, %v6869
  %v7912 = vadd.f32 %v6272, %v6871
  %v7913 = vadd.f32 %v6273, %v6875
  %v7914 = vadd.f32 %v6274, %v6877
  %v7915 = vadd.f32 %v6275, %v6881
  %v7916 = vadd.f32 %v6276, %v6883
  %v7917 = vadd.f32 %v6277, %v6887
  %v7918 = vadd.f32 %v6278, %v6889
  %v7919 = vadd.f32 %v6279, %v6893
  %v7920 = vadd.f32 %v6280, %v6895
  %v7921 = vadd.f32 %v6281, %v6899
  %v7922 = vadd.f32 %v6282, %v6901
  %v7923 = vadd.f32 %v6283, %v6905
  %v7924 = vadd.f32 %v6284, %v6907
  %v7925 = vadd.f32 %v6285, %v6911
  %v7926 = vadd.f32 %v6286, %v6913
  %v7927 = vadd.f32 %v6287, %v6917
  %v7928 = vadd.f32 %v6288, %v6919
  %v7929 = vadd.f32 %v6289, %v6923
  %v7930 = vadd.f32 %v6290, %v6925
  %v7931 = vadd.f32 %v6291, %v6929
  %v7932 = vadd.f32 %v6292, %v6931
  %v7933 = vadd.f32 %v6293, %v6935
  %v7934 = vadd.f32 %v6294, %v6937
  %v7935 = vadd.f32 %v6295, %v6941
  %v7936 = vadd.f32 %v6296, %v6943
  %v7937 = vadd.f32 %v6297, %v6947
  %v7938 = vadd.f32 %v6298, %v6949
  %v7939 = vadd.f32 %v6299, %v6953
  %v7940 = vadd.f32 %v6300, %v6955
  %v7941 = vadd.f32 %v6301, %v6959
  %v7942 = vadd.f32 %v6302, %v6961
  %v7943 = vadd.f32 %v6303, %v6965
  %v7944 = vadd.f32 %v6304, %v6967
  %v7945 = vadd.f32 %v6305, %v6971
  %v7946 = vadd.f32 %v6306, %v6973
  %v7947 = vadd.f32 %v6307, %v6977
  %v7948 = vadd.f32 %v6308, %v6979
  %v7949 = vadd.f32 %v6309, %v6983
  %v7950 = vadd.f32 %v6310, %v6985
  %v7951 = vadd.f32 %v6311, %v6989
  %v7952 = vadd.f32 %v6312, %v6991
  %v7953 = vadd.f32 %v6313, %v6995
  %v7954 = vadd.f32 %v6314, %v6997
  %v7955 = vadd.f32 %v6315, %v7001
  %v7956 = vadd.f32 %v6316, %v7003
  %v7957 = vadd.f32 %v6317, %v7007
  %v7958 = vadd.f32 %v6318, %v7009
  %v7959 = vadd.f32 %v6319, %v7013
  %v7960 = vadd.f32 %v6320, %v7015
  %v7961 = vadd.f32 %v6321, %v7019
  %v7962 = vadd.f32 %v6322, %v7021
  %v7963 = vadd.f32 %v6323, %v7025
  %v7964 = vadd.f32 %v6324, %v7027
  %v7965 = vadd.f32 %v6325, %v7031
  %v7966 = vadd.f32 %v6326, %v7033
  %v7967 = vadd.f32 %v6327, %v7037
  %v7968 = vadd.f32 %v6328, %v7039
  %v7969 = vadd.f32 %v6329, %v7043
  %v7970 = vadd.f32 %v6330, %v7045
  %v7971 = vadd.f32 %v6331, %v7049
  %v7972 = vadd.f32 %v6332, %v7051
  %v7973 = vadd.f32 %v6333, %v7055
  %v7974 = vadd.f32 %v6334, %v7057
  %v7975 = vadd.f32 %v6335, %v7061
  %v7976 = vadd.f32 %v6336, %v7063
  %v7977 = vadd.f32 %v6337, %v7067
  %v7978 = vadd.f32 %v6338, %v7069
  %v7979 = vadd.f32 %v6339, %v7073
  %v7980 = vadd.f32 %v6340, %v7075
  %v7981 = vadd.f32 %v6341, %v7079
  %v7982 = vadd.f32 %v6342, %v7081
  %v7983 = vadd.f32 %v6343, %v7085
  %v7984 = vadd.f32 %v6344, %v7087
  %v7985 = vadd.f32 %v6345, %v7091
  %v7986 = vadd.f32 %v6346, %v7093
  %v7987 = vadd.f32 %v6347, %v7097
  %v7988 = vadd.f32 %v6348, %v7099
  %v7989 = vadd.f32 %v6349, %v7103
  %v7990 = vadd.f32 %v6350, %v7105
  %v7991 = vadd.f32 %v6351, %v7109
  %v7992 = vadd.f32 %v6352, %v7111
  %v7993 = vadd.f32 %v6353, %v7115
  %v7994 = vadd.f32 %v6354, %v7117
  %v7995 = vadd.f32 %v6355, %v7121
  %v7996 = vadd.f32 %v6356, %v7123
  %v7997 = vadd.f32 %v6357, %v7127
  %v7998 = vadd.f32 %v6358, %v7129
  %v7999 = vadd.f32 %v6359, %v7133
  %v8000 = vadd.f32 %v6360, %v7135
  %v8001 = vadd.f32 %v6361, %v7139
  %v8002 = vadd.f32 %v6362, %v7141
  %v8003 = vadd.f32 %v6363, %v7145
  %v8004 = vadd.f32 %v6364, %v7147
  %v8005 = vadd.f32 %v6365, %v7151
  %v8006 = vadd.f32 %v6366, %v7153
  %v8007 = vadd.f32 %v6367, %v7157
  %v8008 = vadd.f32 %v6368, %v7159
  %v8009 = vadd.f32 %v6369, %v7163
  %v8010 = vadd.f32 %v6370, %v7165
  %v8011 = vadd.f32 %v6371, %v7169
  %v8012 = vadd.f32 %v6372, %v7171
  %v8013 = vadd.f32 %v6373, %v7175
  %v8014 = vadd.f32 %v6374, %v7177
  %v8015 = vadd.f32 %v6375, %v7181
  %v8016 = vadd.f32 %v6376, %v7183
  %v8017 = vadd.f32 %v6377, %v7187
  %v8018 = vadd.f32 %v6378, %v7189
  %v8019 = vadd.f32 %v6379, %v7193
  %v8020 = vadd.f32 %v6380, %v7195
  %v8021 = vadd.f32 %v6381, %v7199
  %v8022 = vadd.f32 %v6382, %v7201
  %v8023 = vadd.f32 %v6383, %v7205
  %v8024 = vadd.f32 %v6384, %v7207
  %v8025 = vadd.f32 %v6385, %v7211
  %v8026 = vadd.f32 %v6386, %v7213
  %v8027 = vadd.f32 %v6387, %v7217
  %v8028 = vadd.f32 %v6388, %v7219
  %v8029 = vadd.f32 %v6389, %v7223
  %v8030 = vadd.f32 %v6390, %v7225
  %v8031 = vadd.f32 %v6391, %v7229
  %v8032 = vadd.f32 %v6392, %v7231
  %v8033 = vadd.f32 %v6393, %v7235
  %v8034 = vadd.f32 %v6394, %v7237
  %v8035 = vadd.f32 %v6395, %v7241
  %v8036 = vadd.f32 %v6396, %v7243
  %v8037 = vadd.f32 %v6397, %v7247
  %v8038 = vadd.f32 %v6398, %v7249
  %v8039 = vadd.f32 %v6399, %v7253
  %v8040 = vadd.f32 %v6400, %v7255
  %v8041 = vadd.f32 %v6401, %v7259
  %v8042 = vadd.f32 %v6402, %v7261
  %v8043 = vadd.f32 %v6403, %v7265
  %v8044 = vadd.f32 %v6404, %v7267
  %v8045 = vadd.f32 %v6405, %v7271
  %v8046 = vadd.f32 %v6406, %v7273
  %v8047 = vadd.f32 %v6407, %v7277
  %v8048 = vadd.f32 %v6408, %v7279
  %v8049 = vadd.f32 %v6409, %v7283
  %v8050 = vadd.f32 %v6410, %v7285
  %v8051 = vadd.f32 %v6411, %v7289
  %v8052 = vadd.f32 %v6412, %v7291
  %v8053 = vadd.f32 %v6413, %v7295
  %v8054 = vadd.f32 %v6414, %v7297
  %v8055 = vadd.f32 %v6415, %v7301
  %v8056 = vadd.f32 %v6416, %v7303
  %v8057 = vadd.f32 %v6417, %v7307
  %v8058 = vadd.f32 %v6418, %v7309
  %v8059 = vadd.f32 %v6419, %v7313
  %v8060 = vadd.f32 %v6420, %v7315
  %v8061 = vadd.f32 %v6421, %v7319
  %v8062 = vadd.f32 %v6422, %v7321
  %v8063 = vadd.f32 %v6423, %v7325
  %v8064 = vadd.f32 %v6424, %v7327
  %v8065 = vadd.f32 %v6425, %v7331
  %v8066 = vadd.f32 %v6426, %v7333
  %v8067 = vadd.f32 %v6427, %v7337
  %v8068 = vadd.f32 %v6428, %v7339
  %v8069 = vadd.f32 %v6429, %v7343
  %v8070 = vadd.f32 %v6430, %v7345
  %v8071 = vadd.f32 %v6431, %v7349
  %v8072 = vadd.f32 %v6432, %v7351
  %v8073 = vadd.f32 %v6433, %v7355
  %v8074 = vadd.f32 %v6434, %v7357
  %v8075 = vadd.f32 %v6435, %v7361
  %v8076 = vadd.f32 %v6436, %v7363
  %v8077 = vadd.f32 %v6437, %v7367
  %v8078 = vadd.f32 %v6438, %v7369
  %v8079 = vadd.f32 %v6439, %v7373
  %v8080 = vadd.f32 %v6440, %v7375
  %v8081 = vadd.f32 %v6441, %v7379
  %v8082 = vadd.f32 %v6442, %v7381
  %v8083 = vadd.f32 %v6443, %v7385
  %v8084 = vadd.f32 %v6444, %v7387
  %v8085 = vadd.f32 %v6445, %v7391
  %v8086 = vadd.f32 %v6446, %v7393
  %v8087 = vadd.f32 %v6447, %v7397
  %v8088 = vadd.f32 %v6448, %v7399
  %v8089 = vadd.f32 %v6449, %v7403
  %v8090 = vadd.f32 %v6450, %v7405
  %v8091 = vadd.f32 %v6451, %v7409
  %v8092 = vadd.f32 %v6452, %v7411
  %v8093 = vadd.f32 %v6453, %v7415
  %v8094 = vadd.f32 %v6454, %v7417
  %v8095 = vadd.f32 %v6455, %v7421
  %v8096 = vadd.f32 %v6456, %v7423
  %v8097 = vadd.f32 %v6457, %v7427
  %v8098 = vadd.f32 %v6458, %v7429
  %v8099 = vadd.f32 %v6459, %v7433
  %v8100 = vadd.f32 %v6460, %v7435
  %v8101 = vadd.f32 %v6461, %v7439
  %v8102 = vadd.f32 %v6462, %v7441
  %v8103 = vadd.f32 %v6463, %v7445
  %v8104 = vadd.f32 %v6464, %v7447
  %v8105 = vadd.f32 %v6465, %v7451
  %v8106 = vadd.f32 %v6466, %v7453
  %v8107 = vadd.f32 %v6467, %v7457
  %v8108 = vadd.f32 %v6468, %v7459
  %v8109 = vadd.f32 %v6469, %v7463
  %v8110 = vadd.f32 %v6470, %v7465
  %v8111 = vadd.f32 %v6471, %v7469
  %v8112 = vadd.f32 %v6472, %v7471
  %v8113 = vadd.f32 %v6473, %v7475
  %v8114 = vadd.f32 %v6474, %v7477
  %v8115 = vadd.f32 %v6475, %v7481
  %v8116 = vadd.f32 %v6476, %v7483
  %v8117 = vadd.f32 %v6477, %v7487
  %v8118 = vadd.f32 %v6478, %v7489
  %v8119 = vadd.f32 %v6479, %v7493
  %v8120 = vadd.f32 %v6480, %v7495
  %v8121 = vadd.f32 %v6481, %v7499
  %v8122 = vadd.f32 %v6482, %v7501
  %v8123 = vadd.f32 %v6483, %v7505
  %v8124 = vadd.f32 %v6484, %v7507
  %v8125 = vadd.f32 %v6485, %v7511
  %v8126 = vadd.f32 %v6486, %v7513
  %v8127 = vadd.f32 %v6487, %v7517
  %v8128 = vadd.f32 %v6488, %v7519
  %v8129 = vadd.f32 %v6489, %v7523
  %v8130 = vadd.f32 %v6490, %v7525
  %v8131 = vadd.f32 %v6491, %v7529
  %v8132 = vadd.f32 %v6492, %v7531
  %v8133 = vadd.f32 %v6493, %v7535
  %v8134 = vadd.f32 %v6494, %v7537
  %v8135 = vadd.f32 %v6495, %v7541
  %v8136 = vadd.f32 %v6496, %v7543
  %v8137 = vadd.f32 %v6497, %v7547
  %v8138 = vadd.f32 %v6498, %v7549
  %v8139 = vadd.f32 %v6499, %v7553
  %v8140 = vadd.f32 %v6500, %v7555
  %v8141 = vadd.f32 %v6501, %v7559
  %v8142 = vadd.f32 %v6502, %v7561
  %v8143 = vadd.f32 %v6503, %v7565
  %v8144 = vadd.f32 %v6504, %v7567
  %v8145 = vadd.f32 %v6505, %v7571
  %v8146 = vadd.f32 %v6506, %v7573
  %v8147 = vadd.f32 %v6507, %v7577
  %v8148 = vadd.f32 %v6508, %v7579
  %v8149 = vadd.f32 %v6509, %v7583
  %v8150 = vadd.f32 %v6510, %v7585
  %v8151 = vadd.f32 %v6511, %v7589
  %v8152 = vadd.f32 %v6512, %v7591
  %v8153 = vadd.f32 %v6513, %v7595
  %v8154 = vadd.f32 %v6514, %v7597
  %v8155 = vadd.f32 %v6515, %v7601
  %v8156 = vadd.f32 %v6516, %v7603
  %v8157 = vadd.f32 %v6517, %v7607
  %v8158 = vadd.f32 %v6518, %v7609
  %v8159 = vadd.f32 %v6519, %v7613
  %v8160 = vadd.f32 %v6520, %v7615
  %v8161 = vadd.f32 %v6521, %v7619
  %v8162 = vadd.f32 %v6522, %v7621
  %v8163 = vadd.f32 %v6523, %v7625
  %v8164 = vadd.f32 %v6524, %v7627
  %v8165 = vadd.f32 %v6525, %v7631
  %v8166 = vadd.f32 %v6526, %v7633
  %v8167 = vadd.f32 %v6527, %v7637
  %v8168 = vadd.f32 %v6528, %v7639
  %v8169 = vadd.f32 %v6529, %v7643
  %v8170 = vadd.f32 %v6530, %v7645
  %v8171 = vadd.f32 %v6531, %v7649
  %v8172 = vadd.f32 %v6532, %v7651
  %v8173 = vadd.f32 %v6533, %v7655
  %v8174 = vadd.f32 %v6534, %v7657
  %v8175 = vadd.f32 %v6535, %v7661
  %v8176 = vadd.f32 %v6536, %v7663
  %v8177 = vadd.f32 %v6537, %v7667
  %v8178 = vadd.f32 %v6538, %v7669
  %v8179 = vadd.f32 %v6539, %v7673
  %v8180 = vadd.f32 %v6540, %v7675
  %v8181 = vadd.f32 %v6541, %v7679
  %v8182 = vadd.f32 %v6542, %v7681
  %v8183 = vadd.f32 %v6543, %v7685
  %v8184 = vadd.f32 %v6544, %v7687
  %v8185 = vadd.f32 %v6545, %v7691
  %v8186 = vadd.f32 %v6546, %v7693
  %v8187 = vadd.f32 %v6547, %v7697
  %v8188 = vadd.f32 %v6548, %v7699
  %v8189 = vadd.f32 %v6549, %v7703
  %v8190 = vadd.f32 %v6550, %v7705
  %v8191 = vadd.f32 %v6551, %v7709
  %v8192 = vadd.f32 %v6552, %v7711
  %v8193 = vadd.f32 %v6553, %v7715
  %v8194 = vadd.f32 %v6554, %v7717
  %v8195 = vadd.f32 %v6555, %v7721
  %v8196 = vadd.f32 %v6556, %v7723
  %v8197 = vadd.f32 %v6557, %v7727
  %v8198 = vadd.f32 %v6558, %v7729
  %v8199 = vadd.f32 %v6559, %v7733
  %v8200 = vadd.f32 %v6560, %v7735
  %v8201 = vadd.f32 %v6561, %v7739
  %v8202 = vadd.f32 %v6562, %v7741
  %v8203 = vadd.f32 %v6563, %v7745
  %v8204 = vadd.f32 %v6564, %v7747
  %v8205 = vadd.f32 %v6565, %v7751
  %v8206 = vadd.f32 %v6566, %v7753
  %v8207 = vadd.f32 %v6567, %v7757
  %v8208 = vadd.f32 %v6568, %v7759
  %v8209 = vadd.f32 %v6569, %v7763
  %v8210 = vadd.f32 %v6570, %v7765
  %v8211 = vadd.f32 %v6571, %v7769
  %v8212 = vadd.f32 %v6572, %v7771
  %v8213 = vadd.f32 %v6573, %v7775
  %v8214 = vadd.f32 %v6574, %v7777
  %v8215 = vadd.f32 %v6575, %v7781
  %v8216 = vadd.f32 %v6576, %v7783
  %v8217 = vadd.f32 %v6577, %v7787
  %v8218 = vadd.f32 %v6578, %v7789
  %v8219 = vadd.f32 %v6579, %v7793
  %v8220 = vadd.f32 %v6580, %v7795
  %v8221 = vadd.f32 %v6581, %v7799
  %v8222 = vadd.f32 %v6582, %v7801
  %v8223 = vadd.f32 %v6583, %v7805
  %v8224 = vadd.f32 %v6584, %v7807
  %v8225 = vadd.f32 %v6585, %v7811
  %v8226 = vadd.f32 %v6586, %v7813
  %v8227 = vadd.f32 %v6587, %v7817
  %v8228 = vadd.f32 %v6588, %v7819
  %v8229 = vadd.f32 %v6589, %v7823
  %v8230 = vadd.f32 %v6590, %v7825
  %v8231 = vadd.f32 %v6591, %v7829
  %v8232 = vadd.f32 %v6592, %v7831
  %v8233 = vadd.f32 %v6593, %v7835
  %v8234 = vadd.f32 %v6594, %v7837
  %v8235 = vadd.f32 %v6595, %v7841
  %v8236 = vadd.f32 %v6596, %v7843
  %v8237 = vadd.f32 %v6597, %v7847
  %v8238 = vadd.f32 %v6598, %v7849
  %v8239 = vadd.f32 %v6599, %v7853
  %v8240 = vadd.f32 %v6600, %v7855
  %v8241 = vmax.f32 %v7857, %v7873
  %v8242 = vmax.f32 %v7858, %v7874
  %v8243 = vmax.f32 %v7859, %v7875
  %v8244 = vmax.f32 %v7860, %v7876
  %v8245 = vmax.f32 %v7861, %v7877
  %v8246 = vmax.f32 %v7862, %v7878
  %v8247 = vmax.f32 %v7863, %v7879
  %v8248 = vmax.f32 %v7864, %v7880
  %v8249 = vmax.f32 %v7865, %v7881
  %v8250 = vmax.f32 %v7866, %v7882
  %v8251 = vmax.f32 %v7867, %v7883
  %v8252 = vmax.f32 %v7868, %v7884
  %v8253 = vmax.f32 %v7869, %v7885
  %v8254 = vmax.f32 %v7870, %v7886
  %v8255 = vmax.f32 %v7871, %v7887
  %v8256 = vmax.f32 %v7872, %v7888
  %v8257 = vmax.f32 %v7889, %v7905
  %v8258 = vmax.f32 %v7890, %v7906
  %v8259 = vmax.f32 %v7891, %v7907
  %v8260 = vmax.f32 %v7892, %v7908
  %v8261 = vmax.f32 %v7893, %v7909
  %v8262 = vmax.f32 %v7894, %v7910
  %v8263 = vmax.f32 %v7895, %v7911
  %v8264 = vmax.f32 %v7896, %v7912
  %v8265 = vmax.f32 %v7897, %v7913
  %v8266 = vmax.f32 %v7898, %v7914
  %v8267 = vmax.f32 %v7899, %v7915
  %v8268 = vmax.f32 %v7900, %v7916
  %v8269 = vmax.f32 %v7901, %v7917
  %v8270 = vmax.f32 %v7902, %v7918
  %v8271 = vmax.f32 %v7903, %v7919
  %v8272 = vmax.f32 %v7904, %v7920
  %v8273 = vmax.f32 %v7921, %v7937
  %v8274 = vmax.f32 %v7922, %v7938
  %v8275 = vmax.f32 %v7923, %v7939
  %v8276 = vmax.f32 %v7924, %v7940
  %v8277 = vmax.f32 %v7925, %v7941
  %v8278 = vmax.f32 %v7926, %v7942
  %v8279 = vmax.f32 %v7927, %v7943
  %v8280 = vmax.f32 %v7928, %v7944
  %v8281 = vmax.f32 %v7929, %v7945
  %v8282 = vmax.f32 %v7930, %v7946
  %v8283 = vmax.f32 %v7931, %v7947
  %v8284 = vmax.f32 %v7932, %v7948
  %v8285 = vmax.f32 %v7933, %v7949
  %v8286 = vmax.f32 %v7934, %v7950
  %v8287 = vmax.f32 %v7935, %v7951
  %v8288 = vmax.f32 %v7936, %v7952
  %v8289 = vmax.f32 %v7953, %v7969
  %v8290 = vmax.f32 %v7954, %v7970
  %v8291 = vmax.f32 %v7955, %v7971
  %v8292 = vmax.f32 %v7956, %v7972
  %v8293 = vmax.f32 %v7957, %v7973
  %v8294 = vmax.f32 %v7958, %v7974
  %v8295 = vmax.f32 %v7959, %v7975
  %v8296 = vmax.f32 %v7960, %v7976
  %v8297 = vmax.f32 %v7961, %v7977
  %v8298 = vmax.f32 %v7962, %v7978
  %v8299 = vmax.f32 %v7963, %v7979
  %v8300 = vmax.f32 %v7964, %v7980
  %v8301 = vmax.f32 %v7965, %v7981
  %v8302 = vmax.f32 %v7966, %v7982
  %v8303 = vmax.f32 %v7967, %v7983
  %v8304 = vmax.f32 %v7968, %v7984
  %v8305 = vmax.f32 %v7985, %v8001
  %v8306 = vmax.f32 %v7986, %v8002
  %v8307 = vmax.f32 %v7987, %v8003
  %v8308 = vmax.f32 %v7988, %v8004
  %v8309 = vmax.f32 %v7989, %v8005
  %v8310 = vmax.f32 %v7990, %v8006
  %v8311 = vmax.f32 %v7991, %v8007
  %v8312 = vmax.f32 %v7992, %v8008
  %v8313 = vmax.f32 %v7993, %v8009
  %v8314 = vmax.f32 %v7994, %v8010
  %v8315 = vmax.f32 %v7995, %v8011
  %v8316 = vmax.f32 %v7996, %v8012
  %v8317 = vmax.f32 %v7997, %v8013
  %v8318 = vmax.f32 %v7998, %v8014
  %v8319 = vmax.f32 %v7999, %v8015
  %v8320 = vmax.f32 %v8000, %v8016
  %v8321 = vmax.f32 %v8017, %v8033
  %v8322 = vmax.f32 %v8018, %v8034
  %v8323 = vmax.f32 %v8019, %v8035
  %v8324 = vmax.f32 %v8020, %v8036
  %v8325 = vmax.f32 %v8021, %v8037
  %v8326 = vmax.f32 %v8022, %v8038
  %v8327 = vmax.f32 %v8023, %v8039
  %v8328 = vmax.f32 %v8024, %v8040
  %v8329 = vmax.f32 %v8025, %v8041
  %v8330 = vmax.f32 %v8026, %v8042
  %v8331 = vmax.f32 %v8027, %v8043
  %v8332 = vmax.f32 %v8028, %v8044
  %v8333 = vmax.f32 %v8029, %v8045
  %v8334 = vmax.f32 %v8030, %v8046
  %v8335 = vmax.f32 %v8031, %v8047
  %v8336 = vmax.f32 %v8032, %v8048
  %v8337 = vmax.f32 %v8049, %v8065
  %v8338 = vmax.f32 %v8050, %v8066
  %v8339 = vmax.f32 %v8051, %v8067
  %v8340 = vmax.f32 %v8052, %v8068
  %v8341 = vmax.f32 %v8053, %v8069
  %v8342 = vmax.f32 %v8054, %v8070
  %v8343 = vmax.f32 %v8055, %v8071
  %v8344 = vmax.f32 %v8056, %v8072
  %v8345 = vmax.f32 %v8057, %v8073
  %v8346 = vmax.f32 %v8058, %v8074
  %v8347 = vmax.f32 %v8059, %v8075
  %v8348 = vmax.f32 %v8060, %v8076
  %v8349 = vmax.f32 %v8061, %v8077
  %v8350 = vmax.f32 %v8062, %v8078
  %v8351 = vmax.f32 %v8063, %v8079
  %v8352 = vmax.f32 %v8064, %v8080
  %v8353 = vmax.f32 %v8081, %v8097
  %v8354 = vmax.f32 %v8082, %v8098
  %v8355 = vmax.f32 %v8083, %v8099
  %v8356 = vmax.f32 %v8084, %v8100
  %v8357 = vmax.f32 %v8085, %v8101
  %v8358 = vmax.f32 %v8086, %v8102
  %v8359 = vmax.f32 %v8087, %v8103
  %v8360 = vmax.f32 %v8088, %v8104
  %v8361 = vmax.f32 %v8089, %v8105
  %v8362 = vmax.f32 %v8090, %v8106
  %v8363 = vmax.f32 %v8091, %v8107
  %v8364 = vmax.f32 %v8092, %v8108
  %v8365 = vmax.f32 %v8093, %v8109
  %v8366 = vmax.f32 %v8094, %v8110
  %v8367 = vmax.f32 %v8095, %v8111
  %v8368 = vmax.f32 %v8096, %v8112
  %v8369 = vmax.f32 %v8113, %v8129
  %v8370 = vmax.f32 %v8114, %v8130
  %v8371 = vmax.f32 %v8115, %v8131
  %v8372 = vmax.f32 %v8116, %v8132
  %v8373 = vmax.f32 %v8117, %v8133
  %v8374 = vmax.f32 %v8118, %v8134
  %v8375 = vmax.f32 %v8119, %v8135
  %v8376 = vmax.f32 %v8120, %v8136
  %v8377 = vmax.f32 %v8121, %v8137
  %v8378 = vmax.f32 %v8122, %v8138
  %v8379 = vmax.f32 %v8123, %v8139
  %v8380 = vmax.f32 %v8124, %v8140
  %v8381 = vmax.f32 %v8125, %v8141
  %v8382 = vmax.f32 %v8126, %v8142
  %v8383 = vmax.f32 %v8127, %v8143
  %v8384 = vmax.f32 %v8128, %v8144
  %v8385 = vmax.f32 %v8145, %v8161
  %v8386 = vmax.f32 %v8146, %v8162
  %v8387 = vmax.f32 %v8147, %v8163
  %v8388 = vmax.f32 %v8148, %v8164
  %v8389 = vmax.f32 %v8149, %v8165
  %v8390 = vmax.f32 %v8150, %v8166
  %v8391 = vmax.f32 %v8151, %v8167
  %v8392 = vmax.f32 %v8152, %v8168
  %v8393 = vmax.f32 %v8153, %v8169
  %v8394 = vmax.f32 %v8154, %v8170
  %v8395 = vmax.f32 %v8155, %v8171
  %v8396 = vmax.f32 %v8156, %v8172
  %v8397 = vmax.f32 %v8157, %v8173
  %v8398 = vmax.f32 %v8158, %v8174
  %v8399 = vmax.f32 %v8159, %v8175
  %v8400 = vmax.f32 %v8160, %v8176
  %v8401 = vmax.f32 %v8177, %v8193
  %v8402 = vmax.f32 %v8178, %v8194
  %v8403 = vmax.f32 %v8179, %v8195
  %v8404 = vmax.f32 %v8180, %v8196
  %v8405 = vmax.f32 %v8181, %v8197
  %v8406 = vmax.f32 %v8182, %v8198
  %v8407 = vmax.f32 %v8183, %v8199
  %v8408 = vmax.f32 %v8184, %v8200
  %v8409 = vmax.f32 %v8185, %v8201
  %v8410 = vmax.f32 %v8186, %v8202
  %v8411 = vmax.f32 %v8187, %v8203
  %v8412 = vmax.f32 %v8188, %v8204
  %v8413 = vmax.f32 %v8189, %v8205
  %v8414 = vmax.f32 %v8190, %v8206
  %v8415 = vmax.f32 %v8191, %v8207
  %v8416 = vmax.f32 %v8192, %v8208
  %v8417 = vmax.f32 %v8209, %v8225
  %v8418 = vmax.f32 %v8210, %v8226
  %v8419 = vmax.f32 %v8211, %v8227
  %v8420 = vmax.f32 %v8212, %v8228
  %v8421 = vmax.f32 %v8213, %v8229
  %v8422 = vmax.f32 %v8214, %v8230
  %v8423 = vmax.f32 %v8215, %v8231
  %v8424 = vmax.f32 %v8216, %v8232
  %v8425 = vmax.f32 %v8217, %v8233
  %v8426 = vmax.f32 %v8218, %v8234
  %v8427 = vmax.f32 %v8219, %v8235
  %v8428 = vmax.f32 %v8220, %v8236
  %v8429 = vmax.f32 %v8221, %v8237
  %v8430 = vmax.f32 %v8222, %v8238
  %v8431 = vmax.f32 %v8223, %v8239
  %v8432 = vmax.f32 %v8224, %v8240
  %v8433 = vmax.f32 %v8241, %v8242
  %v8434 = vmax.f32 %v8243, %v8244
  %v8435 = vmax.f32 %v8245, %v8246
  %v8436 = vmax.f32 %v8247, %v8248
  %v8437 = vmax.f32 %v8249, %v8250
  %v8438 = vmax.f32 %v8251, %v8252
  %v8439 = vmax.f32 %v8253, %v8254
  %v8440 = vmax.f32 %v8255, %v8256
  %v8441 = vmax.f32 %v8257, %v8258
  %v8442 = vmax.f32 %v8259, %v8260
  %v8443 = vmax.f32 %v8261, %v8262
  %v8444 = vmax.f32 %v8263, %v8264
  %v8445 = vmax.f32 %v8265, %v8266
  %v8446 = vmax.f32 %v8267, %v8268
  %v8447 = vmax.f32 %v8269, %v8270
  %v8448 = vmax.f32 %v8271, %v8272
  %v8449 = vmax.f32 %v8273, %v8274
  %v8450 = vmax.f32 %v8275, %v8276
  %v8451 = vmax.f32 %v8277, %v8278
  %v8452 = vmax.f32 %v8279, %v8280
  %v8453 = vmax.f32 %v8281, %v8282
  %v8454 = vmax.f32 %v8283, %v8284
  %v8455 = vmax.f32 %v8285, %v8286
  %v8456 = vmax.f32 %v8287, %v8288
  %v8457 = vmax.f32 %v8289, %v8290
  %v8458 = vmax.f32 %v8291, %v8292
  %v8459 = vmax.f32 %v8293, %v8294
  %v8460 = vmax.f32 %v8295, %v8296
  %v8461 = vmax.f32 %v8297, %v8298
  %v8462 = vmax.f32 %v8299, %v8300
  %v8463 = vmax.f32 %v8301, %v8302
  %v8464 = vmax.f32 %v8303, %v8304
  %v8465 = vmax.f32 %v8305, %v8306
  %v8466 = vmax.f32 %v8307, %v8308
  %v8467 = vmax.f32 %v8309, %v8310
  %v8468 = vmax.f32 %v8311, %v8312
  %v8469 = vmax.f32 %v8313, %v8314
  %v8470 = vmax.f32 %v8315, %v8316
  %v8471 = vmax.f32 %v8317, %v8318
  %v8472 = vmax.f32 %v8319, %v8320
  %v8473 = vmax.f32 %v8321, %v8322
  %v8474 = vmax.f32 %v8323, %v8324
  %v8475 = vmax.f32 %v8325, %v8326
  %v8476 = vmax.f32 %v8327, %v8328
  %v8477 = vmax.f32 %v8329, %v8330
  %v8478 = vmax.f32 %v8331, %v8332
  %v8479 = vmax.f32 %v8333, %v8334
  %v8480 = vmax.f32 %v8335, %v8336
  %v8481 = vmax.f32 %v8337, %v8338
  %v8482 = vmax.f32 %v8339, %v8340
  %v8483 = vmax.f32 %v8341, %v8342
  %v8484 = vmax.f32 %v8343, %v8344
  %v8485 = vmax.f32 %v8345, %v8346
  %v8486 = vmax.f32 %v8347, %v8348
  %v8487 = vmax.f32 %v8349, %v8350
  %v8488 = vmax.f32 %v8351, %v8352
  %v8489 = vmax.f32 %v8353, %v8354
  %v8490 = vmax.f32 %v8355, %v8356
  %v8491 = vmax.f32 %v8357, %v8358
  %v8492 = vmax.f32 %v8359, %v8360
  %v8493 = vmax.f32 %v8361, %v8362
  %v8494 = vmax.f32 %v8363, %v8364
  %v8495 = vmax.f32 %v8365, %v8366
  %v8496 = vmax.f32 %v8367, %v8368
  %v8497 = vmax.f32 %v8369, %v8370
  %v8498 = vmax.f32 %v8371, %v8372
  %v8499 = vmax.f32 %v8373, %v8374
  %v8500 = vmax.f32 %v8375, %v8376
  %v8501 = vmax.f32 %v8377, %v8378
  %v8502 = vmax.f32 %v8379, %v8380
  %v8503 = vmax.f32 %v8381, %v8382
  %v8504 = vmax.f32 %v8383, %v8384
  %v8505 = vmax.f32 %v8385, %v8386
  %v8506 = vmax.f32 %v8387, %v8388
  %v8507 = vmax.f32 %v8389, %v8390
  %v8508 = vmax.f32 %v8391, %v8392
  %v8509 = vmax.f32 %v8393, %v8394
  %v8510 = vmax.f32 %v8395, %v8396
  %v8511 = vmax.f32 %v8397, %v8398
  %v8512 = vmax.f32 %v8399, %v8400
  %v8513 = vmax.f32 %v8401, %v8402
  %v8514 = vmax.f32 %v8403, %v8404
  %v8515 = vmax.f32 %v8405, %v8406
  %v8516 = vmax.f32 %v8407, %v8408
  %v8517 = vmax.f32 %v8409, %v8410
  %v8518 = vmax.f32 %v8411, %v8412
  %v8519 = vmax.f32 %v8413, %v8414
  %v8520 = vmax.f32 %v8415, %v8416
  %v8521 = vmax.f32 %v8417, %v8418
  %v8522 = vmax.f32 %v8419, %v8420
  %v8523 = vmax.f32 %v8421, %v8422
  %v8524 = vmax.f32 %v8423, %v8424
  %v8525 = vmax.f32 %v8425, %v8426
  %v8526 = vmax.f32 %v8427, %v8428
  %v8527 = vmax.f32 %v8429, %v8430
  %v8528 = vmax.f32 %v8431, %v8432
  %v8529 = vld [vmem:[%s2] sm:$0x1]
  %v8531 = vlaneseq
  %v8532 = vshrl.u32 %v8531, 7
  %v8533 = vsub.s32 0, %v8532
  %v8534 = vrot.slane %v8529, %v8533
  %v8536 = vadd.f32 %v8433, %v8534
  %v8537 = vadd.f32 %v8434, %v8534
  %v8538 = vadd.f32 %v8435, %v8534
  %v8539 = vadd.f32 %v8436, %v8534
  %v8540 = vadd.f32 %v8437, %v8534
  %v8541 = vadd.f32 %v8438, %v8534
  %v8542 = vadd.f32 %v8439, %v8534
  %v8543 = vadd.f32 %v8440, %v8534
  %v8544 = vadd.f32 %v8441, %v8534
  %v8545 = vadd.f32 %v8442, %v8534
  %v8546 = vadd.f32 %v8443, %v8534
  %v8547 = vadd.f32 %v8444, %v8534
  %v8548 = vadd.f32 %v8445, %v8534
  %v8549 = vadd.f32 %v8446, %v8534
  %v8550 = vadd.f32 %v8447, %v8534
  %v8551 = vadd.f32 %v8448, %v8534
  %v8552 = vadd.f32 %v8449, %v8534
  %v8553 = vadd.f32 %v8450, %v8534
  %v8554 = vadd.f32 %v8451, %v8534
  %v8555 = vadd.f32 %v8452, %v8534
  %v8556 = vadd.f32 %v8453, %v8534
  %v8557 = vadd.f32 %v8454, %v8534
  %v8558 = vadd.f32 %v8455, %v8534
  %v8559 = vadd.f32 %v8456, %v8534
  %v8560 = vadd.f32 %v8457, %v8534
  %v8561 = vadd.f32 %v8458, %v8534
  %v8562 = vadd.f32 %v8459, %v8534
  %v8563 = vadd.f32 %v8460, %v8534
  %v8564 = vadd.f32 %v8461, %v8534
  %v8565 = vadd.f32 %v8462, %v8534
  %v8566 = vadd.f32 %v8463, %v8534
  %v8567 = vadd.f32 %v8464, %v8534
  %v8568 = vadd.f32 %v8465, %v8534
  %v8569 = vadd.f32 %v8466, %v8534
  %v8570 = vadd.f32 %v8467, %v8534
  %v8571 = vadd.f32 %v8468, %v8534
  %v8572 = vadd.f32 %v8469, %v8534
  %v8573 = vadd.f32 %v8470, %v8534
  %v8574 = vadd.f32 %v8471, %v8534
  %v8575 = vadd.f32 %v8472, %v8534
  %v8576 = vadd.f32 %v8473, %v8534
  %v8577 = vadd.f32 %v8474, %v8534
  %v8578 = vadd.f32 %v8475, %v8534
  %v8579 = vadd.f32 %v8476, %v8534
  %v8580 = vadd.f32 %v8477, %v8534
  %v8581 = vadd.f32 %v8478, %v8534
  %v8582 = vadd.f32 %v8479, %v8534
  %v8583 = vadd.f32 %v8480, %v8534
  %v8584 = vadd.f32 %v8481, %v8534
  %v8585 = vadd.f32 %v8482, %v8534
  %v8586 = vadd.f32 %v8483, %v8534
  %v8587 = vadd.f32 %v8484, %v8534
  %v8588 = vadd.f32 %v8485, %v8534
  %v8589 = vadd.f32 %v8486, %v8534
  %v8590 = vadd.f32 %v8487, %v8534
  %v8591 = vadd.f32 %v8488, %v8534
  %v8592 = vadd.f32 %v8489, %v8534
  %v8593 = vadd.f32 %v8490, %v8534
  %v8594 = vadd.f32 %v8491, %v8534
  %v8595 = vadd.f32 %v8492, %v8534
  %v8596 = vadd.f32 %v8493, %v8534
  %v8597 = vadd.f32 %v8494, %v8534
  %v8598 = vadd.f32 %v8495, %v8534
  %v8599 = vadd.f32 %v8496, %v8534
  %v8600 = vadd.f32 %v8497, %v8534
  %v8601 = vadd.f32 %v8498, %v8534
  %v8602 = vadd.f32 %v8499, %v8534
  %v8603 = vadd.f32 %v8500, %v8534
  %v8604 = vadd.f32 %v8501, %v8534
  %v8605 = vadd.f32 %v8502, %v8534
  %v8606 = vadd.f32 %v8503, %v8534
  %v8607 = vadd.f32 %v8504, %v8534
  %v8608 = vadd.f32 %v8505, %v8534
  %v8609 = vadd.f32 %v8506, %v8534
  %v8610 = vadd.f32 %v8507, %v8534
  %v8611 = vadd.f32 %v8508, %v8534
  %v8612 = vadd.f32 %v8509, %v8534
  %v8613 = vadd.f32 %v8510, %v8534
  %v8614 = vadd.f32 %v8511, %v8534
  %v8615 = vadd.f32 %v8512, %v8534
  %v8616 = vadd.f32 %v8513, %v8534
  %v8617 = vadd.f32 %v8514, %v8534
  %v8618 = vadd.f32 %v8515, %v8534
  %v8619 = vadd.f32 %v8516, %v8534
  %v8620 = vadd.f32 %v8517, %v8534
  %v8621 = vadd.f32 %v8518, %v8534
  %v8622 = vadd.f32 %v8519, %v8534
  %v8623 = vadd.f32 %v8520, %v8534
  %v8624 = vadd.f32 %v8521, %v8534
  %v8625 = vadd.f32 %v8522, %v8534
  %v8626 = vadd.f32 %v8523, %v8534
  %v8627 = vadd.f32 %v8524, %v8534
  %v8628 = vadd.f32 %v8525, %v8534
  %v8629 = vadd.f32 %v8526, %v8534
  %v8630 = vadd.f32 %v8527, %v8534
  %v8631 = vadd.f32 %v8528, %v8534
  %v8632 = vmax.f32 %v8536, 0.0
  %v8633 = vmax.f32 %v8537, 0.0
  %v8634 = vmax.f32 %v8538, 0.0
  %v8635 = vmax.f32 %v8539, 0.0
  %v8636 = vmax.f32 %v8540, 0.0
  %v8637 = vmax.f32 %v8541, 0.0
  %v8638 = vmax.f32 %v8542, 0.0
  %v8639 = vmax.f32 %v8543, 0.0
  %v8640 = vmax.f32 %v8544, 0.0
  %v8641 = vmax.f32 %v8545, 0.0
  %v8642 = vmax.f32 %v8546, 0.0
  %v8643 = vmax.f32 %v8547, 0.0
  %v8644 = vmax.f32 %v8548, 0.0
  %v8645 = vmax.f32 %v8549, 0.0
  %v8646 = vmax.f32 %v8550, 0.0
  %v8647 = vmax.f32 %v8551, 0.0
  %v8648 = vmax.f32 %v8552, 0.0
  %v8649 = vmax.f32 %v8553, 0.0
  %v8650 = vmax.f32 %v8554, 0.0
  %v8651 = vmax.f32 %v8555, 0.0
  %v8652 = vmax.f32 %v8556, 0.0
  %v8653 = vmax.f32 %v8557, 0.0
  %v8654 = vmax.f32 %v8558, 0.0
  %v8655 = vmax.f32 %v8559, 0.0
  %v8656 = vmax.f32 %v8560, 0.0
  %v8657 = vmax.f32 %v8561, 0.0
  %v8658 = vmax.f32 %v8562, 0.0
  %v8659 = vmax.f32 %v8563, 0.0
  %v8660 = vmax.f32 %v8564, 0.0
  %v8661 = vmax.f32 %v8565, 0.0
  %v8662 = vmax.f32 %v8566, 0.0
  %v8663 = vmax.f32 %v8567, 0.0
  %v8664 = vmax.f32 %v8568, 0.0
  %v8665 = vmax.f32 %v8569, 0.0
  %v8666 = vmax.f32 %v8570, 0.0
  %v8667 = vmax.f32 %v8571, 0.0
  %v8668 = vmax.f32 %v8572, 0.0
  %v8669 = vmax.f32 %v8573, 0.0
  %v8670 = vmax.f32 %v8574, 0.0
  %v8671 = vmax.f32 %v8575, 0.0
  %v8672 = vmax.f32 %v8576, 0.0
  %v8673 = vmax.f32 %v8577, 0.0
  %v8674 = vmax.f32 %v8578, 0.0
  %v8675 = vmax.f32 %v8579, 0.0
  %v8676 = vmax.f32 %v8580, 0.0
  %v8677 = vmax.f32 %v8581, 0.0
  %v8678 = vmax.f32 %v8582, 0.0
  %v8679 = vmax.f32 %v8583, 0.0
  %v8680 = vmax.f32 %v8584, 0.0
  %v8681 = vmax.f32 %v8585, 0.0
  %v8682 = vmax.f32 %v8586, 0.0
  %v8683 = vmax.f32 %v8587, 0.0
  %v8684 = vmax.f32 %v8588, 0.0
  %v8685 = vmax.f32 %v8589, 0.0
  %v8686 = vmax.f32 %v8590, 0.0
  %v8687 = vmax.f32 %v8591, 0.0
  %v8688 = vmax.f32 %v8592, 0.0
  %v8689 = vmax.f32 %v8593, 0.0
  %v8690 = vmax.f32 %v8594, 0.0
  %v8691 = vmax.f32 %v8595, 0.0
  %v8692 = vmax.f32 %v8596, 0.0
  %v8693 = vmax.f32 %v8597, 0.0
  %v8694 = vmax.f32 %v8598, 0.0
  %v8695 = vmax.f32 %v8599, 0.0
  %v8696 = vmax.f32 %v8600, 0.0
  %v8697 = vmax.f32 %v8601, 0.0
  %v8698 = vmax.f32 %v8602, 0.0
  %v8699 = vmax.f32 %v8603, 0.0
  %v8700 = vmax.f32 %v8604, 0.0
  %v8701 = vmax.f32 %v8605, 0.0
  %v8702 = vmax.f32 %v8606, 0.0
  %v8703 = vmax.f32 %v8607, 0.0
  %v8704 = vmax.f32 %v8608, 0.0
  %v8705 = vmax.f32 %v8609, 0.0
  %v8706 = vmax.f32 %v8610, 0.0
  %v8707 = vmax.f32 %v8611, 0.0
  %v8708 = vmax.f32 %v8612, 0.0
  %v8709 = vmax.f32 %v8613, 0.0
  %v8710 = vmax.f32 %v8614, 0.0
  %v8711 = vmax.f32 %v8615, 0.0
  %v8712 = vmax.f32 %v8616, 0.0
  %v8713 = vmax.f32 %v8617, 0.0
  %v8714 = vmax.f32 %v8618, 0.0
  %v8715 = vmax.f32 %v8619, 0.0
  %v8716 = vmax.f32 %v8620, 0.0
  %v8717 = vmax.f32 %v8621, 0.0
  %v8718 = vmax.f32 %v8622, 0.0
  %v8719 = vmax.f32 %v8623, 0.0
  %v8720 = vmax.f32 %v8624, 0.0
  %v8721 = vmax.f32 %v8625, 0.0
  %v8722 = vmax.f32 %v8626, 0.0
  %v8723 = vmax.f32 %v8627, 0.0
  %v8724 = vmax.f32 %v8628, 0.0
  %v8725 = vmax.f32 %v8629, 0.0
  %v8726 = vmax.f32 %v8630, 0.0
  %v8727 = vmax.f32 %v8631, 0.0
  %v8728 = vld [vmem:[%s3] sm:$0xff]
  %v8729 = vld [vmem:[%s3 + $0x8] sm:$0xff]
  %v8730 = vld [vmem:[%s3 + $0x10] sm:$0xff]
  %v8731 = vld [vmem:[%s3 + $0x18] sm:$0xff]
  %v8732 = vld [vmem:[%s3 + $0x20] sm:$0xff]
  %v8733 = vld [vmem:[%s3 + $0x28] sm:$0xff]
  %v8734 = vld [vmem:[%s3 + $0x30] sm:$0xff]
  %v8735 = vld [vmem:[%s3 + $0x38] sm:$0xff]
  %v8736 = vld [vmem:[%s3 + $0x40] sm:$0xff]
  %v8737 = vld [vmem:[%s3 + $0x48] sm:$0xff]
  %v8738 = vld [vmem:[%s3 + $0x50] sm:$0xff]
  %v8739 = vld [vmem:[%s3 + $0x58] sm:$0xff]
  %v8740 = vld [vmem:[%s3 + $0x60] sm:$0xff]
  %v8741 = vld [vmem:[%s3 + $0x68] sm:$0xff]
  %v8742 = vld [vmem:[%s3 + $0x70] sm:$0xff]
  %v8743 = vld [vmem:[%s3 + $0x78] sm:$0xff]
  %v8744 = vld [vmem:[%s3 + $0x80] sm:$0xff]
  %v8745 = vld [vmem:[%s3 + $0x88] sm:$0xff]
  %v8746 = vld [vmem:[%s3 + $0x90] sm:$0xff]
  %v8747 = vld [vmem:[%s3 + $0x98] sm:$0xff]
  %v8748 = vld [vmem:[%s3 + $0xa0] sm:$0xff]
  %v8749 = vld [vmem:[%s3 + $0xa8] sm:$0xff]
  %v8750 = vld [vmem:[%s3 + $0xb0] sm:$0xff]
  %v8751 = vld [vmem:[%s3 + $0xb8] sm:$0xff]
  %v8752 = vld [vmem:[%s3 + $0xc0] sm:$0xff]
  %v8753 = vld [vmem:[%s3 + $0xc8] sm:$0xff]
  %v8754 = vld [vmem:[%s3 + $0xd0] sm:$0xff]
  %v8755 = vld [vmem:[%s3 + $0xd8] sm:$0xff]
  %v8756 = vld [vmem:[%s3 + $0xe0] sm:$0xff]
  %v8757 = vld [vmem:[%s3 + $0xe8] sm:$0xff]
  %v8758 = vld [vmem:[%s3 + $0xf0] sm:$0xff]
  %v8759 = vld [vmem:[%s3 + $0xf8] sm:$0xff]
  %s8760 = scalar_lea.vmem %s3, 256
  %v8761 = vld [vmem:[%s8760] sm:$0xff]
  %v8762 = vld [vmem:[%s8760 + $0x8] sm:$0xff]
  %v8763 = vld [vmem:[%s8760 + $0x10] sm:$0xff]
  %v8764 = vld [vmem:[%s8760 + $0x18] sm:$0xff]
  %v8765 = vld [vmem:[%s8760 + $0x20] sm:$0xff]
  %v8766 = vld [vmem:[%s8760 + $0x28] sm:$0xff]
  %v8767 = vld [vmem:[%s8760 + $0x30] sm:$0xff]
  %v8768 = vld [vmem:[%s8760 + $0x38] sm:$0xff]
  %v8769 = vld [vmem:[%s8760 + $0x40] sm:$0xff]
  %v8770 = vld [vmem:[%s8760 + $0x48] sm:$0xff]
  %v8771 = vld [vmem:[%s8760 + $0x50] sm:$0xff]
  %v8772 = vld [vmem:[%s8760 + $0x58] sm:$0xff]
  %v8773 = vld [vmem:[%s8760 + $0x60] sm:$0xff]
  %v8774 = vld [vmem:[%s8760 + $0x68] sm:$0xff]
  %v8775 = vld [vmem:[%s8760 + $0x70] sm:$0xff]
  %v8776 = vld [vmem:[%s8760 + $0x78] sm:$0xff]
  %v8777 = vld [vmem:[%s8760 + $0x80] sm:$0xff]
  %v8778 = vld [vmem:[%s8760 + $0x88] sm:$0xff]
  %v8779 = vld [vmem:[%s8760 + $0x90] sm:$0xff]
  %v8780 = vld [vmem:[%s8760 + $0x98] sm:$0xff]
  %v8781 = vld [vmem:[%s8760 + $0xa0] sm:$0xff]
  %v8782 = vld [vmem:[%s8760 + $0xa8] sm:$0xff]
  %v8783 = vld [vmem:[%s8760 + $0xb0] sm:$0xff]
  %v8784 = vld [vmem:[%s8760 + $0xb8] sm:$0xff]
  %v8785 = vld [vmem:[%s8760 + $0xc0] sm:$0xff]
  %v8786 = vld [vmem:[%s8760 + $0xc8] sm:$0xff]
  %v8787 = vld [vmem:[%s8760 + $0xd0] sm:$0xff]
  %v8788 = vld [vmem:[%s8760 + $0xd8] sm:$0xff]
  %v8789 = vld [vmem:[%s8760 + $0xe0] sm:$0xff]
  %v8790 = vld [vmem:[%s8760 + $0xe8] sm:$0xff]
  %v8791 = vld [vmem:[%s8760 + $0xf0] sm:$0xff]
  %v8792 = vld [vmem:[%s8760 + $0xf8] sm:$0xff]
  %8793 = vmatprep.subr.mxu0 %v8792
  %8794 = vmatpush1.msra.mxu0 %v8791
  %8795 = vmatprep.subr.mxu0 %v8790
  %8796 = vmatpush1.msra.mxu0 %v8789
  %8797 = vmatprep.subr.mxu0 %v8788
  %8798 = vmatpush1.msra.mxu0 %v8787
  %8799 = vmatprep.subr.mxu0 %v8786
  %8800 = vmatpush1.msra.mxu0 %v8785
  %8801 = vmatprep.subr.mxu0 %v8784
  %8802 = vmatpush1.msra.mxu0 %v8783
  %8803 = vmatprep.subr.mxu0 %v8782
  %8804 = vmatpush1.msra.mxu0 %v8781
  %8805 = vmatprep.subr.mxu0 %v8780
  %8806 = vmatpush1.msra.mxu0 %v8779
  %8807 = vmatprep.subr.mxu0 %v8778
  %8808 = vmatpush1.msra.mxu0 %v8777
  %8809 = vmatprep.subr.mxu0 %v8776
  %8810 = vmatpush1.msra.mxu0 %v8775
  %8811 = vmatprep.subr.mxu0 %v8774
  %8812 = vmatpush1.msra.mxu0 %v8773
  %8813 = vmatprep.subr.mxu0 %v8772
  %8814 = vmatpush1.msra.mxu0 %v8771
  %8815 = vmatprep.subr.mxu0 %v8770
  %8816 = vmatpush1.msra.mxu0 %v8769
  %8817 = vmatprep.subr.mxu0 %v8768
  %8818 = vmatpush1.msra.mxu0 %v8767
  %8819 = vmatprep.subr.mxu0 %v8766
  %8820 = vmatpush1.msra.mxu0 %v8765
  %8821 = vmatprep.subr.mxu0 %v8764
  %8822 = vmatpush1.msra.mxu0 %v8763
  %8823 = vmatprep.subr.mxu0 %v8762
  %8824 = vmatpush1.msra.mxu0 %v8761
  %8825 = vmatprep.subr.mxu0 0.0
  %8826 = vmatpush2.msra.mxu0 0.0
  %8827 = vmatprep.subr.mxu0 0.0
  %8828 = vmatpush2.msra.mxu0 0.0
  %8829 = vmatprep.subr.mxu0 0.0
  %8830 = vmatpush2.msra.mxu0 0.0
  %8831 = vmatprep.subr.mxu0 0.0
  %8832 = vmatpush2.msra.mxu0 0.0
  %8833 = vmatprep.subr.mxu0 0.0
  %8834 = vmatpush2.msra.mxu0 0.0
  %8835 = vmatprep.subr.mxu0 0.0
  %8836 = vmatpush2.msra.mxu0 0.0
  %8837 = vmatprep.subr.mxu0 0.0
  %8838 = vmatpush2.msra.mxu0 0.0
  %8839 = vmatprep.subr.mxu0 0.0
  %8840 = vmatpush2.msra.mxu0 0.0
  %8841 = vmatprep.subr.mxu0 0.0
  %8842 = vmatpush2.msra.mxu0 0.0
  %8843 = vmatprep.subr.mxu0 0.0
  %8844 = vmatpush2.msra.mxu0 0.0
  %8845 = vmatprep.subr.mxu0 0.0
  %8846 = vmatpush2.msra.mxu0 0.0
  %8847 = vmatprep.subr.mxu0 0.0
  %8848 = vmatpush2.msra.mxu0 0.0
  %8849 = vmatprep.subr.mxu0 0.0
  %8850 = vmatpush2.msra.mxu0 0.0
  %8851 = vmatprep.subr.mxu0 0.0
  %8852 = vmatpush2.msra.mxu0 0.0
  %8853 = vmatprep.subr.mxu0 0.0
  %8854 = vmatpush2.msra.mxu0 0.0
  %8855 = vmatprep.subr.mxu0 0.0
  %8856 = vmatpush2.msra.mxu0 0.0
  %8857 = vmatprep.mubr.f32.mxu0 0.0
  %8858 = vmatmul.mubr.f32.gmra.mxu0 %v8640
  %v8859 = vpop.f32.mrf.mxu0
  %v8860 = vadd.f32 0.0, %v8859
  %v8861 = vpop.f32.mrf.mxu0
  %v8862 = vadd.f32 0.0, %v8861
  %8863 = vmatprep.mubr.f32.mxu0 0.0
  %8864 = vmatmul.mubr.f32.gmra.mxu0 %v8641
  %v8865 = vpop.f32.mrf.mxu0
  %v8866 = vadd.f32 0.0, %v8865
  %v8867 = vpop.f32.mrf.mxu0
  %v8868 = vadd.f32 0.0, %v8867
  %8869 = vmatprep.mubr.f32.mxu0 0.0
  %8870 = vmatmul.mubr.f32.gmra.mxu0 %v8642
  %v8871 = vpop.f32.mrf.mxu0
  %v8872 = vadd.f32 0.0, %v8871
  %v8873 = vpop.f32.mrf.mxu0
  %v8874 = vadd.f32 0.0, %v8873
  %8875 = vmatprep.mubr.f32.mxu0 0.0
  %8876 = vmatmul.mubr.f32.gmra.mxu0 %v8643
  %v8877 = vpop.f32.mrf.mxu0
  %v8878 = vadd.f32 0.0, %v8877
  %v8879 = vpop.f32.mrf.mxu0
  %v8880 = vadd.f32 0.0, %v8879
  %8881 = vmatprep.mubr.f32.mxu0 0.0
  %8882 = vmatmul.mubr.f32.gmra.mxu0 %v8644
  %v8883 = vpop.f32.mrf.mxu0
  %v8884 = vadd.f32 0.0, %v8883
  %v8885 = vpop.f32.mrf.mxu0
  %v8886 = vadd.f32 0.0, %v8885
  %8887 = vmatprep.mubr.f32.mxu0 0.0
  %8888 = vmatmul.mubr.f32.gmra.mxu0 %v8645
  %v8889 = vpop.f32.mrf.mxu0
  %v8890 = vadd.f32 0.0, %v8889
  %v8891 = vpop.f32.mrf.mxu0
  %v8892 = vadd.f32 0.0, %v8891
  %8893 = vmatprep.mubr.f32.mxu0 0.0
  %8894 = vmatmul.mubr.f32.gmra.mxu0 %v8646
  %v8895 = vpop.f32.mrf.mxu0
  %v8896 = vadd.f32 0.0, %v8895
  %v8897 = vpop.f32.mrf.mxu0
  %v8898 = vadd.f32 0.0, %v8897
  %8899 = vmatprep.mubr.f32.mxu0 0.0
  %8900 = vmatmul.mubr.f32.gmra.mxu0 %v8647
  %v8901 = vpop.f32.mrf.mxu0
  %v8902 = vadd.f32 0.0, %v8901
  %v8903 = vpop.f32.mrf.mxu0
  %v8904 = vadd.f32 0.0, %v8903
  %8905 = vmatprep.mubr.f32.mxu0 0.0
  %8906 = vmatmul.mubr.f32.gmra.mxu0 %v8648
  %v8907 = vpop.f32.mrf.mxu0
  %v8908 = vadd.f32 0.0, %v8907
  %v8909 = vpop.f32.mrf.mxu0
  %v8910 = vadd.f32 0.0, %v8909
  %8911 = vmatprep.mubr.f32.mxu0 0.0
  %8912 = vmatmul.mubr.f32.gmra.mxu0 %v8649
  %v8913 = vpop.f32.mrf.mxu0
  %v8914 = vadd.f32 0.0, %v8913
  %v8915 = vpop.f32.mrf.mxu0
  %v8916 = vadd.f32 0.0, %v8915
  %8917 = vmatprep.mubr.f32.mxu0 0.0
  %8918 = vmatmul.mubr.f32.gmra.mxu0 %v8650
  %v8919 = vpop.f32.mrf.mxu0
  %v8920 = vadd.f32 0.0, %v8919
  %v8921 = vpop.f32.mrf.mxu0
  %v8922 = vadd.f32 0.0, %v8921
  %8923 = vmatprep.mubr.f32.mxu0 0.0
  %8924 = vmatmul.mubr.f32.gmra.mxu0 %v8651
  %v8925 = vpop.f32.mrf.mxu0
  %v8926 = vadd.f32 0.0, %v8925
  %v8927 = vpop.f32.mrf.mxu0
  %v8928 = vadd.f32 0.0, %v8927
  %8929 = vmatprep.mubr.f32.mxu0 0.0
  %8930 = vmatmul.mubr.f32.gmra.mxu0 %v8652
  %v8931 = vpop.f32.mrf.mxu0
  %v8932 = vadd.f32 0.0, %v8931
  %v8933 = vpop.f32.mrf.mxu0
  %v8934 = vadd.f32 0.0, %v8933
  %8935 = vmatprep.mubr.f32.mxu0 0.0
  %8936 = vmatmul.mubr.f32.gmra.mxu0 %v8653
  %v8937 = vpop.f32.mrf.mxu0
  %v8938 = vadd.f32 0.0, %v8937
  %v8939 = vpop.f32.mrf.mxu0
  %v8940 = vadd.f32 0.0, %v8939
  %8941 = vmatprep.mubr.f32.mxu0 0.0
  %8942 = vmatmul.mubr.f32.gmra.mxu0 %v8654
  %v8943 = vpop.f32.mrf.mxu0
  %v8944 = vadd.f32 0.0, %v8943
  %v8945 = vpop.f32.mrf.mxu0
  %v8946 = vadd.f32 0.0, %v8945
  %8947 = vmatprep.mubr.f32.mxu0 0.0
  %8948 = vmatmul.mubr.f32.gmra.mxu0 %v8655
  %v8949 = vpop.f32.mrf.mxu0
  %v8950 = vadd.f32 0.0, %v8949
  %v8951 = vpop.f32.mrf.mxu0
  %v8952 = vadd.f32 0.0, %v8951
  %8953 = vmatprep.mubr.f32.mxu0 0.0
  %8954 = vmatmul.mubr.f32.gmra.mxu0 %v8656
  %v8955 = vpop.f32.mrf.mxu0
  %v8956 = vadd.f32 0.0, %v8955
  %v8957 = vpop.f32.mrf.mxu0
  %v8958 = vadd.f32 0.0, %v8957
  %8959 = vmatprep.mubr.f32.mxu0 0.0
  %8960 = vmatmul.mubr.f32.gmra.mxu0 %v8657
  %v8961 = vpop.f32.mrf.mxu0
  %v8962 = vadd.f32 0.0, %v8961
  %v8963 = vpop.f32.mrf.mxu0
  %v8964 = vadd.f32 0.0, %v8963
  %8965 = vmatprep.mubr.f32.mxu0 0.0
  %8966 = vmatmul.mubr.f32.gmra.mxu0 %v8658
  %v8967 = vpop.f32.mrf.mxu0
  %v8968 = vadd.f32 0.0, %v8967
  %v8969 = vpop.f32.mrf.mxu0
  %v8970 = vadd.f32 0.0, %v8969
  %8971 = vmatprep.mubr.f32.mxu0 0.0
  %8972 = vmatmul.mubr.f32.gmra.mxu0 %v8659
  %v8973 = vpop.f32.mrf.mxu0
  %v8974 = vadd.f32 0.0, %v8973
  %v8975 = vpop.f32.mrf.mxu0
  %v8976 = vadd.f32 0.0, %v8975
  %8977 = vmatprep.mubr.f32.mxu0 0.0
  %8978 = vmatmul.mubr.f32.gmra.mxu0 %v8660
  %v8979 = vpop.f32.mrf.mxu0
  %v8980 = vadd.f32 0.0, %v8979
  %v8981 = vpop.f32.mrf.mxu0
  %v8982 = vadd.f32 0.0, %v8981
  %8983 = vmatprep.mubr.f32.mxu0 0.0
  %8984 = vmatmul.mubr.f32.gmra.mxu0 %v8661
  %v8985 = vpop.f32.mrf.mxu0
  %v8986 = vadd.f32 0.0, %v8985
  %v8987 = vpop.f32.mrf.mxu0
  %v8988 = vadd.f32 0.0, %v8987
  %8989 = vmatprep.mubr.f32.mxu0 0.0
  %8990 = vmatmul.mubr.f32.gmra.mxu0 %v8662
  %v8991 = vpop.f32.mrf.mxu0
  %v8992 = vadd.f32 0.0, %v8991
  %v8993 = vpop.f32.mrf.mxu0
  %v8994 = vadd.f32 0.0, %v8993
  %8995 = vmatprep.mubr.f32.mxu0 0.0
  %8996 = vmatmul.mubr.f32.gmra.mxu0 %v8663
  %v8997 = vpop.f32.mrf.mxu0
  %v8998 = vadd.f32 0.0, %v8997
  %v8999 = vpop.f32.mrf.mxu0
  %v9000 = vadd.f32 0.0, %v8999
  %9001 = vmatprep.mubr.f32.mxu0 0.0
  %9002 = vmatmul.mubr.f32.gmra.mxu0 %v8664
  %v9003 = vpop.f32.mrf.mxu0
  %v9004 = vadd.f32 0.0, %v9003
  %v9005 = vpop.f32.mrf.mxu0
  %v9006 = vadd.f32 0.0, %v9005
  %9007 = vmatprep.mubr.f32.mxu0 0.0
  %9008 = vmatmul.mubr.f32.gmra.mxu0 %v8665
  %v9009 = vpop.f32.mrf.mxu0
  %v9010 = vadd.f32 0.0, %v9009
  %v9011 = vpop.f32.mrf.mxu0
  %v9012 = vadd.f32 0.0, %v9011
  %9013 = vmatprep.mubr.f32.mxu0 0.0
  %9014 = vmatmul.mubr.f32.gmra.mxu0 %v8666
  %v9015 = vpop.f32.mrf.mxu0
  %v9016 = vadd.f32 0.0, %v9015
  %v9017 = vpop.f32.mrf.mxu0
  %v9018 = vadd.f32 0.0, %v9017
  %9019 = vmatprep.mubr.f32.mxu0 0.0
  %9020 = vmatmul.mubr.f32.gmra.mxu0 %v8667
  %v9021 = vpop.f32.mrf.mxu0
  %v9022 = vadd.f32 0.0, %v9021
  %v9023 = vpop.f32.mrf.mxu0
  %v9024 = vadd.f32 0.0, %v9023
  %9025 = vmatprep.mubr.f32.mxu0 0.0
  %9026 = vmatmul.mubr.f32.gmra.mxu0 %v8668
  %v9027 = vpop.f32.mrf.mxu0
  %v9028 = vadd.f32 0.0, %v9027
  %v9029 = vpop.f32.mrf.mxu0
  %v9030 = vadd.f32 0.0, %v9029
  %9031 = vmatprep.mubr.f32.mxu0 0.0
  %9032 = vmatmul.mubr.f32.gmra.mxu0 %v8669
  %v9033 = vpop.f32.mrf.mxu0
  %v9034 = vadd.f32 0.0, %v9033
  %v9035 = vpop.f32.mrf.mxu0
  %v9036 = vadd.f32 0.0, %v9035
  %9037 = vmatprep.mubr.f32.mxu0 0.0
  %9038 = vmatmul.mubr.f32.gmra.mxu0 %v8670
  %v9039 = vpop.f32.mrf.mxu0
  %v9040 = vadd.f32 0.0, %v9039
  %v9041 = vpop.f32.mrf.mxu0
  %v9042 = vadd.f32 0.0, %v9041
  %9043 = vmatprep.mubr.f32.mxu0 0.0
  %9044 = vmatmul.mubr.f32.gmra.mxu0 %v8671
  %v9045 = vpop.f32.mrf.mxu0
  %v9046 = vadd.f32 0.0, %v9045
  %v9047 = vpop.f32.mrf.mxu0
  %v9048 = vadd.f32 0.0, %v9047
  %9049 = vmatprep.mubr.f32.mxu0 0.0
  %9050 = vmatmul.mubr.f32.gmra.mxu0 %v8672
  %v9051 = vpop.f32.mrf.mxu0
  %v9052 = vadd.f32 0.0, %v9051
  %v9053 = vpop.f32.mrf.mxu0
  %v9054 = vadd.f32 0.0, %v9053
  %9055 = vmatprep.mubr.f32.mxu0 0.0
  %9056 = vmatmul.mubr.f32.gmra.mxu0 %v8673
  %v9057 = vpop.f32.mrf.mxu0
  %v9058 = vadd.f32 0.0, %v9057
  %v9059 = vpop.f32.mrf.mxu0
  %v9060 = vadd.f32 0.0, %v9059
  %9061 = vmatprep.mubr.f32.mxu0 0.0
  %9062 = vmatmul.mubr.f32.gmra.mxu0 %v8674
  %v9063 = vpop.f32.mrf.mxu0
  %v9064 = vadd.f32 0.0, %v9063
  %v9065 = vpop.f32.mrf.mxu0
  %v9066 = vadd.f32 0.0, %v9065
  %9067 = vmatprep.mubr.f32.mxu0 0.0
  %9068 = vmatmul.mubr.f32.gmra.mxu0 %v8675
  %v9069 = vpop.f32.mrf.mxu0
  %v9070 = vadd.f32 0.0, %v9069
  %v9071 = vpop.f32.mrf.mxu0
  %v9072 = vadd.f32 0.0, %v9071
  %9073 = vmatprep.mubr.f32.mxu0 0.0
  %9074 = vmatmul.mubr.f32.gmra.mxu0 %v8676
  %v9075 = vpop.f32.mrf.mxu0
  %v9076 = vadd.f32 0.0, %v9075
  %v9077 = vpop.f32.mrf.mxu0
  %v9078 = vadd.f32 0.0, %v9077
  %9079 = vmatprep.mubr.f32.mxu0 0.0
  %9080 = vmatmul.mubr.f32.gmra.mxu0 %v8677
  %v9081 = vpop.f32.mrf.mxu0
  %v9082 = vadd.f32 0.0, %v9081
  %v9083 = vpop.f32.mrf.mxu0
  %v9084 = vadd.f32 0.0, %v9083
  %9085 = vmatprep.mubr.f32.mxu0 0.0
  %9086 = vmatmul.mubr.f32.gmra.mxu0 %v8678
  %v9087 = vpop.f32.mrf.mxu0
  %v9088 = vadd.f32 0.0, %v9087
  %v9089 = vpop.f32.mrf.mxu0
  %v9090 = vadd.f32 0.0, %v9089
  %9091 = vmatprep.mubr.f32.mxu0 0.0
  %9092 = vmatmul.mubr.f32.gmra.mxu0 %v8679
  %v9093 = vpop.f32.mrf.mxu0
  %v9094 = vadd.f32 0.0, %v9093
  %v9095 = vpop.f32.mrf.mxu0
  %v9096 = vadd.f32 0.0, %v9095
  %9097 = vmatprep.mubr.f32.mxu0 0.0
  %9098 = vmatmul.mubr.f32.gmra.mxu0 %v8680
  %v9099 = vpop.f32.mrf.mxu0
  %v9100 = vadd.f32 0.0, %v9099
  %v9101 = vpop.f32.mrf.mxu0
  %v9102 = vadd.f32 0.0, %v9101
  %9103 = vmatprep.mubr.f32.mxu0 0.0
  %9104 = vmatmul.mubr.f32.gmra.mxu0 %v8681
  %v9105 = vpop.f32.mrf.mxu0
  %v9106 = vadd.f32 0.0, %v9105
  %v9107 = vpop.f32.mrf.mxu0
  %v9108 = vadd.f32 0.0, %v9107
  %9109 = vmatprep.mubr.f32.mxu0 0.0
  %9110 = vmatmul.mubr.f32.gmra.mxu0 %v8682
  %v9111 = vpop.f32.mrf.mxu0
  %v9112 = vadd.f32 0.0, %v9111
  %v9113 = vpop.f32.mrf.mxu0
  %v9114 = vadd.f32 0.0, %v9113
  %9115 = vmatprep.mubr.f32.mxu0 0.0
  %9116 = vmatmul.mubr.f32.gmra.mxu0 %v8683
  %v9117 = vpop.f32.mrf.mxu0
  %v9118 = vadd.f32 0.0, %v9117
  %v9119 = vpop.f32.mrf.mxu0
  %v9120 = vadd.f32 0.0, %v9119
  %9121 = vmatprep.mubr.f32.mxu0 0.0
  %9122 = vmatmul.mubr.f32.gmra.mxu0 %v8684
  %v9123 = vpop.f32.mrf.mxu0
  %v9124 = vadd.f32 0.0, %v9123
  %v9125 = vpop.f32.mrf.mxu0
  %v9126 = vadd.f32 0.0, %v9125
  %9127 = vmatprep.mubr.f32.mxu0 0.0
  %9128 = vmatmul.mubr.f32.gmra.mxu0 %v8685
  %v9129 = vpop.f32.mrf.mxu0
  %v9130 = vadd.f32 0.0, %v9129
  %v9131 = vpop.f32.mrf.mxu0
  %v9132 = vadd.f32 0.0, %v9131
  %9133 = vmatprep.mubr.f32.mxu0 0.0
  %9134 = vmatmul.mubr.f32.gmra.mxu0 %v8686
  %v9135 = vpop.f32.mrf.mxu0
  %v9136 = vadd.f32 0.0, %v9135
  %v9137 = vpop.f32.mrf.mxu0
  %v9138 = vadd.f32 0.0, %v9137
  %9139 = vmatprep.mubr.f32.mxu0 0.0
  %9140 = vmatmul.mubr.f32.gmra.mxu0 %v8687
  %v9141 = vpop.f32.mrf.mxu0
  %v9142 = vadd.f32 0.0, %v9141
  %v9143 = vpop.f32.mrf.mxu0
  %v9144 = vadd.f32 0.0, %v9143
  %9145 = vmatprep.mubr.f32.mxu0 0.0
  %9146 = vmatmul.mubr.f32.gmra.mxu0 %v8688
  %v9147 = vpop.f32.mrf.mxu0
  %v9148 = vadd.f32 0.0, %v9147
  %v9149 = vpop.f32.mrf.mxu0
  %v9150 = vadd.f32 0.0, %v9149
  %9151 = vmatprep.mubr.f32.mxu0 0.0
  %9152 = vmatmul.mubr.f32.gmra.mxu0 %v8689
  %v9153 = vpop.f32.mrf.mxu0
  %v9154 = vadd.f32 0.0, %v9153
  %v9155 = vpop.f32.mrf.mxu0
  %v9156 = vadd.f32 0.0, %v9155
  %9157 = vmatprep.mubr.f32.mxu0 0.0
  %9158 = vmatmul.mubr.f32.gmra.mxu0 %v8690
  %v9159 = vpop.f32.mrf.mxu0
  %v9160 = vadd.f32 0.0, %v9159
  %v9161 = vpop.f32.mrf.mxu0
  %v9162 = vadd.f32 0.0, %v9161
  %9163 = vmatprep.mubr.f32.mxu0 0.0
  %9164 = vmatmul.mubr.f32.gmra.mxu0 %v8691
  %v9165 = vpop.f32.mrf.mxu0
  %v9166 = vadd.f32 0.0, %v9165
  %v9167 = vpop.f32.mrf.mxu0
  %v9168 = vadd.f32 0.0, %v9167
  %9169 = vmatprep.mubr.f32.mxu0 0.0
  %9170 = vmatmul.mubr.f32.gmra.mxu0 %v8692
  %v9171 = vpop.f32.mrf.mxu0
  %v9172 = vadd.f32 0.0, %v9171
  %v9173 = vpop.f32.mrf.mxu0
  %v9174 = vadd.f32 0.0, %v9173
  %9175 = vmatprep.mubr.f32.mxu0 0.0
  %9176 = vmatmul.mubr.f32.gmra.mxu0 %v8693
  %v9177 = vpop.f32.mrf.mxu0
  %v9178 = vadd.f32 0.0, %v9177
  %v9179 = vpop.f32.mrf.mxu0
  %v9180 = vadd.f32 0.0, %v9179
  %9181 = vmatprep.mubr.f32.mxu0 0.0
  %9182 = vmatmul.mubr.f32.gmra.mxu0 %v8694
  %v9183 = vpop.f32.mrf.mxu0
  %v9184 = vadd.f32 0.0, %v9183
  %v9185 = vpop.f32.mrf.mxu0
  %v9186 = vadd.f32 0.0, %v9185
  %9187 = vmatprep.mubr.f32.mxu0 0.0
  %9188 = vmatmul.mubr.f32.gmra.mxu0 %v8695
  %v9189 = vpop.f32.mrf.mxu0
  %v9190 = vadd.f32 0.0, %v9189
  %v9191 = vpop.f32.mrf.mxu0
  %v9192 = vadd.f32 0.0, %v9191
  %9193 = vmatprep.mubr.f32.mxu0 0.0
  %9194 = vmatmul.mubr.f32.gmra.mxu0 %v8696
  %v9195 = vpop.f32.mrf.mxu0
  %v9196 = vadd.f32 0.0, %v9195
  %v9197 = vpop.f32.mrf.mxu0
  %v9198 = vadd.f32 0.0, %v9197
  %9199 = vmatprep.mubr.f32.mxu0 0.0
  %9200 = vmatmul.mubr.f32.gmra.mxu0 %v8697
  %v9201 = vpop.f32.mrf.mxu0
  %v9202 = vadd.f32 0.0, %v9201
  %v9203 = vpop.f32.mrf.mxu0
  %v9204 = vadd.f32 0.0, %v9203
  %9205 = vmatprep.mubr.f32.mxu0 0.0
  %9206 = vmatmul.mubr.f32.gmra.mxu0 %v8698
  %v9207 = vpop.f32.mrf.mxu0
  %v9208 = vadd.f32 0.0, %v9207
  %v9209 = vpop.f32.mrf.mxu0
  %v9210 = vadd.f32 0.0, %v9209
  %9211 = vmatprep.mubr.f32.mxu0 0.0
  %9212 = vmatmul.mubr.f32.gmra.mxu0 %v8699
  %v9213 = vpop.f32.mrf.mxu0
  %v9214 = vadd.f32 0.0, %v9213
  %v9215 = vpop.f32.mrf.mxu0
  %v9216 = vadd.f32 0.0, %v9215
  %9217 = vmatprep.mubr.f32.mxu0 0.0
  %9218 = vmatmul.mubr.f32.gmra.mxu0 %v8700
  %v9219 = vpop.f32.mrf.mxu0
  %v9220 = vadd.f32 0.0, %v9219
  %v9221 = vpop.f32.mrf.mxu0
  %v9222 = vadd.f32 0.0, %v9221
  %9223 = vmatprep.mubr.f32.mxu0 0.0
  %9224 = vmatmul.mubr.f32.gmra.mxu0 %v8701
  %v9225 = vpop.f32.mrf.mxu0
  %v9226 = vadd.f32 0.0, %v9225
  %v9227 = vpop.f32.mrf.mxu0
  %v9228 = vadd.f32 0.0, %v9227
  %9229 = vmatprep.mubr.f32.mxu0 0.0
  %9230 = vmatmul.mubr.f32.gmra.mxu0 %v8702
  %v9231 = vpop.f32.mrf.mxu0
  %v9232 = vadd.f32 0.0, %v9231
  %v9233 = vpop.f32.mrf.mxu0
  %v9234 = vadd.f32 0.0, %v9233
  %9235 = vmatprep.mubr.f32.mxu0 0.0
  %9236 = vmatmul.mubr.f32.gmra.mxu0 %v8703
  %v9237 = vpop.f32.mrf.mxu0
  %v9238 = vadd.f32 0.0, %v9237
  %v9239 = vpop.f32.mrf.mxu0
  %v9240 = vadd.f32 0.0, %v9239
  %9241 = vdwg.mxu0
  %9242 = vmatprep.subr.mxu0 %v8759
  %9243 = vmatpush1.msra.mxu0 %v8758
  %9244 = vmatprep.subr.mxu0 %v8757
  %9245 = vmatpush1.msra.mxu0 %v8756
  %9246 = vmatprep.subr.mxu0 %v8755
  %9247 = vmatpush1.msra.mxu0 %v8754
  %9248 = vmatprep.subr.mxu0 %v8753
  %9249 = vmatpush1.msra.mxu0 %v8752
  %9250 = vmatprep.subr.mxu0 %v8751
  %9251 = vmatpush1.msra.mxu0 %v8750
  %9252 = vmatprep.subr.mxu0 %v8749
  %9253 = vmatpush1.msra.mxu0 %v8748
  %9254 = vmatprep.subr.mxu0 %v8747
  %9255 = vmatpush1.msra.mxu0 %v8746
  %9256 = vmatprep.subr.mxu0 %v8745
  %9257 = vmatpush1.msra.mxu0 %v8744
  %9258 = vmatprep.subr.mxu0 %v8743
  %9259 = vmatpush1.msra.mxu0 %v8742
  %9260 = vmatprep.subr.mxu0 %v8741
  %9261 = vmatpush1.msra.mxu0 %v8740
  %9262 = vmatprep.subr.mxu0 %v8739
  %9263 = vmatpush1.msra.mxu0 %v8738
  %9264 = vmatprep.subr.mxu0 %v8737
  %9265 = vmatpush1.msra.mxu0 %v8736
  %9266 = vmatprep.subr.mxu0 %v8735
  %9267 = vmatpush1.msra.mxu0 %v8734
  %9268 = vmatprep.subr.mxu0 %v8733
  %9269 = vmatpush1.msra.mxu0 %v8732
  %9270 = vmatprep.subr.mxu0 %v8731
  %9271 = vmatpush1.msra.mxu0 %v8730
  %9272 = vmatprep.subr.mxu0 %v8729
  %9273 = vmatpush1.msra.mxu0 %v8728
  %9274 = vmatprep.subr.mxu0 0.0
  %9275 = vmatpush2.msra.mxu0 0.0
  %9276 = vmatprep.subr.mxu0 0.0
  %9277 = vmatpush2.msra.mxu0 0.0
  %9278 = vmatprep.subr.mxu0 0.0
  %9279 = vmatpush2.msra.mxu0 0.0
  %9280 = vmatprep.subr.mxu0 0.0
  %9281 = vmatpush2.msra.mxu0 0.0
  %9282 = vmatprep.subr.mxu0 0.0
  %9283 = vmatpush2.msra.mxu0 0.0
  %9284 = vmatprep.subr.mxu0 0.0
  %9285 = vmatpush2.msra.mxu0 0.0
  %9286 = vmatprep.subr.mxu0 0.0
  %9287 = vmatpush2.msra.mxu0 0.0
  %9288 = vmatprep.subr.mxu0 0.0
  %9289 = vmatpush2.msra.mxu0 0.0
  %9290 = vmatprep.subr.mxu0 0.0
  %9291 = vmatpush2.msra.mxu0 0.0
  %9292 = vmatprep.subr.mxu0 0.0
  %9293 = vmatpush2.msra.mxu0 0.0
  %9294 = vmatprep.subr.mxu0 0.0
  %9295 = vmatpush2.msra.mxu0 0.0
  %9296 = vmatprep.subr.mxu0 0.0
  %9297 = vmatpush2.msra.mxu0 0.0
  %9298 = vmatprep.subr.mxu0 0.0
  %9299 = vmatpush2.msra.mxu0 0.0
  %9300 = vmatprep.subr.mxu0 0.0
  %9301 = vmatpush2.msra.mxu0 0.0
  %9302 = vmatprep.subr.mxu0 0.0
  %9303 = vmatpush2.msra.mxu0 0.0
  %9304 = vmatprep.subr.mxu0 0.0
  %9305 = vmatpush2.msra.mxu0 0.0
  %9306 = vmatprep.mubr.f32.mxu0 0.0
  %9307 = vmatmul.mubr.f32.gmra.mxu0 %v8632
  %v9308 = vpop.f32.mrf.mxu0
  %v9309 = vadd.f32 %v8860, %v9308
  %v9310 = vpop.f32.mrf.mxu0
  %v9311 = vadd.f32 %v8862, %v9310
  %9312 = vmatprep.mubr.f32.mxu0 0.0
  %9313 = vmatmul.mubr.f32.gmra.mxu0 %v8633
  %v9314 = vpop.f32.mrf.mxu0
  %v9315 = vadd.f32 %v8866, %v9314
  %v9316 = vpop.f32.mrf.mxu0
  %v9317 = vadd.f32 %v8868, %v9316
  %9318 = vmatprep.mubr.f32.mxu0 0.0
  %9319 = vmatmul.mubr.f32.gmra.mxu0 %v8634
  %v9320 = vpop.f32.mrf.mxu0
  %v9321 = vadd.f32 %v8872, %v9320
  %v9322 = vpop.f32.mrf.mxu0
  %v9323 = vadd.f32 %v8874, %v9322
  %9324 = vmatprep.mubr.f32.mxu0 0.0
  %9325 = vmatmul.mubr.f32.gmra.mxu0 %v8635
  %v9326 = vpop.f32.mrf.mxu0
  %v9327 = vadd.f32 %v8878, %v9326
  %v9328 = vpop.f32.mrf.mxu0
  %v9329 = vadd.f32 %v8880, %v9328
  %9330 = vmatprep.mubr.f32.mxu0 0.0
  %9331 = vmatmul.mubr.f32.gmra.mxu0 %v8636
  %v9332 = vpop.f32.mrf.mxu0
  %v9333 = vadd.f32 %v8884, %v9332
  %v9334 = vpop.f32.mrf.mxu0
  %v9335 = vadd.f32 %v8886, %v9334
  %9336 = vmatprep.mubr.f32.mxu0 0.0
  %9337 = vmatmul.mubr.f32.gmra.mxu0 %v8637
  %v9338 = vpop.f32.mrf.mxu0
  %v9339 = vadd.f32 %v8890, %v9338
  %v9340 = vpop.f32.mrf.mxu0
  %v9341 = vadd.f32 %v8892, %v9340
  %9342 = vmatprep.mubr.f32.mxu0 0.0
  %9343 = vmatmul.mubr.f32.gmra.mxu0 %v8638
  %v9344 = vpop.f32.mrf.mxu0
  %v9345 = vadd.f32 %v8896, %v9344
  %v9346 = vpop.f32.mrf.mxu0
  %v9347 = vadd.f32 %v8898, %v9346
  %9348 = vmatprep.mubr.f32.mxu0 0.0
  %9349 = vmatmul.mubr.f32.gmra.mxu0 %v8639
  %v9350 = vpop.f32.mrf.mxu0
  %v9351 = vadd.f32 %v8902, %v9350
  %v9352 = vpop.f32.mrf.mxu0
  %v9353 = vadd.f32 %v8904, %v9352
  %9354 = vmatprep.mubr.f32.mxu0 0.0
  %9355 = vmatmul.mubr.f32.gmra.mxu0 %v8640
  %v9356 = vpop.f32.mrf.mxu0
  %v9357 = vadd.f32 %v8908, %v9356
  %v9358 = vpop.f32.mrf.mxu0
  %v9359 = vadd.f32 %v8910, %v9358
  %9360 = vmatprep.mubr.f32.mxu0 0.0
  %9361 = vmatmul.mubr.f32.gmra.mxu0 %v8641
  %v9362 = vpop.f32.mrf.mxu0
  %v9363 = vadd.f32 %v8914, %v9362
  %v9364 = vpop.f32.mrf.mxu0
  %v9365 = vadd.f32 %v8916, %v9364
  %9366 = vmatprep.mubr.f32.mxu0 0.0
  %9367 = vmatmul.mubr.f32.gmra.mxu0 %v8642
  %v9368 = vpop.f32.mrf.mxu0
  %v9369 = vadd.f32 %v8920, %v9368
  %v9370 = vpop.f32.mrf.mxu0
  %v9371 = vadd.f32 %v8922, %v9370
  %9372 = vmatprep.mubr.f32.mxu0 0.0
  %9373 = vmatmul.mubr.f32.gmra.mxu0 %v8643
  %v9374 = vpop.f32.mrf.mxu0
  %v9375 = vadd.f32 %v8926, %v9374
  %v9376 = vpop.f32.mrf.mxu0
  %v9377 = vadd.f32 %v8928, %v9376
  %9378 = vmatprep.mubr.f32.mxu0 0.0
  %9379 = vmatmul.mubr.f32.gmra.mxu0 %v8644
  %v9380 = vpop.f32.mrf.mxu0
  %v9381 = vadd.f32 %v8932, %v9380
  %v9382 = vpop.f32.mrf.mxu0
  %v9383 = vadd.f32 %v8934, %v9382
  %9384 = vmatprep.mubr.f32.mxu0 0.0
  %9385 = vmatmul.mubr.f32.gmra.mxu0 %v8645
  %v9386 = vpop.f32.mrf.mxu0
  %v9387 = vadd.f32 %v8938, %v9386
  %v9388 = vpop.f32.mrf.mxu0
  %v9389 = vadd.f32 %v8940, %v9388
  %9390 = vmatprep.mubr.f32.mxu0 0.0
  %9391 = vmatmul.mubr.f32.gmra.mxu0 %v8646
  %v9392 = vpop.f32.mrf.mxu0
  %v9393 = vadd.f32 %v8944, %v9392
  %v9394 = vpop.f32.mrf.mxu0
  %v9395 = vadd.f32 %v8946, %v9394
  %9396 = vmatprep.mubr.f32.mxu0 0.0
  %9397 = vmatmul.mubr.f32.gmra.mxu0 %v8647
  %v9398 = vpop.f32.mrf.mxu0
  %v9399 = vadd.f32 %v8950, %v9398
  %v9400 = vpop.f32.mrf.mxu0
  %v9401 = vadd.f32 %v8952, %v9400
  %9402 = vmatprep.mubr.f32.mxu0 0.0
  %9403 = vmatmul.mubr.f32.gmra.mxu0 %v8648
  %v9404 = vpop.f32.mrf.mxu0
  %v9405 = vadd.f32 %v8956, %v9404
  %v9406 = vpop.f32.mrf.mxu0
  %v9407 = vadd.f32 %v8958, %v9406
  %9408 = vmatprep.mubr.f32.mxu0 0.0
  %9409 = vmatmul.mubr.f32.gmra.mxu0 %v8649
  %v9410 = vpop.f32.mrf.mxu0
  %v9411 = vadd.f32 %v8962, %v9410
  %v9412 = vpop.f32.mrf.mxu0
  %v9413 = vadd.f32 %v8964, %v9412
  %9414 = vmatprep.mubr.f32.mxu0 0.0
  %9415 = vmatmul.mubr.f32.gmra.mxu0 %v8650
  %v9416 = vpop.f32.mrf.mxu0
  %v9417 = vadd.f32 %v8968, %v9416
  %v9418 = vpop.f32.mrf.mxu0
  %v9419 = vadd.f32 %v8970, %v9418
  %9420 = vmatprep.mubr.f32.mxu0 0.0
  %9421 = vmatmul.mubr.f32.gmra.mxu0 %v8651
  %v9422 = vpop.f32.mrf.mxu0
  %v9423 = vadd.f32 %v8974, %v9422
  %v9424 = vpop.f32.mrf.mxu0
  %v9425 = vadd.f32 %v8976, %v9424
  %9426 = vmatprep.mubr.f32.mxu0 0.0
  %9427 = vmatmul.mubr.f32.gmra.mxu0 %v8652
  %v9428 = vpop.f32.mrf.mxu0
  %v9429 = vadd.f32 %v8980, %v9428
  %v9430 = vpop.f32.mrf.mxu0
  %v9431 = vadd.f32 %v8982, %v9430
  %9432 = vmatprep.mubr.f32.mxu0 0.0
  %9433 = vmatmul.mubr.f32.gmra.mxu0 %v8653
  %v9434 = vpop.f32.mrf.mxu0
  %v9435 = vadd.f32 %v8986, %v9434
  %v9436 = vpop.f32.mrf.mxu0
  %v9437 = vadd.f32 %v8988, %v9436
  %9438 = vmatprep.mubr.f32.mxu0 0.0
  %9439 = vmatmul.mubr.f32.gmra.mxu0 %v8654
  %v9440 = vpop.f32.mrf.mxu0
  %v9441 = vadd.f32 %v8992, %v9440
  %v9442 = vpop.f32.mrf.mxu0
  %v9443 = vadd.f32 %v8994, %v9442
  %9444 = vmatprep.mubr.f32.mxu0 0.0
  %9445 = vmatmul.mubr.f32.gmra.mxu0 %v8655
  %v9446 = vpop.f32.mrf.mxu0
  %v9447 = vadd.f32 %v8998, %v9446
  %v9448 = vpop.f32.mrf.mxu0
  %v9449 = vadd.f32 %v9000, %v9448
  %9450 = vmatprep.mubr.f32.mxu0 0.0
  %9451 = vmatmul.mubr.f32.gmra.mxu0 %v8656
  %v9452 = vpop.f32.mrf.mxu0
  %v9453 = vadd.f32 %v9004, %v9452
  %v9454 = vpop.f32.mrf.mxu0
  %v9455 = vadd.f32 %v9006, %v9454
  %9456 = vmatprep.mubr.f32.mxu0 0.0
  %9457 = vmatmul.mubr.f32.gmra.mxu0 %v8657
  %v9458 = vpop.f32.mrf.mxu0
  %v9459 = vadd.f32 %v9010, %v9458
  %v9460 = vpop.f32.mrf.mxu0
  %v9461 = vadd.f32 %v9012, %v9460
  %9462 = vmatprep.mubr.f32.mxu0 0.0
  %9463 = vmatmul.mubr.f32.gmra.mxu0 %v8658
  %v9464 = vpop.f32.mrf.mxu0
  %v9465 = vadd.f32 %v9016, %v9464
  %v9466 = vpop.f32.mrf.mxu0
  %v9467 = vadd.f32 %v9018, %v9466
  %9468 = vmatprep.mubr.f32.mxu0 0.0
  %9469 = vmatmul.mubr.f32.gmra.mxu0 %v8659
  %v9470 = vpop.f32.mrf.mxu0
  %v9471 = vadd.f32 %v9022, %v9470
  %v9472 = vpop.f32.mrf.mxu0
  %v9473 = vadd.f32 %v9024, %v9472
  %9474 = vmatprep.mubr.f32.mxu0 0.0
  %9475 = vmatmul.mubr.f32.gmra.mxu0 %v8660
  %v9476 = vpop.f32.mrf.mxu0
  %v9477 = vadd.f32 %v9028, %v9476
  %v9478 = vpop.f32.mrf.mxu0
  %v9479 = vadd.f32 %v9030, %v9478
  %9480 = vmatprep.mubr.f32.mxu0 0.0
  %9481 = vmatmul.mubr.f32.gmra.mxu0 %v8661
  %v9482 = vpop.f32.mrf.mxu0
  %v9483 = vadd.f32 %v9034, %v9482
  %v9484 = vpop.f32.mrf.mxu0
  %v9485 = vadd.f32 %v9036, %v9484
  %9486 = vmatprep.mubr.f32.mxu0 0.0
  %9487 = vmatmul.mubr.f32.gmra.mxu0 %v8662
  %v9488 = vpop.f32.mrf.mxu0
  %v9489 = vadd.f32 %v9040, %v9488
  %v9490 = vpop.f32.mrf.mxu0
  %v9491 = vadd.f32 %v9042, %v9490
  %9492 = vmatprep.mubr.f32.mxu0 0.0
  %9493 = vmatmul.mubr.f32.gmra.mxu0 %v8663
  %v9494 = vpop.f32.mrf.mxu0
  %v9495 = vadd.f32 %v9046, %v9494
  %v9496 = vpop.f32.mrf.mxu0
  %v9497 = vadd.f32 %v9048, %v9496
  %9498 = vmatprep.mubr.f32.mxu0 0.0
  %9499 = vmatmul.mubr.f32.gmra.mxu0 %v8664
  %v9500 = vpop.f32.mrf.mxu0
  %v9501 = vadd.f32 %v9052, %v9500
  %v9502 = vpop.f32.mrf.mxu0
  %v9503 = vadd.f32 %v9054, %v9502
  %9504 = vmatprep.mubr.f32.mxu0 0.0
  %9505 = vmatmul.mubr.f32.gmra.mxu0 %v8665
  %v9506 = vpop.f32.mrf.mxu0
  %v9507 = vadd.f32 %v9058, %v9506
  %v9508 = vpop.f32.mrf.mxu0
  %v9509 = vadd.f32 %v9060, %v9508
  %9510 = vmatprep.mubr.f32.mxu0 0.0
  %9511 = vmatmul.mubr.f32.gmra.mxu0 %v8666
  %v9512 = vpop.f32.mrf.mxu0
  %v9513 = vadd.f32 %v9064, %v9512
  %v9514 = vpop.f32.mrf.mxu0
  %v9515 = vadd.f32 %v9066, %v9514
  %9516 = vmatprep.mubr.f32.mxu0 0.0
  %9517 = vmatmul.mubr.f32.gmra.mxu0 %v8667
  %v9518 = vpop.f32.mrf.mxu0
  %v9519 = vadd.f32 %v9070, %v9518
  %v9520 = vpop.f32.mrf.mxu0
  %v9521 = vadd.f32 %v9072, %v9520
  %9522 = vmatprep.mubr.f32.mxu0 0.0
  %9523 = vmatmul.mubr.f32.gmra.mxu0 %v8668
  %v9524 = vpop.f32.mrf.mxu0
  %v9525 = vadd.f32 %v9076, %v9524
  %v9526 = vpop.f32.mrf.mxu0
  %v9527 = vadd.f32 %v9078, %v9526
  %9528 = vmatprep.mubr.f32.mxu0 0.0
  %9529 = vmatmul.mubr.f32.gmra.mxu0 %v8669
  %v9530 = vpop.f32.mrf.mxu0
  %v9531 = vadd.f32 %v9082, %v9530
  %v9532 = vpop.f32.mrf.mxu0
  %v9533 = vadd.f32 %v9084, %v9532
  %9534 = vmatprep.mubr.f32.mxu0 0.0
  %9535 = vmatmul.mubr.f32.gmra.mxu0 %v8670
  %v9536 = vpop.f32.mrf.mxu0
  %v9537 = vadd.f32 %v9088, %v9536
  %v9538 = vpop.f32.mrf.mxu0
  %v9539 = vadd.f32 %v9090, %v9538
  %9540 = vmatprep.mubr.f32.mxu0 0.0
  %9541 = vmatmul.mubr.f32.gmra.mxu0 %v8671
  %v9542 = vpop.f32.mrf.mxu0
  %v9543 = vadd.f32 %v9094, %v9542
  %v9544 = vpop.f32.mrf.mxu0
  %v9545 = vadd.f32 %v9096, %v9544
  %9546 = vmatprep.mubr.f32.mxu0 0.0
  %9547 = vmatmul.mubr.f32.gmra.mxu0 %v8672
  %v9548 = vpop.f32.mrf.mxu0
  %v9549 = vadd.f32 %v9100, %v9548
  %v9550 = vpop.f32.mrf.mxu0
  %v9551 = vadd.f32 %v9102, %v9550
  %9552 = vmatprep.mubr.f32.mxu0 0.0
  %9553 = vmatmul.mubr.f32.gmra.mxu0 %v8673
  %v9554 = vpop.f32.mrf.mxu0
  %v9555 = vadd.f32 %v9106, %v9554
  %v9556 = vpop.f32.mrf.mxu0
  %v9557 = vadd.f32 %v9108, %v9556
  %9558 = vmatprep.mubr.f32.mxu0 0.0
  %9559 = vmatmul.mubr.f32.gmra.mxu0 %v8674
  %v9560 = vpop.f32.mrf.mxu0
  %v9561 = vadd.f32 %v9112, %v9560
  %v9562 = vpop.f32.mrf.mxu0
  %v9563 = vadd.f32 %v9114, %v9562
  %9564 = vmatprep.mubr.f32.mxu0 0.0
  %9565 = vmatmul.mubr.f32.gmra.mxu0 %v8675
  %v9566 = vpop.f32.mrf.mxu0
  %v9567 = vadd.f32 %v9118, %v9566
  %v9568 = vpop.f32.mrf.mxu0
  %v9569 = vadd.f32 %v9120, %v9568
  %9570 = vmatprep.mubr.f32.mxu0 0.0
  %9571 = vmatmul.mubr.f32.gmra.mxu0 %v8676
  %v9572 = vpop.f32.mrf.mxu0
  %v9573 = vadd.f32 %v9124, %v9572
  %v9574 = vpop.f32.mrf.mxu0
  %v9575 = vadd.f32 %v9126, %v9574
  %9576 = vmatprep.mubr.f32.mxu0 0.0
  %9577 = vmatmul.mubr.f32.gmra.mxu0 %v8677
  %v9578 = vpop.f32.mrf.mxu0
  %v9579 = vadd.f32 %v9130, %v9578
  %v9580 = vpop.f32.mrf.mxu0
  %v9581 = vadd.f32 %v9132, %v9580
  %9582 = vmatprep.mubr.f32.mxu0 0.0
  %9583 = vmatmul.mubr.f32.gmra.mxu0 %v8678
  %v9584 = vpop.f32.mrf.mxu0
  %v9585 = vadd.f32 %v9136, %v9584
  %v9586 = vpop.f32.mrf.mxu0
  %v9587 = vadd.f32 %v9138, %v9586
  %9588 = vmatprep.mubr.f32.mxu0 0.0
  %9589 = vmatmul.mubr.f32.gmra.mxu0 %v8679
  %v9590 = vpop.f32.mrf.mxu0
  %v9591 = vadd.f32 %v9142, %v9590
  %v9592 = vpop.f32.mrf.mxu0
  %v9593 = vadd.f32 %v9144, %v9592
  %9594 = vmatprep.mubr.f32.mxu0 0.0
  %9595 = vmatmul.mubr.f32.gmra.mxu0 %v8680
  %v9596 = vpop.f32.mrf.mxu0
  %v9597 = vadd.f32 %v9148, %v9596
  %v9598 = vpop.f32.mrf.mxu0
  %v9599 = vadd.f32 %v9150, %v9598
  %9600 = vmatprep.mubr.f32.mxu0 0.0
  %9601 = vmatmul.mubr.f32.gmra.mxu0 %v8681
  %v9602 = vpop.f32.mrf.mxu0
  %v9603 = vadd.f32 %v9154, %v9602
  %v9604 = vpop.f32.mrf.mxu0
  %v9605 = vadd.f32 %v9156, %v9604
  %9606 = vmatprep.mubr.f32.mxu0 0.0
  %9607 = vmatmul.mubr.f32.gmra.mxu0 %v8682
  %v9608 = vpop.f32.mrf.mxu0
  %v9609 = vadd.f32 %v9160, %v9608
  %v9610 = vpop.f32.mrf.mxu0
  %v9611 = vadd.f32 %v9162, %v9610
  %9612 = vmatprep.mubr.f32.mxu0 0.0
  %9613 = vmatmul.mubr.f32.gmra.mxu0 %v8683
  %v9614 = vpop.f32.mrf.mxu0
  %v9615 = vadd.f32 %v9166, %v9614
  %v9616 = vpop.f32.mrf.mxu0
  %v9617 = vadd.f32 %v9168, %v9616
  %9618 = vmatprep.mubr.f32.mxu0 0.0
  %9619 = vmatmul.mubr.f32.gmra.mxu0 %v8684
  %v9620 = vpop.f32.mrf.mxu0
  %v9621 = vadd.f32 %v9172, %v9620
  %v9622 = vpop.f32.mrf.mxu0
  %v9623 = vadd.f32 %v9174, %v9622
  %9624 = vmatprep.mubr.f32.mxu0 0.0
  %9625 = vmatmul.mubr.f32.gmra.mxu0 %v8685
  %v9626 = vpop.f32.mrf.mxu0
  %v9627 = vadd.f32 %v9178, %v9626
  %v9628 = vpop.f32.mrf.mxu0
  %v9629 = vadd.f32 %v9180, %v9628
  %9630 = vmatprep.mubr.f32.mxu0 0.0
  %9631 = vmatmul.mubr.f32.gmra.mxu0 %v8686
  %v9632 = vpop.f32.mrf.mxu0
  %v9633 = vadd.f32 %v9184, %v9632
  %v9634 = vpop.f32.mrf.mxu0
  %v9635 = vadd.f32 %v9186, %v9634
  %9636 = vmatprep.mubr.f32.mxu0 0.0
  %9637 = vmatmul.mubr.f32.gmra.mxu0 %v8687
  %v9638 = vpop.f32.mrf.mxu0
  %v9639 = vadd.f32 %v9190, %v9638
  %v9640 = vpop.f32.mrf.mxu0
  %v9641 = vadd.f32 %v9192, %v9640
  %9642 = vmatprep.mubr.f32.mxu0 0.0
  %9643 = vmatmul.mubr.f32.gmra.mxu0 %v8688
  %v9644 = vpop.f32.mrf.mxu0
  %v9645 = vadd.f32 %v9196, %v9644
  %v9646 = vpop.f32.mrf.mxu0
  %v9647 = vadd.f32 %v9198, %v9646
  %9648 = vmatprep.mubr.f32.mxu0 0.0
  %9649 = vmatmul.mubr.f32.gmra.mxu0 %v8689
  %v9650 = vpop.f32.mrf.mxu0
  %v9651 = vadd.f32 %v9202, %v9650
  %v9652 = vpop.f32.mrf.mxu0
  %v9653 = vadd.f32 %v9204, %v9652
  %9654 = vmatprep.mubr.f32.mxu0 0.0
  %9655 = vmatmul.mubr.f32.gmra.mxu0 %v8690
  %v9656 = vpop.f32.mrf.mxu0
  %v9657 = vadd.f32 %v9208, %v9656
  %v9658 = vpop.f32.mrf.mxu0
  %v9659 = vadd.f32 %v9210, %v9658
  %9660 = vmatprep.mubr.f32.mxu0 0.0
  %9661 = vmatmul.mubr.f32.gmra.mxu0 %v8691
  %v9662 = vpop.f32.mrf.mxu0
  %v9663 = vadd.f32 %v9214, %v9662
  %v9664 = vpop.f32.mrf.mxu0
  %v9665 = vadd.f32 %v9216, %v9664
  %9666 = vmatprep.mubr.f32.mxu0 0.0
  %9667 = vmatmul.mubr.f32.gmra.mxu0 %v8692
  %v9668 = vpop.f32.mrf.mxu0
  %v9669 = vadd.f32 %v9220, %v9668
  %v9670 = vpop.f32.mrf.mxu0
  %v9671 = vadd.f32 %v9222, %v9670
  %9672 = vmatprep.mubr.f32.mxu0 0.0
  %9673 = vmatmul.mubr.f32.gmra.mxu0 %v8693
  %v9674 = vpop.f32.mrf.mxu0
  %v9675 = vadd.f32 %v9226, %v9674
  %v9676 = vpop.f32.mrf.mxu0
  %v9677 = vadd.f32 %v9228, %v9676
  %9678 = vmatprep.mubr.f32.mxu0 0.0
  %9679 = vmatmul.mubr.f32.gmra.mxu0 %v8694
  %v9680 = vpop.f32.mrf.mxu0
  %v9681 = vadd.f32 %v9232, %v9680
  %v9682 = vpop.f32.mrf.mxu0
  %v9683 = vadd.f32 %v9234, %v9682
  %9684 = vmatprep.mubr.f32.mxu0 0.0
  %9685 = vmatmul.mubr.f32.gmra.mxu0 %v8695
  %v9686 = vpop.f32.mrf.mxu0
  %v9687 = vadd.f32 %v9238, %v9686
  %v9688 = vpop.f32.mrf.mxu0
  %v9689 = vadd.f32 %v9240, %v9688
  %9690 = vdwg.mxu0
  %s9691 = scalar_lea.vmem %s3, 512
  %v9692 = vld [vmem:[%s9691] sm:$0xff]
  %v9693 = vld [vmem:[%s9691 + $0x8] sm:$0xff]
  %v9694 = vld [vmem:[%s9691 + $0x10] sm:$0xff]
  %v9695 = vld [vmem:[%s9691 + $0x18] sm:$0xff]
  %v9696 = vld [vmem:[%s9691 + $0x20] sm:$0xff]
  %v9697 = vld [vmem:[%s9691 + $0x28] sm:$0xff]
  %v9698 = vld [vmem:[%s9691 + $0x30] sm:$0xff]
  %v9699 = vld [vmem:[%s9691 + $0x38] sm:$0xff]
  %v9700 = vld [vmem:[%s9691 + $0x40] sm:$0xff]
  %v9701 = vld [vmem:[%s9691 + $0x48] sm:$0xff]
  %v9702 = vld [vmem:[%s9691 + $0x50] sm:$0xff]
  %v9703 = vld [vmem:[%s9691 + $0x58] sm:$0xff]
  %v9704 = vld [vmem:[%s9691 + $0x60] sm:$0xff]
  %v9705 = vld [vmem:[%s9691 + $0x68] sm:$0xff]
  %v9706 = vld [vmem:[%s9691 + $0x70] sm:$0xff]
  %v9707 = vld [vmem:[%s9691 + $0x78] sm:$0xff]
  %v9708 = vld [vmem:[%s9691 + $0x80] sm:$0xff]
  %v9709 = vld [vmem:[%s9691 + $0x88] sm:$0xff]
  %v9710 = vld [vmem:[%s9691 + $0x90] sm:$0xff]
  %v9711 = vld [vmem:[%s9691 + $0x98] sm:$0xff]
  %v9712 = vld [vmem:[%s9691 + $0xa0] sm:$0xff]
  %v9713 = vld [vmem:[%s9691 + $0xa8] sm:$0xff]
  %v9714 = vld [vmem:[%s9691 + $0xb0] sm:$0xff]
  %v9715 = vld [vmem:[%s9691 + $0xb8] sm:$0xff]
  %v9716 = vld [vmem:[%s9691 + $0xc0] sm:$0xff]
  %v9717 = vld [vmem:[%s9691 + $0xc8] sm:$0xff]
  %v9718 = vld [vmem:[%s9691 + $0xd0] sm:$0xff]
  %v9719 = vld [vmem:[%s9691 + $0xd8] sm:$0xff]
  %v9720 = vld [vmem:[%s9691 + $0xe0] sm:$0xff]
  %v9721 = vld [vmem:[%s9691 + $0xe8] sm:$0xff]
  %v9722 = vld [vmem:[%s9691 + $0xf0] sm:$0xff]
  %v9723 = vld [vmem:[%s9691 + $0xf8] sm:$0xff]
  %9724 = vmatprep.subr.mxu0 %v9723
  %9725 = vmatpush1.msra.mxu0 %v9722
  %9726 = vmatprep.subr.mxu0 %v9721
  %9727 = vmatpush1.msra.mxu0 %v9720
  %9728 = vmatprep.subr.mxu0 %v9719
  %9729 = vmatpush1.msra.mxu0 %v9718
  %9730 = vmatprep.subr.mxu0 %v9717
  %9731 = vmatpush1.msra.mxu0 %v9716
  %9732 = vmatprep.subr.mxu0 %v9715
  %9733 = vmatpush1.msra.mxu0 %v9714
  %9734 = vmatprep.subr.mxu0 %v9713
  %9735 = vmatpush1.msra.mxu0 %v9712
  %9736 = vmatprep.subr.mxu0 %v9711
  %9737 = vmatpush1.msra.mxu0 %v9710
  %9738 = vmatprep.subr.mxu0 %v9709
  %9739 = vmatpush1.msra.mxu0 %v9708
  %9740 = vmatprep.subr.mxu0 %v9707
  %9741 = vmatpush1.msra.mxu0 %v9706
  %9742 = vmatprep.subr.mxu0 %v9705
  %9743 = vmatpush1.msra.mxu0 %v9704
  %9744 = vmatprep.subr.mxu0 %v9703
  %9745 = vmatpush1.msra.mxu0 %v9702
  %9746 = vmatprep.subr.mxu0 %v9701
  %9747 = vmatpush1.msra.mxu0 %v9700
  %9748 = vmatprep.subr.mxu0 %v9699
  %9749 = vmatpush1.msra.mxu0 %v9698
  %9750 = vmatprep.subr.mxu0 %v9697
  %9751 = vmatpush1.msra.mxu0 %v9696
  %9752 = vmatprep.subr.mxu0 %v9695
  %9753 = vmatpush1.msra.mxu0 %v9694
  %9754 = vmatprep.subr.mxu0 %v9693
  %9755 = vmatpush1.msra.mxu0 %v9692
  %9756 = vmatprep.subr.mxu0 0.0
  %9757 = vmatpush2.msra.mxu0 0.0
  %9758 = vmatprep.subr.mxu0 0.0
  %9759 = vmatpush2.msra.mxu0 0.0
  %9760 = vmatprep.subr.mxu0 0.0
  %9761 = vmatpush2.msra.mxu0 0.0
  %9762 = vmatprep.subr.mxu0 0.0
  %9763 = vmatpush2.msra.mxu0 0.0
  %9764 = vmatprep.subr.mxu0 0.0
  %9765 = vmatpush2.msra.mxu0 0.0
  %9766 = vmatprep.subr.mxu0 0.0
  %9767 = vmatpush2.msra.mxu0 0.0
  %9768 = vmatprep.subr.mxu0 0.0
  %9769 = vmatpush2.msra.mxu0 0.0
  %9770 = vmatprep.subr.mxu0 0.0
  %9771 = vmatpush2.msra.mxu0 0.0
  %9772 = vmatprep.subr.mxu0 0.0
  %9773 = vmatpush2.msra.mxu0 0.0
  %9774 = vmatprep.subr.mxu0 0.0
  %9775 = vmatpush2.msra.mxu0 0.0
  %9776 = vmatprep.subr.mxu0 0.0
  %9777 = vmatpush2.msra.mxu0 0.0
  %9778 = vmatprep.subr.mxu0 0.0
  %9779 = vmatpush2.msra.mxu0 0.0
  %9780 = vmatprep.subr.mxu0 0.0
  %9781 = vmatpush2.msra.mxu0 0.0
  %9782 = vmatprep.subr.mxu0 0.0
  %9783 = vmatpush2.msra.mxu0 0.0
  %9784 = vmatprep.subr.mxu0 0.0
  %9785 = vmatpush2.msra.mxu0 0.0
  %9786 = vmatprep.subr.mxu0 0.0
  %9787 = vmatpush2.msra.mxu0 0.0
  %9788 = vmatprep.mubr.f32.mxu0 0.0
  %9789 = vmatmul.mubr.f32.gmra.mxu0 %v8648
  %v9790 = vpop.f32.mrf.mxu0
  %v9791 = vadd.f32 0.0, %v9790
  %v9792 = vpop.f32.mrf.mxu0
  %v9793 = vadd.f32 0.0, %v9792
  %9794 = vmatprep.mubr.f32.mxu0 0.0
  %9795 = vmatmul.mubr.f32.gmra.mxu0 %v8649
  %v9796 = vpop.f32.mrf.mxu0
  %v9797 = vadd.f32 0.0, %v9796
  %v9798 = vpop.f32.mrf.mxu0
  %v9799 = vadd.f32 0.0, %v9798
  %9800 = vmatprep.mubr.f32.mxu0 0.0
  %9801 = vmatmul.mubr.f32.gmra.mxu0 %v8650
  %v9802 = vpop.f32.mrf.mxu0
  %v9803 = vadd.f32 0.0, %v9802
  %v9804 = vpop.f32.mrf.mxu0
  %v9805 = vadd.f32 0.0, %v9804
  %9806 = vmatprep.mubr.f32.mxu0 0.0
  %9807 = vmatmul.mubr.f32.gmra.mxu0 %v8651
  %v9808 = vpop.f32.mrf.mxu0
  %v9809 = vadd.f32 0.0, %v9808
  %v9810 = vpop.f32.mrf.mxu0
  %v9811 = vadd.f32 0.0, %v9810
  %9812 = vmatprep.mubr.f32.mxu0 0.0
  %9813 = vmatmul.mubr.f32.gmra.mxu0 %v8652
  %v9814 = vpop.f32.mrf.mxu0
  %v9815 = vadd.f32 0.0, %v9814
  %v9816 = vpop.f32.mrf.mxu0
  %v9817 = vadd.f32 0.0, %v9816
  %9818 = vmatprep.mubr.f32.mxu0 0.0
  %9819 = vmatmul.mubr.f32.gmra.mxu0 %v8653
  %v9820 = vpop.f32.mrf.mxu0
  %v9821 = vadd.f32 0.0, %v9820
  %v9822 = vpop.f32.mrf.mxu0
  %v9823 = vadd.f32 0.0, %v9822
  %9824 = vmatprep.mubr.f32.mxu0 0.0
  %9825 = vmatmul.mubr.f32.gmra.mxu0 %v8654
  %v9826 = vpop.f32.mrf.mxu0
  %v9827 = vadd.f32 0.0, %v9826
  %v9828 = vpop.f32.mrf.mxu0
  %v9829 = vadd.f32 0.0, %v9828
  %9830 = vmatprep.mubr.f32.mxu0 0.0
  %9831 = vmatmul.mubr.f32.gmra.mxu0 %v8655
  %v9832 = vpop.f32.mrf.mxu0
  %v9833 = vadd.f32 0.0, %v9832
  %v9834 = vpop.f32.mrf.mxu0
  %v9835 = vadd.f32 0.0, %v9834
  %9836 = vmatprep.mubr.f32.mxu0 0.0
  %9837 = vmatmul.mubr.f32.gmra.mxu0 %v8656
  %v9838 = vpop.f32.mrf.mxu0
  %v9839 = vadd.f32 0.0, %v9838
  %v9840 = vpop.f32.mrf.mxu0
  %v9841 = vadd.f32 0.0, %v9840
  %9842 = vmatprep.mubr.f32.mxu0 0.0
  %9843 = vmatmul.mubr.f32.gmra.mxu0 %v8657
  %v9844 = vpop.f32.mrf.mxu0
  %v9845 = vadd.f32 0.0, %v9844
  %v9846 = vpop.f32.mrf.mxu0
  %v9847 = vadd.f32 0.0, %v9846
  %9848 = vmatprep.mubr.f32.mxu0 0.0
  %9849 = vmatmul.mubr.f32.gmra.mxu0 %v8658
  %v9850 = vpop.f32.mrf.mxu0
  %v9851 = vadd.f32 0.0, %v9850
  %v9852 = vpop.f32.mrf.mxu0
  %v9853 = vadd.f32 0.0, %v9852
  %9854 = vmatprep.mubr.f32.mxu0 0.0
  %9855 = vmatmul.mubr.f32.gmra.mxu0 %v8659
  %v9856 = vpop.f32.mrf.mxu0
  %v9857 = vadd.f32 0.0, %v9856
  %v9858 = vpop.f32.mrf.mxu0
  %v9859 = vadd.f32 0.0, %v9858
  %9860 = vmatprep.mubr.f32.mxu0 0.0
  %9861 = vmatmul.mubr.f32.gmra.mxu0 %v8660
  %v9862 = vpop.f32.mrf.mxu0
  %v9863 = vadd.f32 0.0, %v9862
  %v9864 = vpop.f32.mrf.mxu0
  %v9865 = vadd.f32 0.0, %v9864
  %9866 = vmatprep.mubr.f32.mxu0 0.0
  %9867 = vmatmul.mubr.f32.gmra.mxu0 %v8661
  %v9868 = vpop.f32.mrf.mxu0
  %v9869 = vadd.f32 0.0, %v9868
  %v9870 = vpop.f32.mrf.mxu0
  %v9871 = vadd.f32 0.0, %v9870
  %9872 = vmatprep.mubr.f32.mxu0 0.0
  %9873 = vmatmul.mubr.f32.gmra.mxu0 %v8662
  %v9874 = vpop.f32.mrf.mxu0
  %v9875 = vadd.f32 0.0, %v9874
  %v9876 = vpop.f32.mrf.mxu0
  %v9877 = vadd.f32 0.0, %v9876
  %9878 = vmatprep.mubr.f32.mxu0 0.0
  %9879 = vmatmul.mubr.f32.gmra.mxu0 %v8663
  %v9880 = vpop.f32.mrf.mxu0
  %v9881 = vadd.f32 0.0, %v9880
  %v9882 = vpop.f32.mrf.mxu0
  %v9883 = vadd.f32 0.0, %v9882
  %9884 = vmatprep.mubr.f32.mxu0 0.0
  %9885 = vmatmul.mubr.f32.gmra.mxu0 %v8664
  %v9886 = vpop.f32.mrf.mxu0
  %v9887 = vadd.f32 0.0, %v9886
  %v9888 = vpop.f32.mrf.mxu0
  %v9889 = vadd.f32 0.0, %v9888
  %9890 = vmatprep.mubr.f32.mxu0 0.0
  %9891 = vmatmul.mubr.f32.gmra.mxu0 %v8665
  %v9892 = vpop.f32.mrf.mxu0
  %v9893 = vadd.f32 0.0, %v9892
  %v9894 = vpop.f32.mrf.mxu0
  %v9895 = vadd.f32 0.0, %v9894
  %9896 = vmatprep.mubr.f32.mxu0 0.0
  %9897 = vmatmul.mubr.f32.gmra.mxu0 %v8666
  %v9898 = vpop.f32.mrf.mxu0
  %v9899 = vadd.f32 0.0, %v9898
  %v9900 = vpop.f32.mrf.mxu0
  %v9901 = vadd.f32 0.0, %v9900
  %9902 = vmatprep.mubr.f32.mxu0 0.0
  %9903 = vmatmul.mubr.f32.gmra.mxu0 %v8667
  %v9904 = vpop.f32.mrf.mxu0
  %v9905 = vadd.f32 0.0, %v9904
  %v9906 = vpop.f32.mrf.mxu0
  %v9907 = vadd.f32 0.0, %v9906
  %9908 = vmatprep.mubr.f32.mxu0 0.0
  %9909 = vmatmul.mubr.f32.gmra.mxu0 %v8668
  %v9910 = vpop.f32.mrf.mxu0
  %v9911 = vadd.f32 0.0, %v9910
  %v9912 = vpop.f32.mrf.mxu0
  %v9913 = vadd.f32 0.0, %v9912
  %9914 = vmatprep.mubr.f32.mxu0 0.0
  %9915 = vmatmul.mubr.f32.gmra.mxu0 %v8669
  %v9916 = vpop.f32.mrf.mxu0
  %v9917 = vadd.f32 0.0, %v9916
  %v9918 = vpop.f32.mrf.mxu0
  %v9919 = vadd.f32 0.0, %v9918
  %9920 = vmatprep.mubr.f32.mxu0 0.0
  %9921 = vmatmul.mubr.f32.gmra.mxu0 %v8670
  %v9922 = vpop.f32.mrf.mxu0
  %v9923 = vadd.f32 0.0, %v9922
  %v9924 = vpop.f32.mrf.mxu0
  %v9925 = vadd.f32 0.0, %v9924
  %9926 = vmatprep.mubr.f32.mxu0 0.0
  %9927 = vmatmul.mubr.f32.gmra.mxu0 %v8671
  %v9928 = vpop.f32.mrf.mxu0
  %v9929 = vadd.f32 0.0, %v9928
  %v9930 = vpop.f32.mrf.mxu0
  %v9931 = vadd.f32 0.0, %v9930
  %9932 = vmatprep.mubr.f32.mxu0 0.0
  %9933 = vmatmul.mubr.f32.gmra.mxu0 %v8672
  %v9934 = vpop.f32.mrf.mxu0
  %v9935 = vadd.f32 0.0, %v9934
  %v9936 = vpop.f32.mrf.mxu0
  %v9937 = vadd.f32 0.0, %v9936
  %9938 = vmatprep.mubr.f32.mxu0 0.0
  %9939 = vmatmul.mubr.f32.gmra.mxu0 %v8673
  %v9940 = vpop.f32.mrf.mxu0
  %v9941 = vadd.f32 0.0, %v9940
  %v9942 = vpop.f32.mrf.mxu0
  %v9943 = vadd.f32 0.0, %v9942
  %9944 = vmatprep.mubr.f32.mxu0 0.0
  %9945 = vmatmul.mubr.f32.gmra.mxu0 %v8674
  %v9946 = vpop.f32.mrf.mxu0
  %v9947 = vadd.f32 0.0, %v9946
  %v9948 = vpop.f32.mrf.mxu0
  %v9949 = vadd.f32 0.0, %v9948
  %9950 = vmatprep.mubr.f32.mxu0 0.0
  %9951 = vmatmul.mubr.f32.gmra.mxu0 %v8675
  %v9952 = vpop.f32.mrf.mxu0
  %v9953 = vadd.f32 0.0, %v9952
  %v9954 = vpop.f32.mrf.mxu0
  %v9955 = vadd.f32 0.0, %v9954
  %9956 = vmatprep.mubr.f32.mxu0 0.0
  %9957 = vmatmul.mubr.f32.gmra.mxu0 %v8676
  %v9958 = vpop.f32.mrf.mxu0
  %v9959 = vadd.f32 0.0, %v9958
  %v9960 = vpop.f32.mrf.mxu0
  %v9961 = vadd.f32 0.0, %v9960
  %9962 = vmatprep.mubr.f32.mxu0 0.0
  %9963 = vmatmul.mubr.f32.gmra.mxu0 %v8677
  %v9964 = vpop.f32.mrf.mxu0
  %v9965 = vadd.f32 0.0, %v9964
  %v9966 = vpop.f32.mrf.mxu0
  %v9967 = vadd.f32 0.0, %v9966
  %9968 = vmatprep.mubr.f32.mxu0 0.0
  %9969 = vmatmul.mubr.f32.gmra.mxu0 %v8678
  %v9970 = vpop.f32.mrf.mxu0
  %v9971 = vadd.f32 0.0, %v9970
  %v9972 = vpop.f32.mrf.mxu0
  %v9973 = vadd.f32 0.0, %v9972
  %9974 = vmatprep.mubr.f32.mxu0 0.0
  %9975 = vmatmul.mubr.f32.gmra.mxu0 %v8679
  %v9976 = vpop.f32.mrf.mxu0
  %v9977 = vadd.f32 0.0, %v9976
  %v9978 = vpop.f32.mrf.mxu0
  %v9979 = vadd.f32 0.0, %v9978
  %9980 = vmatprep.mubr.f32.mxu0 0.0
  %9981 = vmatmul.mubr.f32.gmra.mxu0 %v8680
  %v9982 = vpop.f32.mrf.mxu0
  %v9983 = vadd.f32 0.0, %v9982
  %v9984 = vpop.f32.mrf.mxu0
  %v9985 = vadd.f32 0.0, %v9984
  %9986 = vmatprep.mubr.f32.mxu0 0.0
  %9987 = vmatmul.mubr.f32.gmra.mxu0 %v8681
  %v9988 = vpop.f32.mrf.mxu0
  %v9989 = vadd.f32 0.0, %v9988
  %v9990 = vpop.f32.mrf.mxu0
  %v9991 = vadd.f32 0.0, %v9990
  %9992 = vmatprep.mubr.f32.mxu0 0.0
  %9993 = vmatmul.mubr.f32.gmra.mxu0 %v8682
  %v9994 = vpop.f32.mrf.mxu0
  %v9995 = vadd.f32 0.0, %v9994
  %v9996 = vpop.f32.mrf.mxu0
  %v9997 = vadd.f32 0.0, %v9996
  %9998 = vmatprep.mubr.f32.mxu0 0.0
  %9999 = vmatmul.mubr.f32.gmra.mxu0 %v8683
  %v10000 = vpop.f32.mrf.mxu0
  %v10001 = vadd.f32 0.0, %v10000
  %v10002 = vpop.f32.mrf.mxu0
  %v10003 = vadd.f32 0.0, %v10002
  %10004 = vmatprep.mubr.f32.mxu0 0.0
  %10005 = vmatmul.mubr.f32.gmra.mxu0 %v8684
  %v10006 = vpop.f32.mrf.mxu0
  %v10007 = vadd.f32 0.0, %v10006
  %v10008 = vpop.f32.mrf.mxu0
  %v10009 = vadd.f32 0.0, %v10008
  %10010 = vmatprep.mubr.f32.mxu0 0.0
  %10011 = vmatmul.mubr.f32.gmra.mxu0 %v8685
  %v10012 = vpop.f32.mrf.mxu0
  %v10013 = vadd.f32 0.0, %v10012
  %v10014 = vpop.f32.mrf.mxu0
  %v10015 = vadd.f32 0.0, %v10014
  %10016 = vmatprep.mubr.f32.mxu0 0.0
  %10017 = vmatmul.mubr.f32.gmra.mxu0 %v8686
  %v10018 = vpop.f32.mrf.mxu0
  %v10019 = vadd.f32 0.0, %v10018
  %v10020 = vpop.f32.mrf.mxu0
  %v10021 = vadd.f32 0.0, %v10020
  %10022 = vmatprep.mubr.f32.mxu0 0.0
  %10023 = vmatmul.mubr.f32.gmra.mxu0 %v8687
  %v10024 = vpop.f32.mrf.mxu0
  %v10025 = vadd.f32 0.0, %v10024
  %v10026 = vpop.f32.mrf.mxu0
  %v10027 = vadd.f32 0.0, %v10026
  %10028 = vmatprep.mubr.f32.mxu0 0.0
  %10029 = vmatmul.mubr.f32.gmra.mxu0 %v8688
  %v10030 = vpop.f32.mrf.mxu0
  %v10031 = vadd.f32 0.0, %v10030
  %v10032 = vpop.f32.mrf.mxu0
  %v10033 = vadd.f32 0.0, %v10032
  %10034 = vmatprep.mubr.f32.mxu0 0.0
  %10035 = vmatmul.mubr.f32.gmra.mxu0 %v8689
  %v10036 = vpop.f32.mrf.mxu0
  %v10037 = vadd.f32 0.0, %v10036
  %v10038 = vpop.f32.mrf.mxu0
  %v10039 = vadd.f32 0.0, %v10038
  %10040 = vmatprep.mubr.f32.mxu0 0.0
  %10041 = vmatmul.mubr.f32.gmra.mxu0 %v8690
  %v10042 = vpop.f32.mrf.mxu0
  %v10043 = vadd.f32 0.0, %v10042
  %v10044 = vpop.f32.mrf.mxu0
  %v10045 = vadd.f32 0.0, %v10044
  %10046 = vmatprep.mubr.f32.mxu0 0.0
  %10047 = vmatmul.mubr.f32.gmra.mxu0 %v8691
  %v10048 = vpop.f32.mrf.mxu0
  %v10049 = vadd.f32 0.0, %v10048
  %v10050 = vpop.f32.mrf.mxu0
  %v10051 = vadd.f32 0.0, %v10050
  %10052 = vmatprep.mubr.f32.mxu0 0.0
  %10053 = vmatmul.mubr.f32.gmra.mxu0 %v8692
  %v10054 = vpop.f32.mrf.mxu0
  %v10055 = vadd.f32 0.0, %v10054
  %v10056 = vpop.f32.mrf.mxu0
  %v10057 = vadd.f32 0.0, %v10056
  %10058 = vmatprep.mubr.f32.mxu0 0.0
  %10059 = vmatmul.mubr.f32.gmra.mxu0 %v8693
  %v10060 = vpop.f32.mrf.mxu0
  %v10061 = vadd.f32 0.0, %v10060
  %v10062 = vpop.f32.mrf.mxu0
  %v10063 = vadd.f32 0.0, %v10062
  %10064 = vmatprep.mubr.f32.mxu0 0.0
  %10065 = vmatmul.mubr.f32.gmra.mxu0 %v8694
  %v10066 = vpop.f32.mrf.mxu0
  %v10067 = vadd.f32 0.0, %v10066
  %v10068 = vpop.f32.mrf.mxu0
  %v10069 = vadd.f32 0.0, %v10068
  %10070 = vmatprep.mubr.f32.mxu0 0.0
  %10071 = vmatmul.mubr.f32.gmra.mxu0 %v8695
  %v10072 = vpop.f32.mrf.mxu0
  %v10073 = vadd.f32 0.0, %v10072
  %v10074 = vpop.f32.mrf.mxu0
  %v10075 = vadd.f32 0.0, %v10074
  %10076 = vmatprep.mubr.f32.mxu0 0.0
  %10077 = vmatmul.mubr.f32.gmra.mxu0 %v8696
  %v10078 = vpop.f32.mrf.mxu0
  %v10079 = vadd.f32 0.0, %v10078
  %v10080 = vpop.f32.mrf.mxu0
  %v10081 = vadd.f32 0.0, %v10080
  %10082 = vmatprep.mubr.f32.mxu0 0.0
  %10083 = vmatmul.mubr.f32.gmra.mxu0 %v8697
  %v10084 = vpop.f32.mrf.mxu0
  %v10085 = vadd.f32 0.0, %v10084
  %v10086 = vpop.f32.mrf.mxu0
  %v10087 = vadd.f32 0.0, %v10086
  %10088 = vmatprep.mubr.f32.mxu0 0.0
  %10089 = vmatmul.mubr.f32.gmra.mxu0 %v8698
  %v10090 = vpop.f32.mrf.mxu0
  %v10091 = vadd.f32 0.0, %v10090
  %v10092 = vpop.f32.mrf.mxu0
  %v10093 = vadd.f32 0.0, %v10092
  %10094 = vmatprep.mubr.f32.mxu0 0.0
  %10095 = vmatmul.mubr.f32.gmra.mxu0 %v8699
  %v10096 = vpop.f32.mrf.mxu0
  %v10097 = vadd.f32 0.0, %v10096
  %v10098 = vpop.f32.mrf.mxu0
  %v10099 = vadd.f32 0.0, %v10098
  %10100 = vmatprep.mubr.f32.mxu0 0.0
  %10101 = vmatmul.mubr.f32.gmra.mxu0 %v8700
  %v10102 = vpop.f32.mrf.mxu0
  %v10103 = vadd.f32 0.0, %v10102
  %v10104 = vpop.f32.mrf.mxu0
  %v10105 = vadd.f32 0.0, %v10104
  %10106 = vmatprep.mubr.f32.mxu0 0.0
  %10107 = vmatmul.mubr.f32.gmra.mxu0 %v8701
  %v10108 = vpop.f32.mrf.mxu0
  %v10109 = vadd.f32 0.0, %v10108
  %v10110 = vpop.f32.mrf.mxu0
  %v10111 = vadd.f32 0.0, %v10110
  %10112 = vmatprep.mubr.f32.mxu0 0.0
  %10113 = vmatmul.mubr.f32.gmra.mxu0 %v8702
  %v10114 = vpop.f32.mrf.mxu0
  %v10115 = vadd.f32 0.0, %v10114
  %v10116 = vpop.f32.mrf.mxu0
  %v10117 = vadd.f32 0.0, %v10116
  %10118 = vmatprep.mubr.f32.mxu0 0.0
  %10119 = vmatmul.mubr.f32.gmra.mxu0 %v8703
  %v10120 = vpop.f32.mrf.mxu0
  %v10121 = vadd.f32 0.0, %v10120
  %v10122 = vpop.f32.mrf.mxu0
  %v10123 = vadd.f32 0.0, %v10122
  %10124 = vmatprep.mubr.f32.mxu0 0.0
  %10125 = vmatmul.mubr.f32.gmra.mxu0 %v8704
  %v10126 = vpop.f32.mrf.mxu0
  %v10127 = vadd.f32 0.0, %v10126
  %v10128 = vpop.f32.mrf.mxu0
  %v10129 = vadd.f32 0.0, %v10128
  %10130 = vmatprep.mubr.f32.mxu0 0.0
  %10131 = vmatmul.mubr.f32.gmra.mxu0 %v8705
  %v10132 = vpop.f32.mrf.mxu0
  %v10133 = vadd.f32 0.0, %v10132
  %v10134 = vpop.f32.mrf.mxu0
  %v10135 = vadd.f32 0.0, %v10134
  %10136 = vmatprep.mubr.f32.mxu0 0.0
  %10137 = vmatmul.mubr.f32.gmra.mxu0 %v8706
  %v10138 = vpop.f32.mrf.mxu0
  %v10139 = vadd.f32 0.0, %v10138
  %v10140 = vpop.f32.mrf.mxu0
  %v10141 = vadd.f32 0.0, %v10140
  %10142 = vmatprep.mubr.f32.mxu0 0.0
  %10143 = vmatmul.mubr.f32.gmra.mxu0 %v8707
  %v10144 = vpop.f32.mrf.mxu0
  %v10145 = vadd.f32 0.0, %v10144
  %v10146 = vpop.f32.mrf.mxu0
  %v10147 = vadd.f32 0.0, %v10146
  %10148 = vmatprep.mubr.f32.mxu0 0.0
  %10149 = vmatmul.mubr.f32.gmra.mxu0 %v8708
  %v10150 = vpop.f32.mrf.mxu0
  %v10151 = vadd.f32 0.0, %v10150
  %v10152 = vpop.f32.mrf.mxu0
  %v10153 = vadd.f32 0.0, %v10152
  %10154 = vmatprep.mubr.f32.mxu0 0.0
  %10155 = vmatmul.mubr.f32.gmra.mxu0 %v8709
  %v10156 = vpop.f32.mrf.mxu0
  %v10157 = vadd.f32 0.0, %v10156
  %v10158 = vpop.f32.mrf.mxu0
  %v10159 = vadd.f32 0.0, %v10158
  %10160 = vmatprep.mubr.f32.mxu0 0.0
  %10161 = vmatmul.mubr.f32.gmra.mxu0 %v8710
  %v10162 = vpop.f32.mrf.mxu0
  %v10163 = vadd.f32 0.0, %v10162
  %v10164 = vpop.f32.mrf.mxu0
  %v10165 = vadd.f32 0.0, %v10164
  %10166 = vmatprep.mubr.f32.mxu0 0.0
  %10167 = vmatmul.mubr.f32.gmra.mxu0 %v8711
  %v10168 = vpop.f32.mrf.mxu0
  %v10169 = vadd.f32 0.0, %v10168
  %v10170 = vpop.f32.mrf.mxu0
  %v10171 = vadd.f32 0.0, %v10170
  %10172 = vdwg.mxu0
  %v10173 = vadd.f32 %v9309, %v9791
  %v10174 = vadd.f32 %v9311, %v9793
  %v10175 = vadd.f32 %v9315, %v9797
  %v10176 = vadd.f32 %v9317, %v9799
  %v10177 = vadd.f32 %v9321, %v9803
  %v10178 = vadd.f32 %v9323, %v9805
  %v10179 = vadd.f32 %v9327, %v9809
  %v10180 = vadd.f32 %v9329, %v9811
  %v10181 = vadd.f32 %v9333, %v9815
  %v10182 = vadd.f32 %v9335, %v9817
  %v10183 = vadd.f32 %v9339, %v9821
  %v10184 = vadd.f32 %v9341, %v9823
  %v10185 = vadd.f32 %v9345, %v9827
  %v10186 = vadd.f32 %v9347, %v9829
  %v10187 = vadd.f32 %v9351, %v9833
  %v10188 = vadd.f32 %v9353, %v9835
  %v10189 = vadd.f32 %v9357, %v9839
  %v10190 = vadd.f32 %v9359, %v9841
  %v10191 = vadd.f32 %v9363, %v9845
  %v10192 = vadd.f32 %v9365, %v9847
  %v10193 = vadd.f32 %v9369, %v9851
  %v10194 = vadd.f32 %v9371, %v9853
  %v10195 = vadd.f32 %v9375, %v9857
  %v10196 = vadd.f32 %v9377, %v9859
  %v10197 = vadd.f32 %v9381, %v9863
  %v10198 = vadd.f32 %v9383, %v9865
  %v10199 = vadd.f32 %v9387, %v9869
  %v10200 = vadd.f32 %v9389, %v9871
  %v10201 = vadd.f32 %v9393, %v9875
  %v10202 = vadd.f32 %v9395, %v9877
  %v10203 = vadd.f32 %v9399, %v9881
  %v10204 = vadd.f32 %v9401, %v9883
  %v10205 = vadd.f32 %v9405, %v9887
  %v10206 = vadd.f32 %v9407, %v9889
  %v10207 = vadd.f32 %v9411, %v9893
  %v10208 = vadd.f32 %v9413, %v9895
  %v10209 = vadd.f32 %v9417, %v9899
  %v10210 = vadd.f32 %v9419, %v9901
  %v10211 = vadd.f32 %v9423, %v9905
  %v10212 = vadd.f32 %v9425, %v9907
  %v10213 = vadd.f32 %v9429, %v9911
  %v10214 = vadd.f32 %v9431, %v9913
  %v10215 = vadd.f32 %v9435, %v9917
  %v10216 = vadd.f32 %v9437, %v9919
  %v10217 = vadd.f32 %v9441, %v9923
  %v10218 = vadd.f32 %v9443, %v9925
  %v10219 = vadd.f32 %v9447, %v9929
  %v10220 = vadd.f32 %v9449, %v9931
  %v10221 = vadd.f32 %v9453, %v9935
  %v10222 = vadd.f32 %v9455, %v9937
  %v10223 = vadd.f32 %v9459, %v9941
  %v10224 = vadd.f32 %v9461, %v9943
  %v10225 = vadd.f32 %v9465, %v9947
  %v10226 = vadd.f32 %v9467, %v9949
  %v10227 = vadd.f32 %v9471, %v9953
  %v10228 = vadd.f32 %v9473, %v9955
  %v10229 = vadd.f32 %v9477, %v9959
  %v10230 = vadd.f32 %v9479, %v9961
  %v10231 = vadd.f32 %v9483, %v9965
  %v10232 = vadd.f32 %v9485, %v9967
  %v10233 = vadd.f32 %v9489, %v9971
  %v10234 = vadd.f32 %v9491, %v9973
  %v10235 = vadd.f32 %v9495, %v9977
  %v10236 = vadd.f32 %v9497, %v9979
  %v10237 = vadd.f32 %v9501, %v9983
  %v10238 = vadd.f32 %v9503, %v9985
  %v10239 = vadd.f32 %v9507, %v9989
  %v10240 = vadd.f32 %v9509, %v9991
  %v10241 = vadd.f32 %v9513, %v9995
  %v10242 = vadd.f32 %v9515, %v9997
  %v10243 = vadd.f32 %v9519, %v10001
  %v10244 = vadd.f32 %v9521, %v10003
  %v10245 = vadd.f32 %v9525, %v10007
  %v10246 = vadd.f32 %v9527, %v10009
  %v10247 = vadd.f32 %v9531, %v10013
  %v10248 = vadd.f32 %v9533, %v10015
  %v10249 = vadd.f32 %v9537, %v10019
  %v10250 = vadd.f32 %v9539, %v10021
  %v10251 = vadd.f32 %v9543, %v10025
  %v10252 = vadd.f32 %v9545, %v10027
  %v10253 = vadd.f32 %v9549, %v10031
  %v10254 = vadd.f32 %v9551, %v10033
  %v10255 = vadd.f32 %v9555, %v10037
  %v10256 = vadd.f32 %v9557, %v10039
  %v10257 = vadd.f32 %v9561, %v10043
  %v10258 = vadd.f32 %v9563, %v10045
  %v10259 = vadd.f32 %v9567, %v10049
  %v10260 = vadd.f32 %v9569, %v10051
  %v10261 = vadd.f32 %v9573, %v10055
  %v10262 = vadd.f32 %v9575, %v10057
  %v10263 = vadd.f32 %v9579, %v10061
  %v10264 = vadd.f32 %v9581, %v10063
  %v10265 = vadd.f32 %v9585, %v10067
  %v10266 = vadd.f32 %v9587, %v10069
  %v10267 = vadd.f32 %v9591, %v10073
  %v10268 = vadd.f32 %v9593, %v10075
  %v10269 = vadd.f32 %v9597, %v10079
  %v10270 = vadd.f32 %v9599, %v10081
  %v10271 = vadd.f32 %v9603, %v10085
  %v10272 = vadd.f32 %v9605, %v10087
  %v10273 = vadd.f32 %v9609, %v10091
  %v10274 = vadd.f32 %v9611, %v10093
  %v10275 = vadd.f32 %v9615, %v10097
  %v10276 = vadd.f32 %v9617, %v10099
  %v10277 = vadd.f32 %v9621, %v10103
  %v10278 = vadd.f32 %v9623, %v10105
  %v10279 = vadd.f32 %v9627, %v10109
  %v10280 = vadd.f32 %v9629, %v10111
  %v10281 = vadd.f32 %v9633, %v10115
  %v10282 = vadd.f32 %v9635, %v10117
  %v10283 = vadd.f32 %v9639, %v10121
  %v10284 = vadd.f32 %v9641, %v10123
  %v10285 = vadd.f32 %v9645, %v10127
  %v10286 = vadd.f32 %v9647, %v10129
  %v10287 = vadd.f32 %v9651, %v10133
  %v10288 = vadd.f32 %v9653, %v10135
  %v10289 = vadd.f32 %v9657, %v10139
  %v10290 = vadd.f32 %v9659, %v10141
  %v10291 = vadd.f32 %v9663, %v10145
  %v10292 = vadd.f32 %v9665, %v10147
  %v10293 = vadd.f32 %v9669, %v10151
  %v10294 = vadd.f32 %v9671, %v10153
  %v10295 = vadd.f32 %v9675, %v10157
  %v10296 = vadd.f32 %v9677, %v10159
  %v10297 = vadd.f32 %v9681, %v10163
  %v10298 = vadd.f32 %v9683, %v10165
  %v10299 = vadd.f32 %v9687, %v10169
  %v10300 = vadd.f32 %v9689, %v10171
  %s10301 = scalar_lea.vmem %s3, 768
  %v10302 = vld [vmem:[%s10301] sm:$0xff]
  %v10303 = vld [vmem:[%s10301 + $0x8] sm:$0xff]
  %v10304 = vld [vmem:[%s10301 + $0x10] sm:$0xff]
  %v10305 = vld [vmem:[%s10301 + $0x18] sm:$0xff]
  %v10306 = vld [vmem:[%s10301 + $0x20] sm:$0xff]
  %v10307 = vld [vmem:[%s10301 + $0x28] sm:$0xff]
  %v10308 = vld [vmem:[%s10301 + $0x30] sm:$0xff]
  %v10309 = vld [vmem:[%s10301 + $0x38] sm:$0xff]
  %v10310 = vld [vmem:[%s10301 + $0x40] sm:$0xff]
  %v10311 = vld [vmem:[%s10301 + $0x48] sm:$0xff]
  %v10312 = vld [vmem:[%s10301 + $0x50] sm:$0xff]
  %v10313 = vld [vmem:[%s10301 + $0x58] sm:$0xff]
  %v10314 = vld [vmem:[%s10301 + $0x60] sm:$0xff]
  %v10315 = vld [vmem:[%s10301 + $0x68] sm:$0xff]
  %v10316 = vld [vmem:[%s10301 + $0x70] sm:$0xff]
  %v10317 = vld [vmem:[%s10301 + $0x78] sm:$0xff]
  %v10318 = vld [vmem:[%s10301 + $0x80] sm:$0xff]
  %v10319 = vld [vmem:[%s10301 + $0x88] sm:$0xff]
  %v10320 = vld [vmem:[%s10301 + $0x90] sm:$0xff]
  %v10321 = vld [vmem:[%s10301 + $0x98] sm:$0xff]
  %v10322 = vld [vmem:[%s10301 + $0xa0] sm:$0xff]
  %v10323 = vld [vmem:[%s10301 + $0xa8] sm:$0xff]
  %v10324 = vld [vmem:[%s10301 + $0xb0] sm:$0xff]
  %v10325 = vld [vmem:[%s10301 + $0xb8] sm:$0xff]
  %v10326 = vld [vmem:[%s10301 + $0xc0] sm:$0xff]
  %v10327 = vld [vmem:[%s10301 + $0xc8] sm:$0xff]
  %v10328 = vld [vmem:[%s10301 + $0xd0] sm:$0xff]
  %v10329 = vld [vmem:[%s10301 + $0xd8] sm:$0xff]
  %v10330 = vld [vmem:[%s10301 + $0xe0] sm:$0xff]
  %v10331 = vld [vmem:[%s10301 + $0xe8] sm:$0xff]
  %v10332 = vld [vmem:[%s10301 + $0xf0] sm:$0xff]
  %v10333 = vld [vmem:[%s10301 + $0xf8] sm:$0xff]
  %10334 = vmatprep.subr.mxu0 %v10333
  %10335 = vmatpush1.msra.mxu0 %v10332
  %10336 = vmatprep.subr.mxu0 %v10331
  %10337 = vmatpush1.msra.mxu0 %v10330
  %10338 = vmatprep.subr.mxu0 %v10329
  %10339 = vmatpush1.msra.mxu0 %v10328
  %10340 = vmatprep.subr.mxu0 %v10327
  %10341 = vmatpush1.msra.mxu0 %v10326
  %10342 = vmatprep.subr.mxu0 %v10325
  %10343 = vmatpush1.msra.mxu0 %v10324
  %10344 = vmatprep.subr.mxu0 %v10323
  %10345 = vmatpush1.msra.mxu0 %v10322
  %10346 = vmatprep.subr.mxu0 %v10321
  %10347 = vmatpush1.msra.mxu0 %v10320
  %10348 = vmatprep.subr.mxu0 %v10319
  %10349 = vmatpush1.msra.mxu0 %v10318
  %10350 = vmatprep.subr.mxu0 %v10317
  %10351 = vmatpush1.msra.mxu0 %v10316
  %10352 = vmatprep.subr.mxu0 %v10315
  %10353 = vmatpush1.msra.mxu0 %v10314
  %10354 = vmatprep.subr.mxu0 %v10313
  %10355 = vmatpush1.msra.mxu0 %v10312
  %10356 = vmatprep.subr.mxu0 %v10311
  %10357 = vmatpush1.msra.mxu0 %v10310
  %10358 = vmatprep.subr.mxu0 %v10309
  %10359 = vmatpush1.msra.mxu0 %v10308
  %10360 = vmatprep.subr.mxu0 %v10307
  %10361 = vmatpush1.msra.mxu0 %v10306
  %10362 = vmatprep.subr.mxu0 %v10305
  %10363 = vmatpush1.msra.mxu0 %v10304
  %10364 = vmatprep.subr.mxu0 %v10303
  %10365 = vmatpush1.msra.mxu0 %v10302
  %10366 = vmatprep.subr.mxu0 0.0
  %10367 = vmatpush2.msra.mxu0 0.0
  %10368 = vmatprep.subr.mxu0 0.0
  %10369 = vmatpush2.msra.mxu0 0.0
  %10370 = vmatprep.subr.mxu0 0.0
  %10371 = vmatpush2.msra.mxu0 0.0
  %10372 = vmatprep.subr.mxu0 0.0
  %10373 = vmatpush2.msra.mxu0 0.0
  %10374 = vmatprep.subr.mxu0 0.0
  %10375 = vmatpush2.msra.mxu0 0.0
  %10376 = vmatprep.subr.mxu0 0.0
  %10377 = vmatpush2.msra.mxu0 0.0
  %10378 = vmatprep.subr.mxu0 0.0
  %10379 = vmatpush2.msra.mxu0 0.0
  %10380 = vmatprep.subr.mxu0 0.0
  %10381 = vmatpush2.msra.mxu0 0.0
  %10382 = vmatprep.subr.mxu0 0.0
  %10383 = vmatpush2.msra.mxu0 0.0
  %10384 = vmatprep.subr.mxu0 0.0
  %10385 = vmatpush2.msra.mxu0 0.0
  %10386 = vmatprep.subr.mxu0 0.0
  %10387 = vmatpush2.msra.mxu0 0.0
  %10388 = vmatprep.subr.mxu0 0.0
  %10389 = vmatpush2.msra.mxu0 0.0
  %10390 = vmatprep.subr.mxu0 0.0
  %10391 = vmatpush2.msra.mxu0 0.0
  %10392 = vmatprep.subr.mxu0 0.0
  %10393 = vmatpush2.msra.mxu0 0.0
  %10394 = vmatprep.subr.mxu0 0.0
  %10395 = vmatpush2.msra.mxu0 0.0
  %10396 = vmatprep.subr.mxu0 0.0
  %10397 = vmatpush2.msra.mxu0 0.0
  %10398 = vmatprep.mubr.f32.mxu0 0.0
  %10399 = vmatmul.mubr.f32.gmra.mxu0 %v8656
  %v10400 = vpop.f32.mrf.mxu0
  %v10401 = vadd.f32 0.0, %v10400
  %v10402 = vpop.f32.mrf.mxu0
  %v10403 = vadd.f32 0.0, %v10402
  %10404 = vmatprep.mubr.f32.mxu0 0.0
  %10405 = vmatmul.mubr.f32.gmra.mxu0 %v8657
  %v10406 = vpop.f32.mrf.mxu0
  %v10407 = vadd.f32 0.0, %v10406
  %v10408 = vpop.f32.mrf.mxu0
  %v10409 = vadd.f32 0.0, %v10408
  %10410 = vmatprep.mubr.f32.mxu0 0.0
  %10411 = vmatmul.mubr.f32.gmra.mxu0 %v8658
  %v10412 = vpop.f32.mrf.mxu0
  %v10413 = vadd.f32 0.0, %v10412
  %v10414 = vpop.f32.mrf.mxu0
  %v10415 = vadd.f32 0.0, %v10414
  %10416 = vmatprep.mubr.f32.mxu0 0.0
  %10417 = vmatmul.mubr.f32.gmra.mxu0 %v8659
  %v10418 = vpop.f32.mrf.mxu0
  %v10419 = vadd.f32 0.0, %v10418
  %v10420 = vpop.f32.mrf.mxu0
  %v10421 = vadd.f32 0.0, %v10420
  %10422 = vmatprep.mubr.f32.mxu0 0.0
  %10423 = vmatmul.mubr.f32.gmra.mxu0 %v8660
  %v10424 = vpop.f32.mrf.mxu0
  %v10425 = vadd.f32 0.0, %v10424
  %v10426 = vpop.f32.mrf.mxu0
  %v10427 = vadd.f32 0.0, %v10426
  %10428 = vmatprep.mubr.f32.mxu0 0.0
  %10429 = vmatmul.mubr.f32.gmra.mxu0 %v8661
  %v10430 = vpop.f32.mrf.mxu0
  %v10431 = vadd.f32 0.0, %v10430
  %v10432 = vpop.f32.mrf.mxu0
  %v10433 = vadd.f32 0.0, %v10432
  %10434 = vmatprep.mubr.f32.mxu0 0.0
  %10435 = vmatmul.mubr.f32.gmra.mxu0 %v8662
  %v10436 = vpop.f32.mrf.mxu0
  %v10437 = vadd.f32 0.0, %v10436
  %v10438 = vpop.f32.mrf.mxu0
  %v10439 = vadd.f32 0.0, %v10438
  %10440 = vmatprep.mubr.f32.mxu0 0.0
  %10441 = vmatmul.mubr.f32.gmra.mxu0 %v8663
  %v10442 = vpop.f32.mrf.mxu0
  %v10443 = vadd.f32 0.0, %v10442
  %v10444 = vpop.f32.mrf.mxu0
  %v10445 = vadd.f32 0.0, %v10444
  %10446 = vmatprep.mubr.f32.mxu0 0.0
  %10447 = vmatmul.mubr.f32.gmra.mxu0 %v8664
  %v10448 = vpop.f32.mrf.mxu0
  %v10449 = vadd.f32 0.0, %v10448
  %v10450 = vpop.f32.mrf.mxu0
  %v10451 = vadd.f32 0.0, %v10450
  %10452 = vmatprep.mubr.f32.mxu0 0.0
  %10453 = vmatmul.mubr.f32.gmra.mxu0 %v8665
  %v10454 = vpop.f32.mrf.mxu0
  %v10455 = vadd.f32 0.0, %v10454
  %v10456 = vpop.f32.mrf.mxu0
  %v10457 = vadd.f32 0.0, %v10456
  %10458 = vmatprep.mubr.f32.mxu0 0.0
  %10459 = vmatmul.mubr.f32.gmra.mxu0 %v8666
  %v10460 = vpop.f32.mrf.mxu0
  %v10461 = vadd.f32 0.0, %v10460
  %v10462 = vpop.f32.mrf.mxu0
  %v10463 = vadd.f32 0.0, %v10462
  %10464 = vmatprep.mubr.f32.mxu0 0.0
  %10465 = vmatmul.mubr.f32.gmra.mxu0 %v8667
  %v10466 = vpop.f32.mrf.mxu0
  %v10467 = vadd.f32 0.0, %v10466
  %v10468 = vpop.f32.mrf.mxu0
  %v10469 = vadd.f32 0.0, %v10468
  %10470 = vmatprep.mubr.f32.mxu0 0.0
  %10471 = vmatmul.mubr.f32.gmra.mxu0 %v8668
  %v10472 = vpop.f32.mrf.mxu0
  %v10473 = vadd.f32 0.0, %v10472
  %v10474 = vpop.f32.mrf.mxu0
  %v10475 = vadd.f32 0.0, %v10474
  %10476 = vmatprep.mubr.f32.mxu0 0.0
  %10477 = vmatmul.mubr.f32.gmra.mxu0 %v8669
  %v10478 = vpop.f32.mrf.mxu0
  %v10479 = vadd.f32 0.0, %v10478
  %v10480 = vpop.f32.mrf.mxu0
  %v10481 = vadd.f32 0.0, %v10480
  %10482 = vmatprep.mubr.f32.mxu0 0.0
  %10483 = vmatmul.mubr.f32.gmra.mxu0 %v8670
  %v10484 = vpop.f32.mrf.mxu0
  %v10485 = vadd.f32 0.0, %v10484
  %v10486 = vpop.f32.mrf.mxu0
  %v10487 = vadd.f32 0.0, %v10486
  %10488 = vmatprep.mubr.f32.mxu0 0.0
  %10489 = vmatmul.mubr.f32.gmra.mxu0 %v8671
  %v10490 = vpop.f32.mrf.mxu0
  %v10491 = vadd.f32 0.0, %v10490
  %v10492 = vpop.f32.mrf.mxu0
  %v10493 = vadd.f32 0.0, %v10492
  %10494 = vmatprep.mubr.f32.mxu0 0.0
  %10495 = vmatmul.mubr.f32.gmra.mxu0 %v8672
  %v10496 = vpop.f32.mrf.mxu0
  %v10497 = vadd.f32 0.0, %v10496
  %v10498 = vpop.f32.mrf.mxu0
  %v10499 = vadd.f32 0.0, %v10498
  %10500 = vmatprep.mubr.f32.mxu0 0.0
  %10501 = vmatmul.mubr.f32.gmra.mxu0 %v8673
  %v10502 = vpop.f32.mrf.mxu0
  %v10503 = vadd.f32 0.0, %v10502
  %v10504 = vpop.f32.mrf.mxu0
  %v10505 = vadd.f32 0.0, %v10504
  %10506 = vmatprep.mubr.f32.mxu0 0.0
  %10507 = vmatmul.mubr.f32.gmra.mxu0 %v8674
  %v10508 = vpop.f32.mrf.mxu0
  %v10509 = vadd.f32 0.0, %v10508
  %v10510 = vpop.f32.mrf.mxu0
  %v10511 = vadd.f32 0.0, %v10510
  %10512 = vmatprep.mubr.f32.mxu0 0.0
  %10513 = vmatmul.mubr.f32.gmra.mxu0 %v8675
  %v10514 = vpop.f32.mrf.mxu0
  %v10515 = vadd.f32 0.0, %v10514
  %v10516 = vpop.f32.mrf.mxu0
  %v10517 = vadd.f32 0.0, %v10516
  %10518 = vmatprep.mubr.f32.mxu0 0.0
  %10519 = vmatmul.mubr.f32.gmra.mxu0 %v8676
  %v10520 = vpop.f32.mrf.mxu0
  %v10521 = vadd.f32 0.0, %v10520
  %v10522 = vpop.f32.mrf.mxu0
  %v10523 = vadd.f32 0.0, %v10522
  %10524 = vmatprep.mubr.f32.mxu0 0.0
  %10525 = vmatmul.mubr.f32.gmra.mxu0 %v8677
  %v10526 = vpop.f32.mrf.mxu0
  %v10527 = vadd.f32 0.0, %v10526
  %v10528 = vpop.f32.mrf.mxu0
  %v10529 = vadd.f32 0.0, %v10528
  %10530 = vmatprep.mubr.f32.mxu0 0.0
  %10531 = vmatmul.mubr.f32.gmra.mxu0 %v8678
  %v10532 = vpop.f32.mrf.mxu0
  %v10533 = vadd.f32 0.0, %v10532
  %v10534 = vpop.f32.mrf.mxu0
  %v10535 = vadd.f32 0.0, %v10534
  %10536 = vmatprep.mubr.f32.mxu0 0.0
  %10537 = vmatmul.mubr.f32.gmra.mxu0 %v8679
  %v10538 = vpop.f32.mrf.mxu0
  %v10539 = vadd.f32 0.0, %v10538
  %v10540 = vpop.f32.mrf.mxu0
  %v10541 = vadd.f32 0.0, %v10540
  %10542 = vmatprep.mubr.f32.mxu0 0.0
  %10543 = vmatmul.mubr.f32.gmra.mxu0 %v8680
  %v10544 = vpop.f32.mrf.mxu0
  %v10545 = vadd.f32 0.0, %v10544
  %v10546 = vpop.f32.mrf.mxu0
  %v10547 = vadd.f32 0.0, %v10546
  %10548 = vmatprep.mubr.f32.mxu0 0.0
  %10549 = vmatmul.mubr.f32.gmra.mxu0 %v8681
  %v10550 = vpop.f32.mrf.mxu0
  %v10551 = vadd.f32 0.0, %v10550
  %v10552 = vpop.f32.mrf.mxu0
  %v10553 = vadd.f32 0.0, %v10552
  %10554 = vmatprep.mubr.f32.mxu0 0.0
  %10555 = vmatmul.mubr.f32.gmra.mxu0 %v8682
  %v10556 = vpop.f32.mrf.mxu0
  %v10557 = vadd.f32 0.0, %v10556
  %v10558 = vpop.f32.mrf.mxu0
  %v10559 = vadd.f32 0.0, %v10558
  %10560 = vmatprep.mubr.f32.mxu0 0.0
  %10561 = vmatmul.mubr.f32.gmra.mxu0 %v8683
  %v10562 = vpop.f32.mrf.mxu0
  %v10563 = vadd.f32 0.0, %v10562
  %v10564 = vpop.f32.mrf.mxu0
  %v10565 = vadd.f32 0.0, %v10564
  %10566 = vmatprep.mubr.f32.mxu0 0.0
  %10567 = vmatmul.mubr.f32.gmra.mxu0 %v8684
  %v10568 = vpop.f32.mrf.mxu0
  %v10569 = vadd.f32 0.0, %v10568
  %v10570 = vpop.f32.mrf.mxu0
  %v10571 = vadd.f32 0.0, %v10570
  %10572 = vmatprep.mubr.f32.mxu0 0.0
  %10573 = vmatmul.mubr.f32.gmra.mxu0 %v8685
  %v10574 = vpop.f32.mrf.mxu0
  %v10575 = vadd.f32 0.0, %v10574
  %v10576 = vpop.f32.mrf.mxu0
  %v10577 = vadd.f32 0.0, %v10576
  %10578 = vmatprep.mubr.f32.mxu0 0.0
  %10579 = vmatmul.mubr.f32.gmra.mxu0 %v8686
  %v10580 = vpop.f32.mrf.mxu0
  %v10581 = vadd.f32 0.0, %v10580
  %v10582 = vpop.f32.mrf.mxu0
  %v10583 = vadd.f32 0.0, %v10582
  %10584 = vmatprep.mubr.f32.mxu0 0.0
  %10585 = vmatmul.mubr.f32.gmra.mxu0 %v8687
  %v10586 = vpop.f32.mrf.mxu0
  %v10587 = vadd.f32 0.0, %v10586
  %v10588 = vpop.f32.mrf.mxu0
  %v10589 = vadd.f32 0.0, %v10588
  %10590 = vmatprep.mubr.f32.mxu0 0.0
  %10591 = vmatmul.mubr.f32.gmra.mxu0 %v8688
  %v10592 = vpop.f32.mrf.mxu0
  %v10593 = vadd.f32 0.0, %v10592
  %v10594 = vpop.f32.mrf.mxu0
  %v10595 = vadd.f32 0.0, %v10594
  %10596 = vmatprep.mubr.f32.mxu0 0.0
  %10597 = vmatmul.mubr.f32.gmra.mxu0 %v8689
  %v10598 = vpop.f32.mrf.mxu0
  %v10599 = vadd.f32 0.0, %v10598
  %v10600 = vpop.f32.mrf.mxu0
  %v10601 = vadd.f32 0.0, %v10600
  %10602 = vmatprep.mubr.f32.mxu0 0.0
  %10603 = vmatmul.mubr.f32.gmra.mxu0 %v8690
  %v10604 = vpop.f32.mrf.mxu0
  %v10605 = vadd.f32 0.0, %v10604
  %v10606 = vpop.f32.mrf.mxu0
  %v10607 = vadd.f32 0.0, %v10606
  %10608 = vmatprep.mubr.f32.mxu0 0.0
  %10609 = vmatmul.mubr.f32.gmra.mxu0 %v8691
  %v10610 = vpop.f32.mrf.mxu0
  %v10611 = vadd.f32 0.0, %v10610
  %v10612 = vpop.f32.mrf.mxu0
  %v10613 = vadd.f32 0.0, %v10612
  %10614 = vmatprep.mubr.f32.mxu0 0.0
  %10615 = vmatmul.mubr.f32.gmra.mxu0 %v8692
  %v10616 = vpop.f32.mrf.mxu0
  %v10617 = vadd.f32 0.0, %v10616
  %v10618 = vpop.f32.mrf.mxu0
  %v10619 = vadd.f32 0.0, %v10618
  %10620 = vmatprep.mubr.f32.mxu0 0.0
  %10621 = vmatmul.mubr.f32.gmra.mxu0 %v8693
  %v10622 = vpop.f32.mrf.mxu0
  %v10623 = vadd.f32 0.0, %v10622
  %v10624 = vpop.f32.mrf.mxu0
  %v10625 = vadd.f32 0.0, %v10624
  %10626 = vmatprep.mubr.f32.mxu0 0.0
  %10627 = vmatmul.mubr.f32.gmra.mxu0 %v8694
  %v10628 = vpop.f32.mrf.mxu0
  %v10629 = vadd.f32 0.0, %v10628
  %v10630 = vpop.f32.mrf.mxu0
  %v10631 = vadd.f32 0.0, %v10630
  %10632 = vmatprep.mubr.f32.mxu0 0.0
  %10633 = vmatmul.mubr.f32.gmra.mxu0 %v8695
  %v10634 = vpop.f32.mrf.mxu0
  %v10635 = vadd.f32 0.0, %v10634
  %v10636 = vpop.f32.mrf.mxu0
  %v10637 = vadd.f32 0.0, %v10636
  %10638 = vmatprep.mubr.f32.mxu0 0.0
  %10639 = vmatmul.mubr.f32.gmra.mxu0 %v8696
  %v10640 = vpop.f32.mrf.mxu0
  %v10641 = vadd.f32 0.0, %v10640
  %v10642 = vpop.f32.mrf.mxu0
  %v10643 = vadd.f32 0.0, %v10642
  %10644 = vmatprep.mubr.f32.mxu0 0.0
  %10645 = vmatmul.mubr.f32.gmra.mxu0 %v8697
  %v10646 = vpop.f32.mrf.mxu0
  %v10647 = vadd.f32 0.0, %v10646
  %v10648 = vpop.f32.mrf.mxu0
  %v10649 = vadd.f32 0.0, %v10648
  %10650 = vmatprep.mubr.f32.mxu0 0.0
  %10651 = vmatmul.mubr.f32.gmra.mxu0 %v8698
  %v10652 = vpop.f32.mrf.mxu0
  %v10653 = vadd.f32 0.0, %v10652
  %v10654 = vpop.f32.mrf.mxu0
  %v10655 = vadd.f32 0.0, %v10654
  %10656 = vmatprep.mubr.f32.mxu0 0.0
  %10657 = vmatmul.mubr.f32.gmra.mxu0 %v8699
  %v10658 = vpop.f32.mrf.mxu0
  %v10659 = vadd.f32 0.0, %v10658
  %v10660 = vpop.f32.mrf.mxu0
  %v10661 = vadd.f32 0.0, %v10660
  %10662 = vmatprep.mubr.f32.mxu0 0.0
  %10663 = vmatmul.mubr.f32.gmra.mxu0 %v8700
  %v10664 = vpop.f32.mrf.mxu0
  %v10665 = vadd.f32 0.0, %v10664
  %v10666 = vpop.f32.mrf.mxu0
  %v10667 = vadd.f32 0.0, %v10666
  %10668 = vmatprep.mubr.f32.mxu0 0.0
  %10669 = vmatmul.mubr.f32.gmra.mxu0 %v8701
  %v10670 = vpop.f32.mrf.mxu0
  %v10671 = vadd.f32 0.0, %v10670
  %v10672 = vpop.f32.mrf.mxu0
  %v10673 = vadd.f32 0.0, %v10672
  %10674 = vmatprep.mubr.f32.mxu0 0.0
  %10675 = vmatmul.mubr.f32.gmra.mxu0 %v8702
  %v10676 = vpop.f32.mrf.mxu0
  %v10677 = vadd.f32 0.0, %v10676
  %v10678 = vpop.f32.mrf.mxu0
  %v10679 = vadd.f32 0.0, %v10678
  %10680 = vmatprep.mubr.f32.mxu0 0.0
  %10681 = vmatmul.mubr.f32.gmra.mxu0 %v8703
  %v10682 = vpop.f32.mrf.mxu0
  %v10683 = vadd.f32 0.0, %v10682
  %v10684 = vpop.f32.mrf.mxu0
  %v10685 = vadd.f32 0.0, %v10684
  %10686 = vmatprep.mubr.f32.mxu0 0.0
  %10687 = vmatmul.mubr.f32.gmra.mxu0 %v8704
  %v10688 = vpop.f32.mrf.mxu0
  %v10689 = vadd.f32 0.0, %v10688
  %v10690 = vpop.f32.mrf.mxu0
  %v10691 = vadd.f32 0.0, %v10690
  %10692 = vmatprep.mubr.f32.mxu0 0.0
  %10693 = vmatmul.mubr.f32.gmra.mxu0 %v8705
  %v10694 = vpop.f32.mrf.mxu0
  %v10695 = vadd.f32 0.0, %v10694
  %v10696 = vpop.f32.mrf.mxu0
  %v10697 = vadd.f32 0.0, %v10696
  %10698 = vmatprep.mubr.f32.mxu0 0.0
  %10699 = vmatmul.mubr.f32.gmra.mxu0 %v8706
  %v10700 = vpop.f32.mrf.mxu0
  %v10701 = vadd.f32 0.0, %v10700
  %v10702 = vpop.f32.mrf.mxu0
  %v10703 = vadd.f32 0.0, %v10702
  %10704 = vmatprep.mubr.f32.mxu0 0.0
  %10705 = vmatmul.mubr.f32.gmra.mxu0 %v8707
  %v10706 = vpop.f32.mrf.mxu0
  %v10707 = vadd.f32 0.0, %v10706
  %v10708 = vpop.f32.mrf.mxu0
  %v10709 = vadd.f32 0.0, %v10708
  %10710 = vmatprep.mubr.f32.mxu0 0.0
  %10711 = vmatmul.mubr.f32.gmra.mxu0 %v8708
  %v10712 = vpop.f32.mrf.mxu0
  %v10713 = vadd.f32 0.0, %v10712
  %v10714 = vpop.f32.mrf.mxu0
  %v10715 = vadd.f32 0.0, %v10714
  %10716 = vmatprep.mubr.f32.mxu0 0.0
  %10717 = vmatmul.mubr.f32.gmra.mxu0 %v8709
  %v10718 = vpop.f32.mrf.mxu0
  %v10719 = vadd.f32 0.0, %v10718
  %v10720 = vpop.f32.mrf.mxu0
  %v10721 = vadd.f32 0.0, %v10720
  %10722 = vmatprep.mubr.f32.mxu0 0.0
  %10723 = vmatmul.mubr.f32.gmra.mxu0 %v8710
  %v10724 = vpop.f32.mrf.mxu0
  %v10725 = vadd.f32 0.0, %v10724
  %v10726 = vpop.f32.mrf.mxu0
  %v10727 = vadd.f32 0.0, %v10726
  %10728 = vmatprep.mubr.f32.mxu0 0.0
  %10729 = vmatmul.mubr.f32.gmra.mxu0 %v8711
  %v10730 = vpop.f32.mrf.mxu0
  %v10731 = vadd.f32 0.0, %v10730
  %v10732 = vpop.f32.mrf.mxu0
  %v10733 = vadd.f32 0.0, %v10732
  %10734 = vmatprep.mubr.f32.mxu0 0.0
  %10735 = vmatmul.mubr.f32.gmra.mxu0 %v8712
  %v10736 = vpop.f32.mrf.mxu0
  %v10737 = vadd.f32 0.0, %v10736
  %v10738 = vpop.f32.mrf.mxu0
  %v10739 = vadd.f32 0.0, %v10738
  %10740 = vmatprep.mubr.f32.mxu0 0.0
  %10741 = vmatmul.mubr.f32.gmra.mxu0 %v8713
  %v10742 = vpop.f32.mrf.mxu0
  %v10743 = vadd.f32 0.0, %v10742
  %v10744 = vpop.f32.mrf.mxu0
  %v10745 = vadd.f32 0.0, %v10744
  %10746 = vmatprep.mubr.f32.mxu0 0.0
  %10747 = vmatmul.mubr.f32.gmra.mxu0 %v8714
  %v10748 = vpop.f32.mrf.mxu0
  %v10749 = vadd.f32 0.0, %v10748
  %v10750 = vpop.f32.mrf.mxu0
  %v10751 = vadd.f32 0.0, %v10750
  %10752 = vmatprep.mubr.f32.mxu0 0.0
  %10753 = vmatmul.mubr.f32.gmra.mxu0 %v8715
  %v10754 = vpop.f32.mrf.mxu0
  %v10755 = vadd.f32 0.0, %v10754
  %v10756 = vpop.f32.mrf.mxu0
  %v10757 = vadd.f32 0.0, %v10756
  %10758 = vmatprep.mubr.f32.mxu0 0.0
  %10759 = vmatmul.mubr.f32.gmra.mxu0 %v8716
  %v10760 = vpop.f32.mrf.mxu0
  %v10761 = vadd.f32 0.0, %v10760
  %v10762 = vpop.f32.mrf.mxu0
  %v10763 = vadd.f32 0.0, %v10762
  %10764 = vmatprep.mubr.f32.mxu0 0.0
  %10765 = vmatmul.mubr.f32.gmra.mxu0 %v8717
  %v10766 = vpop.f32.mrf.mxu0
  %v10767 = vadd.f32 0.0, %v10766
  %v10768 = vpop.f32.mrf.mxu0
  %v10769 = vadd.f32 0.0, %v10768
  %10770 = vmatprep.mubr.f32.mxu0 0.0
  %10771 = vmatmul.mubr.f32.gmra.mxu0 %v8718
  %v10772 = vpop.f32.mrf.mxu0
  %v10773 = vadd.f32 0.0, %v10772
  %v10774 = vpop.f32.mrf.mxu0
  %v10775 = vadd.f32 0.0, %v10774
  %10776 = vmatprep.mubr.f32.mxu0 0.0
  %10777 = vmatmul.mubr.f32.gmra.mxu0 %v8719
  %v10778 = vpop.f32.mrf.mxu0
  %v10779 = vadd.f32 0.0, %v10778
  %v10780 = vpop.f32.mrf.mxu0
  %v10781 = vadd.f32 0.0, %v10780
  %10782 = vdwg.mxu0
  %v10783 = vadd.f32 %v10173, %v10401
  %v10784 = vadd.f32 %v10174, %v10403
  %v10785 = vadd.f32 %v10175, %v10407
  %v10786 = vadd.f32 %v10176, %v10409
  %v10787 = vadd.f32 %v10177, %v10413
  %v10788 = vadd.f32 %v10178, %v10415
  %v10789 = vadd.f32 %v10179, %v10419
  %v10790 = vadd.f32 %v10180, %v10421
  %v10791 = vadd.f32 %v10181, %v10425
  %v10792 = vadd.f32 %v10182, %v10427
  %v10793 = vadd.f32 %v10183, %v10431
  %v10794 = vadd.f32 %v10184, %v10433
  %v10795 = vadd.f32 %v10185, %v10437
  %v10796 = vadd.f32 %v10186, %v10439
  %v10797 = vadd.f32 %v10187, %v10443
  %v10798 = vadd.f32 %v10188, %v10445
  %v10799 = vadd.f32 %v10189, %v10449
  %v10800 = vadd.f32 %v10190, %v10451
  %v10801 = vadd.f32 %v10191, %v10455
  %v10802 = vadd.f32 %v10192, %v10457
  %v10803 = vadd.f32 %v10193, %v10461
  %v10804 = vadd.f32 %v10194, %v10463
  %v10805 = vadd.f32 %v10195, %v10467
  %v10806 = vadd.f32 %v10196, %v10469
  %v10807 = vadd.f32 %v10197, %v10473
  %v10808 = vadd.f32 %v10198, %v10475
  %v10809 = vadd.f32 %v10199, %v10479
  %v10810 = vadd.f32 %v10200, %v10481
  %v10811 = vadd.f32 %v10201, %v10485
  %v10812 = vadd.f32 %v10202, %v10487
  %v10813 = vadd.f32 %v10203, %v10491
  %v10814 = vadd.f32 %v10204, %v10493
  %v10815 = vadd.f32 %v10205, %v10497
  %v10816 = vadd.f32 %v10206, %v10499
  %v10817 = vadd.f32 %v10207, %v10503
  %v10818 = vadd.f32 %v10208, %v10505
  %v10819 = vadd.f32 %v10209, %v10509
  %v10820 = vadd.f32 %v10210, %v10511
  %v10821 = vadd.f32 %v10211, %v10515
  %v10822 = vadd.f32 %v10212, %v10517
  %v10823 = vadd.f32 %v10213, %v10521
  %v10824 = vadd.f32 %v10214, %v10523
  %v10825 = vadd.f32 %v10215, %v10527
  %v10826 = vadd.f32 %v10216, %v10529
  %v10827 = vadd.f32 %v10217, %v10533
  %v10828 = vadd.f32 %v10218, %v10535
  %v10829 = vadd.f32 %v10219, %v10539
  %v10830 = vadd.f32 %v10220, %v10541
  %v10831 = vadd.f32 %v10221, %v10545
  %v10832 = vadd.f32 %v10222, %v10547
  %v10833 = vadd.f32 %v10223, %v10551
  %v10834 = vadd.f32 %v10224, %v10553
  %v10835 = vadd.f32 %v10225, %v10557
  %v10836 = vadd.f32 %v10226, %v10559
  %v10837 = vadd.f32 %v10227, %v10563
  %v10838 = vadd.f32 %v10228, %v10565
  %v10839 = vadd.f32 %v10229, %v10569
  %v10840 = vadd.f32 %v10230, %v10571
  %v10841 = vadd.f32 %v10231, %v10575
  %v10842 = vadd.f32 %v10232, %v10577
  %v10843 = vadd.f32 %v10233, %v10581
  %v10844 = vadd.f32 %v10234, %v10583
  %v10845 = vadd.f32 %v10235, %v10587
  %v10846 = vadd.f32 %v10236, %v10589
  %v10847 = vadd.f32 %v10237, %v10593
  %v10848 = vadd.f32 %v10238, %v10595
  %v10849 = vadd.f32 %v10239, %v10599
  %v10850 = vadd.f32 %v10240, %v10601
  %v10851 = vadd.f32 %v10241, %v10605
  %v10852 = vadd.f32 %v10242, %v10607
  %v10853 = vadd.f32 %v10243, %v10611
  %v10854 = vadd.f32 %v10244, %v10613
  %v10855 = vadd.f32 %v10245, %v10617
  %v10856 = vadd.f32 %v10246, %v10619
  %v10857 = vadd.f32 %v10247, %v10623
  %v10858 = vadd.f32 %v10248, %v10625
  %v10859 = vadd.f32 %v10249, %v10629
  %v10860 = vadd.f32 %v10250, %v10631
  %v10861 = vadd.f32 %v10251, %v10635
  %v10862 = vadd.f32 %v10252, %v10637
  %v10863 = vadd.f32 %v10253, %v10641
  %v10864 = vadd.f32 %v10254, %v10643
  %v10865 = vadd.f32 %v10255, %v10647
  %v10866 = vadd.f32 %v10256, %v10649
  %v10867 = vadd.f32 %v10257, %v10653
  %v10868 = vadd.f32 %v10258, %v10655
  %v10869 = vadd.f32 %v10259, %v10659
  %v10870 = vadd.f32 %v10260, %v10661
  %v10871 = vadd.f32 %v10261, %v10665
  %v10872 = vadd.f32 %v10262, %v10667
  %v10873 = vadd.f32 %v10263, %v10671
  %v10874 = vadd.f32 %v10264, %v10673
  %v10875 = vadd.f32 %v10265, %v10677
  %v10876 = vadd.f32 %v10266, %v10679
  %v10877 = vadd.f32 %v10267, %v10683
  %v10878 = vadd.f32 %v10268, %v10685
  %v10879 = vadd.f32 %v10269, %v10689
  %v10880 = vadd.f32 %v10270, %v10691
  %v10881 = vadd.f32 %v10271, %v10695
  %v10882 = vadd.f32 %v10272, %v10697
  %v10883 = vadd.f32 %v10273, %v10701
  %v10884 = vadd.f32 %v10274, %v10703
  %v10885 = vadd.f32 %v10275, %v10707
  %v10886 = vadd.f32 %v10276, %v10709
  %v10887 = vadd.f32 %v10277, %v10713
  %v10888 = vadd.f32 %v10278, %v10715
  %v10889 = vadd.f32 %v10279, %v10719
  %v10890 = vadd.f32 %v10280, %v10721
  %v10891 = vadd.f32 %v10281, %v10725
  %v10892 = vadd.f32 %v10282, %v10727
  %v10893 = vadd.f32 %v10283, %v10731
  %v10894 = vadd.f32 %v10284, %v10733
  %v10895 = vadd.f32 %v10285, %v10737
  %v10896 = vadd.f32 %v10286, %v10739
  %v10897 = vadd.f32 %v10287, %v10743
  %v10898 = vadd.f32 %v10288, %v10745
  %v10899 = vadd.f32 %v10289, %v10749
  %v10900 = vadd.f32 %v10290, %v10751
  %v10901 = vadd.f32 %v10291, %v10755
  %v10902 = vadd.f32 %v10292, %v10757
  %v10903 = vadd.f32 %v10293, %v10761
  %v10904 = vadd.f32 %v10294, %v10763
  %v10905 = vadd.f32 %v10295, %v10767
  %v10906 = vadd.f32 %v10296, %v10769
  %v10907 = vadd.f32 %v10297, %v10773
  %v10908 = vadd.f32 %v10298, %v10775
  %v10909 = vadd.f32 %v10299, %v10779
  %v10910 = vadd.f32 %v10300, %v10781
  %s10911 = scalar_lea.vmem %s3, 1024
  %v10912 = vld [vmem:[%s10911] sm:$0xff]
  %v10913 = vld [vmem:[%s10911 + $0x8] sm:$0xff]
  %v10914 = vld [vmem:[%s10911 + $0x10] sm:$0xff]
  %v10915 = vld [vmem:[%s10911 + $0x18] sm:$0xff]
  %v10916 = vld [vmem:[%s10911 + $0x20] sm:$0xff]
  %v10917 = vld [vmem:[%s10911 + $0x28] sm:$0xff]
  %v10918 = vld [vmem:[%s10911 + $0x30] sm:$0xff]
  %v10919 = vld [vmem:[%s10911 + $0x38] sm:$0xff]
  %v10920 = vld [vmem:[%s10911 + $0x40] sm:$0xff]
  %v10921 = vld [vmem:[%s10911 + $0x48] sm:$0xff]
  %v10922 = vld [vmem:[%s10911 + $0x50] sm:$0xff]
  %v10923 = vld [vmem:[%s10911 + $0x58] sm:$0xff]
  %v10924 = vld [vmem:[%s10911 + $0x60] sm:$0xff]
  %v10925 = vld [vmem:[%s10911 + $0x68] sm:$0xff]
  %v10926 = vld [vmem:[%s10911 + $0x70] sm:$0xff]
  %v10927 = vld [vmem:[%s10911 + $0x78] sm:$0xff]
  %v10928 = vld [vmem:[%s10911 + $0x80] sm:$0xff]
  %v10929 = vld [vmem:[%s10911 + $0x88] sm:$0xff]
  %v10930 = vld [vmem:[%s10911 + $0x90] sm:$0xff]
  %v10931 = vld [vmem:[%s10911 + $0x98] sm:$0xff]
  %v10932 = vld [vmem:[%s10911 + $0xa0] sm:$0xff]
  %v10933 = vld [vmem:[%s10911 + $0xa8] sm:$0xff]
  %v10934 = vld [vmem:[%s10911 + $0xb0] sm:$0xff]
  %v10935 = vld [vmem:[%s10911 + $0xb8] sm:$0xff]
  %v10936 = vld [vmem:[%s10911 + $0xc0] sm:$0xff]
  %v10937 = vld [vmem:[%s10911 + $0xc8] sm:$0xff]
  %v10938 = vld [vmem:[%s10911 + $0xd0] sm:$0xff]
  %v10939 = vld [vmem:[%s10911 + $0xd8] sm:$0xff]
  %v10940 = vld [vmem:[%s10911 + $0xe0] sm:$0xff]
  %v10941 = vld [vmem:[%s10911 + $0xe8] sm:$0xff]
  %v10942 = vld [vmem:[%s10911 + $0xf0] sm:$0xff]
  %v10943 = vld [vmem:[%s10911 + $0xf8] sm:$0xff]
  %10944 = vmatprep.subr.mxu0 %v10943
  %10945 = vmatpush1.msra.mxu0 %v10942
  %10946 = vmatprep.subr.mxu0 %v10941
  %10947 = vmatpush1.msra.mxu0 %v10940
  %10948 = vmatprep.subr.mxu0 %v10939
  %10949 = vmatpush1.msra.mxu0 %v10938
  %10950 = vmatprep.subr.mxu0 %v10937
  %10951 = vmatpush1.msra.mxu0 %v10936
  %10952 = vmatprep.subr.mxu0 %v10935
  %10953 = vmatpush1.msra.mxu0 %v10934
  %10954 = vmatprep.subr.mxu0 %v10933
  %10955 = vmatpush1.msra.mxu0 %v10932
  %10956 = vmatprep.subr.mxu0 %v10931
  %10957 = vmatpush1.msra.mxu0 %v10930
  %10958 = vmatprep.subr.mxu0 %v10929
  %10959 = vmatpush1.msra.mxu0 %v10928
  %10960 = vmatprep.subr.mxu0 %v10927
  %10961 = vmatpush1.msra.mxu0 %v10926
  %10962 = vmatprep.subr.mxu0 %v10925
  %10963 = vmatpush1.msra.mxu0 %v10924
  %10964 = vmatprep.subr.mxu0 %v10923
  %10965 = vmatpush1.msra.mxu0 %v10922
  %10966 = vmatprep.subr.mxu0 %v10921
  %10967 = vmatpush1.msra.mxu0 %v10920
  %10968 = vmatprep.subr.mxu0 %v10919
  %10969 = vmatpush1.msra.mxu0 %v10918
  %10970 = vmatprep.subr.mxu0 %v10917
  %10971 = vmatpush1.msra.mxu0 %v10916
  %10972 = vmatprep.subr.mxu0 %v10915
  %10973 = vmatpush1.msra.mxu0 %v10914
  %10974 = vmatprep.subr.mxu0 %v10913
  %10975 = vmatpush1.msra.mxu0 %v10912
  %10976 = vmatprep.subr.mxu0 0.0
  %10977 = vmatpush2.msra.mxu0 0.0
  %10978 = vmatprep.subr.mxu0 0.0
  %10979 = vmatpush2.msra.mxu0 0.0
  %10980 = vmatprep.subr.mxu0 0.0
  %10981 = vmatpush2.msra.mxu0 0.0
  %10982 = vmatprep.subr.mxu0 0.0
  %10983 = vmatpush2.msra.mxu0 0.0
  %10984 = vmatprep.subr.mxu0 0.0
  %10985 = vmatpush2.msra.mxu0 0.0
  %10986 = vmatprep.subr.mxu0 0.0
  %10987 = vmatpush2.msra.mxu0 0.0
  %10988 = vmatprep.subr.mxu0 0.0
  %10989 = vmatpush2.msra.mxu0 0.0
  %10990 = vmatprep.subr.mxu0 0.0
  %10991 = vmatpush2.msra.mxu0 0.0
  %10992 = vmatprep.subr.mxu0 0.0
  %10993 = vmatpush2.msra.mxu0 0.0
  %10994 = vmatprep.subr.mxu0 0.0
  %10995 = vmatpush2.msra.mxu0 0.0
  %10996 = vmatprep.subr.mxu0 0.0
  %10997 = vmatpush2.msra.mxu0 0.0
  %10998 = vmatprep.subr.mxu0 0.0
  %10999 = vmatpush2.msra.mxu0 0.0
  %11000 = vmatprep.subr.mxu0 0.0
  %11001 = vmatpush2.msra.mxu0 0.0
  %11002 = vmatprep.subr.mxu0 0.0
  %11003 = vmatpush2.msra.mxu0 0.0
  %11004 = vmatprep.subr.mxu0 0.0
  %11005 = vmatpush2.msra.mxu0 0.0
  %11006 = vmatprep.subr.mxu0 0.0
  %11007 = vmatpush2.msra.mxu0 0.0
  %11008 = vmatprep.mubr.f32.mxu0 0.0
  %11009 = vmatmul.mubr.f32.gmra.mxu0 %v8664
  %v11010 = vpop.f32.mrf.mxu0
  %v11011 = vadd.f32 0.0, %v11010
  %v11012 = vpop.f32.mrf.mxu0
  %v11013 = vadd.f32 0.0, %v11012
  %11014 = vmatprep.mubr.f32.mxu0 0.0
  %11015 = vmatmul.mubr.f32.gmra.mxu0 %v8665
  %v11016 = vpop.f32.mrf.mxu0
  %v11017 = vadd.f32 0.0, %v11016
  %v11018 = vpop.f32.mrf.mxu0
  %v11019 = vadd.f32 0.0, %v11018
  %11020 = vmatprep.mubr.f32.mxu0 0.0
  %11021 = vmatmul.mubr.f32.gmra.mxu0 %v8666
  %v11022 = vpop.f32.mrf.mxu0
  %v11023 = vadd.f32 0.0, %v11022
  %v11024 = vpop.f32.mrf.mxu0
  %v11025 = vadd.f32 0.0, %v11024
  %11026 = vmatprep.mubr.f32.mxu0 0.0
  %11027 = vmatmul.mubr.f32.gmra.mxu0 %v8667
  %v11028 = vpop.f32.mrf.mxu0
  %v11029 = vadd.f32 0.0, %v11028
  %v11030 = vpop.f32.mrf.mxu0
  %v11031 = vadd.f32 0.0, %v11030
  %11032 = vmatprep.mubr.f32.mxu0 0.0
  %11033 = vmatmul.mubr.f32.gmra.mxu0 %v8668
  %v11034 = vpop.f32.mrf.mxu0
  %v11035 = vadd.f32 0.0, %v11034
  %v11036 = vpop.f32.mrf.mxu0
  %v11037 = vadd.f32 0.0, %v11036
  %11038 = vmatprep.mubr.f32.mxu0 0.0
  %11039 = vmatmul.mubr.f32.gmra.mxu0 %v8669
  %v11040 = vpop.f32.mrf.mxu0
  %v11041 = vadd.f32 0.0, %v11040
  %v11042 = vpop.f32.mrf.mxu0
  %v11043 = vadd.f32 0.0, %v11042
  %11044 = vmatprep.mubr.f32.mxu0 0.0
  %11045 = vmatmul.mubr.f32.gmra.mxu0 %v8670
  %v11046 = vpop.f32.mrf.mxu0
  %v11047 = vadd.f32 0.0, %v11046
  %v11048 = vpop.f32.mrf.mxu0
  %v11049 = vadd.f32 0.0, %v11048
  %11050 = vmatprep.mubr.f32.mxu0 0.0
  %11051 = vmatmul.mubr.f32.gmra.mxu0 %v8671
  %v11052 = vpop.f32.mrf.mxu0
  %v11053 = vadd.f32 0.0, %v11052
  %v11054 = vpop.f32.mrf.mxu0
  %v11055 = vadd.f32 0.0, %v11054
  %11056 = vmatprep.mubr.f32.mxu0 0.0
  %11057 = vmatmul.mubr.f32.gmra.mxu0 %v8672
  %v11058 = vpop.f32.mrf.mxu0
  %v11059 = vadd.f32 0.0, %v11058
  %v11060 = vpop.f32.mrf.mxu0
  %v11061 = vadd.f32 0.0, %v11060
  %11062 = vmatprep.mubr.f32.mxu0 0.0
  %11063 = vmatmul.mubr.f32.gmra.mxu0 %v8673
  %v11064 = vpop.f32.mrf.mxu0
  %v11065 = vadd.f32 0.0, %v11064
  %v11066 = vpop.f32.mrf.mxu0
  %v11067 = vadd.f32 0.0, %v11066
  %11068 = vmatprep.mubr.f32.mxu0 0.0
  %11069 = vmatmul.mubr.f32.gmra.mxu0 %v8674
  %v11070 = vpop.f32.mrf.mxu0
  %v11071 = vadd.f32 0.0, %v11070
  %v11072 = vpop.f32.mrf.mxu0
  %v11073 = vadd.f32 0.0, %v11072
  %11074 = vmatprep.mubr.f32.mxu0 0.0
  %11075 = vmatmul.mubr.f32.gmra.mxu0 %v8675
  %v11076 = vpop.f32.mrf.mxu0
  %v11077 = vadd.f32 0.0, %v11076
  %v11078 = vpop.f32.mrf.mxu0
  %v11079 = vadd.f32 0.0, %v11078
  %11080 = vmatprep.mubr.f32.mxu0 0.0
  %11081 = vmatmul.mubr.f32.gmra.mxu0 %v8676
  %v11082 = vpop.f32.mrf.mxu0
  %v11083 = vadd.f32 0.0, %v11082
  %v11084 = vpop.f32.mrf.mxu0
  %v11085 = vadd.f32 0.0, %v11084
  %11086 = vmatprep.mubr.f32.mxu0 0.0
  %11087 = vmatmul.mubr.f32.gmra.mxu0 %v8677
  %v11088 = vpop.f32.mrf.mxu0
  %v11089 = vadd.f32 0.0, %v11088
  %v11090 = vpop.f32.mrf.mxu0
  %v11091 = vadd.f32 0.0, %v11090
  %11092 = vmatprep.mubr.f32.mxu0 0.0
  %11093 = vmatmul.mubr.f32.gmra.mxu0 %v8678
  %v11094 = vpop.f32.mrf.mxu0
  %v11095 = vadd.f32 0.0, %v11094
  %v11096 = vpop.f32.mrf.mxu0
  %v11097 = vadd.f32 0.0, %v11096
  %11098 = vmatprep.mubr.f32.mxu0 0.0
  %11099 = vmatmul.mubr.f32.gmra.mxu0 %v8679
  %v11100 = vpop.f32.mrf.mxu0
  %v11101 = vadd.f32 0.0, %v11100
  %v11102 = vpop.f32.mrf.mxu0
  %v11103 = vadd.f32 0.0, %v11102
  %11104 = vmatprep.mubr.f32.mxu0 0.0
  %11105 = vmatmul.mubr.f32.gmra.mxu0 %v8680
  %v11106 = vpop.f32.mrf.mxu0
  %v11107 = vadd.f32 0.0, %v11106
  %v11108 = vpop.f32.mrf.mxu0
  %v11109 = vadd.f32 0.0, %v11108
  %11110 = vmatprep.mubr.f32.mxu0 0.0
  %11111 = vmatmul.mubr.f32.gmra.mxu0 %v8681
  %v11112 = vpop.f32.mrf.mxu0
  %v11113 = vadd.f32 0.0, %v11112
  %v11114 = vpop.f32.mrf.mxu0
  %v11115 = vadd.f32 0.0, %v11114
  %11116 = vmatprep.mubr.f32.mxu0 0.0
  %11117 = vmatmul.mubr.f32.gmra.mxu0 %v8682
  %v11118 = vpop.f32.mrf.mxu0
  %v11119 = vadd.f32 0.0, %v11118
  %v11120 = vpop.f32.mrf.mxu0
  %v11121 = vadd.f32 0.0, %v11120
  %11122 = vmatprep.mubr.f32.mxu0 0.0
  %11123 = vmatmul.mubr.f32.gmra.mxu0 %v8683
  %v11124 = vpop.f32.mrf.mxu0
  %v11125 = vadd.f32 0.0, %v11124
  %v11126 = vpop.f32.mrf.mxu0
  %v11127 = vadd.f32 0.0, %v11126
  %11128 = vmatprep.mubr.f32.mxu0 0.0
  %11129 = vmatmul.mubr.f32.gmra.mxu0 %v8684
  %v11130 = vpop.f32.mrf.mxu0
  %v11131 = vadd.f32 0.0, %v11130
  %v11132 = vpop.f32.mrf.mxu0
  %v11133 = vadd.f32 0.0, %v11132
  %11134 = vmatprep.mubr.f32.mxu0 0.0
  %11135 = vmatmul.mubr.f32.gmra.mxu0 %v8685
  %v11136 = vpop.f32.mrf.mxu0
  %v11137 = vadd.f32 0.0, %v11136
  %v11138 = vpop.f32.mrf.mxu0
  %v11139 = vadd.f32 0.0, %v11138
  %11140 = vmatprep.mubr.f32.mxu0 0.0
  %11141 = vmatmul.mubr.f32.gmra.mxu0 %v8686
  %v11142 = vpop.f32.mrf.mxu0
  %v11143 = vadd.f32 0.0, %v11142
  %v11144 = vpop.f32.mrf.mxu0
  %v11145 = vadd.f32 0.0, %v11144
  %11146 = vmatprep.mubr.f32.mxu0 0.0
  %11147 = vmatmul.mubr.f32.gmra.mxu0 %v8687
  %v11148 = vpop.f32.mrf.mxu0
  %v11149 = vadd.f32 0.0, %v11148
  %v11150 = vpop.f32.mrf.mxu0
  %v11151 = vadd.f32 0.0, %v11150
  %11152 = vmatprep.mubr.f32.mxu0 0.0
  %11153 = vmatmul.mubr.f32.gmra.mxu0 %v8688
  %v11154 = vpop.f32.mrf.mxu0
  %v11155 = vadd.f32 0.0, %v11154
  %v11156 = vpop.f32.mrf.mxu0
  %v11157 = vadd.f32 0.0, %v11156
  %11158 = vmatprep.mubr.f32.mxu0 0.0
  %11159 = vmatmul.mubr.f32.gmra.mxu0 %v8689
  %v11160 = vpop.f32.mrf.mxu0
  %v11161 = vadd.f32 0.0, %v11160
  %v11162 = vpop.f32.mrf.mxu0
  %v11163 = vadd.f32 0.0, %v11162
  %11164 = vmatprep.mubr.f32.mxu0 0.0
  %11165 = vmatmul.mubr.f32.gmra.mxu0 %v8690
  %v11166 = vpop.f32.mrf.mxu0
  %v11167 = vadd.f32 0.0, %v11166
  %v11168 = vpop.f32.mrf.mxu0
  %v11169 = vadd.f32 0.0, %v11168
  %11170 = vmatprep.mubr.f32.mxu0 0.0
  %11171 = vmatmul.mubr.f32.gmra.mxu0 %v8691
  %v11172 = vpop.f32.mrf.mxu0
  %v11173 = vadd.f32 0.0, %v11172
  %v11174 = vpop.f32.mrf.mxu0
  %v11175 = vadd.f32 0.0, %v11174
  %11176 = vmatprep.mubr.f32.mxu0 0.0
  %11177 = vmatmul.mubr.f32.gmra.mxu0 %v8692
  %v11178 = vpop.f32.mrf.mxu0
  %v11179 = vadd.f32 0.0, %v11178
  %v11180 = vpop.f32.mrf.mxu0
  %v11181 = vadd.f32 0.0, %v11180
  %11182 = vmatprep.mubr.f32.mxu0 0.0
  %11183 = vmatmul.mubr.f32.gmra.mxu0 %v8693
  %v11184 = vpop.f32.mrf.mxu0
  %v11185 = vadd.f32 0.0, %v11184
  %v11186 = vpop.f32.mrf.mxu0
  %v11187 = vadd.f32 0.0, %v11186
  %11188 = vmatprep.mubr.f32.mxu0 0.0
  %11189 = vmatmul.mubr.f32.gmra.mxu0 %v8694
  %v11190 = vpop.f32.mrf.mxu0
  %v11191 = vadd.f32 0.0, %v11190
  %v11192 = vpop.f32.mrf.mxu0
  %v11193 = vadd.f32 0.0, %v11192
  %11194 = vmatprep.mubr.f32.mxu0 0.0
  %11195 = vmatmul.mubr.f32.gmra.mxu0 %v8695
  %v11196 = vpop.f32.mrf.mxu0
  %v11197 = vadd.f32 0.0, %v11196
  %v11198 = vpop.f32.mrf.mxu0
  %v11199 = vadd.f32 0.0, %v11198
  %11200 = vmatprep.mubr.f32.mxu0 0.0
  %11201 = vmatmul.mubr.f32.gmra.mxu0 %v8696
  %v11202 = vpop.f32.mrf.mxu0
  %v11203 = vadd.f32 0.0, %v11202
  %v11204 = vpop.f32.mrf.mxu0
  %v11205 = vadd.f32 0.0, %v11204
  %11206 = vmatprep.mubr.f32.mxu0 0.0
  %11207 = vmatmul.mubr.f32.gmra.mxu0 %v8697
  %v11208 = vpop.f32.mrf.mxu0
  %v11209 = vadd.f32 0.0, %v11208
  %v11210 = vpop.f32.mrf.mxu0
  %v11211 = vadd.f32 0.0, %v11210
  %11212 = vmatprep.mubr.f32.mxu0 0.0
  %11213 = vmatmul.mubr.f32.gmra.mxu0 %v8698
  %v11214 = vpop.f32.mrf.mxu0
  %v11215 = vadd.f32 0.0, %v11214
  %v11216 = vpop.f32.mrf.mxu0
  %v11217 = vadd.f32 0.0, %v11216
  %11218 = vmatprep.mubr.f32.mxu0 0.0
  %11219 = vmatmul.mubr.f32.gmra.mxu0 %v8699
  %v11220 = vpop.f32.mrf.mxu0
  %v11221 = vadd.f32 0.0, %v11220
  %v11222 = vpop.f32.mrf.mxu0
  %v11223 = vadd.f32 0.0, %v11222
  %11224 = vmatprep.mubr.f32.mxu0 0.0
  %11225 = vmatmul.mubr.f32.gmra.mxu0 %v8700
  %v11226 = vpop.f32.mrf.mxu0
  %v11227 = vadd.f32 0.0, %v11226
  %v11228 = vpop.f32.mrf.mxu0
  %v11229 = vadd.f32 0.0, %v11228
  %11230 = vmatprep.mubr.f32.mxu0 0.0
  %11231 = vmatmul.mubr.f32.gmra.mxu0 %v8701
  %v11232 = vpop.f32.mrf.mxu0
  %v11233 = vadd.f32 0.0, %v11232
  %v11234 = vpop.f32.mrf.mxu0
  %v11235 = vadd.f32 0.0, %v11234
  %11236 = vmatprep.mubr.f32.mxu0 0.0
  %11237 = vmatmul.mubr.f32.gmra.mxu0 %v8702
  %v11238 = vpop.f32.mrf.mxu0
  %v11239 = vadd.f32 0.0, %v11238
  %v11240 = vpop.f32.mrf.mxu0
  %v11241 = vadd.f32 0.0, %v11240
  %11242 = vmatprep.mubr.f32.mxu0 0.0
  %11243 = vmatmul.mubr.f32.gmra.mxu0 %v8703
  %v11244 = vpop.f32.mrf.mxu0
  %v11245 = vadd.f32 0.0, %v11244
  %v11246 = vpop.f32.mrf.mxu0
  %v11247 = vadd.f32 0.0, %v11246
  %11248 = vmatprep.mubr.f32.mxu0 0.0
  %11249 = vmatmul.mubr.f32.gmra.mxu0 %v8704
  %v11250 = vpop.f32.mrf.mxu0
  %v11251 = vadd.f32 0.0, %v11250
  %v11252 = vpop.f32.mrf.mxu0
  %v11253 = vadd.f32 0.0, %v11252
  %11254 = vmatprep.mubr.f32.mxu0 0.0
  %11255 = vmatmul.mubr.f32.gmra.mxu0 %v8705
  %v11256 = vpop.f32.mrf.mxu0
  %v11257 = vadd.f32 0.0, %v11256
  %v11258 = vpop.f32.mrf.mxu0
  %v11259 = vadd.f32 0.0, %v11258
  %11260 = vmatprep.mubr.f32.mxu0 0.0
  %11261 = vmatmul.mubr.f32.gmra.mxu0 %v8706
  %v11262 = vpop.f32.mrf.mxu0
  %v11263 = vadd.f32 0.0, %v11262
  %v11264 = vpop.f32.mrf.mxu0
  %v11265 = vadd.f32 0.0, %v11264
  %11266 = vmatprep.mubr.f32.mxu0 0.0
  %11267 = vmatmul.mubr.f32.gmra.mxu0 %v8707
  %v11268 = vpop.f32.mrf.mxu0
  %v11269 = vadd.f32 0.0, %v11268
  %v11270 = vpop.f32.mrf.mxu0
  %v11271 = vadd.f32 0.0, %v11270
  %11272 = vmatprep.mubr.f32.mxu0 0.0
  %11273 = vmatmul.mubr.f32.gmra.mxu0 %v8708
  %v11274 = vpop.f32.mrf.mxu0
  %v11275 = vadd.f32 0.0, %v11274
  %v11276 = vpop.f32.mrf.mxu0
  %v11277 = vadd.f32 0.0, %v11276
  %11278 = vmatprep.mubr.f32.mxu0 0.0
  %11279 = vmatmul.mubr.f32.gmra.mxu0 %v8709
  %v11280 = vpop.f32.mrf.mxu0
  %v11281 = vadd.f32 0.0, %v11280
  %v11282 = vpop.f32.mrf.mxu0
  %v11283 = vadd.f32 0.0, %v11282
  %11284 = vmatprep.mubr.f32.mxu0 0.0
  %11285 = vmatmul.mubr.f32.gmra.mxu0 %v8710
  %v11286 = vpop.f32.mrf.mxu0
  %v11287 = vadd.f32 0.0, %v11286
  %v11288 = vpop.f32.mrf.mxu0
  %v11289 = vadd.f32 0.0, %v11288
  %11290 = vmatprep.mubr.f32.mxu0 0.0
  %11291 = vmatmul.mubr.f32.gmra.mxu0 %v8711
  %v11292 = vpop.f32.mrf.mxu0
  %v11293 = vadd.f32 0.0, %v11292
  %v11294 = vpop.f32.mrf.mxu0
  %v11295 = vadd.f32 0.0, %v11294
  %11296 = vmatprep.mubr.f32.mxu0 0.0
  %11297 = vmatmul.mubr.f32.gmra.mxu0 %v8712
  %v11298 = vpop.f32.mrf.mxu0
  %v11299 = vadd.f32 0.0, %v11298
  %v11300 = vpop.f32.mrf.mxu0
  %v11301 = vadd.f32 0.0, %v11300
  %11302 = vmatprep.mubr.f32.mxu0 0.0
  %11303 = vmatmul.mubr.f32.gmra.mxu0 %v8713
  %v11304 = vpop.f32.mrf.mxu0
  %v11305 = vadd.f32 0.0, %v11304
  %v11306 = vpop.f32.mrf.mxu0
  %v11307 = vadd.f32 0.0, %v11306
  %11308 = vmatprep.mubr.f32.mxu0 0.0
  %11309 = vmatmul.mubr.f32.gmra.mxu0 %v8714
  %v11310 = vpop.f32.mrf.mxu0
  %v11311 = vadd.f32 0.0, %v11310
  %v11312 = vpop.f32.mrf.mxu0
  %v11313 = vadd.f32 0.0, %v11312
  %11314 = vmatprep.mubr.f32.mxu0 0.0
  %11315 = vmatmul.mubr.f32.gmra.mxu0 %v8715
  %v11316 = vpop.f32.mrf.mxu0
  %v11317 = vadd.f32 0.0, %v11316
  %v11318 = vpop.f32.mrf.mxu0
  %v11319 = vadd.f32 0.0, %v11318
  %11320 = vmatprep.mubr.f32.mxu0 0.0
  %11321 = vmatmul.mubr.f32.gmra.mxu0 %v8716
  %v11322 = vpop.f32.mrf.mxu0
  %v11323 = vadd.f32 0.0, %v11322
  %v11324 = vpop.f32.mrf.mxu0
  %v11325 = vadd.f32 0.0, %v11324
  %11326 = vmatprep.mubr.f32.mxu0 0.0
  %11327 = vmatmul.mubr.f32.gmra.mxu0 %v8717
  %v11328 = vpop.f32.mrf.mxu0
  %v11329 = vadd.f32 0.0, %v11328
  %v11330 = vpop.f32.mrf.mxu0
  %v11331 = vadd.f32 0.0, %v11330
  %11332 = vmatprep.mubr.f32.mxu0 0.0
  %11333 = vmatmul.mubr.f32.gmra.mxu0 %v8718
  %v11334 = vpop.f32.mrf.mxu0
  %v11335 = vadd.f32 0.0, %v11334
  %v11336 = vpop.f32.mrf.mxu0
  %v11337 = vadd.f32 0.0, %v11336
  %11338 = vmatprep.mubr.f32.mxu0 0.0
  %11339 = vmatmul.mubr.f32.gmra.mxu0 %v8719
  %v11340 = vpop.f32.mrf.mxu0
  %v11341 = vadd.f32 0.0, %v11340
  %v11342 = vpop.f32.mrf.mxu0
  %v11343 = vadd.f32 0.0, %v11342
  %11344 = vmatprep.mubr.f32.mxu0 0.0
  %11345 = vmatmul.mubr.f32.gmra.mxu0 %v8720
  %v11346 = vpop.f32.mrf.mxu0
  %v11347 = vadd.f32 0.0, %v11346
  %v11348 = vpop.f32.mrf.mxu0
  %v11349 = vadd.f32 0.0, %v11348
  %11350 = vmatprep.mubr.f32.mxu0 0.0
  %11351 = vmatmul.mubr.f32.gmra.mxu0 %v8721
  %v11352 = vpop.f32.mrf.mxu0
  %v11353 = vadd.f32 0.0, %v11352
  %v11354 = vpop.f32.mrf.mxu0
  %v11355 = vadd.f32 0.0, %v11354
  %11356 = vmatprep.mubr.f32.mxu0 0.0
  %11357 = vmatmul.mubr.f32.gmra.mxu0 %v8722
  %v11358 = vpop.f32.mrf.mxu0
  %v11359 = vadd.f32 0.0, %v11358
  %v11360 = vpop.f32.mrf.mxu0
  %v11361 = vadd.f32 0.0, %v11360
  %11362 = vmatprep.mubr.f32.mxu0 0.0
  %11363 = vmatmul.mubr.f32.gmra.mxu0 %v8723
  %v11364 = vpop.f32.mrf.mxu0
  %v11365 = vadd.f32 0.0, %v11364
  %v11366 = vpop.f32.mrf.mxu0
  %v11367 = vadd.f32 0.0, %v11366
  %11368 = vmatprep.mubr.f32.mxu0 0.0
  %11369 = vmatmul.mubr.f32.gmra.mxu0 %v8724
  %v11370 = vpop.f32.mrf.mxu0
  %v11371 = vadd.f32 0.0, %v11370
  %v11372 = vpop.f32.mrf.mxu0
  %v11373 = vadd.f32 0.0, %v11372
  %11374 = vmatprep.mubr.f32.mxu0 0.0
  %11375 = vmatmul.mubr.f32.gmra.mxu0 %v8725
  %v11376 = vpop.f32.mrf.mxu0
  %v11377 = vadd.f32 0.0, %v11376
  %v11378 = vpop.f32.mrf.mxu0
  %v11379 = vadd.f32 0.0, %v11378
  %11380 = vmatprep.mubr.f32.mxu0 0.0
  %11381 = vmatmul.mubr.f32.gmra.mxu0 %v8726
  %v11382 = vpop.f32.mrf.mxu0
  %v11383 = vadd.f32 0.0, %v11382
  %v11384 = vpop.f32.mrf.mxu0
  %v11385 = vadd.f32 0.0, %v11384
  %11386 = vmatprep.mubr.f32.mxu0 0.0
  %11387 = vmatmul.mubr.f32.gmra.mxu0 %v8727
  %v11388 = vpop.f32.mrf.mxu0
  %v11389 = vadd.f32 0.0, %v11388
  %v11390 = vpop.f32.mrf.mxu0
  %v11391 = vadd.f32 0.0, %v11390
  %11392 = vdwg.mxu0
  %v11393 = vadd.f32 %v10783, %v11011
  %v11394 = vadd.f32 %v10784, %v11013
  %v11395 = vadd.f32 %v10785, %v11017
  %v11396 = vadd.f32 %v10786, %v11019
  %v11397 = vadd.f32 %v10787, %v11023
  %v11398 = vadd.f32 %v10788, %v11025
  %v11399 = vadd.f32 %v10789, %v11029
  %v11400 = vadd.f32 %v10790, %v11031
  %v11401 = vadd.f32 %v10791, %v11035
  %v11402 = vadd.f32 %v10792, %v11037
  %v11403 = vadd.f32 %v10793, %v11041
  %v11404 = vadd.f32 %v10794, %v11043
  %v11405 = vadd.f32 %v10795, %v11047
  %v11406 = vadd.f32 %v10796, %v11049
  %v11407 = vadd.f32 %v10797, %v11053
  %v11408 = vadd.f32 %v10798, %v11055
  %v11409 = vadd.f32 %v10799, %v11059
  %v11410 = vadd.f32 %v10800, %v11061
  %v11411 = vadd.f32 %v10801, %v11065
  %v11412 = vadd.f32 %v10802, %v11067
  %v11413 = vadd.f32 %v10803, %v11071
  %v11414 = vadd.f32 %v10804, %v11073
  %v11415 = vadd.f32 %v10805, %v11077
  %v11416 = vadd.f32 %v10806, %v11079
  %v11417 = vadd.f32 %v10807, %v11083
  %v11418 = vadd.f32 %v10808, %v11085
  %v11419 = vadd.f32 %v10809, %v11089
  %v11420 = vadd.f32 %v10810, %v11091
  %v11421 = vadd.f32 %v10811, %v11095
  %v11422 = vadd.f32 %v10812, %v11097
  %v11423 = vadd.f32 %v10813, %v11101
  %v11424 = vadd.f32 %v10814, %v11103
  %v11425 = vadd.f32 %v10815, %v11107
  %v11426 = vadd.f32 %v10816, %v11109
  %v11427 = vadd.f32 %v10817, %v11113
  %v11428 = vadd.f32 %v10818, %v11115
  %v11429 = vadd.f32 %v10819, %v11119
  %v11430 = vadd.f32 %v10820, %v11121
  %v11431 = vadd.f32 %v10821, %v11125
  %v11432 = vadd.f32 %v10822, %v11127
  %v11433 = vadd.f32 %v10823, %v11131
  %v11434 = vadd.f32 %v10824, %v11133
  %v11435 = vadd.f32 %v10825, %v11137
  %v11436 = vadd.f32 %v10826, %v11139
  %v11437 = vadd.f32 %v10827, %v11143
  %v11438 = vadd.f32 %v10828, %v11145
  %v11439 = vadd.f32 %v10829, %v11149
  %v11440 = vadd.f32 %v10830, %v11151
  %v11441 = vadd.f32 %v10831, %v11155
  %v11442 = vadd.f32 %v10832, %v11157
  %v11443 = vadd.f32 %v10833, %v11161
  %v11444 = vadd.f32 %v10834, %v11163
  %v11445 = vadd.f32 %v10835, %v11167
  %v11446 = vadd.f32 %v10836, %v11169
  %v11447 = vadd.f32 %v10837, %v11173
  %v11448 = vadd.f32 %v10838, %v11175
  %v11449 = vadd.f32 %v10839, %v11179
  %v11450 = vadd.f32 %v10840, %v11181
  %v11451 = vadd.f32 %v10841, %v11185
  %v11452 = vadd.f32 %v10842, %v11187
  %v11453 = vadd.f32 %v10843, %v11191
  %v11454 = vadd.f32 %v10844, %v11193
  %v11455 = vadd.f32 %v10845, %v11197
  %v11456 = vadd.f32 %v10846, %v11199
  %v11457 = vadd.f32 %v10847, %v11203
  %v11458 = vadd.f32 %v10848, %v11205
  %v11459 = vadd.f32 %v10849, %v11209
  %v11460 = vadd.f32 %v10850, %v11211
  %v11461 = vadd.f32 %v10851, %v11215
  %v11462 = vadd.f32 %v10852, %v11217
  %v11463 = vadd.f32 %v10853, %v11221
  %v11464 = vadd.f32 %v10854, %v11223
  %v11465 = vadd.f32 %v10855, %v11227
  %v11466 = vadd.f32 %v10856, %v11229
  %v11467 = vadd.f32 %v10857, %v11233
  %v11468 = vadd.f32 %v10858, %v11235
  %v11469 = vadd.f32 %v10859, %v11239
  %v11470 = vadd.f32 %v10860, %v11241
  %v11471 = vadd.f32 %v10861, %v11245
  %v11472 = vadd.f32 %v10862, %v11247
  %v11473 = vadd.f32 %v10863, %v11251
  %v11474 = vadd.f32 %v10864, %v11253
  %v11475 = vadd.f32 %v10865, %v11257
  %v11476 = vadd.f32 %v10866, %v11259
  %v11477 = vadd.f32 %v10867, %v11263
  %v11478 = vadd.f32 %v10868, %v11265
  %v11479 = vadd.f32 %v10869, %v11269
  %v11480 = vadd.f32 %v10870, %v11271
  %v11481 = vadd.f32 %v10871, %v11275
  %v11482 = vadd.f32 %v10872, %v11277
  %v11483 = vadd.f32 %v10873, %v11281
  %v11484 = vadd.f32 %v10874, %v11283
  %v11485 = vadd.f32 %v10875, %v11287
  %v11486 = vadd.f32 %v10876, %v11289
  %v11487 = vadd.f32 %v10877, %v11293
  %v11488 = vadd.f32 %v10878, %v11295
  %v11489 = vadd.f32 %v10879, %v11299
  %v11490 = vadd.f32 %v10880, %v11301
  %v11491 = vadd.f32 %v10881, %v11305
  %v11492 = vadd.f32 %v10882, %v11307
  %v11493 = vadd.f32 %v10883, %v11311
  %v11494 = vadd.f32 %v10884, %v11313
  %v11495 = vadd.f32 %v10885, %v11317
  %v11496 = vadd.f32 %v10886, %v11319
  %v11497 = vadd.f32 %v10887, %v11323
  %v11498 = vadd.f32 %v10888, %v11325
  %v11499 = vadd.f32 %v10889, %v11329
  %v11500 = vadd.f32 %v10890, %v11331
  %v11501 = vadd.f32 %v10891, %v11335
  %v11502 = vadd.f32 %v10892, %v11337
  %v11503 = vadd.f32 %v10893, %v11341
  %v11504 = vadd.f32 %v10894, %v11343
  %v11505 = vadd.f32 %v10895, %v11347
  %v11506 = vadd.f32 %v10896, %v11349
  %v11507 = vadd.f32 %v10897, %v11353
  %v11508 = vadd.f32 %v10898, %v11355
  %v11509 = vadd.f32 %v10899, %v11359
  %v11510 = vadd.f32 %v10900, %v11361
  %v11511 = vadd.f32 %v10901, %v11365
  %v11512 = vadd.f32 %v10902, %v11367
  %v11513 = vadd.f32 %v10903, %v11371
  %v11514 = vadd.f32 %v10904, %v11373
  %v11515 = vadd.f32 %v10905, %v11377
  %v11516 = vadd.f32 %v10906, %v11379
  %v11517 = vadd.f32 %v10907, %v11383
  %v11518 = vadd.f32 %v10908, %v11385
  %v11519 = vadd.f32 %v10909, %v11389
  %v11520 = vadd.f32 %v10910, %v11391
  %v11521 = vmax.f32 %v11393, %v11409
  %v11522 = vmax.f32 %v11394, %v11410
  %v11523 = vmax.f32 %v11395, %v11411
  %v11524 = vmax.f32 %v11396, %v11412
  %v11525 = vmax.f32 %v11397, %v11413
  %v11526 = vmax.f32 %v11398, %v11414
  %v11527 = vmax.f32 %v11399, %v11415
  %v11528 = vmax.f32 %v11400, %v11416
  %v11529 = vmax.f32 %v11401, %v11417
  %v11530 = vmax.f32 %v11402, %v11418
  %v11531 = vmax.f32 %v11403, %v11419
  %v11532 = vmax.f32 %v11404, %v11420
  %v11533 = vmax.f32 %v11405, %v11421
  %v11534 = vmax.f32 %v11406, %v11422
  %v11535 = vmax.f32 %v11407, %v11423
  %v11536 = vmax.f32 %v11408, %v11424
  %v11537 = vmax.f32 %v11425, %v11441
  %v11538 = vmax.f32 %v11426, %v11442
  %v11539 = vmax.f32 %v11427, %v11443
  %v11540 = vmax.f32 %v11428, %v11444
  %v11541 = vmax.f32 %v11429, %v11445
  %v11542 = vmax.f32 %v11430, %v11446
  %v11543 = vmax.f32 %v11431, %v11447
  %v11544 = vmax.f32 %v11432, %v11448
  %v11545 = vmax.f32 %v11433, %v11449
  %v11546 = vmax.f32 %v11434, %v11450
  %v11547 = vmax.f32 %v11435, %v11451
  %v11548 = vmax.f32 %v11436, %v11452
  %v11549 = vmax.f32 %v11437, %v11453
  %v11550 = vmax.f32 %v11438, %v11454
  %v11551 = vmax.f32 %v11439, %v11455
  %v11552 = vmax.f32 %v11440, %v11456
  %v11553 = vmax.f32 %v11457, %v11473
  %v11554 = vmax.f32 %v11458, %v11474
  %v11555 = vmax.f32 %v11459, %v11475
  %v11556 = vmax.f32 %v11460, %v11476
  %v11557 = vmax.f32 %v11461, %v11477
  %v11558 = vmax.f32 %v11462, %v11478
  %v11559 = vmax.f32 %v11463, %v11479
  %v11560 = vmax.f32 %v11464, %v11480
  %v11561 = vmax.f32 %v11465, %v11481
  %v11562 = vmax.f32 %v11466, %v11482
  %v11563 = vmax.f32 %v11467, %v11483
  %v11564 = vmax.f32 %v11468, %v11484
  %v11565 = vmax.f32 %v11469, %v11485
  %v11566 = vmax.f32 %v11470, %v11486
  %v11567 = vmax.f32 %v11471, %v11487
  %v11568 = vmax.f32 %v11472, %v11488
  %v11569 = vmax.f32 %v11489, %v11505
  %v11570 = vmax.f32 %v11490, %v11506
  %v11571 = vmax.f32 %v11491, %v11507
  %v11572 = vmax.f32 %v11492, %v11508
  %v11573 = vmax.f32 %v11493, %v11509
  %v11574 = vmax.f32 %v11494, %v11510
  %v11575 = vmax.f32 %v11495, %v11511
  %v11576 = vmax.f32 %v11496, %v11512
  %v11577 = vmax.f32 %v11497, %v11513
  %v11578 = vmax.f32 %v11498, %v11514
  %v11579 = vmax.f32 %v11499, %v11515
  %v11580 = vmax.f32 %v11500, %v11516
  %v11581 = vmax.f32 %v11501, %v11517
  %v11582 = vmax.f32 %v11502, %v11518
  %v11583 = vmax.f32 %v11503, %v11519
  %v11584 = vmax.f32 %v11504, %v11520
  %v11585 = vmax.f32 %v11521, %v11522
  %v11586 = vmax.f32 %v11523, %v11524
  %v11587 = vmax.f32 %v11525, %v11526
  %v11588 = vmax.f32 %v11527, %v11528
  %v11589 = vmax.f32 %v11529, %v11530
  %v11590 = vmax.f32 %v11531, %v11532
  %v11591 = vmax.f32 %v11533, %v11534
  %v11592 = vmax.f32 %v11535, %v11536
  %v11593 = vmax.f32 %v11537, %v11538
  %v11594 = vmax.f32 %v11539, %v11540
  %v11595 = vmax.f32 %v11541, %v11542
  %v11596 = vmax.f32 %v11543, %v11544
  %v11597 = vmax.f32 %v11545, %v11546
  %v11598 = vmax.f32 %v11547, %v11548
  %v11599 = vmax.f32 %v11549, %v11550
  %v11600 = vmax.f32 %v11551, %v11552
  %v11601 = vmax.f32 %v11553, %v11554
  %v11602 = vmax.f32 %v11555, %v11556
  %v11603 = vmax.f32 %v11557, %v11558
  %v11604 = vmax.f32 %v11559, %v11560
  %v11605 = vmax.f32 %v11561, %v11562
  %v11606 = vmax.f32 %v11563, %v11564
  %v11607 = vmax.f32 %v11565, %v11566
  %v11608 = vmax.f32 %v11567, %v11568
  %v11609 = vmax.f32 %v11569, %v11570
  %v11610 = vmax.f32 %v11571, %v11572
  %v11611 = vmax.f32 %v11573, %v11574
  %v11612 = vmax.f32 %v11575, %v11576
  %v11613 = vmax.f32 %v11577, %v11578
  %v11614 = vmax.f32 %v11579, %v11580
  %v11615 = vmax.f32 %v11581, %v11582
  %v11616 = vmax.f32 %v11583, %v11584
  %v11617 = vld [vmem:[%s4] sm:$0x1]
  %v11619 = vlaneseq
  %v11620 = vshrl.u32 %v11619, 7
  %v11621 = vsub.s32 0, %v11620
  %v11622 = vrot.slane %v11617, %v11621
  %v11624 = vadd.f32 %v11585, %v11622
  %v11625 = vadd.f32 %v11586, %v11622
  %v11626 = vadd.f32 %v11587, %v11622
  %v11627 = vadd.f32 %v11588, %v11622
  %v11628 = vadd.f32 %v11589, %v11622
  %v11629 = vadd.f32 %v11590, %v11622
  %v11630 = vadd.f32 %v11591, %v11622
  %v11631 = vadd.f32 %v11592, %v11622
  %v11632 = vadd.f32 %v11593, %v11622
  %v11633 = vadd.f32 %v11594, %v11622
  %v11634 = vadd.f32 %v11595, %v11622
  %v11635 = vadd.f32 %v11596, %v11622
  %v11636 = vadd.f32 %v11597, %v11622
  %v11637 = vadd.f32 %v11598, %v11622
  %v11638 = vadd.f32 %v11599, %v11622
  %v11639 = vadd.f32 %v11600, %v11622
  %v11640 = vadd.f32 %v11601, %v11622
  %v11641 = vadd.f32 %v11602, %v11622
  %v11642 = vadd.f32 %v11603, %v11622
  %v11643 = vadd.f32 %v11604, %v11622
  %v11644 = vadd.f32 %v11605, %v11622
  %v11645 = vadd.f32 %v11606, %v11622
  %v11646 = vadd.f32 %v11607, %v11622
  %v11647 = vadd.f32 %v11608, %v11622
  %v11648 = vadd.f32 %v11609, %v11622
  %v11649 = vadd.f32 %v11610, %v11622
  %v11650 = vadd.f32 %v11611, %v11622
  %v11651 = vadd.f32 %v11612, %v11622
  %v11652 = vadd.f32 %v11613, %v11622
  %v11653 = vadd.f32 %v11614, %v11622
  %v11654 = vadd.f32 %v11615, %v11622
  %v11655 = vadd.f32 %v11616, %v11622
  %v11656 = vmax.f32 %v11624, 0.0
  %v11657 = vmax.f32 %v11625, 0.0
  %v11658 = vmax.f32 %v11626, 0.0
  %v11659 = vmax.f32 %v11627, 0.0
  %v11660 = vmax.f32 %v11628, 0.0
  %v11661 = vmax.f32 %v11629, 0.0
  %v11662 = vmax.f32 %v11630, 0.0
  %v11663 = vmax.f32 %v11631, 0.0
  %v11664 = vmax.f32 %v11632, 0.0
  %v11665 = vmax.f32 %v11633, 0.0
  %v11666 = vmax.f32 %v11634, 0.0
  %v11667 = vmax.f32 %v11635, 0.0
  %v11668 = vmax.f32 %v11636, 0.0
  %v11669 = vmax.f32 %v11637, 0.0
  %v11670 = vmax.f32 %v11638, 0.0
  %v11671 = vmax.f32 %v11639, 0.0
  %v11672 = vmax.f32 %v11640, 0.0
  %v11673 = vmax.f32 %v11641, 0.0
  %v11674 = vmax.f32 %v11642, 0.0
  %v11675 = vmax.f32 %v11643, 0.0
  %v11676 = vmax.f32 %v11644, 0.0
  %v11677 = vmax.f32 %v11645, 0.0
  %v11678 = vmax.f32 %v11646, 0.0
  %v11679 = vmax.f32 %v11647, 0.0
  %v11680 = vmax.f32 %v11648, 0.0
  %v11681 = vmax.f32 %v11649, 0.0
  %v11682 = vmax.f32 %v11650, 0.0
  %v11683 = vmax.f32 %v11651, 0.0
  %v11684 = vmax.f32 %v11652, 0.0
  %v11685 = vmax.f32 %v11653, 0.0
  %v11686 = vmax.f32 %v11654, 0.0
  %v11687 = vmax.f32 %v11655, 0.0
  %v11688 = vld [vmem:[%s5] sm:$0xff]
  %v11689 = vld [vmem:[%s5 + $0x8] sm:$0xff]
  %v11690 = vld [vmem:[%s5 + $0x10] sm:$0xff]
  %v11691 = vld [vmem:[%s5 + $0x18] sm:$0xff]
  %v11692 = vld [vmem:[%s5 + $0x20] sm:$0xff]
  %v11693 = vld [vmem:[%s5 + $0x28] sm:$0xff]
  %v11694 = vld [vmem:[%s5 + $0x30] sm:$0xff]
  %v11695 = vld [vmem:[%s5 + $0x38] sm:$0xff]
  %v11696 = vld [vmem:[%s5 + $0x40] sm:$0xff]
  %v11697 = vld [vmem:[%s5 + $0x48] sm:$0xff]
  %v11698 = vld [vmem:[%s5 + $0x50] sm:$0xff]
  %v11699 = vld [vmem:[%s5 + $0x58] sm:$0xff]
  %v11700 = vld [vmem:[%s5 + $0x60] sm:$0xff]
  %v11701 = vld [vmem:[%s5 + $0x68] sm:$0xff]
  %v11702 = vld [vmem:[%s5 + $0x70] sm:$0xff]
  %v11703 = vld [vmem:[%s5 + $0x78] sm:$0xff]
  %s11704 = scalar_lea.vmem %s5, 128
  %v11705 = vld [vmem:[%s11704] sm:$0xff]
  %v11706 = vld [vmem:[%s11704 + $0x8] sm:$0xff]
  %v11707 = vld [vmem:[%s11704 + $0x10] sm:$0xff]
  %v11708 = vld [vmem:[%s11704 + $0x18] sm:$0xff]
  %v11709 = vld [vmem:[%s11704 + $0x20] sm:$0xff]
  %v11710 = vld [vmem:[%s11704 + $0x28] sm:$0xff]
  %v11711 = vld [vmem:[%s11704 + $0x30] sm:$0xff]
  %v11712 = vld [vmem:[%s11704 + $0x38] sm:$0xff]
  %v11713 = vld [vmem:[%s11704 + $0x40] sm:$0xff]
  %v11714 = vld [vmem:[%s11704 + $0x48] sm:$0xff]
  %v11715 = vld [vmem:[%s11704 + $0x50] sm:$0xff]
  %v11716 = vld [vmem:[%s11704 + $0x58] sm:$0xff]
  %v11717 = vld [vmem:[%s11704 + $0x60] sm:$0xff]
  %v11718 = vld [vmem:[%s11704 + $0x68] sm:$0xff]
  %v11719 = vld [vmem:[%s11704 + $0x70] sm:$0xff]
  %v11720 = vld [vmem:[%s11704 + $0x78] sm:$0xff]
  %11721 = vmatprep.subr.mxu0 0.0
  %11722 = vmatpush1.msra.mxu0 %v11720
  %11723 = vmatprep.subr.mxu0 0.0
  %11724 = vmatpush1.msra.mxu0 %v11719
  %11725 = vmatprep.subr.mxu0 0.0
  %11726 = vmatpush1.msra.mxu0 %v11718
  %11727 = vmatprep.subr.mxu0 0.0
  %11728 = vmatpush1.msra.mxu0 %v11717
  %11729 = vmatprep.subr.mxu0 0.0
  %11730 = vmatpush1.msra.mxu0 %v11716
  %11731 = vmatprep.subr.mxu0 0.0
  %11732 = vmatpush1.msra.mxu0 %v11715
  %11733 = vmatprep.subr.mxu0 0.0
  %11734 = vmatpush1.msra.mxu0 %v11714
  %11735 = vmatprep.subr.mxu0 0.0
  %11736 = vmatpush1.msra.mxu0 %v11713
  %11737 = vmatprep.subr.mxu0 0.0
  %11738 = vmatpush1.msra.mxu0 %v11712
  %11739 = vmatprep.subr.mxu0 0.0
  %11740 = vmatpush1.msra.mxu0 %v11711
  %11741 = vmatprep.subr.mxu0 0.0
  %11742 = vmatpush1.msra.mxu0 %v11710
  %11743 = vmatprep.subr.mxu0 0.0
  %11744 = vmatpush1.msra.mxu0 %v11709
  %11745 = vmatprep.subr.mxu0 0.0
  %11746 = vmatpush1.msra.mxu0 %v11708
  %11747 = vmatprep.subr.mxu0 0.0
  %11748 = vmatpush1.msra.mxu0 %v11707
  %11749 = vmatprep.subr.mxu0 0.0
  %11750 = vmatpush1.msra.mxu0 %v11706
  %11751 = vmatprep.subr.mxu0 0.0
  %11752 = vmatpush1.msra.mxu0 %v11705
  %11753 = vmatprep.subr.mxu0 0.0
  %11754 = vmatpush2.msra.mxu0 0.0
  %11755 = vmatprep.subr.mxu0 0.0
  %11756 = vmatpush2.msra.mxu0 0.0
  %11757 = vmatprep.subr.mxu0 0.0
  %11758 = vmatpush2.msra.mxu0 0.0
  %11759 = vmatprep.subr.mxu0 0.0
  %11760 = vmatpush2.msra.mxu0 0.0
  %11761 = vmatprep.subr.mxu0 0.0
  %11762 = vmatpush2.msra.mxu0 0.0
  %11763 = vmatprep.subr.mxu0 0.0
  %11764 = vmatpush2.msra.mxu0 0.0
  %11765 = vmatprep.subr.mxu0 0.0
  %11766 = vmatpush2.msra.mxu0 0.0
  %11767 = vmatprep.subr.mxu0 0.0
  %11768 = vmatpush2.msra.mxu0 0.0
  %11769 = vmatprep.subr.mxu0 0.0
  %11770 = vmatpush2.msra.mxu0 0.0
  %11771 = vmatprep.subr.mxu0 0.0
  %11772 = vmatpush2.msra.mxu0 0.0
  %11773 = vmatprep.subr.mxu0 0.0
  %11774 = vmatpush2.msra.mxu0 0.0
  %11775 = vmatprep.subr.mxu0 0.0
  %11776 = vmatpush2.msra.mxu0 0.0
  %11777 = vmatprep.subr.mxu0 0.0
  %11778 = vmatpush2.msra.mxu0 0.0
  %11779 = vmatprep.subr.mxu0 0.0
  %11780 = vmatpush2.msra.mxu0 0.0
  %11781 = vmatprep.subr.mxu0 0.0
  %11782 = vmatpush2.msra.mxu0 0.0
  %11783 = vmatprep.subr.mxu0 0.0
  %11784 = vmatpush2.msra.mxu0 0.0
  %11785 = vmatprep.mubr.f32.mxu0 0.0
  %11786 = vmatmul.mubr.f32.gmra.mxu0 %v11664
  %v11787 = vpop.f32.mrf.mxu0
  %v11788 = vadd.f32 0.0, %v11787
  %v11789 = vpop.f32.mrf.mxu0
  %11790 = vmatprep.mubr.f32.mxu0 0.0
  %11791 = vmatmul.mubr.f32.gmra.mxu0 %v11665
  %v11792 = vpop.f32.mrf.mxu0
  %v11793 = vadd.f32 0.0, %v11792
  %v11794 = vpop.f32.mrf.mxu0
  %11795 = vmatprep.mubr.f32.mxu0 0.0
  %11796 = vmatmul.mubr.f32.gmra.mxu0 %v11666
  %v11797 = vpop.f32.mrf.mxu0
  %v11798 = vadd.f32 0.0, %v11797
  %v11799 = vpop.f32.mrf.mxu0
  %11800 = vmatprep.mubr.f32.mxu0 0.0
  %11801 = vmatmul.mubr.f32.gmra.mxu0 %v11667
  %v11802 = vpop.f32.mrf.mxu0
  %v11803 = vadd.f32 0.0, %v11802
  %v11804 = vpop.f32.mrf.mxu0
  %11805 = vmatprep.mubr.f32.mxu0 0.0
  %11806 = vmatmul.mubr.f32.gmra.mxu0 %v11668
  %v11807 = vpop.f32.mrf.mxu0
  %v11808 = vadd.f32 0.0, %v11807
  %v11809 = vpop.f32.mrf.mxu0
  %11810 = vmatprep.mubr.f32.mxu0 0.0
  %11811 = vmatmul.mubr.f32.gmra.mxu0 %v11669
  %v11812 = vpop.f32.mrf.mxu0
  %v11813 = vadd.f32 0.0, %v11812
  %v11814 = vpop.f32.mrf.mxu0
  %11815 = vmatprep.mubr.f32.mxu0 0.0
  %11816 = vmatmul.mubr.f32.gmra.mxu0 %v11670
  %v11817 = vpop.f32.mrf.mxu0
  %v11818 = vadd.f32 0.0, %v11817
  %v11819 = vpop.f32.mrf.mxu0
  %11820 = vmatprep.mubr.f32.mxu0 0.0
  %11821 = vmatmul.mubr.f32.gmra.mxu0 %v11671
  %v11822 = vpop.f32.mrf.mxu0
  %v11823 = vadd.f32 0.0, %v11822
  %v11824 = vpop.f32.mrf.mxu0
  %11825 = vdwg.mxu0
  %11826 = vmatprep.subr.mxu0 0.0
  %11827 = vmatpush1.msra.mxu0 %v11703
  %11828 = vmatprep.subr.mxu0 0.0
  %11829 = vmatpush1.msra.mxu0 %v11702
  %11830 = vmatprep.subr.mxu0 0.0
  %11831 = vmatpush1.msra.mxu0 %v11701
  %11832 = vmatprep.subr.mxu0 0.0
  %11833 = vmatpush1.msra.mxu0 %v11700
  %11834 = vmatprep.subr.mxu0 0.0
  %11835 = vmatpush1.msra.mxu0 %v11699
  %11836 = vmatprep.subr.mxu0 0.0
  %11837 = vmatpush1.msra.mxu0 %v11698
  %11838 = vmatprep.subr.mxu0 0.0
  %11839 = vmatpush1.msra.mxu0 %v11697
  %11840 = vmatprep.subr.mxu0 0.0
  %11841 = vmatpush1.msra.mxu0 %v11696
  %11842 = vmatprep.subr.mxu0 0.0
  %11843 = vmatpush1.msra.mxu0 %v11695
  %11844 = vmatprep.subr.mxu0 0.0
  %11845 = vmatpush1.msra.mxu0 %v11694
  %11846 = vmatprep.subr.mxu0 0.0
  %11847 = vmatpush1.msra.mxu0 %v11693
  %11848 = vmatprep.subr.mxu0 0.0
  %11849 = vmatpush1.msra.mxu0 %v11692
  %11850 = vmatprep.subr.mxu0 0.0
  %11851 = vmatpush1.msra.mxu0 %v11691
  %11852 = vmatprep.subr.mxu0 0.0
  %11853 = vmatpush1.msra.mxu0 %v11690
  %11854 = vmatprep.subr.mxu0 0.0
  %11855 = vmatpush1.msra.mxu0 %v11689
  %11856 = vmatprep.subr.mxu0 0.0
  %11857 = vmatpush1.msra.mxu0 %v11688
  %11858 = vmatprep.subr.mxu0 0.0
  %11859 = vmatpush2.msra.mxu0 0.0
  %11860 = vmatprep.subr.mxu0 0.0
  %11861 = vmatpush2.msra.mxu0 0.0
  %11862 = vmatprep.subr.mxu0 0.0
  %11863 = vmatpush2.msra.mxu0 0.0
  %11864 = vmatprep.subr.mxu0 0.0
  %11865 = vmatpush2.msra.mxu0 0.0
  %11866 = vmatprep.subr.mxu0 0.0
  %11867 = vmatpush2.msra.mxu0 0.0
  %11868 = vmatprep.subr.mxu0 0.0
  %11869 = vmatpush2.msra.mxu0 0.0
  %11870 = vmatprep.subr.mxu0 0.0
  %11871 = vmatpush2.msra.mxu0 0.0
  %11872 = vmatprep.subr.mxu0 0.0
  %11873 = vmatpush2.msra.mxu0 0.0
  %11874 = vmatprep.subr.mxu0 0.0
  %11875 = vmatpush2.msra.mxu0 0.0
  %11876 = vmatprep.subr.mxu0 0.0
  %11877 = vmatpush2.msra.mxu0 0.0
  %11878 = vmatprep.subr.mxu0 0.0
  %11879 = vmatpush2.msra.mxu0 0.0
  %11880 = vmatprep.subr.mxu0 0.0
  %11881 = vmatpush2.msra.mxu0 0.0
  %11882 = vmatprep.subr.mxu0 0.0
  %11883 = vmatpush2.msra.mxu0 0.0
  %11884 = vmatprep.subr.mxu0 0.0
  %11885 = vmatpush2.msra.mxu0 0.0
  %11886 = vmatprep.subr.mxu0 0.0
  %11887 = vmatpush2.msra.mxu0 0.0
  %11888 = vmatprep.subr.mxu0 0.0
  %11889 = vmatpush2.msra.mxu0 0.0
  %11890 = vmatprep.mubr.f32.mxu0 0.0
  %11891 = vmatmul.mubr.f32.gmra.mxu0 %v11656
  %v11892 = vpop.f32.mrf.mxu0
  %v11893 = vadd.f32 %v11788, %v11892
  %v11894 = vpop.f32.mrf.mxu0
  %11895 = vmatprep.mubr.f32.mxu0 0.0
  %11896 = vmatmul.mubr.f32.gmra.mxu0 %v11657
  %v11897 = vpop.f32.mrf.mxu0
  %v11898 = vadd.f32 %v11793, %v11897
  %v11899 = vpop.f32.mrf.mxu0
  %11900 = vmatprep.mubr.f32.mxu0 0.0
  %11901 = vmatmul.mubr.f32.gmra.mxu0 %v11658
  %v11902 = vpop.f32.mrf.mxu0
  %v11903 = vadd.f32 %v11798, %v11902
  %v11904 = vpop.f32.mrf.mxu0
  %11905 = vmatprep.mubr.f32.mxu0 0.0
  %11906 = vmatmul.mubr.f32.gmra.mxu0 %v11659
  %v11907 = vpop.f32.mrf.mxu0
  %v11908 = vadd.f32 %v11803, %v11907
  %v11909 = vpop.f32.mrf.mxu0
  %11910 = vmatprep.mubr.f32.mxu0 0.0
  %11911 = vmatmul.mubr.f32.gmra.mxu0 %v11660
  %v11912 = vpop.f32.mrf.mxu0
  %v11913 = vadd.f32 %v11808, %v11912
  %v11914 = vpop.f32.mrf.mxu0
  %11915 = vmatprep.mubr.f32.mxu0 0.0
  %11916 = vmatmul.mubr.f32.gmra.mxu0 %v11661
  %v11917 = vpop.f32.mrf.mxu0
  %v11918 = vadd.f32 %v11813, %v11917
  %v11919 = vpop.f32.mrf.mxu0
  %11920 = vmatprep.mubr.f32.mxu0 0.0
  %11921 = vmatmul.mubr.f32.gmra.mxu0 %v11662
  %v11922 = vpop.f32.mrf.mxu0
  %v11923 = vadd.f32 %v11818, %v11922
  %v11924 = vpop.f32.mrf.mxu0
  %11925 = vmatprep.mubr.f32.mxu0 0.0
  %11926 = vmatmul.mubr.f32.gmra.mxu0 %v11663
  %v11927 = vpop.f32.mrf.mxu0
  %v11928 = vadd.f32 %v11823, %v11927
  %v11929 = vpop.f32.mrf.mxu0
  %11930 = vdwg.mxu0
  %s11931 = scalar_lea.vmem %s5, 256
  %v11932 = vld [vmem:[%s11931] sm:$0xff]
  %v11933 = vld [vmem:[%s11931 + $0x8] sm:$0xff]
  %v11934 = vld [vmem:[%s11931 + $0x10] sm:$0xff]
  %v11935 = vld [vmem:[%s11931 + $0x18] sm:$0xff]
  %v11936 = vld [vmem:[%s11931 + $0x20] sm:$0xff]
  %v11937 = vld [vmem:[%s11931 + $0x28] sm:$0xff]
  %v11938 = vld [vmem:[%s11931 + $0x30] sm:$0xff]
  %v11939 = vld [vmem:[%s11931 + $0x38] sm:$0xff]
  %v11940 = vld [vmem:[%s11931 + $0x40] sm:$0xff]
  %v11941 = vld [vmem:[%s11931 + $0x48] sm:$0xff]
  %v11942 = vld [vmem:[%s11931 + $0x50] sm:$0xff]
  %v11943 = vld [vmem:[%s11931 + $0x58] sm:$0xff]
  %v11944 = vld [vmem:[%s11931 + $0x60] sm:$0xff]
  %v11945 = vld [vmem:[%s11931 + $0x68] sm:$0xff]
  %v11946 = vld [vmem:[%s11931 + $0x70] sm:$0xff]
  %v11947 = vld [vmem:[%s11931 + $0x78] sm:$0xff]
  %11948 = vmatprep.subr.mxu0 0.0
  %11949 = vmatpush1.msra.mxu0 %v11947
  %11950 = vmatprep.subr.mxu0 0.0
  %11951 = vmatpush1.msra.mxu0 %v11946
  %11952 = vmatprep.subr.mxu0 0.0
  %11953 = vmatpush1.msra.mxu0 %v11945
  %11954 = vmatprep.subr.mxu0 0.0
  %11955 = vmatpush1.msra.mxu0 %v11944
  %11956 = vmatprep.subr.mxu0 0.0
  %11957 = vmatpush1.msra.mxu0 %v11943
  %11958 = vmatprep.subr.mxu0 0.0
  %11959 = vmatpush1.msra.mxu0 %v11942
  %11960 = vmatprep.subr.mxu0 0.0
  %11961 = vmatpush1.msra.mxu0 %v11941
  %11962 = vmatprep.subr.mxu0 0.0
  %11963 = vmatpush1.msra.mxu0 %v11940
  %11964 = vmatprep.subr.mxu0 0.0
  %11965 = vmatpush1.msra.mxu0 %v11939
  %11966 = vmatprep.subr.mxu0 0.0
  %11967 = vmatpush1.msra.mxu0 %v11938
  %11968 = vmatprep.subr.mxu0 0.0
  %11969 = vmatpush1.msra.mxu0 %v11937
  %11970 = vmatprep.subr.mxu0 0.0
  %11971 = vmatpush1.msra.mxu0 %v11936
  %11972 = vmatprep.subr.mxu0 0.0
  %11973 = vmatpush1.msra.mxu0 %v11935
  %11974 = vmatprep.subr.mxu0 0.0
  %11975 = vmatpush1.msra.mxu0 %v11934
  %11976 = vmatprep.subr.mxu0 0.0
  %11977 = vmatpush1.msra.mxu0 %v11933
  %11978 = vmatprep.subr.mxu0 0.0
  %11979 = vmatpush1.msra.mxu0 %v11932
  %11980 = vmatprep.subr.mxu0 0.0
  %11981 = vmatpush2.msra.mxu0 0.0
  %11982 = vmatprep.subr.mxu0 0.0
  %11983 = vmatpush2.msra.mxu0 0.0
  %11984 = vmatprep.subr.mxu0 0.0
  %11985 = vmatpush2.msra.mxu0 0.0
  %11986 = vmatprep.subr.mxu0 0.0
  %11987 = vmatpush2.msra.mxu0 0.0
  %11988 = vmatprep.subr.mxu0 0.0
  %11989 = vmatpush2.msra.mxu0 0.0
  %11990 = vmatprep.subr.mxu0 0.0
  %11991 = vmatpush2.msra.mxu0 0.0
  %11992 = vmatprep.subr.mxu0 0.0
  %11993 = vmatpush2.msra.mxu0 0.0
  %11994 = vmatprep.subr.mxu0 0.0
  %11995 = vmatpush2.msra.mxu0 0.0
  %11996 = vmatprep.subr.mxu0 0.0
  %11997 = vmatpush2.msra.mxu0 0.0
  %11998 = vmatprep.subr.mxu0 0.0
  %11999 = vmatpush2.msra.mxu0 0.0
  %12000 = vmatprep.subr.mxu0 0.0
  %12001 = vmatpush2.msra.mxu0 0.0
  %12002 = vmatprep.subr.mxu0 0.0
  %12003 = vmatpush2.msra.mxu0 0.0
  %12004 = vmatprep.subr.mxu0 0.0
  %12005 = vmatpush2.msra.mxu0 0.0
  %12006 = vmatprep.subr.mxu0 0.0
  %12007 = vmatpush2.msra.mxu0 0.0
  %12008 = vmatprep.subr.mxu0 0.0
  %12009 = vmatpush2.msra.mxu0 0.0
  %12010 = vmatprep.subr.mxu0 0.0
  %12011 = vmatpush2.msra.mxu0 0.0
  %12012 = vmatprep.mubr.f32.mxu0 0.0
  %12013 = vmatmul.mubr.f32.gmra.mxu0 %v11672
  %v12014 = vpop.f32.mrf.mxu0
  %v12015 = vadd.f32 0.0, %v12014
  %v12016 = vpop.f32.mrf.mxu0
  %12017 = vmatprep.mubr.f32.mxu0 0.0
  %12018 = vmatmul.mubr.f32.gmra.mxu0 %v11673
  %v12019 = vpop.f32.mrf.mxu0
  %v12020 = vadd.f32 0.0, %v12019
  %v12021 = vpop.f32.mrf.mxu0
  %12022 = vmatprep.mubr.f32.mxu0 0.0
  %12023 = vmatmul.mubr.f32.gmra.mxu0 %v11674
  %v12024 = vpop.f32.mrf.mxu0
  %v12025 = vadd.f32 0.0, %v12024
  %v12026 = vpop.f32.mrf.mxu0
  %12027 = vmatprep.mubr.f32.mxu0 0.0
  %12028 = vmatmul.mubr.f32.gmra.mxu0 %v11675
  %v12029 = vpop.f32.mrf.mxu0
  %v12030 = vadd.f32 0.0, %v12029
  %v12031 = vpop.f32.mrf.mxu0
  %12032 = vmatprep.mubr.f32.mxu0 0.0
  %12033 = vmatmul.mubr.f32.gmra.mxu0 %v11676
  %v12034 = vpop.f32.mrf.mxu0
  %v12035 = vadd.f32 0.0, %v12034
  %v12036 = vpop.f32.mrf.mxu0
  %12037 = vmatprep.mubr.f32.mxu0 0.0
  %12038 = vmatmul.mubr.f32.gmra.mxu0 %v11677
  %v12039 = vpop.f32.mrf.mxu0
  %v12040 = vadd.f32 0.0, %v12039
  %v12041 = vpop.f32.mrf.mxu0
  %12042 = vmatprep.mubr.f32.mxu0 0.0
  %12043 = vmatmul.mubr.f32.gmra.mxu0 %v11678
  %v12044 = vpop.f32.mrf.mxu0
  %v12045 = vadd.f32 0.0, %v12044
  %v12046 = vpop.f32.mrf.mxu0
  %12047 = vmatprep.mubr.f32.mxu0 0.0
  %12048 = vmatmul.mubr.f32.gmra.mxu0 %v11679
  %v12049 = vpop.f32.mrf.mxu0
  %v12050 = vadd.f32 0.0, %v12049
  %v12051 = vpop.f32.mrf.mxu0
  %12052 = vdwg.mxu0
  %v12053 = vadd.f32 %v11893, %v12015
  %v12054 = vadd.f32 %v11898, %v12020
  %v12055 = vadd.f32 %v11903, %v12025
  %v12056 = vadd.f32 %v11908, %v12030
  %v12057 = vadd.f32 %v11913, %v12035
  %v12058 = vadd.f32 %v11918, %v12040
  %v12059 = vadd.f32 %v11923, %v12045
  %v12060 = vadd.f32 %v11928, %v12050
  %s12061 = scalar_lea.vmem %s5, 384
  %v12062 = vld [vmem:[%s12061] sm:$0xff]
  %v12063 = vld [vmem:[%s12061 + $0x8] sm:$0xff]
  %v12064 = vld [vmem:[%s12061 + $0x10] sm:$0xff]
  %v12065 = vld [vmem:[%s12061 + $0x18] sm:$0xff]
  %v12066 = vld [vmem:[%s12061 + $0x20] sm:$0xff]
  %v12067 = vld [vmem:[%s12061 + $0x28] sm:$0xff]
  %v12068 = vld [vmem:[%s12061 + $0x30] sm:$0xff]
  %v12069 = vld [vmem:[%s12061 + $0x38] sm:$0xff]
  %v12070 = vld [vmem:[%s12061 + $0x40] sm:$0xff]
  %v12071 = vld [vmem:[%s12061 + $0x48] sm:$0xff]
  %v12072 = vld [vmem:[%s12061 + $0x50] sm:$0xff]
  %v12073 = vld [vmem:[%s12061 + $0x58] sm:$0xff]
  %v12074 = vld [vmem:[%s12061 + $0x60] sm:$0xff]
  %v12075 = vld [vmem:[%s12061 + $0x68] sm:$0xff]
  %v12076 = vld [vmem:[%s12061 + $0x70] sm:$0xff]
  %v12077 = vld [vmem:[%s12061 + $0x78] sm:$0xff]
  %12078 = vmatprep.subr.mxu0 0.0
  %12079 = vmatpush1.msra.mxu0 %v12077
  %12080 = vmatprep.subr.mxu0 0.0
  %12081 = vmatpush1.msra.mxu0 %v12076
  %12082 = vmatprep.subr.mxu0 0.0
  %12083 = vmatpush1.msra.mxu0 %v12075
  %12084 = vmatprep.subr.mxu0 0.0
  %12085 = vmatpush1.msra.mxu0 %v12074
  %12086 = vmatprep.subr.mxu0 0.0
  %12087 = vmatpush1.msra.mxu0 %v12073
  %12088 = vmatprep.subr.mxu0 0.0
  %12089 = vmatpush1.msra.mxu0 %v12072
  %12090 = vmatprep.subr.mxu0 0.0
  %12091 = vmatpush1.msra.mxu0 %v12071
  %12092 = vmatprep.subr.mxu0 0.0
  %12093 = vmatpush1.msra.mxu0 %v12070
  %12094 = vmatprep.subr.mxu0 0.0
  %12095 = vmatpush1.msra.mxu0 %v12069
  %12096 = vmatprep.subr.mxu0 0.0
  %12097 = vmatpush1.msra.mxu0 %v12068
  %12098 = vmatprep.subr.mxu0 0.0
  %12099 = vmatpush1.msra.mxu0 %v12067
  %12100 = vmatprep.subr.mxu0 0.0
  %12101 = vmatpush1.msra.mxu0 %v12066
  %12102 = vmatprep.subr.mxu0 0.0
  %12103 = vmatpush1.msra.mxu0 %v12065
  %12104 = vmatprep.subr.mxu0 0.0
  %12105 = vmatpush1.msra.mxu0 %v12064
  %12106 = vmatprep.subr.mxu0 0.0
  %12107 = vmatpush1.msra.mxu0 %v12063
  %12108 = vmatprep.subr.mxu0 0.0
  %12109 = vmatpush1.msra.mxu0 %v12062
  %12110 = vmatprep.subr.mxu0 0.0
  %12111 = vmatpush2.msra.mxu0 0.0
  %12112 = vmatprep.subr.mxu0 0.0
  %12113 = vmatpush2.msra.mxu0 0.0
  %12114 = vmatprep.subr.mxu0 0.0
  %12115 = vmatpush2.msra.mxu0 0.0
  %12116 = vmatprep.subr.mxu0 0.0
  %12117 = vmatpush2.msra.mxu0 0.0
  %12118 = vmatprep.subr.mxu0 0.0
  %12119 = vmatpush2.msra.mxu0 0.0
  %12120 = vmatprep.subr.mxu0 0.0
  %12121 = vmatpush2.msra.mxu0 0.0
  %12122 = vmatprep.subr.mxu0 0.0
  %12123 = vmatpush2.msra.mxu0 0.0
  %12124 = vmatprep.subr.mxu0 0.0
  %12125 = vmatpush2.msra.mxu0 0.0
  %12126 = vmatprep.subr.mxu0 0.0
  %12127 = vmatpush2.msra.mxu0 0.0
  %12128 = vmatprep.subr.mxu0 0.0
  %12129 = vmatpush2.msra.mxu0 0.0
  %12130 = vmatprep.subr.mxu0 0.0
  %12131 = vmatpush2.msra.mxu0 0.0
  %12132 = vmatprep.subr.mxu0 0.0
  %12133 = vmatpush2.msra.mxu0 0.0
  %12134 = vmatprep.subr.mxu0 0.0
  %12135 = vmatpush2.msra.mxu0 0.0
  %12136 = vmatprep.subr.mxu0 0.0
  %12137 = vmatpush2.msra.mxu0 0.0
  %12138 = vmatprep.subr.mxu0 0.0
  %12139 = vmatpush2.msra.mxu0 0.0
  %12140 = vmatprep.subr.mxu0 0.0
  %12141 = vmatpush2.msra.mxu0 0.0
  %12142 = vmatprep.mubr.f32.mxu0 0.0
  %12143 = vmatmul.mubr.f32.gmra.mxu0 %v11680
  %v12144 = vpop.f32.mrf.mxu0
  %v12145 = vadd.f32 0.0, %v12144
  %v12146 = vpop.f32.mrf.mxu0
  %12147 = vmatprep.mubr.f32.mxu0 0.0
  %12148 = vmatmul.mubr.f32.gmra.mxu0 %v11681
  %v12149 = vpop.f32.mrf.mxu0
  %v12150 = vadd.f32 0.0, %v12149
  %v12151 = vpop.f32.mrf.mxu0
  %12152 = vmatprep.mubr.f32.mxu0 0.0
  %12153 = vmatmul.mubr.f32.gmra.mxu0 %v11682
  %v12154 = vpop.f32.mrf.mxu0
  %v12155 = vadd.f32 0.0, %v12154
  %v12156 = vpop.f32.mrf.mxu0
  %12157 = vmatprep.mubr.f32.mxu0 0.0
  %12158 = vmatmul.mubr.f32.gmra.mxu0 %v11683
  %v12159 = vpop.f32.mrf.mxu0
  %v12160 = vadd.f32 0.0, %v12159
  %v12161 = vpop.f32.mrf.mxu0
  %12162 = vmatprep.mubr.f32.mxu0 0.0
  %12163 = vmatmul.mubr.f32.gmra.mxu0 %v11684
  %v12164 = vpop.f32.mrf.mxu0
  %v12165 = vadd.f32 0.0, %v12164
  %v12166 = vpop.f32.mrf.mxu0
  %12167 = vmatprep.mubr.f32.mxu0 0.0
  %12168 = vmatmul.mubr.f32.gmra.mxu0 %v11685
  %v12169 = vpop.f32.mrf.mxu0
  %v12170 = vadd.f32 0.0, %v12169
  %v12171 = vpop.f32.mrf.mxu0
  %12172 = vmatprep.mubr.f32.mxu0 0.0
  %12173 = vmatmul.mubr.f32.gmra.mxu0 %v11686
  %v12174 = vpop.f32.mrf.mxu0
  %v12175 = vadd.f32 0.0, %v12174
  %v12176 = vpop.f32.mrf.mxu0
  %12177 = vmatprep.mubr.f32.mxu0 0.0
  %12178 = vmatmul.mubr.f32.gmra.mxu0 %v11687
  %v12179 = vpop.f32.mrf.mxu0
  %v12180 = vadd.f32 0.0, %v12179
  %v12181 = vpop.f32.mrf.mxu0
  %12182 = vdwg.mxu0
  %v12183 = vadd.f32 %v12053, %v12145
  %v12184 = vadd.f32 %v12054, %v12150
  %v12185 = vadd.f32 %v12055, %v12155
  %v12186 = vadd.f32 %v12056, %v12160
  %v12187 = vadd.f32 %v12057, %v12165
  %v12188 = vadd.f32 %v12058, %v12170
  %v12189 = vadd.f32 %v12059, %v12175
  %v12190 = vadd.f32 %v12060, %v12180
  %v12191 = vld [vmem:[%s6] sm:$0x1]
  %v12193 = vlaneseq
  %v12194 = vshrl.u32 %v12193, 7
  %v12195 = vsub.s32 0, %v12194
  %v12196 = vrot.slane %v12191, %v12195
  %v12198 = vadd.f32 %v12183, %v12196
  %v12199 = vadd.f32 %v12184, %v12196
  %v12200 = vadd.f32 %v12185, %v12196
  %v12201 = vadd.f32 %v12186, %v12196
  %v12202 = vadd.f32 %v12187, %v12196
  %v12203 = vadd.f32 %v12188, %v12196
  %v12204 = vadd.f32 %v12189, %v12196
  %v12205 = vadd.f32 %v12190, %v12196
  %v12206 = vmax.f32 %v12198, 0.0
  %v12207 = vmax.f32 %v12199, 0.0
  %v12208 = vmax.f32 %v12200, 0.0
  %v12209 = vmax.f32 %v12201, 0.0
  %v12210 = vmax.f32 %v12202, 0.0
  %v12211 = vmax.f32 %v12203, 0.0
  %v12212 = vmax.f32 %v12204, 0.0
  %v12213 = vmax.f32 %v12205, 0.0
  %v12214 = vld [vmem:[%s7] sm:$0xff]
  %v12215 = vld [vmem:[%s7 + $0x8] sm:$0xff]
  %v12216 = vld [vmem:[%s7 + $0x10] sm:$0xff]
  %v12217 = vld [vmem:[%s7 + $0x18] sm:$0xff]
  %v12218 = vld [vmem:[%s7 + $0x20] sm:$0xff]
  %v12219 = vld [vmem:[%s7 + $0x28] sm:$0xff]
  %v12220 = vld [vmem:[%s7 + $0x30] sm:$0x3]
  %v12221 = vld [vmem:[%s8] sm:$0x1]
  %v12223 = vlaneseq
  %v12224 = vshrl.u32 %v12223, 7
  %v12225 = vsub.s32 0, %v12224
  %v12226 = vrot.slane %v12221, %v12225
  %vm12228 = vcmask 408576
  %v12230 = vsel %vm12228, %v12206, 0
  %v12233 = vsel %vm12228, %v12207, 0
  %v12236 = vsel %vm12228, %v12208, 0
  %v12239 = vsel %vm12228, %v12209, 0
  %v12242 = vsel %vm12228, %v12210, 0
  %v12245 = vsel %vm12228, %v12211, 0
  %v12248 = vsel %vm12228, %v12212, 0
  %v12251 = vsel %vm12228, %v12213, 0
  %vm12253 = vcmask 1041408
  %v12255 = vsel %vm12253, %v12220, 0
  %12257 = vmatprep.subr.mxu0 0.0
  %12258 = vmatpush1.msra.mxu0 0.0
  %12259 = vmatprep.subr.mxu0 0.0
  %12260 = vmatpush1.msra.mxu0 0.0
  %12261 = vmatprep.subr.mxu0 0.0
  %12262 = vmatpush1.msra.mxu0 0.0
  %12263 = vmatprep.subr.mxu0 0.0
  %12264 = vmatpush1.msra.mxu0 0.0
  %12265 = vmatprep.subr.mxu0 0.0
  %12266 = vmatpush1.msra.mxu0 0.0
  %12267 = vmatprep.subr.mxu0 0.0
  %12268 = vmatpush1.msra.mxu0 0.0
  %12269 = vmatprep.subr.mxu0 0.0
  %12270 = vmatpush1.msra.mxu0 0.0
  %12271 = vmatprep.subr.mxu0 0.0
  %12272 = vmatpush1.msra.mxu0 0.0
  %12273 = vmatprep.subr.mxu0 0.0
  %12274 = vmatpush1.msra.mxu0 0.0
  %12275 = vmatprep.subr.mxu0 0.0
  %12276 = vmatpush1.msra.mxu0 %v12255
  %12277 = vmatprep.subr.mxu0 0.0
  %12278 = vmatpush1.msra.mxu0 %v12219
  %12279 = vmatprep.subr.mxu0 0.0
  %12280 = vmatpush1.msra.mxu0 %v12218
  %12281 = vmatprep.subr.mxu0 0.0
  %12282 = vmatpush1.msra.mxu0 %v12217
  %12283 = vmatprep.subr.mxu0 0.0
  %12284 = vmatpush1.msra.mxu0 %v12216
  %12285 = vmatprep.subr.mxu0 0.0
  %12286 = vmatpush1.msra.mxu0 %v12215
  %12287 = vmatprep.subr.mxu0 0.0
  %12288 = vmatpush1.msra.mxu0 %v12214
  %12289 = vmatprep.subr.mxu0 0.0
  %12290 = vmatpush2.msra.mxu0 0.0
  %12291 = vmatprep.subr.mxu0 0.0
  %12292 = vmatpush2.msra.mxu0 0.0
  %12293 = vmatprep.subr.mxu0 0.0
  %12294 = vmatpush2.msra.mxu0 0.0
  %12295 = vmatprep.subr.mxu0 0.0
  %12296 = vmatpush2.msra.mxu0 0.0
  %12297 = vmatprep.subr.mxu0 0.0
  %12298 = vmatpush2.msra.mxu0 0.0
  %12299 = vmatprep.subr.mxu0 0.0
  %12300 = vmatpush2.msra.mxu0 0.0
  %12301 = vmatprep.subr.mxu0 0.0
  %12302 = vmatpush2.msra.mxu0 0.0
  %12303 = vmatprep.subr.mxu0 0.0
  %12304 = vmatpush2.msra.mxu0 0.0
  %12305 = vmatprep.subr.mxu0 0.0
  %12306 = vmatpush2.msra.mxu0 0.0
  %12307 = vmatprep.subr.mxu0 0.0
  %12308 = vmatpush2.msra.mxu0 0.0
  %12309 = vmatprep.subr.mxu0 0.0
  %12310 = vmatpush2.msra.mxu0 0.0
  %12311 = vmatprep.subr.mxu0 0.0
  %12312 = vmatpush2.msra.mxu0 0.0
  %12313 = vmatprep.subr.mxu0 0.0
  %12314 = vmatpush2.msra.mxu0 0.0
  %12315 = vmatprep.subr.mxu0 0.0
  %12316 = vmatpush2.msra.mxu0 0.0
  %12317 = vmatprep.subr.mxu0 0.0
  %12318 = vmatpush2.msra.mxu0 0.0
  %12319 = vmatprep.subr.mxu0 0.0
  %12320 = vmatpush2.msra.mxu0 0.0
  %12321 = vmatprep.mubr.f32.mxu0 0.0
  %12322 = vmatmul.mubr.f32.gmra.mxu0 %v12230
  %v12323 = vpop.f32.mrf.mxu0
  %v12324 = vadd.f32 %v12226, %v12323
  %v12325 = vpop.f32.mrf.mxu0
  %12326 = vmatprep.mubr.f32.mxu0 0.0
  %12327 = vmatmul.mubr.f32.gmra.mxu0 %v12233
  %v12328 = vpop.f32.mrf.mxu0
  %v12329 = vadd.f32 %v12226, %v12328
  %v12330 = vpop.f32.mrf.mxu0
  %12331 = vmatprep.mubr.f32.mxu0 0.0
  %12332 = vmatmul.mubr.f32.gmra.mxu0 %v12236
  %v12333 = vpop.f32.mrf.mxu0
  %v12334 = vadd.f32 %v12226, %v12333
  %v12335 = vpop.f32.mrf.mxu0
  %12336 = vmatprep.mubr.f32.mxu0 0.0
  %12337 = vmatmul.mubr.f32.gmra.mxu0 %v12239
  %v12338 = vpop.f32.mrf.mxu0
  %v12339 = vadd.f32 %v12226, %v12338
  %v12340 = vpop.f32.mrf.mxu0
  %12341 = vmatprep.mubr.f32.mxu0 0.0
  %12342 = vmatmul.mubr.f32.gmra.mxu0 %v12242
  %v12343 = vpop.f32.mrf.mxu0
  %v12344 = vadd.f32 %v12226, %v12343
  %v12345 = vpop.f32.mrf.mxu0
  %12346 = vmatprep.mubr.f32.mxu0 0.0
  %12347 = vmatmul.mubr.f32.gmra.mxu0 %v12245
  %v12348 = vpop.f32.mrf.mxu0
  %v12349 = vadd.f32 %v12226, %v12348
  %v12350 = vpop.f32.mrf.mxu0
  %12351 = vmatprep.mubr.f32.mxu0 0.0
  %12352 = vmatmul.mubr.f32.gmra.mxu0 %v12248
  %v12353 = vpop.f32.mrf.mxu0
  %v12354 = vadd.f32 %v12226, %v12353
  %v12355 = vpop.f32.mrf.mxu0
  %12356 = vmatprep.mubr.f32.mxu0 0.0
  %12357 = vmatmul.mubr.f32.gmra.mxu0 %v12251
  %v12358 = vpop.f32.mrf.mxu0
  %v12359 = vadd.f32 %v12226, %v12358
  %v12360 = vpop.f32.mrf.mxu0
  %12361 = vdwg.mxu0
  %vm12362 = vcmask 80896
  %v12363 = vsel %vm12362, %v12324, -inf
  %12364 = vmax.xlane.f32.xlu0 %v12363
  %v12365 = vpop.xlane.xlu0 %12364
  %v12366 = vsel %vm12362, %v12329, -inf
  %12367 = vmax.xlane.f32.xlu0 %v12366
  %v12368 = vpop.xlane.xlu0 %12367
  %v12369 = vsel %vm12362, %v12334, -inf
  %12370 = vmax.xlane.f32.xlu0 %v12369
  %v12371 = vpop.xlane.xlu0 %12370
  %v12372 = vsel %vm12362, %v12339, -inf
  %12373 = vmax.xlane.f32.xlu0 %v12372
  %v12374 = vpop.xlane.xlu0 %12373
  %v12375 = vsel %vm12362, %v12344, -inf
  %12376 = vmax.xlane.f32.xlu0 %v12375
  %v12377 = vpop.xlane.xlu0 %12376
  %v12378 = vsel %vm12362, %v12349, -inf
  %12379 = vmax.xlane.f32.xlu0 %v12378
  %v12380 = vpop.xlane.xlu0 %12379
  %v12381 = vsel %vm12362, %v12354, -inf
  %12382 = vmax.xlane.f32.xlu0 %v12381
  %v12383 = vpop.xlane.xlu0 %12382
  %v12384 = vsel %vm12362, %v12359, -inf
  %12385 = vmax.xlane.f32.xlu0 %v12384
  %v12386 = vpop.xlane.xlu0 %12385
  %v12387 = vsub.f32 %v12324, %v12365
  %v12388 = vsub.f32 %v12329, %v12368
  %v12389 = vsub.f32 %v12334, %v12371
  %v12390 = vsub.f32 %v12339, %v12374
  %v12391 = vsub.f32 %v12344, %v12377
  %v12392 = vsub.f32 %v12349, %v12380
  %v12393 = vsub.f32 %v12354, %v12383
  %v12394 = vsub.f32 %v12359, %v12386
  %v12395 = vmul.f32 %v12387, 1.442695
  %v12396 = vpow.pop %v12395
  %v12397 = vmul.f32 %v12388, 1.442695
  %v12398 = vpow.pop %v12397
  %v12399 = vmul.f32 %v12389, 1.442695
  %v12400 = vpow.pop %v12399
  %v12401 = vmul.f32 %v12390, 1.442695
  %v12402 = vpow.pop %v12401
  %v12403 = vmul.f32 %v12391, 1.442695
  %v12404 = vpow.pop %v12403
  %v12405 = vmul.f32 %v12392, 1.442695
  %v12406 = vpow.pop %v12405
  %v12407 = vmul.f32 %v12393, 1.442695
  %v12408 = vpow.pop %v12407
  %v12409 = vmul.f32 %v12394, 1.442695
  %v12410 = vpow.pop %v12409
  %v12411 = vsel %vm12362, %v12396, 0.0
  %12412 = vadd.xlane.f32.xlu0 %v12411
  %v12413 = vpop.xlane.xlu0 %12412
  %v12414 = vsel %vm12362, %v12398, 0.0
  %12415 = vadd.xlane.f32.xlu0 %v12414
  %v12416 = vpop.xlane.xlu0 %12415
  %v12417 = vsel %vm12362, %v12400, 0.0
  %12418 = vadd.xlane.f32.xlu0 %v12417
  %v12419 = vpop.xlane.xlu0 %12418
  %v12420 = vsel %vm12362, %v12402, 0.0
  %12421 = vadd.xlane.f32.xlu0 %v12420
  %v12422 = vpop.xlane.xlu0 %12421
  %v12423 = vsel %vm12362, %v12404, 0.0
  %12424 = vadd.xlane.f32.xlu0 %v12423
  %v12425 = vpop.xlane.xlu0 %12424
  %v12426 = vsel %vm12362, %v12406, 0.0
  %12427 = vadd.xlane.f32.xlu0 %v12426
  %v12428 = vpop.xlane.xlu0 %12427
  %v12429 = vsel %vm12362, %v12408, 0.0
  %12430 = vadd.xlane.f32.xlu0 %v12429
  %v12431 = vpop.xlane.xlu0 %12430
  %v12432 = vsel %vm12362, %v12410, 0.0
  %12433 = vadd.xlane.f32.xlu0 %v12432
  %v12434 = vpop.xlane.xlu0 %12433
  %v12435 = vlog2.pop %v12413
  %v12436 = vmul.f32 %v12435, 0.6931472
  %v12437 = vlog2.pop %v12416
  %v12438 = vmul.f32 %v12437, 0.6931472
  %v12439 = vlog2.pop %v12419
  %v12440 = vmul.f32 %v12439, 0.6931472
  %v12441 = vlog2.pop %v12422
  %v12442 = vmul.f32 %v12441, 0.6931472
  %v12443 = vlog2.pop %v12425
  %v12444 = vmul.f32 %v12443, 0.6931472
  %v12445 = vlog2.pop %v12428
  %v12446 = vmul.f32 %v12445, 0.6931472
  %v12447 = vlog2.pop %v12431
  %v12448 = vmul.f32 %v12447, 0.6931472
  %v12449 = vlog2.pop %v12434
  %v12450 = vmul.f32 %v12449, 0.6931472
  %v12451 = vsub.f32 %v12387, %v12436
  %v12452 = vsub.f32 %v12388, %v12438
  %v12453 = vsub.f32 %v12389, %v12440
  %v12454 = vsub.f32 %v12390, %v12442
  %v12455 = vsub.f32 %v12391, %v12444
  %v12456 = vsub.f32 %v12392, %v12446
  %v12457 = vsub.f32 %v12393, %v12448
  %v12458 = vsub.f32 %v12394, %v12450
  %12459 = vst.msk [vmem:[%s9] sm:$0xff] %vm12362, %v12451
  %12460 = vst.msk [vmem:[%s9 + $0x8] sm:$0xff] %vm12362, %v12452
  %12461 = vst.msk [vmem:[%s9 + $0x10] sm:$0xff] %vm12362, %v12453
  %12462 = vst.msk [vmem:[%s9 + $0x18] sm:$0xff] %vm12362, %v12454
  %12463 = vst.msk [vmem:[%s9 + $0x20] sm:$0xff] %vm12362, %v12455
  %12464 = vst.msk [vmem:[%s9 + $0x28] sm:$0xff] %vm12362, %v12456
  %12465 = vst.msk [vmem:[%s9 + $0x30] sm:$0xff] %vm12362, %v12457
  %12466 = vst.msk [vmem:[%s9 + $0x38] sm:$0xff] %vm12362, %v12458
  // Predicated region
  $region38: #{network_forward.1} parent=0 // pred_check
    _
  $region39: #{network_forward.1} parent=0 // pred_check_branch
    %12468 = sbr.rel (0) target = $region41
  $region40: #{network_forward.1} parent=0 // pred_region
    _
  $region41: #{network_forward.1} parent=0 // pred_fallthru
    _
  // Predicated region
  $region42: #{network_forward.1} parent=0 // pred_check
    _
  $region43: #{network_forward.1} parent=0 // pred_check_branch
    %12470 = sbr.rel (0) target = $region45
  $region44: #{network_forward.1} parent=0 // pred_region
    _
  $region45: #{network_forward.1} parent=0 // pred_fallthru
    _

</llo_original>
